<compile_context>
chip_gen: v7x
topology: tpu7x:2x2x1
jax: 0.10.0
libtpu: 0.0.40
codegen_flags: <defaults>
</compile_context>

<pallas_src>
import functools

import jax
import jax.numpy as jnp
from jax.experimental import pallas as pl
from jax.experimental.pallas import tpu as pltpu

BN_EPS = 1e-5
VMEM_LIMIT = 48 << 20   # valid on v5e/v6e (128 MiB) and v7x (64 MiB) physical VMEM


def _round_up(x, m):
    return -(-x // m) * m


# ---------------------------------------------------------------------------
# Pallas kernels: bf16 matmul (MXU), f32 accumulate, optional fused epilogue
# ---------------------------------------------------------------------------
def _mm_kernel(a_ref, w_ref, o_ref):
    o_ref[...] = jnp.dot(a_ref[...], w_ref[...], preferred_element_type=jnp.float32)


def _mm_epilogue_kernel(a_ref, w_ref, shift_ref, o_ref, *, activation):
    y = jnp.dot(a_ref[...], w_ref[...], preferred_element_type=jnp.float32)
    y = y + shift_ref[...]
    if activation == "relu":
        y = jnp.maximum(y, 0.0)
    elif activation == "tanh":
        y = jnp.tanh(y)
    o_ref[...] = y


def pallas_matmul(a, w, shift=None, activation=None):
    """f32 out = [act]((a @ w) [+ shift]); a:(M,K), w:(K,N), shift:(N,)."""
    M, K = a.shape
    K2, N = w.shape
    assert K == K2

    # ---- M tiling: full block (padded to a sublane multiple) for small M,
    #      256/512-row tiles for big M (amortizes per-grid-step overhead).
    if M <= 256:
        Mp = _round_up(M, 8)
        tm, gm = Mp, 1
    else:
        tm = 256 if M <= 2048 else 512
        gm = -(-M // tm)
        Mp = gm * tm
    if Mp != M:
        a = jnp.pad(a, ((0, Mp - M), (0, 0)))

    # ---- N tiling: split into two lane-aligned halves when possible so both
    #      v7x TensorCores get work even when gm == 1.
    if N >= 1024 and N % 256 == 0:
        tn, gn = N // 2, 2
    else:
        tn, gn = N, 1

    a = a.astype(jnp.bfloat16)
    w = w.astype(jnp.bfloat16)

    in_specs = [
        pl.BlockSpec((tm, K), lambda i, j: (i, 0)),
        pl.BlockSpec((K, tn), lambda i, j: (0, j)),
    ]
    operands = [a, w]
    if shift is not None:
        in_specs.append(pl.BlockSpec((1, tn), lambda i, j: (0, j)))
        operands.append(shift.reshape(1, N).astype(jnp.float32))
        kernel = functools.partial(_mm_epilogue_kernel, activation=activation)
    else:
        kernel = _mm_kernel

    out = pl.pallas_call(
        kernel,
        out_shape=jax.ShapeDtypeStruct((Mp, N), jnp.float32),
        grid_spec=pltpu.PrefetchScalarGridSpec(
            num_scalar_prefetch=0,
            grid=(gm, gn),
            in_specs=in_specs,
            out_specs=pl.BlockSpec((tm, tn), lambda i, j: (i, j)),
        ),
        compiler_params=pltpu.CompilerParams(
            dimension_semantics=("parallel", "parallel"),
            vmem_limit_bytes=VMEM_LIMIT,
        ),
    )(*operands)
    return out if Mp == M else out[:M]


# ---------------------------------------------------------------------------
# col2im (overlap-add) epilogue for ConvTranspose2d(k=4, s=2, p=1), in NHWC.
# Output row oy = 2*iy - 1 + ky  ->  even rows get (ky=1, iy) + (ky=3, iy-1),
#                                    odd  rows get (ky=2, iy) + (ky=0, iy+1).
# Same decomposition along columns.  Fuses shift (+bias/BN) and activation.
# ---------------------------------------------------------------------------
def _col2im_s2k4p1(y, B, H, W, C, shift, activation):
    """y: (B*H*W, 16*C) f32 partials laid out (ky, kx, c).  Returns (B, 2H, 2W, C)."""
    y = y.reshape(B, H, W, 4, 4, C)
    r_even = y[:, :, :, 1] + jnp.pad(y[:, :-1, :, 3], ((0, 0), (1, 0), (0, 0), (0, 0), (0, 0)))
    r_odd = y[:, :, :, 2] + jnp.pad(y[:, 1:, :, 0], ((0, 0), (0, 1), (0, 0), (0, 0), (0, 0)))
    rows = jnp.stack([r_even, r_odd], axis=2).reshape(B, 2 * H, W, 4, C)
    c_even = rows[:, :, :, 1] + jnp.pad(rows[:, :, :-1, 3], ((0, 0), (0, 0), (1, 0), (0, 0)))
    c_odd = rows[:, :, :, 2] + jnp.pad(rows[:, :, 1:, 0], ((0, 0), (0, 0), (0, 1), (0, 0)))
    out = jnp.stack([c_even, c_odd], axis=3).reshape(B, 2 * H, 2 * W, C)
    out = out + shift[None, None, None, :]
    if activation == "relu":
        out = jnp.maximum(out, 0.0)
    elif activation == "tanh":
        out = jnp.tanh(out)
    return out


# ---------------------------------------------------------------------------
# Parameters: PyTorch-layout init + one-time precompute of matmul-ready weights
# ---------------------------------------------------------------------------
def init_params(key, nz=128, nc=3):
    def normal(k, shape, std):
        return (std * jax.random.normal(k, shape)).astype(jnp.float32)

    def bn_init(k, n):
        k1, k2, k3, k4 = jax.random.split(k, 4)
        return {
            "g": 1.0 + normal(k1, (n,), 0.02),
            "b": normal(k2, (n,), 0.01),
            "m": normal(k3, (n,), 0.1),
            "v": 1.0 + jnp.abs(normal(k4, (n,), 0.1)),
        }

    ks = jax.random.split(key, 12)
    return {
        "fc_w": normal(ks[0], (448 * 2 * 2, nz), 0.02),   # nn.Linear weight (out, in)
        "fc_b": normal(ks[1], (448 * 2 * 2,), 0.01),
        "bn_fc": bn_init(ks[2], 448 * 2 * 2),
        "w1": normal(ks[3], (448, 256, 4, 4), 0.02),      # ConvTranspose2d (Cin,Cout,kH,kW)
        "b1": normal(ks[4], (256,), 0.01),
        "bn1": bn_init(ks[5], 256),
        "w2": normal(ks[6], (256, 128, 4, 4), 0.02),
        "b2": normal(ks[7], (128,), 0.01),
        "bn2": bn_init(ks[8], 128),
        "w3": normal(ks[9], (128, 64, 4, 4), 0.02),
        "b3": jnp.zeros((64,), jnp.float32),
        "w4": normal(ks[10], (64, nc, 4, 4), 0.02),
        "b4": normal(ks[11], (nc,), 0.01),
    }


def prepare_params(params, nz=128, nc=3):
    """Precompute bf16 matmul-ready weights (BN scale folded) and f32 shifts."""
    def bn_scale(bn):
        return bn["g"] / jnp.sqrt(bn["v"] + BN_EPS)

    # fc: (out,in) -> (in,out), fold BN1d scale, and permute output features from
    # PyTorch's flat (c, h, w) order to (h, w, c) so the fc output is already NHWC.
    s = bn_scale(params["bn_fc"])
    fc_w = params["fc_w"].T * s[None, :]                                   # (nz, 1792)
    fc_shift = (params["fc_b"] - params["bn_fc"]["m"]) * s + params["bn_fc"]["b"]
    perm = (jnp.arange(448)[None, :] * 4 + jnp.arange(4)[:, None]).reshape(-1)
    fc_w = fc_w[:, perm]
    fc_shift = fc_shift[perm]

    def conv_mat(w, scale=None, c_pad=None):
        cin, cout, k, _ = w.shape
        wm = jnp.transpose(w, (0, 2, 3, 1))                                # (Cin, ky, kx, Cout)
        if scale is not None:
            wm = wm * scale[None, None, None, :]
        if c_pad is not None and c_pad > cout:
            wm = jnp.pad(wm, ((0, 0), (0, 0), (0, 0), (0, c_pad - cout)))
            cout = c_pad
        return wm.reshape(cin, k * k * cout).astype(jnp.bfloat16)

    s1, s2 = bn_scale(params["bn1"]), bn_scale(params["bn2"])
    c_pad = _round_up(nc, 8)                                               # lane-dense final N = 16*c_pad
    return {
        "fc_w": fc_w.astype(jnp.bfloat16),
        "fc_shift": fc_shift.astype(jnp.float32),
        "w1": conv_mat(params["w1"], s1),
        "shift1": ((params["b1"] - params["bn1"]["m"]) * s1 + params["bn1"]["b"]).astype(jnp.float32),
        "w2": conv_mat(params["w2"], s2),
        "shift2": ((params["b2"] - params["bn2"]["m"]) * s2 + params["bn2"]["b"]).astype(jnp.float32),
        "w3": conv_mat(params["w3"]),
        "shift3": params["b3"].astype(jnp.float32),
        "w4": conv_mat(params["w4"], c_pad=c_pad),
        "shift4": jnp.pad(params["b4"], (0, c_pad - nc)).astype(jnp.float32),
    }


# ---------------------------------------------------------------------------
# Forward pass (NHWC internally, single NCHW transpose at the end)
# ---------------------------------------------------------------------------
def generator_b_forward(p, z, *, nc=3):
    B = z.shape[0]
    # fc: Linear + BatchNorm1d + ReLU, fully fused inside the matmul kernel.
    x = pallas_matmul(z, p["fc_w"], shift=p["fc_shift"], activation="relu")    # (B, 1792)
    x = x.reshape(B, 2, 2, 448)                                                # NHWC (pre-permuted)
    # deconv stack: dual-form dense matmul (Pallas) + overlap-add epilogue (fused XLA).
    y = pallas_matmul(x.reshape(B * 4, 448), p["w1"])                          # (B*4, 4096)
    x = _col2im_s2k4p1(y, B, 2, 2, 256, p["shift1"], "relu")                   # (B, 4, 4, 256)
    y = pallas_matmul(x.reshape(B * 16, 256), p["w2"])                         # (B*16, 2048)
    x = _col2im_s2k4p1(y, B, 4, 4, 128, p["shift2"], "relu")                   # (B, 8, 8, 128)
    y = pallas_matmul(x.reshape(B * 64, 128), p["w3"])                         # (B*64, 1024)
    x = _col2im_s2k4p1(y, B, 8, 8, 64, p["shift3"], "relu")                    # (B, 16, 16, 64)
    c_pad = p["shift4"].shape[0]
    y = pallas_matmul(x.reshape(B * 256, 64), p["w4"])                         # (B*256, 16*c_pad)
    x = _col2im_s2k4p1(y, B, 16, 16, c_pad, p["shift4"], "tanh")               # (B, 32, 32, c_pad)
    return x[..., :nc].transpose(0, 3, 1, 2)                                   # NCHW, once


# ---------------------------------------------------------------------------
# Pure-JAX reference (silent correctness check)
# ---------------------------------------------------------------------------
def _reference_forward(params, z):
    x = z @ params["fc_w"].T + params["fc_b"]
    bnp = params["bn_fc"]
    x = (x - bnp["m"]) / jnp.sqrt(bnp["v"] + BN_EPS) * bnp["g"] + bnp["b"]
    x = jnp.maximum(x, 0.0)
    x = x.reshape(z.shape[0], 448, 2, 2)

    def convT(x, w, b):
        w_reg = jnp.flip(w, (2, 3)).transpose(1, 0, 2, 3)        # (Cout, Cin, k, k)
        y = jax.lax.conv_general_dilated(
            x, w_reg, window_strides=(1, 1), padding=((2, 2), (2, 2)),
            lhs_dilation=(2, 2), dimension_numbers=("NCHW", "OIHW", "NCHW"),
            precision=jax.lax.Precision.HIGHEST)
        return y + b[None, :, None, None]

    def bn2d(x, bnp):
        rs = lambda a: a[None, :, None, None]
        return (x - rs(bnp["m"])) / jnp.sqrt(rs(bnp["v"]) + BN_EPS) * rs(bnp["g"]) + rs(bnp["b"])

    x = jnp.maximum(bn2d(convT(x, params["w1"], params["b1"]), params["bn1"]), 0.0)
    x = jnp.maximum(bn2d(convT(x, params["w2"], params["b2"]), params["bn2"]), 0.0)
    x = jnp.maximum(convT(x, params["w3"], params["b3"]), 0.0)
    x = jnp.tanh(convT(x, params["w4"], params["b4"]))
    return x


if __name__ == "__main__":
    key = jax.random.PRNGKey(0)
    pkey, zkey = jax.random.split(key)
    nz, nc, B = 128, 3, 2
    params = init_params(pkey, nz=nz, nc=nc)
    prep = prepare_params(params, nz=nz, nc=nc)
    z = jax.random.normal(zkey, (B, nz), jnp.float32)

    fwd = jax.jit(functools.partial(generator_b_forward, nc=nc))
    out = jax.block_until_ready(fwd(prep, z))
    assert out.shape == (B, nc, 32, 32), out.shape
    assert out.dtype == jnp.float32

    ref = _reference_forward(params, z)
    max_err = float(jnp.max(jnp.abs(out - ref)))
    assert bool(jnp.allclose(out, ref, atol=1e-2, rtol=1e-2)), max_err

    print("KERNEL_OK")
</pallas_src>

<mosaic_0001>
module attributes {stable_mosaic.version = 11 : i64} {
  func.func @_mm_epilogue_kernel(%arg0: i32, %arg1: i32, %arg2: memref<8x128xbf16, #tpu.memory_space<vmem>>, %arg3: memref<128x896xbf16, #tpu.memory_space<vmem>>, %arg4: memref<1x896xf32, #tpu.memory_space<vmem>>, %arg5: memref<8x896xf32, #tpu.memory_space<vmem>>) attributes {dimension_semantics = [#tpu.dimension_semantics<parallel>, #tpu.dimension_semantics<parallel>], iteration_bounds = array<i64: 1, 2>, scalar_prefetch = 0 : i64, scratch_operands = 0 : i64, tpu.core_type = #tpu.core_type<tc>, window_params = [{transform_indices = @transform_0, window_bounds = array<i64: 8, 128>}, {transform_indices = @transform_1, window_bounds = array<i64: 128, 896>}, {transform_indices = @transform_2, window_bounds = array<i64: 1, 896>}, {transform_indices = @transform_3, window_bounds = array<i64: 8, 896>}]} {
    %c0 = arith.constant 0 : index
    %c0_0 = arith.constant 0 : index
    %0 = vector.load %arg2[%c0, %c0_0] : memref<8x128xbf16, #tpu.memory_space<vmem>>, vector<8x128xbf16>
    %c0_1 = arith.constant 0 : index
    %c0_2 = arith.constant 0 : index
    %1 = vector.load %arg3[%c0_1, %c0_2] : memref<128x896xbf16, #tpu.memory_space<vmem>>, vector<128x896xbf16>
    %cst = arith.constant dense<0.000000e+00> : vector<8x896xf32>
    %2 = tpu.matmul %0, %1, %cst {dimension_numbers = #tpu.dot_dimension_numbers<[1], [0], [0], [1], [0, 0, 1, 1], [], []>} : vector<8x128xbf16>, vector<128x896xbf16>, vector<8x896xf32> -> vector<8x896xf32>
    %c0_3 = arith.constant 0 : index
    %c0_4 = arith.constant 0 : index
    %3 = vector.load %arg4[%c0_3, %c0_4] : memref<1x896xf32, #tpu.memory_space<vmem>>, vector<1x896xf32>
    %4 = vector.broadcast %3 : vector<1x896xf32> to vector<8x896xf32>
    %5 = arith.addf %2, %4 : vector<8x896xf32>
    %cst_5 = arith.constant 0.000000e+00 : f32
    %6 = vector.broadcast %cst_5 : f32 to vector<8x896xf32>
    %7 = arith.maximumf %5, %6 : vector<8x896xf32>
    %c0_6 = arith.constant 0 : index
    %c0_7 = arith.constant 0 : index
    %8 = vector.load %arg5[%c0_6, %c0_7] : memref<8x896xf32, #tpu.memory_space<vmem>>, vector<8x896xf32>
    tpu.vector_store %arg5[%c0_6, %c0_7], %7 {strides = array<i32>} : memref<8x896xf32, #tpu.memory_space<vmem>>, vector<8x896xf32>,
    return
  }
  func.func @transform_0(%arg0: i32, %arg1: i32) -> (i32, i32) {
    %c0_i32 = arith.constant 0 : i32
    %c0_i32_0 = arith.constant 0 : i32
    return %arg0, %c0_i32 : i32, i32
  }
  func.func @transform_1(%arg0: i32, %arg1: i32) -> (i32, i32) {
    %c0_i32 = arith.constant 0 : i32
    %c0_i32_0 = arith.constant 0 : i32
    return %c0_i32, %arg1 : i32, i32
  }
  func.func @transform_2(%arg0: i32, %arg1: i32) -> (i32, i32) {
    %c0_i32 = arith.constant 0 : i32
    %c0_i32_0 = arith.constant 0 : i32
    return %c0_i32, %arg1 : i32, i32
  }
  func.func @transform_3(%arg0: i32, %arg1: i32) -> (i32, i32) {
    %c0_i32 = arith.constant 0 : i32
    return %arg0, %arg1 : i32, i32
  }
}

module attributes {stable_mosaic.version = 11 : i64} {
  func.func @_mm_kernel(%arg0: i32, %arg1: i32, %arg2: memref<8x448xbf16, #tpu.memory_space<vmem>>, %arg3: memref<448x2048xbf16, #tpu.memory_space<vmem>>, %arg4: memref<8x2048xf32, #tpu.memory_space<vmem>>) attributes {dimension_semantics = [#tpu.dimension_semantics<parallel>, #tpu.dimension_semantics<parallel>], iteration_bounds = array<i64: 1, 2>, scalar_prefetch = 0 : i64, scratch_operands = 0 : i64, tpu.core_type = #tpu.core_type<tc>, window_params = [{transform_indices = @transform_0, window_bounds = array<i64: 8, 448>}, {transform_indices = @transform_1, window_bounds = array<i64: 448, 2048>}, {transform_indices = @transform_2, window_bounds = array<i64: 8, 2048>}]} {
    %c0 = arith.constant 0 : index
    %c0_0 = arith.constant 0 : index
    %0 = vector.load %arg2[%c0, %c0_0] : memref<8x448xbf16, #tpu.memory_space<vmem>>, vector<8x448xbf16>
    %c0_1 = arith.constant 0 : index
    %c0_2 = arith.constant 0 : index
    %1 = vector.load %arg3[%c0_1, %c0_2] : memref<448x2048xbf16, #tpu.memory_space<vmem>>, vector<448x2048xbf16>
    %cst = arith.constant dense<0.000000e+00> : vector<8x2048xf32>
    %2 = tpu.matmul %0, %1, %cst {dimension_numbers = #tpu.dot_dimension_numbers<[1], [0], [0], [1], [0, 0, 1, 1], [], []>} : vector<8x448xbf16>, vector<448x2048xbf16>, vector<8x2048xf32> -> vector<8x2048xf32>
    %c0_3 = arith.constant 0 : index
    %c0_4 = arith.constant 0 : index
    %3 = vector.load %arg4[%c0_3, %c0_4] : memref<8x2048xf32, #tpu.memory_space<vmem>>, vector<8x2048xf32>
    tpu.vector_store %arg4[%c0_3, %c0_4], %2 {strides = array<i32>} : memref<8x2048xf32, #tpu.memory_space<vmem>>, vector<8x2048xf32>,
    return
  }
  func.func @transform_0(%arg0: i32, %arg1: i32) -> (i32, i32) {
    %c0_i32 = arith.constant 0 : i32
    %c0_i32_0 = arith.constant 0 : i32
    return %arg0, %c0_i32 : i32, i32
  }
  func.func @transform_1(%arg0: i32, %arg1: i32) -> (i32, i32) {
    %c0_i32 = arith.constant 0 : i32
    %c0_i32_0 = arith.constant 0 : i32
    return %c0_i32, %arg1 : i32, i32
  }
  func.func @transform_2(%arg0: i32, %arg1: i32) -> (i32, i32) {
    %c0_i32 = arith.constant 0 : i32
    return %arg0, %arg1 : i32, i32
  }
}

module attributes {stable_mosaic.version = 11 : i64} {
  func.func @_mm_kernel(%arg0: i32, %arg1: i32, %arg2: memref<32x256xbf16, #tpu.memory_space<vmem>>, %arg3: memref<256x1024xbf16, #tpu.memory_space<vmem>>, %arg4: memref<32x1024xf32, #tpu.memory_space<vmem>>) attributes {dimension_semantics = [#tpu.dimension_semantics<parallel>, #tpu.dimension_semantics<parallel>], iteration_bounds = array<i64: 1, 2>, scalar_prefetch = 0 : i64, scratch_operands = 0 : i64, tpu.core_type = #tpu.core_type<tc>, window_params = [{transform_indices = @transform_0, window_bounds = array<i64: 32, 256>}, {transform_indices = @transform_1, window_bounds = array<i64: 256, 1024>}, {transform_indices = @transform_2, window_bounds = array<i64: 32, 1024>}]} {
    %c0 = arith.constant 0 : index
    %c0_0 = arith.constant 0 : index
    %0 = vector.load %arg2[%c0, %c0_0] : memref<32x256xbf16, #tpu.memory_space<vmem>>, vector<32x256xbf16>
    %c0_1 = arith.constant 0 : index
    %c0_2 = arith.constant 0 : index
    %1 = vector.load %arg3[%c0_1, %c0_2] : memref<256x1024xbf16, #tpu.memory_space<vmem>>, vector<256x1024xbf16>
    %cst = arith.constant dense<0.000000e+00> : vector<32x1024xf32>
    %2 = tpu.matmul %0, %1, %cst {dimension_numbers = #tpu.dot_dimension_numbers<[1], [0], [0], [1], [0, 0, 1, 1], [], []>} : vector<32x256xbf16>, vector<256x1024xbf16>, vector<32x1024xf32> -> vector<32x1024xf32>
    %c0_3 = arith.constant 0 : index
    %c0_4 = arith.constant 0 : index
    %3 = vector.load %arg4[%c0_3, %c0_4] : memref<32x1024xf32, #tpu.memory_space<vmem>>, vector<32x1024xf32>
    tpu.vector_store %arg4[%c0_3, %c0_4], %2 {strides = array<i32>} : memref<32x1024xf32, #tpu.memory_space<vmem>>, vector<32x1024xf32>,
    return
  }
  func.func @transform_0(%arg0: i32, %arg1: i32) -> (i32, i32) {
    %c0_i32 = arith.constant 0 : i32
    %c0_i32_0 = arith.constant 0 : i32
    return %arg0, %c0_i32 : i32, i32
  }
  func.func @transform_1(%arg0: i32, %arg1: i32) -> (i32, i32) {
    %c0_i32 = arith.constant 0 : i32
    %c0_i32_0 = arith.constant 0 : i32
    return %c0_i32, %arg1 : i32, i32
  }
  func.func @transform_2(%arg0: i32, %arg1: i32) -> (i32, i32) {
    %c0_i32 = arith.constant 0 : i32
    return %arg0, %arg1 : i32, i32
  }
}

module attributes {stable_mosaic.version = 11 : i64} {
  func.func @_mm_kernel(%arg0: i32, %arg1: i32, %arg2: memref<128x128xbf16, #tpu.memory_space<vmem>>, %arg3: memref<128x512xbf16, #tpu.memory_space<vmem>>, %arg4: memref<128x512xf32, #tpu.memory_space<vmem>>) attributes {dimension_semantics = [#tpu.dimension_semantics<parallel>, #tpu.dimension_semantics<parallel>], iteration_bounds = array<i64: 1, 2>, scalar_prefetch = 0 : i64, scratch_operands = 0 : i64, tpu.core_type = #tpu.core_type<tc>, window_params = [{transform_indices = @transform_0, window_bounds = array<i64: 128, 128>}, {transform_indices = @transform_1, window_bounds = array<i64: 128, 512>}, {transform_indices = @transform_2, window_bounds = array<i64: 128, 512>}]} {
    %c0 = arith.constant 0 : index
    %c0_0 = arith.constant 0 : index
    %0 = vector.load %arg2[%c0, %c0_0] : memref<128x128xbf16, #tpu.memory_space<vmem>>, vector<128x128xbf16>
    %c0_1 = arith.constant 0 : index
    %c0_2 = arith.constant 0 : index
    %1 = vector.load %arg3[%c0_1, %c0_2] : memref<128x512xbf16, #tpu.memory_space<vmem>>, vector<128x512xbf16>
    %cst = arith.constant dense<0.000000e+00> : vector<128x512xf32>
    %2 = tpu.matmul %0, %1, %cst {dimension_numbers = #tpu.dot_dimension_numbers<[1], [0], [0], [1], [0, 0, 1, 1], [], []>} : vector<128x128xbf16>, vector<128x512xbf16>, vector<128x512xf32> -> vector<128x512xf32>
    %c0_3 = arith.constant 0 : index
    %c0_4 = arith.constant 0 : index
    %3 = vector.load %arg4[%c0_3, %c0_4] : memref<128x512xf32, #tpu.memory_space<vmem>>, vector<128x512xf32>
    tpu.vector_store %arg4[%c0_3, %c0_4], %2 {strides = array<i32>} : memref<128x512xf32, #tpu.memory_space<vmem>>, vector<128x512xf32>,
    return
  }
  func.func @transform_0(%arg0: i32, %arg1: i32) -> (i32, i32) {
    %c0_i32 = arith.constant 0 : i32
    %c0_i32_0 = arith.constant 0 : i32
    return %arg0, %c0_i32 : i32, i32
  }
  func.func @transform_1(%arg0: i32, %arg1: i32) -> (i32, i32) {
    %c0_i32 = arith.constant 0 : i32
    %c0_i32_0 = arith.constant 0 : i32
    return %c0_i32, %arg1 : i32, i32
  }
  func.func @transform_2(%arg0: i32, %arg1: i32) -> (i32, i32) {
    %c0_i32 = arith.constant 0 : i32
    return %arg0, %arg1 : i32, i32
  }
}

module attributes {stable_mosaic.version = 11 : i64} {
  func.func @_mm_kernel(%arg0: i32, %arg1: i32, %arg2: memref<256x64xbf16, #tpu.memory_space<vmem>>, %arg3: memref<64x128xbf16, #tpu.memory_space<vmem>>, %arg4: memref<256x128xf32, #tpu.memory_space<vmem>>) attributes {dimension_semantics = [#tpu.dimension_semantics<parallel>, #tpu.dimension_semantics<parallel>], iteration_bounds = array<i64: 2, 1>, scalar_prefetch = 0 : i64, scratch_operands = 0 : i64, tpu.core_type = #tpu.core_type<tc>, window_params = [{transform_indices = @transform_0, window_bounds = array<i64: 256, 64>}, {transform_indices = @transform_1, window_bounds = array<i64: 64, 128>}, {transform_indices = @transform_2, window_bounds = array<i64: 256, 128>}]} {
    %c0 = arith.constant 0 : index
    %c0_0 = arith.constant 0 : index
    %0 = vector.load %arg2[%c0, %c0_0] : memref<256x64xbf16, #tpu.memory_space<vmem>>, vector<256x64xbf16>
    %c0_1 = arith.constant 0 : index
    %c0_2 = arith.constant 0 : index
    %1 = vector.load %arg3[%c0_1, %c0_2] : memref<64x128xbf16, #tpu.memory_space<vmem>>, vector<64x128xbf16>
    %cst = arith.constant dense<0.000000e+00> : vector<256x128xf32>
    %2 = tpu.matmul %0, %1, %cst {dimension_numbers = #tpu.dot_dimension_numbers<[1], [0], [0], [1], [0, 0, 1, 1], [], []>} : vector<256x64xbf16>, vector<64x128xbf16>, vector<256x128xf32> -> vector<256x128xf32>
    %c0_3 = arith.constant 0 : index
    %c0_4 = arith.constant 0 : index
    %3 = vector.load %arg4[%c0_3, %c0_4] : memref<256x128xf32, #tpu.memory_space<vmem>>, vector<256x128xf32>
    tpu.vector_store %arg4[%c0_3, %c0_4], %2 {strides = array<i32>} : memref<256x128xf32, #tpu.memory_space<vmem>>, vector<256x128xf32>,
    return
  }
  func.func @transform_0(%arg0: i32, %arg1: i32) -> (i32, i32) {
    %c0_i32 = arith.constant 0 : i32
    %c0_i32_0 = arith.constant 0 : i32
    return %arg0, %c0_i32 : i32, i32
  }
  func.func @transform_1(%arg0: i32, %arg1: i32) -> (i32, i32) {
    %c0_i32 = arith.constant 0 : i32
    %c0_i32_0 = arith.constant 0 : i32
    return %c0_i32, %arg1 : i32, i32
  }
  func.func @transform_2(%arg0: i32, %arg1: i32) -> (i32, i32) {
    %c0_i32 = arith.constant 0 : i32
    return %arg0, %arg1 : i32, i32
  }
}

</mosaic_0001>

<llo_original>
// kernel: generator_b_forward.5
$region0: #{generator_b_forward.5}
  #allocation0 [shape = 'u32[]', space=smem, size = 0x4, offset = 0x4, fixed_abs, tag = 'smem constant byte address 0x4 - core index']
  #allocation1 [shape = 'u32[144,128]{1,0:T(1,128)}', space=vmem, size = 0x12000, scoped, tag = 'internal scratch']
  %s0 = inlined_call_operand.vmem [shape: bf16[8,128], index: 0, kind: input, shape index: {}]
  %s1 = inlined_call_operand.hbm [shape: bf16[128,1792], index: 1, kind: input, shape index: {}]
  %s2 = inlined_call_operand.vmem [shape: f32[1,1792], index: 2, kind: input, shape index: {}]
  %s3 = inlined_call_operand.vmem [shape: f32[8,1792], index: 3, kind: output, shape index: {}]
  %s4 = sld [smem:[#allocation0]]
  $region49: #{generator_b_forward.5} parent=0
    _
  %s6 = ssub.s32 1, %s4
  %s7 = scalar_select 0, %s6, %s4
  $region1: #{generator_b_forward.5} parent=0
    #allocation2 [shape = 'u8[458752]{0}', space=vmem, size = 0x70000, scoped, tag = 'input window, operand 1']
    #allocation3 [shape = 's32[2]{0}', space=sflag, size = 0x8, scoped, tag = 'scoped memory for generator_b_forward.5']
    %8 = vsyncpa [#allocation3], 0
    %s9 = scalar_lea.sflag [#allocation3], 1
    %10 = vsyncpa %s9, 0
    loop: start=0, step=1, limit=4
    $region2: #{generator_b_forward.5} parent=1 // loop_pre_header
      _
    $region3: #{generator_b_forward.5} parent=1 // loop_header
      %s12 = sphi 0, %s16
      %p13 = scmp.ge.s32.totalorder %s12, 4
      %s19 = sphi 0, %s31
      %s20 = sphi 0, %s27
      %s21 = sphi 0, %s19
      %s22 = sphi 0, %s20
      %s23 = sphi 0, %s21
      %s24 = sphi 0, %s22
      %s34 = sphi 0, %s36
      %s37 = sphi 0, %s34
      %s38 = sphi 0, %s37
      %s54 = sphi 0, %s38
      %s60 = sphi 0, %s62
      %s63 = sphi 0, %s60
      %s64 = sphi 0, %s63
      %s80 = sphi 0, %s64
      %s86 = sphi 0, %s88
      %s89 = sphi 0, %s86
      %s90 = sphi 0, %s89
      %s106 = sphi 0, %s90
      %s114 = sphi 0, %s116
      %s117 = sphi 0, %s114
      %s118 = sphi 0, %s117
      %s134 = sphi 0, %s118
    $region4: #{generator_b_forward.5} parent=1 // loop_header_branch
      %15 = sbr.rel (%p13) target = $region8
    $region5: #{generator_b_forward.5} parent=1 // loop_body
      %s17 = ssub.s32 %s12, 1
      %s18 = ssub.s32 %s12, 2
      %s25 = sadd.s32 1, %s20
      %p26 = scmp.ge.s32.totalorder %s25, 2
      %s27 = scalar_select %p26, 0, %s25
      %s28 = sadd.s32 1, %s19
      %s29 = scalar_select %p26, %s28, %s19
      %p30 = scmp.ge.s32.totalorder %s29, 1
      %s31 = scalar_select %p30, 0, %s29
      %s32 = ssub.s32 %s19, %s31
      %p33 = scmp.eq.s32.totalorder %s32, 0
      %s35 = sadd.s32 %s34, 1
      %s36 = scalar_select %p33, %s34, %s35
      %p39 = pneg %p33
      %p40 = scmp.eq.s32.totalorder %s12, 1
      %p41 = por %p39, %p40
      %p42 = scmp.ne.s32.totalorder %s34, %s37
      %p43 = scmp.eq.s32.totalorder %s12, 0
      %p44 = por %p42, %p43
      %p45 = scmp.ne.s32.totalorder %s34, %s37
      %p46 = scmp.eq.s32.totalorder %s17, 1
      %p47 = por %p45, %p46
      %p48 = scmp.ne.s32.totalorder %s37, %s38
      %p49 = scmp.eq.s32.totalorder %s17, 0
      %p50 = por %p48, %p49
      %p51 = scmp.ne.s32.totalorder %s37, %s38
      %p52 = scmp.eq.s32.totalorder %s18, 1
      %p53 = por %p51, %p52
      %p55 = scmp.ne.s32.totalorder %s38, %s54
      %p56 = scmp.eq.s32.totalorder %s18, 0
      %p57 = por %p55, %p56
      %s58 = ssub.s32 %s20, %s27
      %p59 = scmp.eq.s32.totalorder %s58, 0
      %s61 = sadd.s32 %s60, 1
      %s62 = scalar_select %p59, %s60, %s61
      %p65 = pneg %p59
      %p66 = scmp.eq.s32.totalorder %s12, 1
      %p67 = por %p65, %p66
      %p68 = scmp.ne.s32.totalorder %s60, %s63
      %p69 = scmp.eq.s32.totalorder %s12, 0
      %p70 = por %p68, %p69
      %p71 = scmp.ne.s32.totalorder %s60, %s63
      %p72 = scmp.eq.s32.totalorder %s17, 1
      %p73 = por %p71, %p72
      %p74 = scmp.ne.s32.totalorder %s63, %s64
      %p75 = scmp.eq.s32.totalorder %s17, 0
      %p76 = por %p74, %p75
      %p77 = scmp.ne.s32.totalorder %s63, %s64
      %p78 = scmp.eq.s32.totalorder %s18, 1
      %p79 = por %p77, %p78
      %p81 = scmp.ne.s32.totalorder %s64, %s80
      %p82 = scmp.eq.s32.totalorder %s18, 0
      %p83 = por %p81, %p82
      %s84 = ssub.s32 %s20, %s27
      %p85 = scmp.eq.s32.totalorder %s84, 0
      %s87 = sadd.s32 %s86, 1
      %s88 = scalar_select %p85, %s86, %s87
      %p91 = pneg %p85
      %p92 = scmp.eq.s32.totalorder %s12, 1
      %p93 = por %p91, %p92
      %p94 = scmp.ne.s32.totalorder %s86, %s89
      %p95 = scmp.eq.s32.totalorder %s12, 0
      %p96 = por %p94, %p95
      %p97 = scmp.ne.s32.totalorder %s86, %s89
      %p98 = scmp.eq.s32.totalorder %s17, 1
      %p99 = por %p97, %p98
      %p100 = scmp.ne.s32.totalorder %s89, %s90
      %p101 = scmp.eq.s32.totalorder %s17, 0
      %p102 = por %p100, %p101
      %p103 = scmp.ne.s32.totalorder %s89, %s90
      %p104 = scmp.eq.s32.totalorder %s18, 1
      %p105 = por %p103, %p104
      %p107 = scmp.ne.s32.totalorder %s90, %s106
      %p108 = scmp.eq.s32.totalorder %s18, 0
      %p109 = por %p107, %p108
      %s110 = ssub.s32 %s19, %s31
      %s111 = ssub.s32 %s20, %s27
      %s112 = sor.u32 %s110, %s111
      %p113 = scmp.eq.s32.totalorder %s112, 0
      %s115 = sadd.s32 %s114, 1
      %s116 = scalar_select %p113, %s114, %s115
      %p119 = pneg %p113
      %p120 = scmp.eq.s32.totalorder %s12, 1
      %p121 = por %p119, %p120
      %p122 = scmp.ne.s32.totalorder %s114, %s117
      %p123 = scmp.eq.s32.totalorder %s12, 0
      %p124 = por %p122, %p123
      %p125 = scmp.ne.s32.totalorder %s114, %s117
      %p126 = scmp.eq.s32.totalorder %s17, 1
      %p127 = por %p125, %p126
      %p128 = scmp.ne.s32.totalorder %s117, %s118
      %p129 = scmp.eq.s32.totalorder %s17, 0
      %p130 = por %p128, %p129
      %p131 = scmp.ne.s32.totalorder %s117, %s118
      %p132 = scmp.eq.s32.totalorder %s18, 1
      %p133 = por %p131, %p132
      %p135 = scmp.ne.s32.totalorder %s118, %s134
      %p136 = scmp.eq.s32.totalorder %s18, 0
      %p137 = por %p135, %p136
      %p138 = scmp.le.s32.totalorder 1, %s12
      %p139 = scmp.lt.s32.totalorder %s12, 3
      %p140 = pnand %p138, %p139
      %p141 = pneg %p140
      // Predicated region
      $region9: #{generator_b_forward.5} parent=5 // pred_check
        _
      $region10: #{generator_b_forward.5} parent=5 // pred_check_branch
        %143 = sbr.rel (%p140) target = $region12
      $region11: #{generator_b_forward.5} parent=5 // pred_region
        %s144 = ssub.s32 %s12, 1
        // Predicated region
        $region13: #{generator_b_forward.5} parent=11 // pred_check
          %p145 = pneg %p50
        $region14: #{generator_b_forward.5} parent=11 // pred_check_branch
          %147 = sbr.rel (%p145) target = $region16
        $region15: #{generator_b_forward.5} parent=11 // pred_region
          %p148 = scmp.lt.s32.totalorder %s21, 0
          %s149 = scalar_select %p148, %s21, 0
          %s150 = smul.addr %s149, 4
          %s151 = scalar_lea.vmem %s0, %s150
        $region16: #{generator_b_forward.5} parent=11 // pred_fallthru
          _
      $region12: #{generator_b_forward.5} parent=5 // pred_fallthru
        _
      %p152 = scmp.lt.s32.totalorder %s12, 2
      // Predicated region
      $region17: #{generator_b_forward.5} parent=5 // pred_check
        %p153 = pneg %p152
      $region18: #{generator_b_forward.5} parent=5 // pred_check_branch
        %155 = sbr.rel (%p153) target = $region20
      $region19: #{generator_b_forward.5} parent=5 // pred_region
        // Predicated region
        $region21: #{generator_b_forward.5} parent=19 // pred_check
          %p156 = pneg %p70
        $region22: #{generator_b_forward.5} parent=19 // pred_check_branch
          %158 = sbr.rel (%p156) target = $region24
        $region23: #{generator_b_forward.5} parent=19 // pred_region
          %s159 = sand.u32 %s60, 1
          %s160 = scalar_lea.sflag [#allocation3], %s159
          %s161 = sand.u32 %s60, 1
          %s162 = smul.addr %s161, 448
          %s163 = scalar_lea.vmem [#allocation2], %s162
          %s164 = smul.u32 7, %s20
          %s166 = ssub.s32 7168, 7168
          %167 = vsyncadd %s160, %s166
          %s168 = smul.addr %s164, 64
          %s169 = scalar_lea.hbm %s1, %s168
          %s170 = sshll.u32 %s163, 4
          %s171 = int_to_ptr.vmem [resolvable:$true] %s170
          %176 = dma.hbm_to_vmem [thread:$0]  %s169, 7168, %s171, %s160, 896, 448, 28
        $region24: #{generator_b_forward.5} parent=19 // pred_fallthru
          _
        // Predicated region
        $region25: #{generator_b_forward.5} parent=19 // pred_check
          %p177 = pneg %p96
        $region26: #{generator_b_forward.5} parent=19 // pred_check_branch
          %179 = sbr.rel (%p177) target = $region28
        $region27: #{generator_b_forward.5} parent=19 // pred_region
          %s180 = smul.u32 7, %s20
          %p181 = scmp.lt.s32.totalorder %s180, 13
          %s182 = scalar_select %p181, %s180, 13
          %s183 = scalar_lea.vmem %s2, %s182
          %s184 = smul.u32 7, %s20
        $region28: #{generator_b_forward.5} parent=19 // pred_fallthru
          _
      $region20: #{generator_b_forward.5} parent=5 // pred_fallthru
        _
      %p185 = scmp.le.s32.totalorder 1, %s12
      %p186 = scmp.lt.s32.totalorder %s12, 3
      %p187 = pnand %p185, %p186
      %p188 = pneg %p187
      // Predicated region
      $region29: #{generator_b_forward.5} parent=5 // pred_check
        _
      $region30: #{generator_b_forward.5} parent=5 // pred_check_branch
        %190 = sbr.rel (%p187) target = $region32
      $region31: #{generator_b_forward.5} parent=5 // pred_region
        %s191 = ssub.s32 %s12, 1
        %s192 = sand.u32 %s63, 1
        %s193 = scalar_lea.sflag [#allocation3], %s192
        %s194 = sand.u32 %s63, 1
        %s195 = smul.addr %s194, 448
        %s196 = scalar_lea.vmem [#allocation2], %s195
        // Predicated region
        $region33: #{generator_b_forward.5} parent=31 // pred_check
          %p197 = pneg %p76
        $region34: #{generator_b_forward.5} parent=31 // pred_check_branch
          %199 = sbr.rel (%p197) target = $region36
        $region35: #{generator_b_forward.5} parent=31 // pred_region
          %200 = dma.done %s193, 7168
        $region36: #{generator_b_forward.5} parent=31 // pred_fallthru
          _
        %p201 = scmp.lt.s32.totalorder %s21, 0
        %s202 = scalar_select %p201, %s21, 0
        %s203 = smul.addr %s202, 4
        %s204 = scalar_lea.vmem %s0, %s203
        %p205 = pneg %p50
        %p206 = pneg %p47
        %s207 = sand.u32 %s63, 1
        %s208 = scalar_lea.sflag [#allocation3], %s207
        %s209 = sand.u32 %s63, 1
        %s210 = smul.addr %s209, 448
        %s211 = scalar_lea.vmem [#allocation2], %s210
        %p212 = pneg %p76
        %p213 = pneg %p73
        %s214 = smul.u32 7, %s22
        %p215 = scmp.lt.s32.totalorder %s214, 13
        %s216 = scalar_select %p215, %s214, 13
        %s217 = scalar_lea.vmem %s2, %s216
        %p218 = pneg %p102
        %p219 = pneg %p99
        %p220 = pneg %p130
        %p221 = pneg %p127
        %s222 = smul.u32 7, %s22
        %p223 = scmp.lt.s32.totalorder %s21, 0
        %s224 = scalar_select %p223, %s21, 0
        %p225 = scmp.lt.s32.totalorder %s222, 13
        %s226 = scalar_select %p225, %s222, 13
        %s227 = smul.addr %s224, 14
        %s228 = sadd.s32 %s226, %s227
        %s229 = smul.addr %s228, 8
        %s230 = scalar_lea.vmem %s3, %s229
        %p231 = scmp.lt.s32.totalorder %s21, 0
        %s232 = scalar_select %p231, %s21, 0
        %s233 = smul.addr %s232, 4
        %s234 = scalar_lea.vmem %s0, %s233
        %s235 = smul.u32 7, %s22
        %s236 = smul.u32 7, %s22
        %p237 = scmp.lt.s32.totalorder %s236, 13
        %s238 = scalar_select %p237, %s236, 13
        %s239 = scalar_lea.vmem %s2, %s238
        %s240 = smul.u32 7, %s22
        %s241 = smul.u32 7, %s22
        %p242 = scmp.lt.s32.totalorder %s21, 0
        %s243 = scalar_select %p242, %s21, 0
        %p244 = scmp.lt.s32.totalorder %s241, 13
        %s245 = scalar_select %p244, %s241, 13
        %s246 = smul.addr %s243, 14
        %s247 = sadd.s32 %s245, %s246
        %s248 = smul.addr %s247, 8
        %s249 = scalar_lea.vmem %s3, %s248
        %s250 = smul.u32 7, %s22
        %v252 = vld [vmem:[%s234] sm:$0xf]
        %v253 = vld [vmem:[%s196] sm:$0xff]
        %v254 = vld [vmem:[%s196 + $0x8] sm:$0xff]
        %v255 = vld [vmem:[%s196 + $0x10] sm:$0xff]
        %v256 = vld [vmem:[%s196 + $0x18] sm:$0xf]
        %v257 = vld [vmem:[%s196 + $0x1c] sm:$0xff]
        %v258 = vld [vmem:[%s196 + $0x24] sm:$0xff]
        %v259 = vld [vmem:[%s196 + $0x2c] sm:$0xff]
        %v260 = vld [vmem:[%s196 + $0x34] sm:$0xf]
        %v261 = vld [vmem:[%s196 + $0x38] sm:$0xff]
        %v262 = vld [vmem:[%s196 + $0x40] sm:$0xff]
        %v263 = vld [vmem:[%s196 + $0x48] sm:$0xff]
        %v264 = vld [vmem:[%s196 + $0x50] sm:$0xf]
        %v265 = vld [vmem:[%s196 + $0x54] sm:$0xff]
        %v266 = vld [vmem:[%s196 + $0x5c] sm:$0xff]
        %v267 = vld [vmem:[%s196 + $0x64] sm:$0xff]
        %v268 = vld [vmem:[%s196 + $0x6c] sm:$0xf]
        %v269 = vld [vmem:[%s196 + $0x70] sm:$0xff]
        %v270 = vld [vmem:[%s196 + $0x78] sm:$0xff]
        %v271 = vld [vmem:[%s196 + $0x80] sm:$0xff]
        %v272 = vld [vmem:[%s196 + $0x88] sm:$0xf]
        %v273 = vld [vmem:[%s196 + $0x8c] sm:$0xff]
        %v274 = vld [vmem:[%s196 + $0x94] sm:$0xff]
        %v275 = vld [vmem:[%s196 + $0x9c] sm:$0xff]
        %v276 = vld [vmem:[%s196 + $0xa4] sm:$0xf]
        %v277 = vld [vmem:[%s196 + $0xa8] sm:$0xff]
        %v278 = vld [vmem:[%s196 + $0xb0] sm:$0xff]
        %v279 = vld [vmem:[%s196 + $0xb8] sm:$0xff]
        %v280 = vld [vmem:[%s196 + $0xc0] sm:$0xf]
        %v281 = vld [vmem:[%s196 + $0xc4] sm:$0xff]
        %v282 = vld [vmem:[%s196 + $0xcc] sm:$0xff]
        %v283 = vld [vmem:[%s196 + $0xd4] sm:$0xff]
        %v284 = vld [vmem:[%s196 + $0xdc] sm:$0xf]
        %v285 = vld [vmem:[%s196 + $0xe0] sm:$0xff]
        %v286 = vld [vmem:[%s196 + $0xe8] sm:$0xff]
        %v287 = vld [vmem:[%s196 + $0xf0] sm:$0xff]
        %v288 = vld [vmem:[%s196 + $0xf8] sm:$0xf]
        %v289 = vld [vmem:[%s196 + $0xfc] sm:$0xff]
        %v290 = vld [vmem:[%s196 + $0x104] sm:$0xff]
        %v291 = vld [vmem:[%s196 + $0x10c] sm:$0xff]
        %v292 = vld [vmem:[%s196 + $0x114] sm:$0xf]
        %v293 = vld [vmem:[%s196 + $0x118] sm:$0xff]
        %v294 = vld [vmem:[%s196 + $0x120] sm:$0xff]
        %v295 = vld [vmem:[%s196 + $0x128] sm:$0xff]
        %v296 = vld [vmem:[%s196 + $0x130] sm:$0xf]
        %v297 = vld [vmem:[%s196 + $0x134] sm:$0xff]
        %v298 = vld [vmem:[%s196 + $0x13c] sm:$0xff]
        %v299 = vld [vmem:[%s196 + $0x144] sm:$0xff]
        %v300 = vld [vmem:[%s196 + $0x14c] sm:$0xf]
        %v301 = vld [vmem:[%s196 + $0x150] sm:$0xff]
        %v302 = vld [vmem:[%s196 + $0x158] sm:$0xff]
        %v303 = vld [vmem:[%s196 + $0x160] sm:$0xff]
        %v304 = vld [vmem:[%s196 + $0x168] sm:$0xf]
        %v305 = vld [vmem:[%s196 + $0x16c] sm:$0xff]
        %v306 = vld [vmem:[%s196 + $0x174] sm:$0xff]
        %v307 = vld [vmem:[%s196 + $0x17c] sm:$0xff]
        %v308 = vld [vmem:[%s196 + $0x184] sm:$0xf]
        %v309 = vld [vmem:[%s196 + $0x188] sm:$0xff]
        %v310 = vld [vmem:[%s196 + $0x190] sm:$0xff]
        %v311 = vld [vmem:[%s196 + $0x198] sm:$0xff]
        %v312 = vld [vmem:[%s196 + $0x1a0] sm:$0xf]
        %v313 = vld [vmem:[%s196 + $0x1a4] sm:$0xff]
        %v314 = vld [vmem:[%s196 + $0x1ac] sm:$0xff]
        %v315 = vld [vmem:[%s196 + $0x1b4] sm:$0xff]
        %v316 = vld [vmem:[%s196 + $0x1bc] sm:$0xf]
        %v317 = vld [vmem:[%s239] sm:$0xff]
        %v319 = vlaneseq
        %v320 = vshrl.u32 %v319, 7
        %v321 = vsub.s32 0, %v320
        %v322 = vrot.slane %v317, %v321
        %v323 = vlaneseq
        %v324 = vshrl.u32 %v323, 7
        %v325 = vsub.s32 1, %v324
        %v326 = vrot.slane %v317, %v325
        %v327 = vlaneseq
        %v328 = vshrl.u32 %v327, 7
        %v329 = vsub.s32 2, %v328
        %v330 = vrot.slane %v317, %v329
        %v331 = vlaneseq
        %v332 = vshrl.u32 %v331, 7
        %v333 = vsub.s32 3, %v332
        %v334 = vrot.slane %v317, %v333
        %v335 = vlaneseq
        %v336 = vshrl.u32 %v335, 7
        %v337 = vsub.s32 4, %v336
        %v338 = vrot.slane %v317, %v337
        %v339 = vlaneseq
        %v340 = vshrl.u32 %v339, 7
        %v341 = vsub.s32 5, %v340
        %v342 = vrot.slane %v317, %v341
        %v343 = vlaneseq
        %v344 = vshrl.u32 %v343, 7
        %v345 = vsub.s32 6, %v344
        %v346 = vrot.slane %v317, %v345
        %v418 = vunpack.c.l.b16 %v253
        %v419 = vunpack.c.h.b16 %v253
        %v420 = vunpack.c.l.b16 %v254
        %v421 = vunpack.c.h.b16 %v254
        %v422 = vunpack.c.l.b16 %v255
        %v423 = vunpack.c.h.b16 %v255
        %v424 = vunpack.c.l.b16 %v256
        %v425 = vunpack.c.l.b16 %v257
        %v426 = vunpack.c.h.b16 %v257
        %v427 = vunpack.c.l.b16 %v258
        %v428 = vunpack.c.h.b16 %v258
        %v429 = vunpack.c.l.b16 %v259
        %v430 = vunpack.c.h.b16 %v259
        %v431 = vunpack.c.l.b16 %v260
        %v432 = vunpack.c.l.b16 %v261
        %v433 = vunpack.c.h.b16 %v261
        %v434 = vunpack.c.l.b16 %v262
        %v435 = vunpack.c.h.b16 %v262
        %v436 = vunpack.c.l.b16 %v263
        %v437 = vunpack.c.h.b16 %v263
        %v438 = vunpack.c.l.b16 %v264
        %v439 = vunpack.c.l.b16 %v265
        %v440 = vunpack.c.h.b16 %v265
        %v441 = vunpack.c.l.b16 %v266
        %v442 = vunpack.c.h.b16 %v266
        %v443 = vunpack.c.l.b16 %v267
        %v444 = vunpack.c.h.b16 %v267
        %v445 = vunpack.c.l.b16 %v268
        %v446 = vunpack.c.l.b16 %v269
        %v447 = vunpack.c.h.b16 %v269
        %v448 = vunpack.c.l.b16 %v270
        %v449 = vunpack.c.h.b16 %v270
        %v450 = vunpack.c.l.b16 %v271
        %v451 = vunpack.c.h.b16 %v271
        %v452 = vunpack.c.l.b16 %v272
        %v453 = vunpack.c.l.b16 %v273
        %v454 = vunpack.c.h.b16 %v273
        %v455 = vunpack.c.l.b16 %v274
        %v456 = vunpack.c.h.b16 %v274
        %v457 = vunpack.c.l.b16 %v275
        %v458 = vunpack.c.h.b16 %v275
        %v459 = vunpack.c.l.b16 %v276
        %v460 = vunpack.c.l.b16 %v277
        %v461 = vunpack.c.h.b16 %v277
        %v462 = vunpack.c.l.b16 %v278
        %v463 = vunpack.c.h.b16 %v278
        %v464 = vunpack.c.l.b16 %v279
        %v465 = vunpack.c.h.b16 %v279
        %v466 = vunpack.c.l.b16 %v280
        %v467 = vunpack.c.l.b16 %v281
        %v468 = vunpack.c.h.b16 %v281
        %v469 = vunpack.c.l.b16 %v282
        %v470 = vunpack.c.h.b16 %v282
        %v471 = vunpack.c.l.b16 %v283
        %v472 = vunpack.c.h.b16 %v283
        %v473 = vunpack.c.l.b16 %v284
        %v474 = vunpack.c.l.b16 %v285
        %v475 = vunpack.c.h.b16 %v285
        %v476 = vunpack.c.l.b16 %v286
        %v477 = vunpack.c.h.b16 %v286
        %v478 = vunpack.c.l.b16 %v287
        %v479 = vunpack.c.h.b16 %v287
        %v480 = vunpack.c.l.b16 %v288
        %v481 = vunpack.c.l.b16 %v289
        %v482 = vunpack.c.h.b16 %v289
        %v483 = vunpack.c.l.b16 %v290
        %v484 = vunpack.c.h.b16 %v290
        %v485 = vunpack.c.l.b16 %v291
        %v486 = vunpack.c.h.b16 %v291
        %v487 = vunpack.c.l.b16 %v292
        %v488 = vunpack.c.l.b16 %v293
        %v489 = vunpack.c.h.b16 %v293
        %v490 = vunpack.c.l.b16 %v294
        %v491 = vunpack.c.h.b16 %v294
        %v492 = vunpack.c.l.b16 %v295
        %v493 = vunpack.c.h.b16 %v295
        %v494 = vunpack.c.l.b16 %v296
        %v495 = vunpack.c.l.b16 %v297
        %v496 = vunpack.c.h.b16 %v297
        %v497 = vunpack.c.l.b16 %v298
        %v498 = vunpack.c.h.b16 %v298
        %v499 = vunpack.c.l.b16 %v299
        %v500 = vunpack.c.h.b16 %v299
        %v501 = vunpack.c.l.b16 %v300
        %v502 = vunpack.c.l.b16 %v301
        %v503 = vunpack.c.h.b16 %v301
        %v504 = vunpack.c.l.b16 %v302
        %v505 = vunpack.c.h.b16 %v302
        %v506 = vunpack.c.l.b16 %v303
        %v507 = vunpack.c.h.b16 %v303
        %v508 = vunpack.c.l.b16 %v304
        %v509 = vunpack.c.l.b16 %v305
        %v510 = vunpack.c.h.b16 %v305
        %v511 = vunpack.c.l.b16 %v306
        %v512 = vunpack.c.h.b16 %v306
        %v513 = vunpack.c.l.b16 %v307
        %v514 = vunpack.c.h.b16 %v307
        %v515 = vunpack.c.l.b16 %v308
        %v516 = vunpack.c.l.b16 %v309
        %v517 = vunpack.c.h.b16 %v309
        %v518 = vunpack.c.l.b16 %v310
        %v519 = vunpack.c.h.b16 %v310
        %v520 = vunpack.c.l.b16 %v311
        %v521 = vunpack.c.h.b16 %v311
        %v522 = vunpack.c.l.b16 %v312
        %v523 = vunpack.c.l.b16 %v313
        %v524 = vunpack.c.h.b16 %v313
        %v525 = vunpack.c.l.b16 %v314
        %v526 = vunpack.c.h.b16 %v314
        %v527 = vunpack.c.l.b16 %v315
        %v528 = vunpack.c.h.b16 %v315
        %v529 = vunpack.c.l.b16 %v316
        %v530 = vpack.c.b16 %v425, %v418
        %v531 = vpack.c.b16 %v426, %v419
        %v532 = vpack.c.b16 %v427, %v420
        %v533 = vpack.c.b16 %v428, %v421
        %v534 = vpack.c.b16 %v429, %v422
        %v535 = vpack.c.b16 %v430, %v423
        %v536 = vpack.c.b16 %v431, %v424
        %v537 = vpack.c.b16 %v439, %v432
        %v538 = vpack.c.b16 %v440, %v433
        %v539 = vpack.c.b16 %v441, %v434
        %v540 = vpack.c.b16 %v442, %v435
        %v541 = vpack.c.b16 %v443, %v436
        %v542 = vpack.c.b16 %v444, %v437
        %v543 = vpack.c.b16 %v445, %v438
        %v544 = vpack.c.b16 %v453, %v446
        %v545 = vpack.c.b16 %v454, %v447
        %v546 = vpack.c.b16 %v455, %v448
        %v547 = vpack.c.b16 %v456, %v449
        %v548 = vpack.c.b16 %v457, %v450
        %v549 = vpack.c.b16 %v458, %v451
        %v550 = vpack.c.b16 %v459, %v452
        %v551 = vpack.c.b16 %v467, %v460
        %v552 = vpack.c.b16 %v468, %v461
        %v553 = vpack.c.b16 %v469, %v462
        %v554 = vpack.c.b16 %v470, %v463
        %v555 = vpack.c.b16 %v471, %v464
        %v556 = vpack.c.b16 %v472, %v465
        %v557 = vpack.c.b16 %v473, %v466
        %v558 = vpack.c.b16 %v481, %v474
        %v559 = vpack.c.b16 %v482, %v475
        %v560 = vpack.c.b16 %v483, %v476
        %v561 = vpack.c.b16 %v484, %v477
        %v562 = vpack.c.b16 %v485, %v478
        %v563 = vpack.c.b16 %v486, %v479
        %v564 = vpack.c.b16 %v487, %v480
        %v565 = vpack.c.b16 %v495, %v488
        %v566 = vpack.c.b16 %v496, %v489
        %v567 = vpack.c.b16 %v497, %v490
        %v568 = vpack.c.b16 %v498, %v491
        %v569 = vpack.c.b16 %v499, %v492
        %v570 = vpack.c.b16 %v500, %v493
        %v571 = vpack.c.b16 %v501, %v494
        %v572 = vpack.c.b16 %v509, %v502
        %v573 = vpack.c.b16 %v510, %v503
        %v574 = vpack.c.b16 %v511, %v504
        %v575 = vpack.c.b16 %v512, %v505
        %v576 = vpack.c.b16 %v513, %v506
        %v577 = vpack.c.b16 %v514, %v507
        %v578 = vpack.c.b16 %v515, %v508
        %v579 = vpack.c.b16 %v523, %v516
        %v580 = vpack.c.b16 %v524, %v517
        %v581 = vpack.c.b16 %v525, %v518
        %v582 = vpack.c.b16 %v526, %v519
        %v583 = vpack.c.b16 %v527, %v520
        %v584 = vpack.c.b16 %v528, %v521
        %v585 = vpack.c.b16 %v529, %v522
        %642 = vmatprep.subr.bf16.mxu0 %v531
        %643 = vmatpush1.bf16.msra.mxu0 %v530
        %644 = vmatprep.subr.bf16.mxu0 %v538
        %645 = vmatpush1.bf16.msra.mxu0 %v537
        %646 = vmatprep.subr.bf16.mxu0 %v545
        %647 = vmatpush1.bf16.msra.mxu0 %v544
        %648 = vmatprep.subr.bf16.mxu0 %v552
        %649 = vmatpush1.bf16.msra.mxu0 %v551
        %650 = vmatprep.subr.bf16.mxu0 %v559
        %651 = vmatpush1.bf16.msra.mxu0 %v558
        %652 = vmatprep.subr.bf16.mxu0 %v566
        %653 = vmatpush1.bf16.msra.mxu0 %v565
        %654 = vmatprep.subr.bf16.mxu0 %v573
        %655 = vmatpush1.bf16.msra.mxu0 %v572
        %656 = vmatprep.subr.bf16.mxu0 %v580
        %657 = vmatpush1.bf16.msra.mxu0 %v579
        %658 = vmatprep.subr.bf16.mxu0 0
        %659 = vmatpush1.bf16.msra.mxu0 0
        %660 = vmatprep.subr.bf16.mxu0 0
        %661 = vmatpush1.bf16.msra.mxu0 0
        %662 = vmatprep.subr.bf16.mxu0 0
        %663 = vmatpush1.bf16.msra.mxu0 0
        %664 = vmatprep.subr.bf16.mxu0 0
        %665 = vmatpush1.bf16.msra.mxu0 0
        %666 = vmatprep.subr.bf16.mxu0 0
        %667 = vmatpush1.bf16.msra.mxu0 0
        %668 = vmatprep.subr.bf16.mxu0 0
        %669 = vmatpush1.bf16.msra.mxu0 0
        %670 = vmatprep.subr.bf16.mxu0 0
        %671 = vmatpush1.bf16.msra.mxu0 0
        %672 = vmatprep.subr.bf16.mxu0 0
        %673 = vmatpush1.bf16.msra.mxu0 0
        %674 = vmatprep.mubr.bf16.mxu0 0
        %675 = vmatmul.mubr.bf16.gmra.mrb[0].mxu0 %v252
        %v676 = vpop.f32.mrb[0].mxu0
        %v677 = vadd.f32 %v322, %v676
        %v678 = vpop.f32.mrb[0].mxu0
        %v679 = vadd.f32 %v326, %v678
        %v680 = vpop.f32.mrb[0].mxu0
        %v681 = vpop.f32.mrb[0].mxu0
        %682 = vdwg.mxu0
        %683 = vmatprep.subr.bf16.mxu0 %v533
        %684 = vmatpush1.bf16.msra.mxu0 %v532
        %685 = vmatprep.subr.bf16.mxu0 %v540
        %686 = vmatpush1.bf16.msra.mxu0 %v539
        %687 = vmatprep.subr.bf16.mxu0 %v547
        %688 = vmatpush1.bf16.msra.mxu0 %v546
        %689 = vmatprep.subr.bf16.mxu0 %v554
        %690 = vmatpush1.bf16.msra.mxu0 %v553
        %691 = vmatprep.subr.bf16.mxu0 %v561
        %692 = vmatpush1.bf16.msra.mxu0 %v560
        %693 = vmatprep.subr.bf16.mxu0 %v568
        %694 = vmatpush1.bf16.msra.mxu0 %v567
        %695 = vmatprep.subr.bf16.mxu0 %v575
        %696 = vmatpush1.bf16.msra.mxu0 %v574
        %697 = vmatprep.subr.bf16.mxu0 %v582
        %698 = vmatpush1.bf16.msra.mxu0 %v581
        %699 = vmatprep.subr.bf16.mxu0 0
        %700 = vmatpush1.bf16.msra.mxu0 0
        %701 = vmatprep.subr.bf16.mxu0 0
        %702 = vmatpush1.bf16.msra.mxu0 0
        %703 = vmatprep.subr.bf16.mxu0 0
        %704 = vmatpush1.bf16.msra.mxu0 0
        %705 = vmatprep.subr.bf16.mxu0 0
        %706 = vmatpush1.bf16.msra.mxu0 0
        %707 = vmatprep.subr.bf16.mxu0 0
        %708 = vmatpush1.bf16.msra.mxu0 0
        %709 = vmatprep.subr.bf16.mxu0 0
        %710 = vmatpush1.bf16.msra.mxu0 0
        %711 = vmatprep.subr.bf16.mxu0 0
        %712 = vmatpush1.bf16.msra.mxu0 0
        %713 = vmatprep.subr.bf16.mxu0 0
        %714 = vmatpush1.bf16.msra.mxu0 0
        %715 = vmatprep.mubr.bf16.mxu0 0
        %716 = vmatmul.mubr.bf16.gmra.mrb[0].mxu0 %v252
        %v717 = vpop.f32.mrb[0].mxu0
        %v718 = vadd.f32 %v330, %v717
        %v719 = vpop.f32.mrb[0].mxu0
        %v720 = vadd.f32 %v334, %v719
        %v721 = vpop.f32.mrb[0].mxu0
        %v722 = vpop.f32.mrb[0].mxu0
        %723 = vdwg.mxu0
        %724 = vmatprep.subr.bf16.mxu0 %v535
        %725 = vmatpush1.bf16.msra.mxu0 %v534
        %726 = vmatprep.subr.bf16.mxu0 %v542
        %727 = vmatpush1.bf16.msra.mxu0 %v541
        %728 = vmatprep.subr.bf16.mxu0 %v549
        %729 = vmatpush1.bf16.msra.mxu0 %v548
        %730 = vmatprep.subr.bf16.mxu0 %v556
        %731 = vmatpush1.bf16.msra.mxu0 %v555
        %732 = vmatprep.subr.bf16.mxu0 %v563
        %733 = vmatpush1.bf16.msra.mxu0 %v562
        %734 = vmatprep.subr.bf16.mxu0 %v570
        %735 = vmatpush1.bf16.msra.mxu0 %v569
        %736 = vmatprep.subr.bf16.mxu0 %v577
        %737 = vmatpush1.bf16.msra.mxu0 %v576
        %738 = vmatprep.subr.bf16.mxu0 %v584
        %739 = vmatpush1.bf16.msra.mxu0 %v583
        %740 = vmatprep.subr.bf16.mxu0 0
        %741 = vmatpush1.bf16.msra.mxu0 0
        %742 = vmatprep.subr.bf16.mxu0 0
        %743 = vmatpush1.bf16.msra.mxu0 0
        %744 = vmatprep.subr.bf16.mxu0 0
        %745 = vmatpush1.bf16.msra.mxu0 0
        %746 = vmatprep.subr.bf16.mxu0 0
        %747 = vmatpush1.bf16.msra.mxu0 0
        %748 = vmatprep.subr.bf16.mxu0 0
        %749 = vmatpush1.bf16.msra.mxu0 0
        %750 = vmatprep.subr.bf16.mxu0 0
        %751 = vmatpush1.bf16.msra.mxu0 0
        %752 = vmatprep.subr.bf16.mxu0 0
        %753 = vmatpush1.bf16.msra.mxu0 0
        %754 = vmatprep.subr.bf16.mxu0 0
        %755 = vmatpush1.bf16.msra.mxu0 0
        %756 = vmatprep.mubr.bf16.mxu0 0
        %757 = vmatmul.mubr.bf16.gmra.mrb[0].mxu0 %v252
        %v758 = vpop.f32.mrb[0].mxu0
        %v759 = vadd.f32 %v338, %v758
        %v760 = vpop.f32.mrb[0].mxu0
        %v761 = vadd.f32 %v342, %v760
        %v762 = vpop.f32.mrb[0].mxu0
        %v763 = vpop.f32.mrb[0].mxu0
        %764 = vdwg.mxu0
        %765 = vmatprep.subr.bf16.mxu0 0
        %766 = vmatpush1.bf16.msra.mxu0 %v536
        %767 = vmatprep.subr.bf16.mxu0 0
        %768 = vmatpush1.bf16.msra.mxu0 %v543
        %769 = vmatprep.subr.bf16.mxu0 0
        %770 = vmatpush1.bf16.msra.mxu0 %v550
        %771 = vmatprep.subr.bf16.mxu0 0
        %772 = vmatpush1.bf16.msra.mxu0 %v557
        %773 = vmatprep.subr.bf16.mxu0 0
        %774 = vmatpush1.bf16.msra.mxu0 %v564
        %775 = vmatprep.subr.bf16.mxu0 0
        %776 = vmatpush1.bf16.msra.mxu0 %v571
        %777 = vmatprep.subr.bf16.mxu0 0
        %778 = vmatpush1.bf16.msra.mxu0 %v578
        %779 = vmatprep.subr.bf16.mxu0 0
        %780 = vmatpush1.bf16.msra.mxu0 %v585
        %781 = vmatprep.subr.bf16.mxu0 0
        %782 = vmatpush1.bf16.msra.mxu0 0
        %783 = vmatprep.subr.bf16.mxu0 0
        %784 = vmatpush1.bf16.msra.mxu0 0
        %785 = vmatprep.subr.bf16.mxu0 0
        %786 = vmatpush1.bf16.msra.mxu0 0
        %787 = vmatprep.subr.bf16.mxu0 0
        %788 = vmatpush1.bf16.msra.mxu0 0
        %789 = vmatprep.subr.bf16.mxu0 0
        %790 = vmatpush1.bf16.msra.mxu0 0
        %791 = vmatprep.subr.bf16.mxu0 0
        %792 = vmatpush1.bf16.msra.mxu0 0
        %793 = vmatprep.subr.bf16.mxu0 0
        %794 = vmatpush1.bf16.msra.mxu0 0
        %795 = vmatprep.subr.bf16.mxu0 0
        %796 = vmatpush1.bf16.msra.mxu0 0
        %797 = vmatprep.mubr.bf16.mxu0 0
        %798 = vmatmul.mubr.bf16.gmra.mrb[0].mxu0 %v252
        %v799 = vpop.f32.mrb[0].mxu0
        %v800 = vadd.f32 %v346, %v799
        %v801 = vpop.f32.mrb[0].mxu0
        %v802 = vpop.f32.mrb[0].mxu0
        %v803 = vpop.f32.mrb[0].mxu0
        %804 = vdwg.mxu0
        %v805 = vmax.f32 %v677, 0.0
        %v806 = vmax.f32 %v679, 0.0
        %v807 = vmax.f32 %v718, 0.0
        %v808 = vmax.f32 %v720, 0.0
        %v809 = vmax.f32 %v759, 0.0
        %v810 = vmax.f32 %v761, 0.0
        %v811 = vmax.f32 %v800, 0.0
        %812 = vst [vmem:[%s249] sm:$0xff] %v805
        %813 = vst [vmem:[%s249 + $0x8] sm:$0xff] %v806
        %814 = vst [vmem:[%s249 + $0x10] sm:$0xff] %v807
        %815 = vst [vmem:[%s249 + $0x18] sm:$0xff] %v808
        %816 = vst [vmem:[%s249 + $0x20] sm:$0xff] %v809
        %817 = vst [vmem:[%s249 + $0x28] sm:$0xff] %v810
        %818 = vst [vmem:[%s249 + $0x30] sm:$0xff] %v811
        %s819 = smul.u32 7, %s22
        %p820 = scmp.lt.s32.totalorder %s21, 0
        %s821 = scalar_select %p820, %s21, 0
        %p822 = scmp.lt.s32.totalorder %s819, 13
        %s823 = scalar_select %p822, %s819, 13
        %s824 = smul.addr %s821, 14
        %s825 = sadd.s32 %s823, %s824
        %s826 = smul.addr %s825, 8
        %s827 = scalar_lea.vmem %s3, %s826
        // Predicated region
        $region37: #{generator_b_forward.5} parent=31 // pred_check
          %p828 = pneg %p127
        $region38: #{generator_b_forward.5} parent=31 // pred_check_branch
          %830 = sbr.rel (%p828) target = $region40
        $region39: #{generator_b_forward.5} parent=31 // pred_region
          %s831 = smul.u32 7, %s22
        $region40: #{generator_b_forward.5} parent=31 // pred_fallthru
          _
      $region32: #{generator_b_forward.5} parent=5 // pred_fallthru
        _
      %p832 = scmp.le.s32.totalorder 2, %s12
      // Predicated region
      $region41: #{generator_b_forward.5} parent=5 // pred_check
        %p833 = pneg %p832
      $region42: #{generator_b_forward.5} parent=5 // pred_check_branch
        %835 = sbr.rel (%p833) target = $region44
      $region43: #{generator_b_forward.5} parent=5 // pred_region
        %s836 = ssub.s32 %s12, 2
        // Predicated region
        $region45: #{generator_b_forward.5} parent=43 // pred_check
          %p837 = pneg %p133
        $region46: #{generator_b_forward.5} parent=43 // pred_check_branch
          %839 = sbr.rel (%p837) target = $region48
        $region47: #{generator_b_forward.5} parent=43 // pred_region
          %s840 = smul.u32 7, %s24
          %p841 = scmp.lt.s32.totalorder %s23, 0
          %s842 = scalar_select %p841, %s23, 0
          %p843 = scmp.lt.s32.totalorder %s840, 13
          %s844 = scalar_select %p843, %s840, 13
          %s845 = smul.addr %s842, 14
          %s846 = sadd.s32 %s844, %s845
          %s847 = smul.addr %s846, 8
          %s848 = scalar_lea.vmem %s3, %s847
        $region48: #{generator_b_forward.5} parent=43 // pred_fallthru
          _
      $region44: #{generator_b_forward.5} parent=5 // pred_fallthru
        _
    $region6: #{generator_b_forward.5} parent=1 // loop_footer
      %s16 = sadd.s32 1, %s12
    $region7: #{generator_b_forward.5} parent=1 // loop_footer_branch
      %11 = sbr.rel target = $region3
    $region8: #{generator_b_forward.5} parent=1 // loop_exit
      _
    %849 = vsyncpa [#allocation3], 1
    %s850 = scalar_lea.sflag [#allocation3], 1
    %851 = vsyncpa %s850, 1

// kernel: generator_b_forward.7
$region0: #{generator_b_forward.7}
  #allocation0 [shape = 'u32[]', space=smem, size = 0x4, offset = 0x4, fixed_abs, tag = 'smem constant byte address 0x4 - core index']
  #allocation1 [shape = 'u32[144,128]{1,0:T(1,128)}', space=vmem, size = 0x12000, scoped, tag = 'internal scratch']
  %s0 = inlined_call_operand.vmem [shape: bf16[32,256], index: 0, kind: input, shape index: {}]
  %s1 = inlined_call_operand.vmem [shape: bf16[256,2048], index: 1, kind: input, shape index: {}]
  %s2 = inlined_call_operand.vmem [shape: f32[32,2048], index: 2, kind: output, shape index: {}]
  %s3 = sld [smem:[#allocation0]]
  $region83: #{generator_b_forward.7} parent=0
    _
  %s5 = ssub.s32 1, %s3
  %s6 = scalar_select 0, %s5, %s3
  $region1: #{generator_b_forward.7} parent=0
    #allocation2 [shape = 'u8[1048576]{0}', space=vmem, size = 0x100000, scoped, tag = 'input window, operand 1']
    #allocation3 [shape = 'u8[262144]{0}', space=vmem, size = 0x40000, scoped, tag = 'output window, operand 0']
    loop: start=0, step=1, limit=4
    $region2: #{generator_b_forward.7} parent=1 // loop_pre_header
      _
    $region3: #{generator_b_forward.7} parent=1 // loop_header
      %s8 = sphi 0, %s12
      %p9 = scmp.ge.s32.totalorder %s8, 4
      %s15 = sphi 0, %s27
      %s16 = sphi 0, %s23
      %s17 = sphi 0, %s15
      %s18 = sphi 0, %s16
      %s19 = sphi 0, %s17
      %s20 = sphi 0, %s18
      %s30 = sphi 0, %s32
      %s33 = sphi 0, %s30
      %s34 = sphi 0, %s33
      %s50 = sphi 0, %s34
      %s56 = sphi 0, %s58
      %s59 = sphi 0, %s56
      %s60 = sphi 0, %s59
      %s76 = sphi 0, %s60
      %s84 = sphi 0, %s86
      %s87 = sphi 0, %s84
      %s88 = sphi 0, %s87
      %s104 = sphi 0, %s88
    $region4: #{generator_b_forward.7} parent=1 // loop_header_branch
      %11 = sbr.rel (%p9) target = $region8
    $region5: #{generator_b_forward.7} parent=1 // loop_body
      %s13 = ssub.s32 %s8, 1
      %s14 = ssub.s32 %s8, 2
      %s21 = sadd.s32 1, %s16
      %p22 = scmp.ge.s32.totalorder %s21, 2
      %s23 = scalar_select %p22, 0, %s21
      %s24 = sadd.s32 1, %s15
      %s25 = scalar_select %p22, %s24, %s15
      %p26 = scmp.ge.s32.totalorder %s25, 1
      %s27 = scalar_select %p26, 0, %s25
      %s28 = ssub.s32 %s15, %s27
      %p29 = scmp.eq.s32.totalorder %s28, 0
      %s31 = sadd.s32 %s30, 1
      %s32 = scalar_select %p29, %s30, %s31
      %p35 = pneg %p29
      %p36 = scmp.eq.s32.totalorder %s8, 1
      %p37 = por %p35, %p36
      %p38 = scmp.ne.s32.totalorder %s30, %s33
      %p39 = scmp.eq.s32.totalorder %s8, 0
      %p40 = por %p38, %p39
      %p41 = scmp.ne.s32.totalorder %s30, %s33
      %p42 = scmp.eq.s32.totalorder %s13, 1
      %p43 = por %p41, %p42
      %p44 = scmp.ne.s32.totalorder %s33, %s34
      %p45 = scmp.eq.s32.totalorder %s13, 0
      %p46 = por %p44, %p45
      %p47 = scmp.ne.s32.totalorder %s33, %s34
      %p48 = scmp.eq.s32.totalorder %s14, 1
      %p49 = por %p47, %p48
      %p51 = scmp.ne.s32.totalorder %s34, %s50
      %p52 = scmp.eq.s32.totalorder %s14, 0
      %p53 = por %p51, %p52
      %s54 = ssub.s32 %s16, %s23
      %p55 = scmp.eq.s32.totalorder %s54, 0
      %s57 = sadd.s32 %s56, 1
      %s58 = scalar_select %p55, %s56, %s57
      %p61 = pneg %p55
      %p62 = scmp.eq.s32.totalorder %s8, 1
      %p63 = por %p61, %p62
      %p64 = scmp.ne.s32.totalorder %s56, %s59
      %p65 = scmp.eq.s32.totalorder %s8, 0
      %p66 = por %p64, %p65
      %p67 = scmp.ne.s32.totalorder %s56, %s59
      %p68 = scmp.eq.s32.totalorder %s13, 1
      %p69 = por %p67, %p68
      %p70 = scmp.ne.s32.totalorder %s59, %s60
      %p71 = scmp.eq.s32.totalorder %s13, 0
      %p72 = por %p70, %p71
      %p73 = scmp.ne.s32.totalorder %s59, %s60
      %p74 = scmp.eq.s32.totalorder %s14, 1
      %p75 = por %p73, %p74
      %p77 = scmp.ne.s32.totalorder %s60, %s76
      %p78 = scmp.eq.s32.totalorder %s14, 0
      %p79 = por %p77, %p78
      %s80 = ssub.s32 %s15, %s27
      %s81 = ssub.s32 %s16, %s23
      %s82 = sor.u32 %s80, %s81
      %p83 = scmp.eq.s32.totalorder %s82, 0
      %s85 = sadd.s32 %s84, 1
      %s86 = scalar_select %p83, %s84, %s85
      %p89 = pneg %p83
      %p90 = scmp.eq.s32.totalorder %s8, 1
      %p91 = por %p89, %p90
      %p92 = scmp.ne.s32.totalorder %s84, %s87
      %p93 = scmp.eq.s32.totalorder %s8, 0
      %p94 = por %p92, %p93
      %p95 = scmp.ne.s32.totalorder %s84, %s87
      %p96 = scmp.eq.s32.totalorder %s13, 1
      %p97 = por %p95, %p96
      %p98 = scmp.ne.s32.totalorder %s87, %s88
      %p99 = scmp.eq.s32.totalorder %s13, 0
      %p100 = por %p98, %p99
      %p101 = scmp.ne.s32.totalorder %s87, %s88
      %p102 = scmp.eq.s32.totalorder %s14, 1
      %p103 = por %p101, %p102
      %p105 = scmp.ne.s32.totalorder %s88, %s104
      %p106 = scmp.eq.s32.totalorder %s14, 0
      %p107 = por %p105, %p106
      %p108 = scmp.le.s32.totalorder 1, %s8
      %p109 = scmp.lt.s32.totalorder %s8, 3
      %p110 = pnand %p108, %p109
      %p111 = pneg %p110
      // Predicated region
      $region9: #{generator_b_forward.7} parent=5 // pred_check
        _
      $region10: #{generator_b_forward.7} parent=5 // pred_check_branch
        %113 = sbr.rel (%p110) target = $region12
      $region11: #{generator_b_forward.7} parent=5 // pred_region
        %s114 = ssub.s32 %s8, 1
        // Predicated region
        $region13: #{generator_b_forward.7} parent=11 // pred_check
          %p115 = pneg %p46
        $region14: #{generator_b_forward.7} parent=11 // pred_check_branch
          %117 = sbr.rel (%p115) target = $region16
        $region15: #{generator_b_forward.7} parent=11 // pred_region
          %s118 = smul.u32 4, %s17
          %p119 = scmp.lt.s32.totalorder %s118, 3
          %s120 = scalar_select %p119, %s118, 3
          %s121 = smul.addr %s120, 2
          %s122 = smul.addr %s121, 4
          %s123 = scalar_lea.vmem %s0, %s122
          %s124 = smul.u32 4, %s17
        $region16: #{generator_b_forward.7} parent=11 // pred_fallthru
          _
      $region12: #{generator_b_forward.7} parent=5 // pred_fallthru
        _
      %p125 = scmp.lt.s32.totalorder %s8, 2
      // Predicated region
      $region17: #{generator_b_forward.7} parent=5 // pred_check
        %p126 = pneg %p125
      $region18: #{generator_b_forward.7} parent=5 // pred_check_branch
        %128 = sbr.rel (%p126) target = $region20
      $region19: #{generator_b_forward.7} parent=5 // pred_region
        // Predicated region
        $region21: #{generator_b_forward.7} parent=19 // pred_check
          %p129 = pneg %p66
        $region22: #{generator_b_forward.7} parent=19 // pred_check_branch
          %131 = sbr.rel (%p129) target = $region24
        $region23: #{generator_b_forward.7} parent=19 // pred_region
          %s132 = sand.u32 %s56, 1
          %s133 = sand.u32 %s56, 1
          %s134 = smul.addr %s133, 1024
          %s135 = scalar_lea.vmem [#allocation2], %s134
          %s136 = smul.u32 8, %s16
          %s137 = smul.addr %s136, 4
          %s138 = scalar_lea.vmem %s1, %s137
          // Predicated region
          $region25: #{generator_b_forward.7} parent=23 // pred_check
            _
          $region26: #{generator_b_forward.7} parent=23 // pred_check_branch
            %140 = sbr.rel (0) target = $region28
          $region27: #{generator_b_forward.7} parent=23 // pred_region
            // Predicated region
            $region29: #{generator_b_forward.7} parent=27 // pred_check
              _
            $region30: #{generator_b_forward.7} parent=27 // pred_check_branch
              %142 = sbr.rel (0) target = $region32
            $region31: #{generator_b_forward.7} parent=27 // pred_region
              loop: start=0, step=1, limit=1
              $region33: #{generator_b_forward.7} parent=31 // loop_pre_header
                _
              $region34: #{generator_b_forward.7} parent=31 // loop_header
                %s144 = sphi 0, %s148
                %p145 = scmp.ge.s32.totalorder %s144, 1
                %s149 = sphi %s138, %s138
                %s150 = sphi %s135, %s135
              $region35: #{generator_b_forward.7} parent=31 // loop_header_branch
                %147 = sbr.rel (%p145) target = $region39
              $region36: #{generator_b_forward.7} parent=31 // loop_body
                %v151 = vld [vmem:[%s149] sm:$0xff]
                %152 = vst [vmem:[%s150] sm:$0xff] %v151
                %v153 = vld [vmem:[%s149 + $0x8] sm:$0xff]
                %154 = vst [vmem:[%s150 + $0x8] sm:$0xff] %v153
                %v155 = vld [vmem:[%s149 + $0x10] sm:$0xff]
                %156 = vst [vmem:[%s150 + $0x10] sm:$0xff] %v155
                %v157 = vld [vmem:[%s149 + $0x18] sm:$0xff]
                %158 = vst [vmem:[%s150 + $0x18] sm:$0xff] %v157
                %v159 = vld [vmem:[%s149 + $0x40] sm:$0xff]
                %160 = vst [vmem:[%s150 + $0x20] sm:$0xff] %v159
                %v161 = vld [vmem:[%s149 + $0x48] sm:$0xff]
                %162 = vst [vmem:[%s150 + $0x28] sm:$0xff] %v161
                %v163 = vld [vmem:[%s149 + $0x50] sm:$0xff]
                %164 = vst [vmem:[%s150 + $0x30] sm:$0xff] %v163
                %v165 = vld [vmem:[%s149 + $0x58] sm:$0xff]
                %166 = vst [vmem:[%s150 + $0x38] sm:$0xff] %v165
                %v167 = vld [vmem:[%s149 + $0x80] sm:$0xff]
                %168 = vst [vmem:[%s150 + $0x40] sm:$0xff] %v167
                %v169 = vld [vmem:[%s149 + $0x88] sm:$0xff]
                %170 = vst [vmem:[%s150 + $0x48] sm:$0xff] %v169
                %v171 = vld [vmem:[%s149 + $0x90] sm:$0xff]
                %172 = vst [vmem:[%s150 + $0x50] sm:$0xff] %v171
                %v173 = vld [vmem:[%s149 + $0x98] sm:$0xff]
                %174 = vst [vmem:[%s150 + $0x58] sm:$0xff] %v173
                %v175 = vld [vmem:[%s149 + $0xc0] sm:$0xff]
                %176 = vst [vmem:[%s150 + $0x60] sm:$0xff] %v175
                %v177 = vld [vmem:[%s149 + $0xc8] sm:$0xff]
                %178 = vst [vmem:[%s150 + $0x68] sm:$0xff] %v177
                %v179 = vld [vmem:[%s149 + $0xd0] sm:$0xff]
                %180 = vst [vmem:[%s150 + $0x70] sm:$0xff] %v179
                %v181 = vld [vmem:[%s149 + $0xd8] sm:$0xff]
                %182 = vst [vmem:[%s150 + $0x78] sm:$0xff] %v181
                %v183 = vld [vmem:[%s149 + $0x100] sm:$0xff]
                %184 = vst [vmem:[%s150 + $0x80] sm:$0xff] %v183
                %v185 = vld [vmem:[%s149 + $0x108] sm:$0xff]
                %186 = vst [vmem:[%s150 + $0x88] sm:$0xff] %v185
                %v187 = vld [vmem:[%s149 + $0x110] sm:$0xff]
                %188 = vst [vmem:[%s150 + $0x90] sm:$0xff] %v187
                %v189 = vld [vmem:[%s149 + $0x118] sm:$0xff]
                %190 = vst [vmem:[%s150 + $0x98] sm:$0xff] %v189
                %v191 = vld [vmem:[%s149 + $0x140] sm:$0xff]
                %192 = vst [vmem:[%s150 + $0xa0] sm:$0xff] %v191
                %v193 = vld [vmem:[%s149 + $0x148] sm:$0xff]
                %194 = vst [vmem:[%s150 + $0xa8] sm:$0xff] %v193
                %v195 = vld [vmem:[%s149 + $0x150] sm:$0xff]
                %196 = vst [vmem:[%s150 + $0xb0] sm:$0xff] %v195
                %v197 = vld [vmem:[%s149 + $0x158] sm:$0xff]
                %198 = vst [vmem:[%s150 + $0xb8] sm:$0xff] %v197
                %v199 = vld [vmem:[%s149 + $0x180] sm:$0xff]
                %200 = vst [vmem:[%s150 + $0xc0] sm:$0xff] %v199
                %v201 = vld [vmem:[%s149 + $0x188] sm:$0xff]
                %202 = vst [vmem:[%s150 + $0xc8] sm:$0xff] %v201
                %v203 = vld [vmem:[%s149 + $0x190] sm:$0xff]
                %204 = vst [vmem:[%s150 + $0xd0] sm:$0xff] %v203
                %v205 = vld [vmem:[%s149 + $0x198] sm:$0xff]
                %206 = vst [vmem:[%s150 + $0xd8] sm:$0xff] %v205
                %v207 = vld [vmem:[%s149 + $0x1c0] sm:$0xff]
                %208 = vst [vmem:[%s150 + $0xe0] sm:$0xff] %v207
                %v209 = vld [vmem:[%s149 + $0x1c8] sm:$0xff]
                %210 = vst [vmem:[%s150 + $0xe8] sm:$0xff] %v209
                %v211 = vld [vmem:[%s149 + $0x1d0] sm:$0xff]
                %212 = vst [vmem:[%s150 + $0xf0] sm:$0xff] %v211
                %v213 = vld [vmem:[%s149 + $0x1d8] sm:$0xff]
                %214 = vst [vmem:[%s150 + $0xf8] sm:$0xff] %v213
                %v215 = vld [vmem:[%s149 + $0x200] sm:$0xff]
                %216 = vst [vmem:[%s150 + $0x100] sm:$0xff] %v215
                %v217 = vld [vmem:[%s149 + $0x208] sm:$0xff]
                %218 = vst [vmem:[%s150 + $0x108] sm:$0xff] %v217
                %v219 = vld [vmem:[%s149 + $0x210] sm:$0xff]
                %220 = vst [vmem:[%s150 + $0x110] sm:$0xff] %v219
                %v221 = vld [vmem:[%s149 + $0x218] sm:$0xff]
                %222 = vst [vmem:[%s150 + $0x118] sm:$0xff] %v221
                %v223 = vld [vmem:[%s149 + $0x240] sm:$0xff]
                %224 = vst [vmem:[%s150 + $0x120] sm:$0xff] %v223
                %v225 = vld [vmem:[%s149 + $0x248] sm:$0xff]
                %226 = vst [vmem:[%s150 + $0x128] sm:$0xff] %v225
                %v227 = vld [vmem:[%s149 + $0x250] sm:$0xff]
                %228 = vst [vmem:[%s150 + $0x130] sm:$0xff] %v227
                %v229 = vld [vmem:[%s149 + $0x258] sm:$0xff]
                %230 = vst [vmem:[%s150 + $0x138] sm:$0xff] %v229
                %v231 = vld [vmem:[%s149 + $0x280] sm:$0xff]
                %232 = vst [vmem:[%s150 + $0x140] sm:$0xff] %v231
                %v233 = vld [vmem:[%s149 + $0x288] sm:$0xff]
                %234 = vst [vmem:[%s150 + $0x148] sm:$0xff] %v233
                %v235 = vld [vmem:[%s149 + $0x290] sm:$0xff]
                %236 = vst [vmem:[%s150 + $0x150] sm:$0xff] %v235
                %v237 = vld [vmem:[%s149 + $0x298] sm:$0xff]
                %238 = vst [vmem:[%s150 + $0x158] sm:$0xff] %v237
                %v239 = vld [vmem:[%s149 + $0x2c0] sm:$0xff]
                %240 = vst [vmem:[%s150 + $0x160] sm:$0xff] %v239
                %v241 = vld [vmem:[%s149 + $0x2c8] sm:$0xff]
                %242 = vst [vmem:[%s150 + $0x168] sm:$0xff] %v241
                %v243 = vld [vmem:[%s149 + $0x2d0] sm:$0xff]
                %244 = vst [vmem:[%s150 + $0x170] sm:$0xff] %v243
                %v245 = vld [vmem:[%s149 + $0x2d8] sm:$0xff]
                %246 = vst [vmem:[%s150 + $0x178] sm:$0xff] %v245
                %v247 = vld [vmem:[%s149 + $0x300] sm:$0xff]
                %248 = vst [vmem:[%s150 + $0x180] sm:$0xff] %v247
                %v249 = vld [vmem:[%s149 + $0x308] sm:$0xff]
                %250 = vst [vmem:[%s150 + $0x188] sm:$0xff] %v249
                %v251 = vld [vmem:[%s149 + $0x310] sm:$0xff]
                %252 = vst [vmem:[%s150 + $0x190] sm:$0xff] %v251
                %v253 = vld [vmem:[%s149 + $0x318] sm:$0xff]
                %254 = vst [vmem:[%s150 + $0x198] sm:$0xff] %v253
                %v255 = vld [vmem:[%s149 + $0x340] sm:$0xff]
                %256 = vst [vmem:[%s150 + $0x1a0] sm:$0xff] %v255
                %v257 = vld [vmem:[%s149 + $0x348] sm:$0xff]
                %258 = vst [vmem:[%s150 + $0x1a8] sm:$0xff] %v257
                %v259 = vld [vmem:[%s149 + $0x350] sm:$0xff]
                %260 = vst [vmem:[%s150 + $0x1b0] sm:$0xff] %v259
                %v261 = vld [vmem:[%s149 + $0x358] sm:$0xff]
                %262 = vst [vmem:[%s150 + $0x1b8] sm:$0xff] %v261
                %v263 = vld [vmem:[%s149 + $0x380] sm:$0xff]
                %264 = vst [vmem:[%s150 + $0x1c0] sm:$0xff] %v263
                %v265 = vld [vmem:[%s149 + $0x388] sm:$0xff]
                %266 = vst [vmem:[%s150 + $0x1c8] sm:$0xff] %v265
                %v267 = vld [vmem:[%s149 + $0x390] sm:$0xff]
                %268 = vst [vmem:[%s150 + $0x1d0] sm:$0xff] %v267
                %v269 = vld [vmem:[%s149 + $0x398] sm:$0xff]
                %270 = vst [vmem:[%s150 + $0x1d8] sm:$0xff] %v269
                %v271 = vld [vmem:[%s149 + $0x3c0] sm:$0xff]
                %272 = vst [vmem:[%s150 + $0x1e0] sm:$0xff] %v271
                %v273 = vld [vmem:[%s149 + $0x3c8] sm:$0xff]
                %274 = vst [vmem:[%s150 + $0x1e8] sm:$0xff] %v273
                %v275 = vld [vmem:[%s149 + $0x3d0] sm:$0xff]
                %276 = vst [vmem:[%s150 + $0x1f0] sm:$0xff] %v275
                %v277 = vld [vmem:[%s149 + $0x3d8] sm:$0xff]
                %278 = vst [vmem:[%s150 + $0x1f8] sm:$0xff] %v277
                %v279 = vld [vmem:[%s149 + $0x400] sm:$0xff]
                %280 = vst [vmem:[%s150 + $0x200] sm:$0xff] %v279
                %v281 = vld [vmem:[%s149 + $0x408] sm:$0xff]
                %282 = vst [vmem:[%s150 + $0x208] sm:$0xff] %v281
                %v283 = vld [vmem:[%s149 + $0x410] sm:$0xff]
                %284 = vst [vmem:[%s150 + $0x210] sm:$0xff] %v283
                %v285 = vld [vmem:[%s149 + $0x418] sm:$0xff]
                %286 = vst [vmem:[%s150 + $0x218] sm:$0xff] %v285
                %v287 = vld [vmem:[%s149 + $0x440] sm:$0xff]
                %288 = vst [vmem:[%s150 + $0x220] sm:$0xff] %v287
                %v289 = vld [vmem:[%s149 + $0x448] sm:$0xff]
                %290 = vst [vmem:[%s150 + $0x228] sm:$0xff] %v289
                %v291 = vld [vmem:[%s149 + $0x450] sm:$0xff]
                %292 = vst [vmem:[%s150 + $0x230] sm:$0xff] %v291
                %v293 = vld [vmem:[%s149 + $0x458] sm:$0xff]
                %294 = vst [vmem:[%s150 + $0x238] sm:$0xff] %v293
                %v295 = vld [vmem:[%s149 + $0x480] sm:$0xff]
                %296 = vst [vmem:[%s150 + $0x240] sm:$0xff] %v295
                %v297 = vld [vmem:[%s149 + $0x488] sm:$0xff]
                %298 = vst [vmem:[%s150 + $0x248] sm:$0xff] %v297
                %v299 = vld [vmem:[%s149 + $0x490] sm:$0xff]
                %300 = vst [vmem:[%s150 + $0x250] sm:$0xff] %v299
                %v301 = vld [vmem:[%s149 + $0x498] sm:$0xff]
                %302 = vst [vmem:[%s150 + $0x258] sm:$0xff] %v301
                %v303 = vld [vmem:[%s149 + $0x4c0] sm:$0xff]
                %304 = vst [vmem:[%s150 + $0x260] sm:$0xff] %v303
                %v305 = vld [vmem:[%s149 + $0x4c8] sm:$0xff]
                %306 = vst [vmem:[%s150 + $0x268] sm:$0xff] %v305
                %v307 = vld [vmem:[%s149 + $0x4d0] sm:$0xff]
                %308 = vst [vmem:[%s150 + $0x270] sm:$0xff] %v307
                %v309 = vld [vmem:[%s149 + $0x4d8] sm:$0xff]
                %310 = vst [vmem:[%s150 + $0x278] sm:$0xff] %v309
                %v311 = vld [vmem:[%s149 + $0x500] sm:$0xff]
                %312 = vst [vmem:[%s150 + $0x280] sm:$0xff] %v311
                %v313 = vld [vmem:[%s149 + $0x508] sm:$0xff]
                %314 = vst [vmem:[%s150 + $0x288] sm:$0xff] %v313
                %v315 = vld [vmem:[%s149 + $0x510] sm:$0xff]
                %316 = vst [vmem:[%s150 + $0x290] sm:$0xff] %v315
                %v317 = vld [vmem:[%s149 + $0x518] sm:$0xff]
                %318 = vst [vmem:[%s150 + $0x298] sm:$0xff] %v317
                %v319 = vld [vmem:[%s149 + $0x540] sm:$0xff]
                %320 = vst [vmem:[%s150 + $0x2a0] sm:$0xff] %v319
                %v321 = vld [vmem:[%s149 + $0x548] sm:$0xff]
                %322 = vst [vmem:[%s150 + $0x2a8] sm:$0xff] %v321
                %v323 = vld [vmem:[%s149 + $0x550] sm:$0xff]
                %324 = vst [vmem:[%s150 + $0x2b0] sm:$0xff] %v323
                %v325 = vld [vmem:[%s149 + $0x558] sm:$0xff]
                %326 = vst [vmem:[%s150 + $0x2b8] sm:$0xff] %v325
                %v327 = vld [vmem:[%s149 + $0x580] sm:$0xff]
                %328 = vst [vmem:[%s150 + $0x2c0] sm:$0xff] %v327
                %v329 = vld [vmem:[%s149 + $0x588] sm:$0xff]
                %330 = vst [vmem:[%s150 + $0x2c8] sm:$0xff] %v329
                %v331 = vld [vmem:[%s149 + $0x590] sm:$0xff]
                %332 = vst [vmem:[%s150 + $0x2d0] sm:$0xff] %v331
                %v333 = vld [vmem:[%s149 + $0x598] sm:$0xff]
                %334 = vst [vmem:[%s150 + $0x2d8] sm:$0xff] %v333
                %v335 = vld [vmem:[%s149 + $0x5c0] sm:$0xff]
                %336 = vst [vmem:[%s150 + $0x2e0] sm:$0xff] %v335
                %v337 = vld [vmem:[%s149 + $0x5c8] sm:$0xff]
                %338 = vst [vmem:[%s150 + $0x2e8] sm:$0xff] %v337
                %v339 = vld [vmem:[%s149 + $0x5d0] sm:$0xff]
                %340 = vst [vmem:[%s150 + $0x2f0] sm:$0xff] %v339
                %v341 = vld [vmem:[%s149 + $0x5d8] sm:$0xff]
                %342 = vst [vmem:[%s150 + $0x2f8] sm:$0xff] %v341
                %v343 = vld [vmem:[%s149 + $0x600] sm:$0xff]
                %344 = vst [vmem:[%s150 + $0x300] sm:$0xff] %v343
                %v345 = vld [vmem:[%s149 + $0x608] sm:$0xff]
                %346 = vst [vmem:[%s150 + $0x308] sm:$0xff] %v345
                %v347 = vld [vmem:[%s149 + $0x610] sm:$0xff]
                %348 = vst [vmem:[%s150 + $0x310] sm:$0xff] %v347
                %v349 = vld [vmem:[%s149 + $0x618] sm:$0xff]
                %350 = vst [vmem:[%s150 + $0x318] sm:$0xff] %v349
                %v351 = vld [vmem:[%s149 + $0x640] sm:$0xff]
                %352 = vst [vmem:[%s150 + $0x320] sm:$0xff] %v351
                %v353 = vld [vmem:[%s149 + $0x648] sm:$0xff]
                %354 = vst [vmem:[%s150 + $0x328] sm:$0xff] %v353
                %v355 = vld [vmem:[%s149 + $0x650] sm:$0xff]
                %356 = vst [vmem:[%s150 + $0x330] sm:$0xff] %v355
                %v357 = vld [vmem:[%s149 + $0x658] sm:$0xff]
                %358 = vst [vmem:[%s150 + $0x338] sm:$0xff] %v357
                %v359 = vld [vmem:[%s149 + $0x680] sm:$0xff]
                %360 = vst [vmem:[%s150 + $0x340] sm:$0xff] %v359
                %v361 = vld [vmem:[%s149 + $0x688] sm:$0xff]
                %362 = vst [vmem:[%s150 + $0x348] sm:$0xff] %v361
                %v363 = vld [vmem:[%s149 + $0x690] sm:$0xff]
                %364 = vst [vmem:[%s150 + $0x350] sm:$0xff] %v363
                %v365 = vld [vmem:[%s149 + $0x698] sm:$0xff]
                %366 = vst [vmem:[%s150 + $0x358] sm:$0xff] %v365
                %v367 = vld [vmem:[%s149 + $0x6c0] sm:$0xff]
                %368 = vst [vmem:[%s150 + $0x360] sm:$0xff] %v367
                %v369 = vld [vmem:[%s149 + $0x6c8] sm:$0xff]
                %370 = vst [vmem:[%s150 + $0x368] sm:$0xff] %v369
                %v371 = vld [vmem:[%s149 + $0x6d0] sm:$0xff]
                %372 = vst [vmem:[%s150 + $0x370] sm:$0xff] %v371
                %v373 = vld [vmem:[%s149 + $0x6d8] sm:$0xff]
                %374 = vst [vmem:[%s150 + $0x378] sm:$0xff] %v373
                %v375 = vld [vmem:[%s149 + $0x700] sm:$0xff]
                %376 = vst [vmem:[%s150 + $0x380] sm:$0xff] %v375
                %v377 = vld [vmem:[%s149 + $0x708] sm:$0xff]
                %378 = vst [vmem:[%s150 + $0x388] sm:$0xff] %v377
                %v379 = vld [vmem:[%s149 + $0x710] sm:$0xff]
                %380 = vst [vmem:[%s150 + $0x390] sm:$0xff] %v379
                %v381 = vld [vmem:[%s149 + $0x718] sm:$0xff]
                %382 = vst [vmem:[%s150 + $0x398] sm:$0xff] %v381
                %v383 = vld [vmem:[%s149 + $0x740] sm:$0xff]
                %384 = vst [vmem:[%s150 + $0x3a0] sm:$0xff] %v383
                %v385 = vld [vmem:[%s149 + $0x748] sm:$0xff]
                %386 = vst [vmem:[%s150 + $0x3a8] sm:$0xff] %v385
                %v387 = vld [vmem:[%s149 + $0x750] sm:$0xff]
                %388 = vst [vmem:[%s150 + $0x3b0] sm:$0xff] %v387
                %v389 = vld [vmem:[%s149 + $0x758] sm:$0xff]
                %390 = vst [vmem:[%s150 + $0x3b8] sm:$0xff] %v389
                %v391 = vld [vmem:[%s149 + $0x780] sm:$0xff]
                %392 = vst [vmem:[%s150 + $0x3c0] sm:$0xff] %v391
                %v393 = vld [vmem:[%s149 + $0x788] sm:$0xff]
                %394 = vst [vmem:[%s150 + $0x3c8] sm:$0xff] %v393
                %v395 = vld [vmem:[%s149 + $0x790] sm:$0xff]
                %396 = vst [vmem:[%s150 + $0x3d0] sm:$0xff] %v395
                %v397 = vld [vmem:[%s149 + $0x798] sm:$0xff]
                %398 = vst [vmem:[%s150 + $0x3d8] sm:$0xff] %v397
                %v399 = vld [vmem:[%s149 + $0x7c0] sm:$0xff]
                %400 = vst [vmem:[%s150 + $0x3e0] sm:$0xff] %v399
                %v401 = vld [vmem:[%s149 + $0x7c8] sm:$0xff]
                %402 = vst [vmem:[%s150 + $0x3e8] sm:$0xff] %v401
                %v403 = vld [vmem:[%s149 + $0x7d0] sm:$0xff]
                %404 = vst [vmem:[%s150 + $0x3f0] sm:$0xff] %v403
                %v405 = vld [vmem:[%s149 + $0x7d8] sm:$0xff]
                %406 = vst [vmem:[%s150 + $0x3f8] sm:$0xff] %v405
              $region37: #{generator_b_forward.7} parent=31 // loop_footer
                %s148 = sadd.s32 1, %s144
              $region38: #{generator_b_forward.7} parent=31 // loop_footer_branch
                %143 = sbr.rel target = $region34
              $region39: #{generator_b_forward.7} parent=31 // loop_exit
                _
            $region32: #{generator_b_forward.7} parent=27 // pred_fallthru
              _
            // Predicated region
            $region40: #{generator_b_forward.7} parent=27 // pred_check
              _
            $region41: #{generator_b_forward.7} parent=27 // pred_check_branch
              %408 = sbr.rel target = $region43
            $region42: #{generator_b_forward.7} parent=27 // pred_region
              _
            $region43: #{generator_b_forward.7} parent=27 // pred_fallthru
              _
          $region28: #{generator_b_forward.7} parent=23 // pred_fallthru
            _
          %409 = vnop
        $region24: #{generator_b_forward.7} parent=19 // pred_fallthru
          _
      $region20: #{generator_b_forward.7} parent=5 // pred_fallthru
        _
      %p410 = scmp.le.s32.totalorder 1, %s8
      %p411 = scmp.lt.s32.totalorder %s8, 3
      %p412 = pnand %p410, %p411
      %p413 = pneg %p412
      // Predicated region
      $region44: #{generator_b_forward.7} parent=5 // pred_check
        _
      $region45: #{generator_b_forward.7} parent=5 // pred_check_branch
        %415 = sbr.rel (%p412) target = $region47
      $region46: #{generator_b_forward.7} parent=5 // pred_region
        %s416 = ssub.s32 %s8, 1
        %s417 = sand.u32 %s59, 1
        %s418 = sand.u32 %s59, 1
        %s419 = smul.addr %s418, 1024
        %s420 = scalar_lea.vmem [#allocation2], %s419
        // Predicated region
        $region48: #{generator_b_forward.7} parent=46 // pred_check
          %p421 = pneg %p72
        $region49: #{generator_b_forward.7} parent=46 // pred_check_branch
          %423 = sbr.rel (%p421) target = $region51
        $region50: #{generator_b_forward.7} parent=46 // pred_region
          _
        $region51: #{generator_b_forward.7} parent=46 // pred_fallthru
          _
        %s424 = smul.u32 4, %s17
        %p425 = scmp.lt.s32.totalorder %s424, 3
        %s426 = scalar_select %p425, %s424, 3
        %s427 = smul.addr %s426, 2
        %s428 = smul.addr %s427, 4
        %s429 = scalar_lea.vmem %s0, %s428
        %p430 = pneg %p46
        %p431 = pneg %p43
        %s432 = sand.u32 %s59, 1
        %s433 = sand.u32 %s59, 1
        %s434 = smul.addr %s433, 1024
        %s435 = scalar_lea.vmem [#allocation2], %s434
        %p436 = pneg %p72
        %p437 = pneg %p69
        %p438 = pneg %p100
        %p439 = pneg %p97
        %s440 = sand.u32 %s87, 1
        %s441 = sand.u32 %s87, 1
        %s442 = smul.addr %s441, 256
        %s443 = scalar_lea.vmem [#allocation3], %s442
        %s444 = smul.u32 4, %s17
        %p445 = scmp.lt.s32.totalorder %s444, 3
        %s446 = scalar_select %p445, %s444, 3
        %s447 = smul.addr %s446, 2
        %s448 = smul.addr %s447, 4
        %s449 = scalar_lea.vmem %s0, %s448
        %s450 = smul.u32 4, %s17
        %s451 = smul.u32 8, %s18
        %s452 = smul.u32 4, %s17
        %s453 = smul.u32 8, %s18
        %v454 = vld [vmem:[%s449] sm:$0xff]
        %v455 = vld [vmem:[%s449 + $0x8] sm:$0xff]
        %v456 = vld [vmem:[%s449 + $0x10] sm:$0xff]
        %v457 = vld [vmem:[%s449 + $0x18] sm:$0xff]
        %v458 = vld [vmem:[%s420] sm:$0xff]
        %v459 = vld [vmem:[%s420 + $0x8] sm:$0xff]
        %v460 = vld [vmem:[%s420 + $0x10] sm:$0xff]
        %v461 = vld [vmem:[%s420 + $0x18] sm:$0xff]
        %v462 = vld [vmem:[%s420 + $0x20] sm:$0xff]
        %v463 = vld [vmem:[%s420 + $0x28] sm:$0xff]
        %v464 = vld [vmem:[%s420 + $0x30] sm:$0xff]
        %v465 = vld [vmem:[%s420 + $0x38] sm:$0xff]
        %v466 = vld [vmem:[%s420 + $0x40] sm:$0xff]
        %v467 = vld [vmem:[%s420 + $0x48] sm:$0xff]
        %v468 = vld [vmem:[%s420 + $0x50] sm:$0xff]
        %v469 = vld [vmem:[%s420 + $0x58] sm:$0xff]
        %v470 = vld [vmem:[%s420 + $0x60] sm:$0xff]
        %v471 = vld [vmem:[%s420 + $0x68] sm:$0xff]
        %v472 = vld [vmem:[%s420 + $0x70] sm:$0xff]
        %v473 = vld [vmem:[%s420 + $0x78] sm:$0xff]
        %v474 = vld [vmem:[%s420 + $0x80] sm:$0xff]
        %v475 = vld [vmem:[%s420 + $0x88] sm:$0xff]
        %v476 = vld [vmem:[%s420 + $0x90] sm:$0xff]
        %v477 = vld [vmem:[%s420 + $0x98] sm:$0xff]
        %v478 = vld [vmem:[%s420 + $0xa0] sm:$0xff]
        %v479 = vld [vmem:[%s420 + $0xa8] sm:$0xff]
        %v480 = vld [vmem:[%s420 + $0xb0] sm:$0xff]
        %v481 = vld [vmem:[%s420 + $0xb8] sm:$0xff]
        %v482 = vld [vmem:[%s420 + $0xc0] sm:$0xff]
        %v483 = vld [vmem:[%s420 + $0xc8] sm:$0xff]
        %v484 = vld [vmem:[%s420 + $0xd0] sm:$0xff]
        %v485 = vld [vmem:[%s420 + $0xd8] sm:$0xff]
        %v486 = vld [vmem:[%s420 + $0xe0] sm:$0xff]
        %v487 = vld [vmem:[%s420 + $0xe8] sm:$0xff]
        %v488 = vld [vmem:[%s420 + $0xf0] sm:$0xff]
        %v489 = vld [vmem:[%s420 + $0xf8] sm:$0xff]
        %v490 = vld [vmem:[%s420 + $0x100] sm:$0xff]
        %v491 = vld [vmem:[%s420 + $0x108] sm:$0xff]
        %v492 = vld [vmem:[%s420 + $0x110] sm:$0xff]
        %v493 = vld [vmem:[%s420 + $0x118] sm:$0xff]
        %v494 = vld [vmem:[%s420 + $0x120] sm:$0xff]
        %v495 = vld [vmem:[%s420 + $0x128] sm:$0xff]
        %v496 = vld [vmem:[%s420 + $0x130] sm:$0xff]
        %v497 = vld [vmem:[%s420 + $0x138] sm:$0xff]
        %v498 = vld [vmem:[%s420 + $0x140] sm:$0xff]
        %v499 = vld [vmem:[%s420 + $0x148] sm:$0xff]
        %v500 = vld [vmem:[%s420 + $0x150] sm:$0xff]
        %v501 = vld [vmem:[%s420 + $0x158] sm:$0xff]
        %v502 = vld [vmem:[%s420 + $0x160] sm:$0xff]
        %v503 = vld [vmem:[%s420 + $0x168] sm:$0xff]
        %v504 = vld [vmem:[%s420 + $0x170] sm:$0xff]
        %v505 = vld [vmem:[%s420 + $0x178] sm:$0xff]
        %v506 = vld [vmem:[%s420 + $0x180] sm:$0xff]
        %v507 = vld [vmem:[%s420 + $0x188] sm:$0xff]
        %v508 = vld [vmem:[%s420 + $0x190] sm:$0xff]
        %v509 = vld [vmem:[%s420 + $0x198] sm:$0xff]
        %v510 = vld [vmem:[%s420 + $0x1a0] sm:$0xff]
        %v511 = vld [vmem:[%s420 + $0x1a8] sm:$0xff]
        %v512 = vld [vmem:[%s420 + $0x1b0] sm:$0xff]
        %v513 = vld [vmem:[%s420 + $0x1b8] sm:$0xff]
        %v514 = vld [vmem:[%s420 + $0x1c0] sm:$0xff]
        %v515 = vld [vmem:[%s420 + $0x1c8] sm:$0xff]
        %v516 = vld [vmem:[%s420 + $0x1d0] sm:$0xff]
        %v517 = vld [vmem:[%s420 + $0x1d8] sm:$0xff]
        %v518 = vld [vmem:[%s420 + $0x1e0] sm:$0xff]
        %v519 = vld [vmem:[%s420 + $0x1e8] sm:$0xff]
        %v520 = vld [vmem:[%s420 + $0x1f0] sm:$0xff]
        %v521 = vld [vmem:[%s420 + $0x1f8] sm:$0xff]
        %v522 = vld [vmem:[%s420 + $0x200] sm:$0xff]
        %v523 = vld [vmem:[%s420 + $0x208] sm:$0xff]
        %v524 = vld [vmem:[%s420 + $0x210] sm:$0xff]
        %v525 = vld [vmem:[%s420 + $0x218] sm:$0xff]
        %v526 = vld [vmem:[%s420 + $0x220] sm:$0xff]
        %v527 = vld [vmem:[%s420 + $0x228] sm:$0xff]
        %v528 = vld [vmem:[%s420 + $0x230] sm:$0xff]
        %v529 = vld [vmem:[%s420 + $0x238] sm:$0xff]
        %v530 = vld [vmem:[%s420 + $0x240] sm:$0xff]
        %v531 = vld [vmem:[%s420 + $0x248] sm:$0xff]
        %v532 = vld [vmem:[%s420 + $0x250] sm:$0xff]
        %v533 = vld [vmem:[%s420 + $0x258] sm:$0xff]
        %v534 = vld [vmem:[%s420 + $0x260] sm:$0xff]
        %v535 = vld [vmem:[%s420 + $0x268] sm:$0xff]
        %v536 = vld [vmem:[%s420 + $0x270] sm:$0xff]
        %v537 = vld [vmem:[%s420 + $0x278] sm:$0xff]
        %v538 = vld [vmem:[%s420 + $0x280] sm:$0xff]
        %v539 = vld [vmem:[%s420 + $0x288] sm:$0xff]
        %v540 = vld [vmem:[%s420 + $0x290] sm:$0xff]
        %v541 = vld [vmem:[%s420 + $0x298] sm:$0xff]
        %v542 = vld [vmem:[%s420 + $0x2a0] sm:$0xff]
        %v543 = vld [vmem:[%s420 + $0x2a8] sm:$0xff]
        %v544 = vld [vmem:[%s420 + $0x2b0] sm:$0xff]
        %v545 = vld [vmem:[%s420 + $0x2b8] sm:$0xff]
        %v546 = vld [vmem:[%s420 + $0x2c0] sm:$0xff]
        %v547 = vld [vmem:[%s420 + $0x2c8] sm:$0xff]
        %v548 = vld [vmem:[%s420 + $0x2d0] sm:$0xff]
        %v549 = vld [vmem:[%s420 + $0x2d8] sm:$0xff]
        %v550 = vld [vmem:[%s420 + $0x2e0] sm:$0xff]
        %v551 = vld [vmem:[%s420 + $0x2e8] sm:$0xff]
        %v552 = vld [vmem:[%s420 + $0x2f0] sm:$0xff]
        %v553 = vld [vmem:[%s420 + $0x2f8] sm:$0xff]
        %v554 = vld [vmem:[%s420 + $0x300] sm:$0xff]
        %v555 = vld [vmem:[%s420 + $0x308] sm:$0xff]
        %v556 = vld [vmem:[%s420 + $0x310] sm:$0xff]
        %v557 = vld [vmem:[%s420 + $0x318] sm:$0xff]
        %v558 = vld [vmem:[%s420 + $0x320] sm:$0xff]
        %v559 = vld [vmem:[%s420 + $0x328] sm:$0xff]
        %v560 = vld [vmem:[%s420 + $0x330] sm:$0xff]
        %v561 = vld [vmem:[%s420 + $0x338] sm:$0xff]
        %v562 = vld [vmem:[%s420 + $0x340] sm:$0xff]
        %v563 = vld [vmem:[%s420 + $0x348] sm:$0xff]
        %v564 = vld [vmem:[%s420 + $0x350] sm:$0xff]
        %v565 = vld [vmem:[%s420 + $0x358] sm:$0xff]
        %v566 = vld [vmem:[%s420 + $0x360] sm:$0xff]
        %v567 = vld [vmem:[%s420 + $0x368] sm:$0xff]
        %v568 = vld [vmem:[%s420 + $0x370] sm:$0xff]
        %v569 = vld [vmem:[%s420 + $0x378] sm:$0xff]
        %v570 = vld [vmem:[%s420 + $0x380] sm:$0xff]
        %v571 = vld [vmem:[%s420 + $0x388] sm:$0xff]
        %v572 = vld [vmem:[%s420 + $0x390] sm:$0xff]
        %v573 = vld [vmem:[%s420 + $0x398] sm:$0xff]
        %v574 = vld [vmem:[%s420 + $0x3a0] sm:$0xff]
        %v575 = vld [vmem:[%s420 + $0x3a8] sm:$0xff]
        %v576 = vld [vmem:[%s420 + $0x3b0] sm:$0xff]
        %v577 = vld [vmem:[%s420 + $0x3b8] sm:$0xff]
        %v578 = vld [vmem:[%s420 + $0x3c0] sm:$0xff]
        %v579 = vld [vmem:[%s420 + $0x3c8] sm:$0xff]
        %v580 = vld [vmem:[%s420 + $0x3d0] sm:$0xff]
        %v581 = vld [vmem:[%s420 + $0x3d8] sm:$0xff]
        %v582 = vld [vmem:[%s420 + $0x3e0] sm:$0xff]
        %v583 = vld [vmem:[%s420 + $0x3e8] sm:$0xff]
        %v584 = vld [vmem:[%s420 + $0x3f0] sm:$0xff]
        %v585 = vld [vmem:[%s420 + $0x3f8] sm:$0xff]
        %v590 = vunpack.c.l.b16 %v454
        %v591 = vunpack.c.h.b16 %v454
        %v592 = vunpack.c.l.b16 %v455
        %v593 = vunpack.c.h.b16 %v455
        %v594 = vunpack.c.l.b16 %v456
        %v595 = vunpack.c.h.b16 %v456
        %v596 = vunpack.c.l.b16 %v457
        %v597 = vunpack.c.h.b16 %v457
        %v598 = vpack.c.b16 %v592, %v590
        %v599 = vpack.c.b16 %v593, %v591
        %v600 = vpack.c.b16 %v596, %v594
        %v601 = vpack.c.b16 %v597, %v595
        %v734 = vunpack.c.l.b16 %v458
        %v735 = vunpack.c.h.b16 %v458
        %v736 = vunpack.c.l.b16 %v459
        %v737 = vunpack.c.h.b16 %v459
        %v738 = vunpack.c.l.b16 %v460
        %v739 = vunpack.c.h.b16 %v460
        %v740 = vunpack.c.l.b16 %v461
        %v741 = vunpack.c.h.b16 %v461
        %v742 = vunpack.c.l.b16 %v462
        %v743 = vunpack.c.h.b16 %v462
        %v744 = vunpack.c.l.b16 %v463
        %v745 = vunpack.c.h.b16 %v463
        %v746 = vunpack.c.l.b16 %v464
        %v747 = vunpack.c.h.b16 %v464
        %v748 = vunpack.c.l.b16 %v465
        %v749 = vunpack.c.h.b16 %v465
        %v750 = vunpack.c.l.b16 %v466
        %v751 = vunpack.c.h.b16 %v466
        %v752 = vunpack.c.l.b16 %v467
        %v753 = vunpack.c.h.b16 %v467
        %v754 = vunpack.c.l.b16 %v468
        %v755 = vunpack.c.h.b16 %v468
        %v756 = vunpack.c.l.b16 %v469
        %v757 = vunpack.c.h.b16 %v469
        %v758 = vunpack.c.l.b16 %v470
        %v759 = vunpack.c.h.b16 %v470
        %v760 = vunpack.c.l.b16 %v471
        %v761 = vunpack.c.h.b16 %v471
        %v762 = vunpack.c.l.b16 %v472
        %v763 = vunpack.c.h.b16 %v472
        %v764 = vunpack.c.l.b16 %v473
        %v765 = vunpack.c.h.b16 %v473
        %v766 = vunpack.c.l.b16 %v474
        %v767 = vunpack.c.h.b16 %v474
        %v768 = vunpack.c.l.b16 %v475
        %v769 = vunpack.c.h.b16 %v475
        %v770 = vunpack.c.l.b16 %v476
        %v771 = vunpack.c.h.b16 %v476
        %v772 = vunpack.c.l.b16 %v477
        %v773 = vunpack.c.h.b16 %v477
        %v774 = vunpack.c.l.b16 %v478
        %v775 = vunpack.c.h.b16 %v478
        %v776 = vunpack.c.l.b16 %v479
        %v777 = vunpack.c.h.b16 %v479
        %v778 = vunpack.c.l.b16 %v480
        %v779 = vunpack.c.h.b16 %v480
        %v780 = vunpack.c.l.b16 %v481
        %v781 = vunpack.c.h.b16 %v481
        %v782 = vunpack.c.l.b16 %v482
        %v783 = vunpack.c.h.b16 %v482
        %v784 = vunpack.c.l.b16 %v483
        %v785 = vunpack.c.h.b16 %v483
        %v786 = vunpack.c.l.b16 %v484
        %v787 = vunpack.c.h.b16 %v484
        %v788 = vunpack.c.l.b16 %v485
        %v789 = vunpack.c.h.b16 %v485
        %v790 = vunpack.c.l.b16 %v486
        %v791 = vunpack.c.h.b16 %v486
        %v792 = vunpack.c.l.b16 %v487
        %v793 = vunpack.c.h.b16 %v487
        %v794 = vunpack.c.l.b16 %v488
        %v795 = vunpack.c.h.b16 %v488
        %v796 = vunpack.c.l.b16 %v489
        %v797 = vunpack.c.h.b16 %v489
        %v798 = vunpack.c.l.b16 %v490
        %v799 = vunpack.c.h.b16 %v490
        %v800 = vunpack.c.l.b16 %v491
        %v801 = vunpack.c.h.b16 %v491
        %v802 = vunpack.c.l.b16 %v492
        %v803 = vunpack.c.h.b16 %v492
        %v804 = vunpack.c.l.b16 %v493
        %v805 = vunpack.c.h.b16 %v493
        %v806 = vunpack.c.l.b16 %v494
        %v807 = vunpack.c.h.b16 %v494
        %v808 = vunpack.c.l.b16 %v495
        %v809 = vunpack.c.h.b16 %v495
        %v810 = vunpack.c.l.b16 %v496
        %v811 = vunpack.c.h.b16 %v496
        %v812 = vunpack.c.l.b16 %v497
        %v813 = vunpack.c.h.b16 %v497
        %v814 = vunpack.c.l.b16 %v498
        %v815 = vunpack.c.h.b16 %v498
        %v816 = vunpack.c.l.b16 %v499
        %v817 = vunpack.c.h.b16 %v499
        %v818 = vunpack.c.l.b16 %v500
        %v819 = vunpack.c.h.b16 %v500
        %v820 = vunpack.c.l.b16 %v501
        %v821 = vunpack.c.h.b16 %v501
        %v822 = vunpack.c.l.b16 %v502
        %v823 = vunpack.c.h.b16 %v502
        %v824 = vunpack.c.l.b16 %v503
        %v825 = vunpack.c.h.b16 %v503
        %v826 = vunpack.c.l.b16 %v504
        %v827 = vunpack.c.h.b16 %v504
        %v828 = vunpack.c.l.b16 %v505
        %v829 = vunpack.c.h.b16 %v505
        %v830 = vunpack.c.l.b16 %v506
        %v831 = vunpack.c.h.b16 %v506
        %v832 = vunpack.c.l.b16 %v507
        %v833 = vunpack.c.h.b16 %v507
        %v834 = vunpack.c.l.b16 %v508
        %v835 = vunpack.c.h.b16 %v508
        %v836 = vunpack.c.l.b16 %v509
        %v837 = vunpack.c.h.b16 %v509
        %v838 = vunpack.c.l.b16 %v510
        %v839 = vunpack.c.h.b16 %v510
        %v840 = vunpack.c.l.b16 %v511
        %v841 = vunpack.c.h.b16 %v511
        %v842 = vunpack.c.l.b16 %v512
        %v843 = vunpack.c.h.b16 %v512
        %v844 = vunpack.c.l.b16 %v513
        %v845 = vunpack.c.h.b16 %v513
        %v846 = vunpack.c.l.b16 %v514
        %v847 = vunpack.c.h.b16 %v514
        %v848 = vunpack.c.l.b16 %v515
        %v849 = vunpack.c.h.b16 %v515
        %v850 = vunpack.c.l.b16 %v516
        %v851 = vunpack.c.h.b16 %v516
        %v852 = vunpack.c.l.b16 %v517
        %v853 = vunpack.c.h.b16 %v517
        %v854 = vunpack.c.l.b16 %v518
        %v855 = vunpack.c.h.b16 %v518
        %v856 = vunpack.c.l.b16 %v519
        %v857 = vunpack.c.h.b16 %v519
        %v858 = vunpack.c.l.b16 %v520
        %v859 = vunpack.c.h.b16 %v520
        %v860 = vunpack.c.l.b16 %v521
        %v861 = vunpack.c.h.b16 %v521
        %v862 = vunpack.c.l.b16 %v522
        %v863 = vunpack.c.h.b16 %v522
        %v864 = vunpack.c.l.b16 %v523
        %v865 = vunpack.c.h.b16 %v523
        %v866 = vunpack.c.l.b16 %v524
        %v867 = vunpack.c.h.b16 %v524
        %v868 = vunpack.c.l.b16 %v525
        %v869 = vunpack.c.h.b16 %v525
        %v870 = vunpack.c.l.b16 %v526
        %v871 = vunpack.c.h.b16 %v526
        %v872 = vunpack.c.l.b16 %v527
        %v873 = vunpack.c.h.b16 %v527
        %v874 = vunpack.c.l.b16 %v528
        %v875 = vunpack.c.h.b16 %v528
        %v876 = vunpack.c.l.b16 %v529
        %v877 = vunpack.c.h.b16 %v529
        %v878 = vunpack.c.l.b16 %v530
        %v879 = vunpack.c.h.b16 %v530
        %v880 = vunpack.c.l.b16 %v531
        %v881 = vunpack.c.h.b16 %v531
        %v882 = vunpack.c.l.b16 %v532
        %v883 = vunpack.c.h.b16 %v532
        %v884 = vunpack.c.l.b16 %v533
        %v885 = vunpack.c.h.b16 %v533
        %v886 = vunpack.c.l.b16 %v534
        %v887 = vunpack.c.h.b16 %v534
        %v888 = vunpack.c.l.b16 %v535
        %v889 = vunpack.c.h.b16 %v535
        %v890 = vunpack.c.l.b16 %v536
        %v891 = vunpack.c.h.b16 %v536
        %v892 = vunpack.c.l.b16 %v537
        %v893 = vunpack.c.h.b16 %v537
        %v894 = vunpack.c.l.b16 %v538
        %v895 = vunpack.c.h.b16 %v538
        %v896 = vunpack.c.l.b16 %v539
        %v897 = vunpack.c.h.b16 %v539
        %v898 = vunpack.c.l.b16 %v540
        %v899 = vunpack.c.h.b16 %v540
        %v900 = vunpack.c.l.b16 %v541
        %v901 = vunpack.c.h.b16 %v541
        %v902 = vunpack.c.l.b16 %v542
        %v903 = vunpack.c.h.b16 %v542
        %v904 = vunpack.c.l.b16 %v543
        %v905 = vunpack.c.h.b16 %v543
        %v906 = vunpack.c.l.b16 %v544
        %v907 = vunpack.c.h.b16 %v544
        %v908 = vunpack.c.l.b16 %v545
        %v909 = vunpack.c.h.b16 %v545
        %v910 = vunpack.c.l.b16 %v546
        %v911 = vunpack.c.h.b16 %v546
        %v912 = vunpack.c.l.b16 %v547
        %v913 = vunpack.c.h.b16 %v547
        %v914 = vunpack.c.l.b16 %v548
        %v915 = vunpack.c.h.b16 %v548
        %v916 = vunpack.c.l.b16 %v549
        %v917 = vunpack.c.h.b16 %v549
        %v918 = vunpack.c.l.b16 %v550
        %v919 = vunpack.c.h.b16 %v550
        %v920 = vunpack.c.l.b16 %v551
        %v921 = vunpack.c.h.b16 %v551
        %v922 = vunpack.c.l.b16 %v552
        %v923 = vunpack.c.h.b16 %v552
        %v924 = vunpack.c.l.b16 %v553
        %v925 = vunpack.c.h.b16 %v553
        %v926 = vunpack.c.l.b16 %v554
        %v927 = vunpack.c.h.b16 %v554
        %v928 = vunpack.c.l.b16 %v555
        %v929 = vunpack.c.h.b16 %v555
        %v930 = vunpack.c.l.b16 %v556
        %v931 = vunpack.c.h.b16 %v556
        %v932 = vunpack.c.l.b16 %v557
        %v933 = vunpack.c.h.b16 %v557
        %v934 = vunpack.c.l.b16 %v558
        %v935 = vunpack.c.h.b16 %v558
        %v936 = vunpack.c.l.b16 %v559
        %v937 = vunpack.c.h.b16 %v559
        %v938 = vunpack.c.l.b16 %v560
        %v939 = vunpack.c.h.b16 %v560
        %v940 = vunpack.c.l.b16 %v561
        %v941 = vunpack.c.h.b16 %v561
        %v942 = vunpack.c.l.b16 %v562
        %v943 = vunpack.c.h.b16 %v562
        %v944 = vunpack.c.l.b16 %v563
        %v945 = vunpack.c.h.b16 %v563
        %v946 = vunpack.c.l.b16 %v564
        %v947 = vunpack.c.h.b16 %v564
        %v948 = vunpack.c.l.b16 %v565
        %v949 = vunpack.c.h.b16 %v565
        %v950 = vunpack.c.l.b16 %v566
        %v951 = vunpack.c.h.b16 %v566
        %v952 = vunpack.c.l.b16 %v567
        %v953 = vunpack.c.h.b16 %v567
        %v954 = vunpack.c.l.b16 %v568
        %v955 = vunpack.c.h.b16 %v568
        %v956 = vunpack.c.l.b16 %v569
        %v957 = vunpack.c.h.b16 %v569
        %v958 = vunpack.c.l.b16 %v570
        %v959 = vunpack.c.h.b16 %v570
        %v960 = vunpack.c.l.b16 %v571
        %v961 = vunpack.c.h.b16 %v571
        %v962 = vunpack.c.l.b16 %v572
        %v963 = vunpack.c.h.b16 %v572
        %v964 = vunpack.c.l.b16 %v573
        %v965 = vunpack.c.h.b16 %v573
        %v966 = vunpack.c.l.b16 %v574
        %v967 = vunpack.c.h.b16 %v574
        %v968 = vunpack.c.l.b16 %v575
        %v969 = vunpack.c.h.b16 %v575
        %v970 = vunpack.c.l.b16 %v576
        %v971 = vunpack.c.h.b16 %v576
        %v972 = vunpack.c.l.b16 %v577
        %v973 = vunpack.c.h.b16 %v577
        %v974 = vunpack.c.l.b16 %v578
        %v975 = vunpack.c.h.b16 %v578
        %v976 = vunpack.c.l.b16 %v579
        %v977 = vunpack.c.h.b16 %v579
        %v978 = vunpack.c.l.b16 %v580
        %v979 = vunpack.c.h.b16 %v580
        %v980 = vunpack.c.l.b16 %v581
        %v981 = vunpack.c.h.b16 %v581
        %v982 = vunpack.c.l.b16 %v582
        %v983 = vunpack.c.h.b16 %v582
        %v984 = vunpack.c.l.b16 %v583
        %v985 = vunpack.c.h.b16 %v583
        %v986 = vunpack.c.l.b16 %v584
        %v987 = vunpack.c.h.b16 %v584
        %v988 = vunpack.c.l.b16 %v585
        %v989 = vunpack.c.h.b16 %v585
        %v990 = vpack.c.b16 %v742, %v734
        %v991 = vpack.c.b16 %v743, %v735
        %v992 = vpack.c.b16 %v744, %v736
        %v993 = vpack.c.b16 %v745, %v737
        %v994 = vpack.c.b16 %v746, %v738
        %v995 = vpack.c.b16 %v747, %v739
        %v996 = vpack.c.b16 %v748, %v740
        %v997 = vpack.c.b16 %v749, %v741
        %v998 = vpack.c.b16 %v758, %v750
        %v999 = vpack.c.b16 %v759, %v751
        %v1000 = vpack.c.b16 %v760, %v752
        %v1001 = vpack.c.b16 %v761, %v753
        %v1002 = vpack.c.b16 %v762, %v754
        %v1003 = vpack.c.b16 %v763, %v755
        %v1004 = vpack.c.b16 %v764, %v756
        %v1005 = vpack.c.b16 %v765, %v757
        %v1006 = vpack.c.b16 %v774, %v766
        %v1007 = vpack.c.b16 %v775, %v767
        %v1008 = vpack.c.b16 %v776, %v768
        %v1009 = vpack.c.b16 %v777, %v769
        %v1010 = vpack.c.b16 %v778, %v770
        %v1011 = vpack.c.b16 %v779, %v771
        %v1012 = vpack.c.b16 %v780, %v772
        %v1013 = vpack.c.b16 %v781, %v773
        %v1014 = vpack.c.b16 %v790, %v782
        %v1015 = vpack.c.b16 %v791, %v783
        %v1016 = vpack.c.b16 %v792, %v784
        %v1017 = vpack.c.b16 %v793, %v785
        %v1018 = vpack.c.b16 %v794, %v786
        %v1019 = vpack.c.b16 %v795, %v787
        %v1020 = vpack.c.b16 %v796, %v788
        %v1021 = vpack.c.b16 %v797, %v789
        %v1022 = vpack.c.b16 %v806, %v798
        %v1023 = vpack.c.b16 %v807, %v799
        %v1024 = vpack.c.b16 %v808, %v800
        %v1025 = vpack.c.b16 %v809, %v801
        %v1026 = vpack.c.b16 %v810, %v802
        %v1027 = vpack.c.b16 %v811, %v803
        %v1028 = vpack.c.b16 %v812, %v804
        %v1029 = vpack.c.b16 %v813, %v805
        %v1030 = vpack.c.b16 %v822, %v814
        %v1031 = vpack.c.b16 %v823, %v815
        %v1032 = vpack.c.b16 %v824, %v816
        %v1033 = vpack.c.b16 %v825, %v817
        %v1034 = vpack.c.b16 %v826, %v818
        %v1035 = vpack.c.b16 %v827, %v819
        %v1036 = vpack.c.b16 %v828, %v820
        %v1037 = vpack.c.b16 %v829, %v821
        %v1038 = vpack.c.b16 %v838, %v830
        %v1039 = vpack.c.b16 %v839, %v831
        %v1040 = vpack.c.b16 %v840, %v832
        %v1041 = vpack.c.b16 %v841, %v833
        %v1042 = vpack.c.b16 %v842, %v834
        %v1043 = vpack.c.b16 %v843, %v835
        %v1044 = vpack.c.b16 %v844, %v836
        %v1045 = vpack.c.b16 %v845, %v837
        %v1046 = vpack.c.b16 %v854, %v846
        %v1047 = vpack.c.b16 %v855, %v847
        %v1048 = vpack.c.b16 %v856, %v848
        %v1049 = vpack.c.b16 %v857, %v849
        %v1050 = vpack.c.b16 %v858, %v850
        %v1051 = vpack.c.b16 %v859, %v851
        %v1052 = vpack.c.b16 %v860, %v852
        %v1053 = vpack.c.b16 %v861, %v853
        %v1054 = vpack.c.b16 %v870, %v862
        %v1055 = vpack.c.b16 %v871, %v863
        %v1056 = vpack.c.b16 %v872, %v864
        %v1057 = vpack.c.b16 %v873, %v865
        %v1058 = vpack.c.b16 %v874, %v866
        %v1059 = vpack.c.b16 %v875, %v867
        %v1060 = vpack.c.b16 %v876, %v868
        %v1061 = vpack.c.b16 %v877, %v869
        %v1062 = vpack.c.b16 %v886, %v878
        %v1063 = vpack.c.b16 %v887, %v879
        %v1064 = vpack.c.b16 %v888, %v880
        %v1065 = vpack.c.b16 %v889, %v881
        %v1066 = vpack.c.b16 %v890, %v882
        %v1067 = vpack.c.b16 %v891, %v883
        %v1068 = vpack.c.b16 %v892, %v884
        %v1069 = vpack.c.b16 %v893, %v885
        %v1070 = vpack.c.b16 %v902, %v894
        %v1071 = vpack.c.b16 %v903, %v895
        %v1072 = vpack.c.b16 %v904, %v896
        %v1073 = vpack.c.b16 %v905, %v897
        %v1074 = vpack.c.b16 %v906, %v898
        %v1075 = vpack.c.b16 %v907, %v899
        %v1076 = vpack.c.b16 %v908, %v900
        %v1077 = vpack.c.b16 %v909, %v901
        %v1078 = vpack.c.b16 %v918, %v910
        %v1079 = vpack.c.b16 %v919, %v911
        %v1080 = vpack.c.b16 %v920, %v912
        %v1081 = vpack.c.b16 %v921, %v913
        %v1082 = vpack.c.b16 %v922, %v914
        %v1083 = vpack.c.b16 %v923, %v915
        %v1084 = vpack.c.b16 %v924, %v916
        %v1085 = vpack.c.b16 %v925, %v917
        %v1086 = vpack.c.b16 %v934, %v926
        %v1087 = vpack.c.b16 %v935, %v927
        %v1088 = vpack.c.b16 %v936, %v928
        %v1089 = vpack.c.b16 %v937, %v929
        %v1090 = vpack.c.b16 %v938, %v930
        %v1091 = vpack.c.b16 %v939, %v931
        %v1092 = vpack.c.b16 %v940, %v932
        %v1093 = vpack.c.b16 %v941, %v933
        %v1094 = vpack.c.b16 %v950, %v942
        %v1095 = vpack.c.b16 %v951, %v943
        %v1096 = vpack.c.b16 %v952, %v944
        %v1097 = vpack.c.b16 %v953, %v945
        %v1098 = vpack.c.b16 %v954, %v946
        %v1099 = vpack.c.b16 %v955, %v947
        %v1100 = vpack.c.b16 %v956, %v948
        %v1101 = vpack.c.b16 %v957, %v949
        %v1102 = vpack.c.b16 %v966, %v958
        %v1103 = vpack.c.b16 %v967, %v959
        %v1104 = vpack.c.b16 %v968, %v960
        %v1105 = vpack.c.b16 %v969, %v961
        %v1106 = vpack.c.b16 %v970, %v962
        %v1107 = vpack.c.b16 %v971, %v963
        %v1108 = vpack.c.b16 %v972, %v964
        %v1109 = vpack.c.b16 %v973, %v965
        %v1110 = vpack.c.b16 %v982, %v974
        %v1111 = vpack.c.b16 %v983, %v975
        %v1112 = vpack.c.b16 %v984, %v976
        %v1113 = vpack.c.b16 %v985, %v977
        %v1114 = vpack.c.b16 %v986, %v978
        %v1115 = vpack.c.b16 %v987, %v979
        %v1116 = vpack.c.b16 %v988, %v980
        %v1117 = vpack.c.b16 %v989, %v981
        %1246 = vmatprep.subr.bf16.mxu0 %v991
        %1247 = vmatpush1.bf16.msra.mxu0 %v990
        %1248 = vmatprep.subr.bf16.mxu0 %v999
        %1249 = vmatpush1.bf16.msra.mxu0 %v998
        %1250 = vmatprep.subr.bf16.mxu0 %v1007
        %1251 = vmatpush1.bf16.msra.mxu0 %v1006
        %1252 = vmatprep.subr.bf16.mxu0 %v1015
        %1253 = vmatpush1.bf16.msra.mxu0 %v1014
        %1254 = vmatprep.subr.bf16.mxu0 %v1023
        %1255 = vmatpush1.bf16.msra.mxu0 %v1022
        %1256 = vmatprep.subr.bf16.mxu0 %v1031
        %1257 = vmatpush1.bf16.msra.mxu0 %v1030
        %1258 = vmatprep.subr.bf16.mxu0 %v1039
        %1259 = vmatpush1.bf16.msra.mxu0 %v1038
        %1260 = vmatprep.subr.bf16.mxu0 %v1047
        %1261 = vmatpush1.bf16.msra.mxu0 %v1046
        %1262 = vmatprep.subr.bf16.mxu0 %v1055
        %1263 = vmatpush1.bf16.msra.mxu0 %v1054
        %1264 = vmatprep.subr.bf16.mxu0 %v1063
        %1265 = vmatpush1.bf16.msra.mxu0 %v1062
        %1266 = vmatprep.subr.bf16.mxu0 %v1071
        %1267 = vmatpush1.bf16.msra.mxu0 %v1070
        %1268 = vmatprep.subr.bf16.mxu0 %v1079
        %1269 = vmatpush1.bf16.msra.mxu0 %v1078
        %1270 = vmatprep.subr.bf16.mxu0 %v1087
        %1271 = vmatpush1.bf16.msra.mxu0 %v1086
        %1272 = vmatprep.subr.bf16.mxu0 %v1095
        %1273 = vmatpush1.bf16.msra.mxu0 %v1094
        %1274 = vmatprep.subr.bf16.mxu0 %v1103
        %1275 = vmatpush1.bf16.msra.mxu0 %v1102
        %1276 = vmatprep.subr.bf16.mxu0 %v1111
        %1277 = vmatpush1.bf16.msra.mxu0 %v1110
        %1278 = vmatprep.mubr.bf16.mxu0 %v599
        %1279 = vmatmul.mubr.bf16.gmra.mrb[0].mxu0 %v598
        %v1280 = vpop.f32.mrb[0].mxu0
        %v1281 = vadd.f32 0.0, %v1280
        %v1282 = vpop.f32.mrb[0].mxu0
        %v1283 = vadd.f32 0.0, %v1282
        %v1284 = vpop.f32.mrb[0].mxu0
        %v1285 = vadd.f32 0.0, %v1284
        %v1286 = vpop.f32.mrb[0].mxu0
        %v1287 = vadd.f32 0.0, %v1286
        %1288 = vmatprep.mubr.bf16.mxu0 %v601
        %1289 = vmatmul.mubr.bf16.gmra.mrb[0].mxu0 %v600
        %v1290 = vpop.f32.mrb[0].mxu0
        %v1291 = vadd.f32 0.0, %v1290
        %v1292 = vpop.f32.mrb[0].mxu0
        %v1293 = vadd.f32 0.0, %v1292
        %v1294 = vpop.f32.mrb[0].mxu0
        %v1295 = vadd.f32 0.0, %v1294
        %v1296 = vpop.f32.mrb[0].mxu0
        %v1297 = vadd.f32 0.0, %v1296
        %1298 = vdwg.mxu0
        %1299 = vmatprep.subr.bf16.mxu0 %v993
        %1300 = vmatpush1.bf16.msra.mxu0 %v992
        %1301 = vmatprep.subr.bf16.mxu0 %v1001
        %1302 = vmatpush1.bf16.msra.mxu0 %v1000
        %1303 = vmatprep.subr.bf16.mxu0 %v1009
        %1304 = vmatpush1.bf16.msra.mxu0 %v1008
        %1305 = vmatprep.subr.bf16.mxu0 %v1017
        %1306 = vmatpush1.bf16.msra.mxu0 %v1016
        %1307 = vmatprep.subr.bf16.mxu0 %v1025
        %1308 = vmatpush1.bf16.msra.mxu0 %v1024
        %1309 = vmatprep.subr.bf16.mxu0 %v1033
        %1310 = vmatpush1.bf16.msra.mxu0 %v1032
        %1311 = vmatprep.subr.bf16.mxu0 %v1041
        %1312 = vmatpush1.bf16.msra.mxu0 %v1040
        %1313 = vmatprep.subr.bf16.mxu0 %v1049
        %1314 = vmatpush1.bf16.msra.mxu0 %v1048
        %1315 = vmatprep.subr.bf16.mxu0 %v1057
        %1316 = vmatpush1.bf16.msra.mxu0 %v1056
        %1317 = vmatprep.subr.bf16.mxu0 %v1065
        %1318 = vmatpush1.bf16.msra.mxu0 %v1064
        %1319 = vmatprep.subr.bf16.mxu0 %v1073
        %1320 = vmatpush1.bf16.msra.mxu0 %v1072
        %1321 = vmatprep.subr.bf16.mxu0 %v1081
        %1322 = vmatpush1.bf16.msra.mxu0 %v1080
        %1323 = vmatprep.subr.bf16.mxu0 %v1089
        %1324 = vmatpush1.bf16.msra.mxu0 %v1088
        %1325 = vmatprep.subr.bf16.mxu0 %v1097
        %1326 = vmatpush1.bf16.msra.mxu0 %v1096
        %1327 = vmatprep.subr.bf16.mxu0 %v1105
        %1328 = vmatpush1.bf16.msra.mxu0 %v1104
        %1329 = vmatprep.subr.bf16.mxu0 %v1113
        %1330 = vmatpush1.bf16.msra.mxu0 %v1112
        %1331 = vmatprep.mubr.bf16.mxu0 %v599
        %1332 = vmatmul.mubr.bf16.gmra.mrb[0].mxu0 %v598
        %v1333 = vpop.f32.mrb[0].mxu0
        %v1334 = vadd.f32 0.0, %v1333
        %v1335 = vpop.f32.mrb[0].mxu0
        %v1336 = vadd.f32 0.0, %v1335
        %v1337 = vpop.f32.mrb[0].mxu0
        %v1338 = vadd.f32 0.0, %v1337
        %v1339 = vpop.f32.mrb[0].mxu0
        %v1340 = vadd.f32 0.0, %v1339
        %1341 = vmatprep.mubr.bf16.mxu0 %v601
        %1342 = vmatmul.mubr.bf16.gmra.mrb[0].mxu0 %v600
        %v1343 = vpop.f32.mrb[0].mxu0
        %v1344 = vadd.f32 0.0, %v1343
        %v1345 = vpop.f32.mrb[0].mxu0
        %v1346 = vadd.f32 0.0, %v1345
        %v1347 = vpop.f32.mrb[0].mxu0
        %v1348 = vadd.f32 0.0, %v1347
        %v1349 = vpop.f32.mrb[0].mxu0
        %v1350 = vadd.f32 0.0, %v1349
        %1351 = vdwg.mxu0
        %1352 = vmatprep.subr.bf16.mxu0 %v995
        %1353 = vmatpush1.bf16.msra.mxu0 %v994
        %1354 = vmatprep.subr.bf16.mxu0 %v1003
        %1355 = vmatpush1.bf16.msra.mxu0 %v1002
        %1356 = vmatprep.subr.bf16.mxu0 %v1011
        %1357 = vmatpush1.bf16.msra.mxu0 %v1010
        %1358 = vmatprep.subr.bf16.mxu0 %v1019
        %1359 = vmatpush1.bf16.msra.mxu0 %v1018
        %1360 = vmatprep.subr.bf16.mxu0 %v1027
        %1361 = vmatpush1.bf16.msra.mxu0 %v1026
        %1362 = vmatprep.subr.bf16.mxu0 %v1035
        %1363 = vmatpush1.bf16.msra.mxu0 %v1034
        %1364 = vmatprep.subr.bf16.mxu0 %v1043
        %1365 = vmatpush1.bf16.msra.mxu0 %v1042
        %1366 = vmatprep.subr.bf16.mxu0 %v1051
        %1367 = vmatpush1.bf16.msra.mxu0 %v1050
        %1368 = vmatprep.subr.bf16.mxu0 %v1059
        %1369 = vmatpush1.bf16.msra.mxu0 %v1058
        %1370 = vmatprep.subr.bf16.mxu0 %v1067
        %1371 = vmatpush1.bf16.msra.mxu0 %v1066
        %1372 = vmatprep.subr.bf16.mxu0 %v1075
        %1373 = vmatpush1.bf16.msra.mxu0 %v1074
        %1374 = vmatprep.subr.bf16.mxu0 %v1083
        %1375 = vmatpush1.bf16.msra.mxu0 %v1082
        %1376 = vmatprep.subr.bf16.mxu0 %v1091
        %1377 = vmatpush1.bf16.msra.mxu0 %v1090
        %1378 = vmatprep.subr.bf16.mxu0 %v1099
        %1379 = vmatpush1.bf16.msra.mxu0 %v1098
        %1380 = vmatprep.subr.bf16.mxu0 %v1107
        %1381 = vmatpush1.bf16.msra.mxu0 %v1106
        %1382 = vmatprep.subr.bf16.mxu0 %v1115
        %1383 = vmatpush1.bf16.msra.mxu0 %v1114
        %1384 = vmatprep.mubr.bf16.mxu0 %v599
        %1385 = vmatmul.mubr.bf16.gmra.mrb[0].mxu0 %v598
        %v1386 = vpop.f32.mrb[0].mxu0
        %v1387 = vadd.f32 0.0, %v1386
        %v1388 = vpop.f32.mrb[0].mxu0
        %v1389 = vadd.f32 0.0, %v1388
        %v1390 = vpop.f32.mrb[0].mxu0
        %v1391 = vadd.f32 0.0, %v1390
        %v1392 = vpop.f32.mrb[0].mxu0
        %v1393 = vadd.f32 0.0, %v1392
        %1394 = vmatprep.mubr.bf16.mxu0 %v601
        %1395 = vmatmul.mubr.bf16.gmra.mrb[0].mxu0 %v600
        %v1396 = vpop.f32.mrb[0].mxu0
        %v1397 = vadd.f32 0.0, %v1396
        %v1398 = vpop.f32.mrb[0].mxu0
        %v1399 = vadd.f32 0.0, %v1398
        %v1400 = vpop.f32.mrb[0].mxu0
        %v1401 = vadd.f32 0.0, %v1400
        %v1402 = vpop.f32.mrb[0].mxu0
        %v1403 = vadd.f32 0.0, %v1402
        %1404 = vdwg.mxu0
        %1405 = vmatprep.subr.bf16.mxu0 %v997
        %1406 = vmatpush1.bf16.msra.mxu0 %v996
        %1407 = vmatprep.subr.bf16.mxu0 %v1005
        %1408 = vmatpush1.bf16.msra.mxu0 %v1004
        %1409 = vmatprep.subr.bf16.mxu0 %v1013
        %1410 = vmatpush1.bf16.msra.mxu0 %v1012
        %1411 = vmatprep.subr.bf16.mxu0 %v1021
        %1412 = vmatpush1.bf16.msra.mxu0 %v1020
        %1413 = vmatprep.subr.bf16.mxu0 %v1029
        %1414 = vmatpush1.bf16.msra.mxu0 %v1028
        %1415 = vmatprep.subr.bf16.mxu0 %v1037
        %1416 = vmatpush1.bf16.msra.mxu0 %v1036
        %1417 = vmatprep.subr.bf16.mxu0 %v1045
        %1418 = vmatpush1.bf16.msra.mxu0 %v1044
        %1419 = vmatprep.subr.bf16.mxu0 %v1053
        %1420 = vmatpush1.bf16.msra.mxu0 %v1052
        %1421 = vmatprep.subr.bf16.mxu0 %v1061
        %1422 = vmatpush1.bf16.msra.mxu0 %v1060
        %1423 = vmatprep.subr.bf16.mxu0 %v1069
        %1424 = vmatpush1.bf16.msra.mxu0 %v1068
        %1425 = vmatprep.subr.bf16.mxu0 %v1077
        %1426 = vmatpush1.bf16.msra.mxu0 %v1076
        %1427 = vmatprep.subr.bf16.mxu0 %v1085
        %1428 = vmatpush1.bf16.msra.mxu0 %v1084
        %1429 = vmatprep.subr.bf16.mxu0 %v1093
        %1430 = vmatpush1.bf16.msra.mxu0 %v1092
        %1431 = vmatprep.subr.bf16.mxu0 %v1101
        %1432 = vmatpush1.bf16.msra.mxu0 %v1100
        %1433 = vmatprep.subr.bf16.mxu0 %v1109
        %1434 = vmatpush1.bf16.msra.mxu0 %v1108
        %1435 = vmatprep.subr.bf16.mxu0 %v1117
        %1436 = vmatpush1.bf16.msra.mxu0 %v1116
        %1437 = vmatprep.mubr.bf16.mxu0 %v599
        %1438 = vmatmul.mubr.bf16.gmra.mrb[0].mxu0 %v598
        %v1439 = vpop.f32.mrb[0].mxu0
        %v1440 = vadd.f32 0.0, %v1439
        %v1441 = vpop.f32.mrb[0].mxu0
        %v1442 = vadd.f32 0.0, %v1441
        %v1443 = vpop.f32.mrb[0].mxu0
        %v1444 = vadd.f32 0.0, %v1443
        %v1445 = vpop.f32.mrb[0].mxu0
        %v1446 = vadd.f32 0.0, %v1445
        %1447 = vmatprep.mubr.bf16.mxu0 %v601
        %1448 = vmatmul.mubr.bf16.gmra.mrb[0].mxu0 %v600
        %v1449 = vpop.f32.mrb[0].mxu0
        %v1450 = vadd.f32 0.0, %v1449
        %v1451 = vpop.f32.mrb[0].mxu0
        %v1452 = vadd.f32 0.0, %v1451
        %v1453 = vpop.f32.mrb[0].mxu0
        %v1454 = vadd.f32 0.0, %v1453
        %v1455 = vpop.f32.mrb[0].mxu0
        %v1456 = vadd.f32 0.0, %v1455
        %1457 = vdwg.mxu0
        %1458 = vst [vmem:[%s443] sm:$0xff] %v1281
        %1459 = vst [vmem:[%s443 + $0x8] sm:$0xff] %v1283
        %1460 = vst [vmem:[%s443 + $0x10] sm:$0xff] %v1334
        %1461 = vst [vmem:[%s443 + $0x18] sm:$0xff] %v1336
        %1462 = vst [vmem:[%s443 + $0x20] sm:$0xff] %v1387
        %1463 = vst [vmem:[%s443 + $0x28] sm:$0xff] %v1389
        %1464 = vst [vmem:[%s443 + $0x30] sm:$0xff] %v1440
        %1465 = vst [vmem:[%s443 + $0x38] sm:$0xff] %v1442
        %1466 = vst [vmem:[%s443 + $0x40] sm:$0xff] %v1285
        %1467 = vst [vmem:[%s443 + $0x48] sm:$0xff] %v1287
        %1468 = vst [vmem:[%s443 + $0x50] sm:$0xff] %v1338
        %1469 = vst [vmem:[%s443 + $0x58] sm:$0xff] %v1340
        %1470 = vst [vmem:[%s443 + $0x60] sm:$0xff] %v1391
        %1471 = vst [vmem:[%s443 + $0x68] sm:$0xff] %v1393
        %1472 = vst [vmem:[%s443 + $0x70] sm:$0xff] %v1444
        %1473 = vst [vmem:[%s443 + $0x78] sm:$0xff] %v1446
        %1474 = vst [vmem:[%s443 + $0x80] sm:$0xff] %v1291
        %1475 = vst [vmem:[%s443 + $0x88] sm:$0xff] %v1293
        %1476 = vst [vmem:[%s443 + $0x90] sm:$0xff] %v1344
        %1477 = vst [vmem:[%s443 + $0x98] sm:$0xff] %v1346
        %1478 = vst [vmem:[%s443 + $0xa0] sm:$0xff] %v1397
        %1479 = vst [vmem:[%s443 + $0xa8] sm:$0xff] %v1399
        %1480 = vst [vmem:[%s443 + $0xb0] sm:$0xff] %v1450
        %1481 = vst [vmem:[%s443 + $0xb8] sm:$0xff] %v1452
        %1482 = vst [vmem:[%s443 + $0xc0] sm:$0xff] %v1295
        %1483 = vst [vmem:[%s443 + $0xc8] sm:$0xff] %v1297
        %1484 = vst [vmem:[%s443 + $0xd0] sm:$0xff] %v1348
        %1485 = vst [vmem:[%s443 + $0xd8] sm:$0xff] %v1350
        %1486 = vst [vmem:[%s443 + $0xe0] sm:$0xff] %v1401
        %1487 = vst [vmem:[%s443 + $0xe8] sm:$0xff] %v1403
        %1488 = vst [vmem:[%s443 + $0xf0] sm:$0xff] %v1454
        %1489 = vst [vmem:[%s443 + $0xf8] sm:$0xff] %v1456
        %s1490 = sand.u32 %s87, 1
        %s1491 = sand.u32 %s87, 1
        %s1492 = smul.addr %s1491, 256
        %s1493 = scalar_lea.vmem [#allocation3], %s1492
        // Predicated region
        $region52: #{generator_b_forward.7} parent=46 // pred_check
          %p1494 = pneg %p97
        $region53: #{generator_b_forward.7} parent=46 // pred_check_branch
          %1496 = sbr.rel (%p1494) target = $region55
        $region54: #{generator_b_forward.7} parent=46 // pred_region
          %s1497 = smul.u32 4, %s17
          %s1498 = smul.u32 8, %s18
          %s1499 = smul.addr %s1497, 16
          %s1500 = sadd.s32 %s1498, %s1499
          %s1501 = smul.addr %s1500, 8
          %s1502 = scalar_lea.vmem %s2, %s1501
          // Predicated region
          $region56: #{generator_b_forward.7} parent=54 // pred_check
            _
          $region57: #{generator_b_forward.7} parent=54 // pred_check_branch
            %1504 = sbr.rel (0) target = $region59
          $region58: #{generator_b_forward.7} parent=54 // pred_region
            // Predicated region
            $region60: #{generator_b_forward.7} parent=58 // pred_check
              _
            $region61: #{generator_b_forward.7} parent=58 // pred_check_branch
              %1506 = sbr.rel (0) target = $region63
            $region62: #{generator_b_forward.7} parent=58 // pred_region
              loop: start=0, step=1, limit=1
              $region64: #{generator_b_forward.7} parent=62 // loop_pre_header
                _
              $region65: #{generator_b_forward.7} parent=62 // loop_header
                %s1508 = sphi 0, %s1512
                %p1509 = scmp.ge.s32.totalorder %s1508, 1
                %s1513 = sphi %s1493, %s1493
                %s1514 = sphi %s1502, %s1502
              $region66: #{generator_b_forward.7} parent=62 // loop_header_branch
                %1511 = sbr.rel (%p1509) target = $region70
              $region67: #{generator_b_forward.7} parent=62 // loop_body
                %v1515 = vld [vmem:[%s1513] sm:$0xff]
                %1516 = vst [vmem:[%s1514] sm:$0xff] %v1515
                %v1517 = vld [vmem:[%s1513 + $0x8] sm:$0xff]
                %1518 = vst [vmem:[%s1514 + $0x8] sm:$0xff] %v1517
                %v1519 = vld [vmem:[%s1513 + $0x10] sm:$0xff]
                %1520 = vst [vmem:[%s1514 + $0x10] sm:$0xff] %v1519
                %v1521 = vld [vmem:[%s1513 + $0x18] sm:$0xff]
                %1522 = vst [vmem:[%s1514 + $0x18] sm:$0xff] %v1521
                %v1523 = vld [vmem:[%s1513 + $0x20] sm:$0xff]
                %1524 = vst [vmem:[%s1514 + $0x20] sm:$0xff] %v1523
                %v1525 = vld [vmem:[%s1513 + $0x28] sm:$0xff]
                %1526 = vst [vmem:[%s1514 + $0x28] sm:$0xff] %v1525
                %v1527 = vld [vmem:[%s1513 + $0x30] sm:$0xff]
                %1528 = vst [vmem:[%s1514 + $0x30] sm:$0xff] %v1527
                %v1529 = vld [vmem:[%s1513 + $0x38] sm:$0xff]
                %1530 = vst [vmem:[%s1514 + $0x38] sm:$0xff] %v1529
                %v1531 = vld [vmem:[%s1513 + $0x40] sm:$0xff]
                %1532 = vst [vmem:[%s1514 + $0x80] sm:$0xff] %v1531
                %v1533 = vld [vmem:[%s1513 + $0x48] sm:$0xff]
                %1534 = vst [vmem:[%s1514 + $0x88] sm:$0xff] %v1533
                %v1535 = vld [vmem:[%s1513 + $0x50] sm:$0xff]
                %1536 = vst [vmem:[%s1514 + $0x90] sm:$0xff] %v1535
                %v1537 = vld [vmem:[%s1513 + $0x58] sm:$0xff]
                %1538 = vst [vmem:[%s1514 + $0x98] sm:$0xff] %v1537
                %v1539 = vld [vmem:[%s1513 + $0x60] sm:$0xff]
                %1540 = vst [vmem:[%s1514 + $0xa0] sm:$0xff] %v1539
                %v1541 = vld [vmem:[%s1513 + $0x68] sm:$0xff]
                %1542 = vst [vmem:[%s1514 + $0xa8] sm:$0xff] %v1541
                %v1543 = vld [vmem:[%s1513 + $0x70] sm:$0xff]
                %1544 = vst [vmem:[%s1514 + $0xb0] sm:$0xff] %v1543
                %v1545 = vld [vmem:[%s1513 + $0x78] sm:$0xff]
                %1546 = vst [vmem:[%s1514 + $0xb8] sm:$0xff] %v1545
                %v1547 = vld [vmem:[%s1513 + $0x80] sm:$0xff]
                %1548 = vst [vmem:[%s1514 + $0x100] sm:$0xff] %v1547
                %v1549 = vld [vmem:[%s1513 + $0x88] sm:$0xff]
                %1550 = vst [vmem:[%s1514 + $0x108] sm:$0xff] %v1549
                %v1551 = vld [vmem:[%s1513 + $0x90] sm:$0xff]
                %1552 = vst [vmem:[%s1514 + $0x110] sm:$0xff] %v1551
                %v1553 = vld [vmem:[%s1513 + $0x98] sm:$0xff]
                %1554 = vst [vmem:[%s1514 + $0x118] sm:$0xff] %v1553
                %v1555 = vld [vmem:[%s1513 + $0xa0] sm:$0xff]
                %1556 = vst [vmem:[%s1514 + $0x120] sm:$0xff] %v1555
                %v1557 = vld [vmem:[%s1513 + $0xa8] sm:$0xff]
                %1558 = vst [vmem:[%s1514 + $0x128] sm:$0xff] %v1557
                %v1559 = vld [vmem:[%s1513 + $0xb0] sm:$0xff]
                %1560 = vst [vmem:[%s1514 + $0x130] sm:$0xff] %v1559
                %v1561 = vld [vmem:[%s1513 + $0xb8] sm:$0xff]
                %1562 = vst [vmem:[%s1514 + $0x138] sm:$0xff] %v1561
                %v1563 = vld [vmem:[%s1513 + $0xc0] sm:$0xff]
                %1564 = vst [vmem:[%s1514 + $0x180] sm:$0xff] %v1563
                %v1565 = vld [vmem:[%s1513 + $0xc8] sm:$0xff]
                %1566 = vst [vmem:[%s1514 + $0x188] sm:$0xff] %v1565
                %v1567 = vld [vmem:[%s1513 + $0xd0] sm:$0xff]
                %1568 = vst [vmem:[%s1514 + $0x190] sm:$0xff] %v1567
                %v1569 = vld [vmem:[%s1513 + $0xd8] sm:$0xff]
                %1570 = vst [vmem:[%s1514 + $0x198] sm:$0xff] %v1569
                %v1571 = vld [vmem:[%s1513 + $0xe0] sm:$0xff]
                %1572 = vst [vmem:[%s1514 + $0x1a0] sm:$0xff] %v1571
                %v1573 = vld [vmem:[%s1513 + $0xe8] sm:$0xff]
                %1574 = vst [vmem:[%s1514 + $0x1a8] sm:$0xff] %v1573
                %v1575 = vld [vmem:[%s1513 + $0xf0] sm:$0xff]
                %1576 = vst [vmem:[%s1514 + $0x1b0] sm:$0xff] %v1575
                %v1577 = vld [vmem:[%s1513 + $0xf8] sm:$0xff]
                %1578 = vst [vmem:[%s1514 + $0x1b8] sm:$0xff] %v1577
              $region68: #{generator_b_forward.7} parent=62 // loop_footer
                %s1512 = sadd.s32 1, %s1508
              $region69: #{generator_b_forward.7} parent=62 // loop_footer_branch
                %1507 = sbr.rel target = $region65
              $region70: #{generator_b_forward.7} parent=62 // loop_exit
                _
            $region63: #{generator_b_forward.7} parent=58 // pred_fallthru
              _
            // Predicated region
            $region71: #{generator_b_forward.7} parent=58 // pred_check
              _
            $region72: #{generator_b_forward.7} parent=58 // pred_check_branch
              %1580 = sbr.rel target = $region74
            $region73: #{generator_b_forward.7} parent=58 // pred_region
              _
            $region74: #{generator_b_forward.7} parent=58 // pred_fallthru
              _
          $region59: #{generator_b_forward.7} parent=54 // pred_fallthru
            _
          %1581 = vnop
        $region55: #{generator_b_forward.7} parent=46 // pred_fallthru
          _
      $region47: #{generator_b_forward.7} parent=5 // pred_fallthru
        _
      %p1582 = scmp.le.s32.totalorder 2, %s8
      // Predicated region
      $region75: #{generator_b_forward.7} parent=5 // pred_check
        %p1583 = pneg %p1582
      $region76: #{generator_b_forward.7} parent=5 // pred_check_branch
        %1585 = sbr.rel (%p1583) target = $region78
      $region77: #{generator_b_forward.7} parent=5 // pred_region
        %s1586 = ssub.s32 %s8, 2
        // Predicated region
        $region79: #{generator_b_forward.7} parent=77 // pred_check
          %p1587 = pneg %p103
        $region80: #{generator_b_forward.7} parent=77 // pred_check_branch
          %1589 = sbr.rel (%p1587) target = $region82
        $region81: #{generator_b_forward.7} parent=77 // pred_region
          %s1590 = sand.u32 %s88, 1
          %s1591 = sand.u32 %s88, 1
          %s1592 = smul.addr %s1591, 256
          %s1593 = scalar_lea.vmem [#allocation3], %s1592
        $region82: #{generator_b_forward.7} parent=77 // pred_fallthru
          _
      $region78: #{generator_b_forward.7} parent=5 // pred_fallthru
        _
    $region6: #{generator_b_forward.7} parent=1 // loop_footer
      %s12 = sadd.s32 1, %s8
    $region7: #{generator_b_forward.7} parent=1 // loop_footer_branch
      %7 = sbr.rel target = $region3
    $region8: #{generator_b_forward.7} parent=1 // loop_exit
      _

// kernel: generator_b_forward.6
$region0: #{generator_b_forward.6}
  #allocation0 [shape = 'u32[]', space=smem, size = 0x4, offset = 0x4, fixed_abs, tag = 'smem constant byte address 0x4 - core index']
  #allocation1 [shape = 'u32[144,128]{1,0:T(1,128)}', space=vmem, size = 0x12000, scoped, tag = 'internal scratch']
  %s0 = inlined_call_operand.vmem [shape: bf16[8,448], index: 0, kind: input, shape index: {}]
  %s1 = inlined_call_operand.hbm [shape: bf16[448,4096], index: 1, kind: input, shape index: {}]
  %s2 = inlined_call_operand.vmem [shape: f32[8,4096], index: 2, kind: output, shape index: {}]
  %s3 = sld [smem:[#allocation0]]
  $region45: #{generator_b_forward.6} parent=0
    _
  %s5 = ssub.s32 1, %s3
  %s6 = scalar_select 0, %s5, %s3
  $region1: #{generator_b_forward.6} parent=0
    #allocation2 [shape = 'u8[3670016]{0}', space=vmem, size = 0x380000, scoped, tag = 'input window, operand 1']
    #allocation3 [shape = 's32[2]{0}', space=sflag, size = 0x8, scoped, tag = 'scoped memory for generator_b_forward.6']
    %7 = vsyncpa [#allocation3], 0
    %s8 = scalar_lea.sflag [#allocation3], 1
    %9 = vsyncpa %s8, 0
    loop: start=0, step=1, limit=4
    $region2: #{generator_b_forward.6} parent=1 // loop_pre_header
      _
    $region3: #{generator_b_forward.6} parent=1 // loop_header
      %s11 = sphi 0, %s15
      %p12 = scmp.ge.s32.totalorder %s11, 4
      %s18 = sphi 0, %s30
      %s19 = sphi 0, %s26
      %s20 = sphi 0, %s18
      %s21 = sphi 0, %s19
      %s22 = sphi 0, %s20
      %s23 = sphi 0, %s21
      %s33 = sphi 0, %s35
      %s36 = sphi 0, %s33
      %s37 = sphi 0, %s36
      %s53 = sphi 0, %s37
      %s59 = sphi 0, %s61
      %s62 = sphi 0, %s59
      %s63 = sphi 0, %s62
      %s79 = sphi 0, %s63
      %s87 = sphi 0, %s89
      %s90 = sphi 0, %s87
      %s91 = sphi 0, %s90
      %s107 = sphi 0, %s91
    $region4: #{generator_b_forward.6} parent=1 // loop_header_branch
      %14 = sbr.rel (%p12) target = $region8
    $region5: #{generator_b_forward.6} parent=1 // loop_body
      %s16 = ssub.s32 %s11, 1
      %s17 = ssub.s32 %s11, 2
      %s24 = sadd.s32 1, %s19
      %p25 = scmp.ge.s32.totalorder %s24, 2
      %s26 = scalar_select %p25, 0, %s24
      %s27 = sadd.s32 1, %s18
      %s28 = scalar_select %p25, %s27, %s18
      %p29 = scmp.ge.s32.totalorder %s28, 1
      %s30 = scalar_select %p29, 0, %s28
      %s31 = ssub.s32 %s18, %s30
      %p32 = scmp.eq.s32.totalorder %s31, 0
      %s34 = sadd.s32 %s33, 1
      %s35 = scalar_select %p32, %s33, %s34
      %p38 = pneg %p32
      %p39 = scmp.eq.s32.totalorder %s11, 1
      %p40 = por %p38, %p39
      %p41 = scmp.ne.s32.totalorder %s33, %s36
      %p42 = scmp.eq.s32.totalorder %s11, 0
      %p43 = por %p41, %p42
      %p44 = scmp.ne.s32.totalorder %s33, %s36
      %p45 = scmp.eq.s32.totalorder %s16, 1
      %p46 = por %p44, %p45
      %p47 = scmp.ne.s32.totalorder %s36, %s37
      %p48 = scmp.eq.s32.totalorder %s16, 0
      %p49 = por %p47, %p48
      %p50 = scmp.ne.s32.totalorder %s36, %s37
      %p51 = scmp.eq.s32.totalorder %s17, 1
      %p52 = por %p50, %p51
      %p54 = scmp.ne.s32.totalorder %s37, %s53
      %p55 = scmp.eq.s32.totalorder %s17, 0
      %p56 = por %p54, %p55
      %s57 = ssub.s32 %s19, %s26
      %p58 = scmp.eq.s32.totalorder %s57, 0
      %s60 = sadd.s32 %s59, 1
      %s61 = scalar_select %p58, %s59, %s60
      %p64 = pneg %p58
      %p65 = scmp.eq.s32.totalorder %s11, 1
      %p66 = por %p64, %p65
      %p67 = scmp.ne.s32.totalorder %s59, %s62
      %p68 = scmp.eq.s32.totalorder %s11, 0
      %p69 = por %p67, %p68
      %p70 = scmp.ne.s32.totalorder %s59, %s62
      %p71 = scmp.eq.s32.totalorder %s16, 1
      %p72 = por %p70, %p71
      %p73 = scmp.ne.s32.totalorder %s62, %s63
      %p74 = scmp.eq.s32.totalorder %s16, 0
      %p75 = por %p73, %p74
      %p76 = scmp.ne.s32.totalorder %s62, %s63
      %p77 = scmp.eq.s32.totalorder %s17, 1
      %p78 = por %p76, %p77
      %p80 = scmp.ne.s32.totalorder %s63, %s79
      %p81 = scmp.eq.s32.totalorder %s17, 0
      %p82 = por %p80, %p81
      %s83 = ssub.s32 %s18, %s30
      %s84 = ssub.s32 %s19, %s26
      %s85 = sor.u32 %s83, %s84
      %p86 = scmp.eq.s32.totalorder %s85, 0
      %s88 = sadd.s32 %s87, 1
      %s89 = scalar_select %p86, %s87, %s88
      %p92 = pneg %p86
      %p93 = scmp.eq.s32.totalorder %s11, 1
      %p94 = por %p92, %p93
      %p95 = scmp.ne.s32.totalorder %s87, %s90
      %p96 = scmp.eq.s32.totalorder %s11, 0
      %p97 = por %p95, %p96
      %p98 = scmp.ne.s32.totalorder %s87, %s90
      %p99 = scmp.eq.s32.totalorder %s16, 1
      %p100 = por %p98, %p99
      %p101 = scmp.ne.s32.totalorder %s90, %s91
      %p102 = scmp.eq.s32.totalorder %s16, 0
      %p103 = por %p101, %p102
      %p104 = scmp.ne.s32.totalorder %s90, %s91
      %p105 = scmp.eq.s32.totalorder %s17, 1
      %p106 = por %p104, %p105
      %p108 = scmp.ne.s32.totalorder %s91, %s107
      %p109 = scmp.eq.s32.totalorder %s17, 0
      %p110 = por %p108, %p109
      %p111 = scmp.le.s32.totalorder 1, %s11
      %p112 = scmp.lt.s32.totalorder %s11, 3
      %p113 = pnand %p111, %p112
      %p114 = pneg %p113
      // Predicated region
      $region9: #{generator_b_forward.6} parent=5 // pred_check
        _
      $region10: #{generator_b_forward.6} parent=5 // pred_check_branch
        %116 = sbr.rel (%p113) target = $region12
      $region11: #{generator_b_forward.6} parent=5 // pred_region
        %s117 = ssub.s32 %s11, 1
        // Predicated region
        $region13: #{generator_b_forward.6} parent=11 // pred_check
          %p118 = pneg %p49
        $region14: #{generator_b_forward.6} parent=11 // pred_check_branch
          %120 = sbr.rel (%p118) target = $region16
        $region15: #{generator_b_forward.6} parent=11 // pred_region
          %p121 = scmp.lt.s32.totalorder %s20, 0
          %s122 = scalar_select %p121, %s20, 0
          %s123 = smul.addr %s122, 4
          %s124 = smul.addr %s123, 4
          %s125 = scalar_lea.vmem %s0, %s124
        $region16: #{generator_b_forward.6} parent=11 // pred_fallthru
          _
      $region12: #{generator_b_forward.6} parent=5 // pred_fallthru
        _
      %p126 = scmp.lt.s32.totalorder %s11, 2
      // Predicated region
      $region17: #{generator_b_forward.6} parent=5 // pred_check
        %p127 = pneg %p126
      $region18: #{generator_b_forward.6} parent=5 // pred_check_branch
        %129 = sbr.rel (%p127) target = $region20
      $region19: #{generator_b_forward.6} parent=5 // pred_region
        // Predicated region
        $region21: #{generator_b_forward.6} parent=19 // pred_check
          %p130 = pneg %p69
        $region22: #{generator_b_forward.6} parent=19 // pred_check_branch
          %132 = sbr.rel (%p130) target = $region24
        $region23: #{generator_b_forward.6} parent=19 // pred_region
          %s133 = sand.u32 %s59, 1
          %s134 = scalar_lea.sflag [#allocation3], %s133
          %s135 = sand.u32 %s59, 1
          %s136 = smul.addr %s135, 3584
          %s137 = scalar_lea.vmem [#allocation2], %s136
          %s138 = smul.u32 16, %s19
          %s140 = ssub.s32 57344, 57344
          %141 = vsyncadd %s134, %s140
          %s142 = smul.addr %s138, 64
          %s143 = scalar_lea.hbm %s1, %s142
          %s144 = sshll.u32 %s137, 4
          %s145 = int_to_ptr.vmem [resolvable:$true] %s144
          %150 = dma.hbm_to_vmem [thread:$0]  %s143, 57344, %s145, %s134, 2048, 1024, 64
        $region24: #{generator_b_forward.6} parent=19 // pred_fallthru
          _
      $region20: #{generator_b_forward.6} parent=5 // pred_fallthru
        _
      %p151 = scmp.le.s32.totalorder 1, %s11
      %p152 = scmp.lt.s32.totalorder %s11, 3
      %p153 = pnand %p151, %p152
      %p154 = pneg %p153
      // Predicated region
      $region25: #{generator_b_forward.6} parent=5 // pred_check
        _
      $region26: #{generator_b_forward.6} parent=5 // pred_check_branch
        %156 = sbr.rel (%p153) target = $region28
      $region27: #{generator_b_forward.6} parent=5 // pred_region
        %s157 = ssub.s32 %s11, 1
        %s158 = sand.u32 %s62, 1
        %s159 = scalar_lea.sflag [#allocation3], %s158
        %s160 = sand.u32 %s62, 1
        %s161 = smul.addr %s160, 3584
        %s162 = scalar_lea.vmem [#allocation2], %s161
        // Predicated region
        $region29: #{generator_b_forward.6} parent=27 // pred_check
          %p163 = pneg %p75
        $region30: #{generator_b_forward.6} parent=27 // pred_check_branch
          %165 = sbr.rel (%p163) target = $region32
        $region31: #{generator_b_forward.6} parent=27 // pred_region
          %166 = dma.done %s159, 57344
        $region32: #{generator_b_forward.6} parent=27 // pred_fallthru
          _
        %p167 = scmp.lt.s32.totalorder %s20, 0
        %s168 = scalar_select %p167, %s20, 0
        %s169 = smul.addr %s168, 4
        %s170 = smul.addr %s169, 4
        %s171 = scalar_lea.vmem %s0, %s170
        %p172 = pneg %p49
        %p173 = pneg %p46
        %s174 = sand.u32 %s62, 1
        %s175 = scalar_lea.sflag [#allocation3], %s174
        %s176 = sand.u32 %s62, 1
        %s177 = smul.addr %s176, 3584
        %s178 = scalar_lea.vmem [#allocation2], %s177
        %p179 = pneg %p75
        %p180 = pneg %p72
        %p181 = pneg %p103
        %p182 = pneg %p100
        %s183 = smul.u32 16, %s21
        %p184 = scmp.lt.s32.totalorder %s20, 0
        %s185 = scalar_select %p184, %s20, 0
        %p186 = scmp.lt.s32.totalorder %s183, 31
        %s187 = scalar_select %p186, %s183, 31
        %s188 = smul.addr %s185, 32
        %s189 = sadd.s32 %s187, %s188
        %s190 = smul.addr %s189, 8
        %s191 = scalar_lea.vmem %s2, %s190
        %p192 = scmp.lt.s32.totalorder %s20, 0
        %s193 = scalar_select %p192, %s20, 0
        %s194 = smul.addr %s193, 4
        %s195 = smul.addr %s194, 4
        %s196 = scalar_lea.vmem %s0, %s195
        %s197 = smul.u32 16, %s21
        %s198 = smul.u32 16, %s21
        %p199 = scmp.lt.s32.totalorder %s20, 0
        %s200 = scalar_select %p199, %s20, 0
        %p201 = scmp.lt.s32.totalorder %s198, 31
        %s202 = scalar_select %p201, %s198, 31
        %s203 = smul.addr %s200, 32
        %s204 = sadd.s32 %s202, %s203
        %s205 = smul.addr %s204, 8
        %s206 = scalar_lea.vmem %s2, %s205
        %s207 = smul.u32 16, %s21
        %v209 = vld [vmem:[%s196] sm:$0xff]
        %v210 = vld [vmem:[%s196 + $0x8] sm:$0xff]
        %v211 = vld [vmem:[%s162] sm:$0xff]
        %v212 = vld [vmem:[%s162 + $0x8] sm:$0xff]
        %v213 = vld [vmem:[%s162 + $0x10] sm:$0xff]
        %v214 = vld [vmem:[%s162 + $0x18] sm:$0xff]
        %v215 = vld [vmem:[%s162 + $0x20] sm:$0xff]
        %v216 = vld [vmem:[%s162 + $0x28] sm:$0xff]
        %v217 = vld [vmem:[%s162 + $0x30] sm:$0xff]
        %v218 = vld [vmem:[%s162 + $0x38] sm:$0xff]
        %v219 = vld [vmem:[%s162 + $0x40] sm:$0xff]
        %v220 = vld [vmem:[%s162 + $0x48] sm:$0xff]
        %v221 = vld [vmem:[%s162 + $0x50] sm:$0xff]
        %v222 = vld [vmem:[%s162 + $0x58] sm:$0xff]
        %v223 = vld [vmem:[%s162 + $0x60] sm:$0xff]
        %v224 = vld [vmem:[%s162 + $0x68] sm:$0xff]
        %v225 = vld [vmem:[%s162 + $0x70] sm:$0xff]
        %v226 = vld [vmem:[%s162 + $0x78] sm:$0xff]
        %v227 = vld [vmem:[%s162 + $0x80] sm:$0xff]
        %v228 = vld [vmem:[%s162 + $0x88] sm:$0xff]
        %v229 = vld [vmem:[%s162 + $0x90] sm:$0xff]
        %v230 = vld [vmem:[%s162 + $0x98] sm:$0xff]
        %v231 = vld [vmem:[%s162 + $0xa0] sm:$0xff]
        %v232 = vld [vmem:[%s162 + $0xa8] sm:$0xff]
        %v233 = vld [vmem:[%s162 + $0xb0] sm:$0xff]
        %v234 = vld [vmem:[%s162 + $0xb8] sm:$0xff]
        %v235 = vld [vmem:[%s162 + $0xc0] sm:$0xff]
        %v236 = vld [vmem:[%s162 + $0xc8] sm:$0xff]
        %v237 = vld [vmem:[%s162 + $0xd0] sm:$0xff]
        %v238 = vld [vmem:[%s162 + $0xd8] sm:$0xff]
        %v239 = vld [vmem:[%s162 + $0xe0] sm:$0xff]
        %v240 = vld [vmem:[%s162 + $0xe8] sm:$0xff]
        %v241 = vld [vmem:[%s162 + $0xf0] sm:$0xff]
        %v242 = vld [vmem:[%s162 + $0xf8] sm:$0xff]
        %v243 = vld [vmem:[%s162 + $0x100] sm:$0xff]
        %v244 = vld [vmem:[%s162 + $0x108] sm:$0xff]
        %v245 = vld [vmem:[%s162 + $0x110] sm:$0xff]
        %v246 = vld [vmem:[%s162 + $0x118] sm:$0xff]
        %v247 = vld [vmem:[%s162 + $0x120] sm:$0xff]
        %v248 = vld [vmem:[%s162 + $0x128] sm:$0xff]
        %v249 = vld [vmem:[%s162 + $0x130] sm:$0xff]
        %v250 = vld [vmem:[%s162 + $0x138] sm:$0xff]
        %v251 = vld [vmem:[%s162 + $0x140] sm:$0xff]
        %v252 = vld [vmem:[%s162 + $0x148] sm:$0xff]
        %v253 = vld [vmem:[%s162 + $0x150] sm:$0xff]
        %v254 = vld [vmem:[%s162 + $0x158] sm:$0xff]
        %v255 = vld [vmem:[%s162 + $0x160] sm:$0xff]
        %v256 = vld [vmem:[%s162 + $0x168] sm:$0xff]
        %v257 = vld [vmem:[%s162 + $0x170] sm:$0xff]
        %v258 = vld [vmem:[%s162 + $0x178] sm:$0xff]
        %v259 = vld [vmem:[%s162 + $0x180] sm:$0xff]
        %v260 = vld [vmem:[%s162 + $0x188] sm:$0xff]
        %v261 = vld [vmem:[%s162 + $0x190] sm:$0xff]
        %v262 = vld [vmem:[%s162 + $0x198] sm:$0xff]
        %v263 = vld [vmem:[%s162 + $0x1a0] sm:$0xff]
        %v264 = vld [vmem:[%s162 + $0x1a8] sm:$0xff]
        %v265 = vld [vmem:[%s162 + $0x1b0] sm:$0xff]
        %v266 = vld [vmem:[%s162 + $0x1b8] sm:$0xff]
        %v267 = vld [vmem:[%s162 + $0x1c0] sm:$0xff]
        %v268 = vld [vmem:[%s162 + $0x1c8] sm:$0xff]
        %v269 = vld [vmem:[%s162 + $0x1d0] sm:$0xff]
        %v270 = vld [vmem:[%s162 + $0x1d8] sm:$0xff]
        %v271 = vld [vmem:[%s162 + $0x1e0] sm:$0xff]
        %v272 = vld [vmem:[%s162 + $0x1e8] sm:$0xff]
        %v273 = vld [vmem:[%s162 + $0x1f0] sm:$0xff]
        %v274 = vld [vmem:[%s162 + $0x1f8] sm:$0xff]
        %v275 = vld [vmem:[%s162 + $0x200] sm:$0xff]
        %v276 = vld [vmem:[%s162 + $0x208] sm:$0xff]
        %v277 = vld [vmem:[%s162 + $0x210] sm:$0xff]
        %v278 = vld [vmem:[%s162 + $0x218] sm:$0xff]
        %v279 = vld [vmem:[%s162 + $0x220] sm:$0xff]
        %v280 = vld [vmem:[%s162 + $0x228] sm:$0xff]
        %v281 = vld [vmem:[%s162 + $0x230] sm:$0xff]
        %v282 = vld [vmem:[%s162 + $0x238] sm:$0xff]
        %v283 = vld [vmem:[%s162 + $0x240] sm:$0xff]
        %v284 = vld [vmem:[%s162 + $0x248] sm:$0xff]
        %v285 = vld [vmem:[%s162 + $0x250] sm:$0xff]
        %v286 = vld [vmem:[%s162 + $0x258] sm:$0xff]
        %v287 = vld [vmem:[%s162 + $0x260] sm:$0xff]
        %v288 = vld [vmem:[%s162 + $0x268] sm:$0xff]
        %v289 = vld [vmem:[%s162 + $0x270] sm:$0xff]
        %v290 = vld [vmem:[%s162 + $0x278] sm:$0xff]
        %v291 = vld [vmem:[%s162 + $0x280] sm:$0xff]
        %v292 = vld [vmem:[%s162 + $0x288] sm:$0xff]
        %v293 = vld [vmem:[%s162 + $0x290] sm:$0xff]
        %v294 = vld [vmem:[%s162 + $0x298] sm:$0xff]
        %v295 = vld [vmem:[%s162 + $0x2a0] sm:$0xff]
        %v296 = vld [vmem:[%s162 + $0x2a8] sm:$0xff]
        %v297 = vld [vmem:[%s162 + $0x2b0] sm:$0xff]
        %v298 = vld [vmem:[%s162 + $0x2b8] sm:$0xff]
        %v299 = vld [vmem:[%s162 + $0x2c0] sm:$0xff]
        %v300 = vld [vmem:[%s162 + $0x2c8] sm:$0xff]
        %v301 = vld [vmem:[%s162 + $0x2d0] sm:$0xff]
        %v302 = vld [vmem:[%s162 + $0x2d8] sm:$0xff]
        %v303 = vld [vmem:[%s162 + $0x2e0] sm:$0xff]
        %v304 = vld [vmem:[%s162 + $0x2e8] sm:$0xff]
        %v305 = vld [vmem:[%s162 + $0x2f0] sm:$0xff]
        %v306 = vld [vmem:[%s162 + $0x2f8] sm:$0xff]
        %v307 = vld [vmem:[%s162 + $0x300] sm:$0xff]
        %v308 = vld [vmem:[%s162 + $0x308] sm:$0xff]
        %v309 = vld [vmem:[%s162 + $0x310] sm:$0xff]
        %v310 = vld [vmem:[%s162 + $0x318] sm:$0xff]
        %v311 = vld [vmem:[%s162 + $0x320] sm:$0xff]
        %v312 = vld [vmem:[%s162 + $0x328] sm:$0xff]
        %v313 = vld [vmem:[%s162 + $0x330] sm:$0xff]
        %v314 = vld [vmem:[%s162 + $0x338] sm:$0xff]
        %v315 = vld [vmem:[%s162 + $0x340] sm:$0xff]
        %v316 = vld [vmem:[%s162 + $0x348] sm:$0xff]
        %v317 = vld [vmem:[%s162 + $0x350] sm:$0xff]
        %v318 = vld [vmem:[%s162 + $0x358] sm:$0xff]
        %v319 = vld [vmem:[%s162 + $0x360] sm:$0xff]
        %v320 = vld [vmem:[%s162 + $0x368] sm:$0xff]
        %v321 = vld [vmem:[%s162 + $0x370] sm:$0xff]
        %v322 = vld [vmem:[%s162 + $0x378] sm:$0xff]
        %v323 = vld [vmem:[%s162 + $0x380] sm:$0xff]
        %v324 = vld [vmem:[%s162 + $0x388] sm:$0xff]
        %v325 = vld [vmem:[%s162 + $0x390] sm:$0xff]
        %v326 = vld [vmem:[%s162 + $0x398] sm:$0xff]
        %v327 = vld [vmem:[%s162 + $0x3a0] sm:$0xff]
        %v328 = vld [vmem:[%s162 + $0x3a8] sm:$0xff]
        %v329 = vld [vmem:[%s162 + $0x3b0] sm:$0xff]
        %v330 = vld [vmem:[%s162 + $0x3b8] sm:$0xff]
        %v331 = vld [vmem:[%s162 + $0x3c0] sm:$0xff]
        %v332 = vld [vmem:[%s162 + $0x3c8] sm:$0xff]
        %v333 = vld [vmem:[%s162 + $0x3d0] sm:$0xff]
        %v334 = vld [vmem:[%s162 + $0x3d8] sm:$0xff]
        %v335 = vld [vmem:[%s162 + $0x3e0] sm:$0xff]
        %v336 = vld [vmem:[%s162 + $0x3e8] sm:$0xff]
        %v337 = vld [vmem:[%s162 + $0x3f0] sm:$0xff]
        %v338 = vld [vmem:[%s162 + $0x3f8] sm:$0xff]
        %v339 = vld [vmem:[%s162 + $0x400] sm:$0xff]
        %v340 = vld [vmem:[%s162 + $0x408] sm:$0xff]
        %v341 = vld [vmem:[%s162 + $0x410] sm:$0xff]
        %v342 = vld [vmem:[%s162 + $0x418] sm:$0xff]
        %v343 = vld [vmem:[%s162 + $0x420] sm:$0xff]
        %v344 = vld [vmem:[%s162 + $0x428] sm:$0xff]
        %v345 = vld [vmem:[%s162 + $0x430] sm:$0xff]
        %v346 = vld [vmem:[%s162 + $0x438] sm:$0xff]
        %v347 = vld [vmem:[%s162 + $0x440] sm:$0xff]
        %v348 = vld [vmem:[%s162 + $0x448] sm:$0xff]
        %v349 = vld [vmem:[%s162 + $0x450] sm:$0xff]
        %v350 = vld [vmem:[%s162 + $0x458] sm:$0xff]
        %v351 = vld [vmem:[%s162 + $0x460] sm:$0xff]
        %v352 = vld [vmem:[%s162 + $0x468] sm:$0xff]
        %v353 = vld [vmem:[%s162 + $0x470] sm:$0xff]
        %v354 = vld [vmem:[%s162 + $0x478] sm:$0xff]
        %v355 = vld [vmem:[%s162 + $0x480] sm:$0xff]
        %v356 = vld [vmem:[%s162 + $0x488] sm:$0xff]
        %v357 = vld [vmem:[%s162 + $0x490] sm:$0xff]
        %v358 = vld [vmem:[%s162 + $0x498] sm:$0xff]
        %v359 = vld [vmem:[%s162 + $0x4a0] sm:$0xff]
        %v360 = vld [vmem:[%s162 + $0x4a8] sm:$0xff]
        %v361 = vld [vmem:[%s162 + $0x4b0] sm:$0xff]
        %v362 = vld [vmem:[%s162 + $0x4b8] sm:$0xff]
        %v363 = vld [vmem:[%s162 + $0x4c0] sm:$0xff]
        %v364 = vld [vmem:[%s162 + $0x4c8] sm:$0xff]
        %v365 = vld [vmem:[%s162 + $0x4d0] sm:$0xff]
        %v366 = vld [vmem:[%s162 + $0x4d8] sm:$0xff]
        %v367 = vld [vmem:[%s162 + $0x4e0] sm:$0xff]
        %v368 = vld [vmem:[%s162 + $0x4e8] sm:$0xff]
        %v369 = vld [vmem:[%s162 + $0x4f0] sm:$0xff]
        %v370 = vld [vmem:[%s162 + $0x4f8] sm:$0xff]
        %v371 = vld [vmem:[%s162 + $0x500] sm:$0xff]
        %v372 = vld [vmem:[%s162 + $0x508] sm:$0xff]
        %v373 = vld [vmem:[%s162 + $0x510] sm:$0xff]
        %v374 = vld [vmem:[%s162 + $0x518] sm:$0xff]
        %v375 = vld [vmem:[%s162 + $0x520] sm:$0xff]
        %v376 = vld [vmem:[%s162 + $0x528] sm:$0xff]
        %v377 = vld [vmem:[%s162 + $0x530] sm:$0xff]
        %v378 = vld [vmem:[%s162 + $0x538] sm:$0xff]
        %v379 = vld [vmem:[%s162 + $0x540] sm:$0xff]
        %v380 = vld [vmem:[%s162 + $0x548] sm:$0xff]
        %v381 = vld [vmem:[%s162 + $0x550] sm:$0xff]
        %v382 = vld [vmem:[%s162 + $0x558] sm:$0xff]
        %v383 = vld [vmem:[%s162 + $0x560] sm:$0xff]
        %v384 = vld [vmem:[%s162 + $0x568] sm:$0xff]
        %v385 = vld [vmem:[%s162 + $0x570] sm:$0xff]
        %v386 = vld [vmem:[%s162 + $0x578] sm:$0xff]
        %v387 = vld [vmem:[%s162 + $0x580] sm:$0xff]
        %v388 = vld [vmem:[%s162 + $0x588] sm:$0xff]
        %v389 = vld [vmem:[%s162 + $0x590] sm:$0xff]
        %v390 = vld [vmem:[%s162 + $0x598] sm:$0xff]
        %v391 = vld [vmem:[%s162 + $0x5a0] sm:$0xff]
        %v392 = vld [vmem:[%s162 + $0x5a8] sm:$0xff]
        %v393 = vld [vmem:[%s162 + $0x5b0] sm:$0xff]
        %v394 = vld [vmem:[%s162 + $0x5b8] sm:$0xff]
        %v395 = vld [vmem:[%s162 + $0x5c0] sm:$0xff]
        %v396 = vld [vmem:[%s162 + $0x5c8] sm:$0xff]
        %v397 = vld [vmem:[%s162 + $0x5d0] sm:$0xff]
        %v398 = vld [vmem:[%s162 + $0x5d8] sm:$0xff]
        %v399 = vld [vmem:[%s162 + $0x5e0] sm:$0xff]
        %v400 = vld [vmem:[%s162 + $0x5e8] sm:$0xff]
        %v401 = vld [vmem:[%s162 + $0x5f0] sm:$0xff]
        %v402 = vld [vmem:[%s162 + $0x5f8] sm:$0xff]
        %v403 = vld [vmem:[%s162 + $0x600] sm:$0xff]
        %v404 = vld [vmem:[%s162 + $0x608] sm:$0xff]
        %v405 = vld [vmem:[%s162 + $0x610] sm:$0xff]
        %v406 = vld [vmem:[%s162 + $0x618] sm:$0xff]
        %v407 = vld [vmem:[%s162 + $0x620] sm:$0xff]
        %v408 = vld [vmem:[%s162 + $0x628] sm:$0xff]
        %v409 = vld [vmem:[%s162 + $0x630] sm:$0xff]
        %v410 = vld [vmem:[%s162 + $0x638] sm:$0xff]
        %v411 = vld [vmem:[%s162 + $0x640] sm:$0xff]
        %v412 = vld [vmem:[%s162 + $0x648] sm:$0xff]
        %v413 = vld [vmem:[%s162 + $0x650] sm:$0xff]
        %v414 = vld [vmem:[%s162 + $0x658] sm:$0xff]
        %v415 = vld [vmem:[%s162 + $0x660] sm:$0xff]
        %v416 = vld [vmem:[%s162 + $0x668] sm:$0xff]
        %v417 = vld [vmem:[%s162 + $0x670] sm:$0xff]
        %v418 = vld [vmem:[%s162 + $0x678] sm:$0xff]
        %v419 = vld [vmem:[%s162 + $0x680] sm:$0xff]
        %v420 = vld [vmem:[%s162 + $0x688] sm:$0xff]
        %v421 = vld [vmem:[%s162 + $0x690] sm:$0xff]
        %v422 = vld [vmem:[%s162 + $0x698] sm:$0xff]
        %v423 = vld [vmem:[%s162 + $0x6a0] sm:$0xff]
        %v424 = vld [vmem:[%s162 + $0x6a8] sm:$0xff]
        %v425 = vld [vmem:[%s162 + $0x6b0] sm:$0xff]
        %v426 = vld [vmem:[%s162 + $0x6b8] sm:$0xff]
        %v427 = vld [vmem:[%s162 + $0x6c0] sm:$0xff]
        %v428 = vld [vmem:[%s162 + $0x6c8] sm:$0xff]
        %v429 = vld [vmem:[%s162 + $0x6d0] sm:$0xff]
        %v430 = vld [vmem:[%s162 + $0x6d8] sm:$0xff]
        %v431 = vld [vmem:[%s162 + $0x6e0] sm:$0xff]
        %v432 = vld [vmem:[%s162 + $0x6e8] sm:$0xff]
        %v433 = vld [vmem:[%s162 + $0x6f0] sm:$0xff]
        %v434 = vld [vmem:[%s162 + $0x6f8] sm:$0xff]
        %v435 = vld [vmem:[%s162 + $0x700] sm:$0xff]
        %v436 = vld [vmem:[%s162 + $0x708] sm:$0xff]
        %v437 = vld [vmem:[%s162 + $0x710] sm:$0xff]
        %v438 = vld [vmem:[%s162 + $0x718] sm:$0xff]
        %v439 = vld [vmem:[%s162 + $0x720] sm:$0xff]
        %v440 = vld [vmem:[%s162 + $0x728] sm:$0xff]
        %v441 = vld [vmem:[%s162 + $0x730] sm:$0xff]
        %v442 = vld [vmem:[%s162 + $0x738] sm:$0xff]
        %v443 = vld [vmem:[%s162 + $0x740] sm:$0xff]
        %v444 = vld [vmem:[%s162 + $0x748] sm:$0xff]
        %v445 = vld [vmem:[%s162 + $0x750] sm:$0xff]
        %v446 = vld [vmem:[%s162 + $0x758] sm:$0xff]
        %v447 = vld [vmem:[%s162 + $0x760] sm:$0xff]
        %v448 = vld [vmem:[%s162 + $0x768] sm:$0xff]
        %v449 = vld [vmem:[%s162 + $0x770] sm:$0xff]
        %v450 = vld [vmem:[%s162 + $0x778] sm:$0xff]
        %v451 = vld [vmem:[%s162 + $0x780] sm:$0xff]
        %v452 = vld [vmem:[%s162 + $0x788] sm:$0xff]
        %v453 = vld [vmem:[%s162 + $0x790] sm:$0xff]
        %v454 = vld [vmem:[%s162 + $0x798] sm:$0xff]
        %v455 = vld [vmem:[%s162 + $0x7a0] sm:$0xff]
        %v456 = vld [vmem:[%s162 + $0x7a8] sm:$0xff]
        %v457 = vld [vmem:[%s162 + $0x7b0] sm:$0xff]
        %v458 = vld [vmem:[%s162 + $0x7b8] sm:$0xff]
        %v459 = vld [vmem:[%s162 + $0x7c0] sm:$0xff]
        %v460 = vld [vmem:[%s162 + $0x7c8] sm:$0xff]
        %v461 = vld [vmem:[%s162 + $0x7d0] sm:$0xff]
        %v462 = vld [vmem:[%s162 + $0x7d8] sm:$0xff]
        %v463 = vld [vmem:[%s162 + $0x7e0] sm:$0xff]
        %v464 = vld [vmem:[%s162 + $0x7e8] sm:$0xff]
        %v465 = vld [vmem:[%s162 + $0x7f0] sm:$0xff]
        %v466 = vld [vmem:[%s162 + $0x7f8] sm:$0xff]
        %v467 = vld [vmem:[%s162 + $0x800] sm:$0xff]
        %v468 = vld [vmem:[%s162 + $0x808] sm:$0xff]
        %v469 = vld [vmem:[%s162 + $0x810] sm:$0xff]
        %v470 = vld [vmem:[%s162 + $0x818] sm:$0xff]
        %v471 = vld [vmem:[%s162 + $0x820] sm:$0xff]
        %v472 = vld [vmem:[%s162 + $0x828] sm:$0xff]
        %v473 = vld [vmem:[%s162 + $0x830] sm:$0xff]
        %v474 = vld [vmem:[%s162 + $0x838] sm:$0xff]
        %v475 = vld [vmem:[%s162 + $0x840] sm:$0xff]
        %v476 = vld [vmem:[%s162 + $0x848] sm:$0xff]
        %v477 = vld [vmem:[%s162 + $0x850] sm:$0xff]
        %v478 = vld [vmem:[%s162 + $0x858] sm:$0xff]
        %v479 = vld [vmem:[%s162 + $0x860] sm:$0xff]
        %v480 = vld [vmem:[%s162 + $0x868] sm:$0xff]
        %v481 = vld [vmem:[%s162 + $0x870] sm:$0xff]
        %v482 = vld [vmem:[%s162 + $0x878] sm:$0xff]
        %v483 = vld [vmem:[%s162 + $0x880] sm:$0xff]
        %v484 = vld [vmem:[%s162 + $0x888] sm:$0xff]
        %v485 = vld [vmem:[%s162 + $0x890] sm:$0xff]
        %v486 = vld [vmem:[%s162 + $0x898] sm:$0xff]
        %v487 = vld [vmem:[%s162 + $0x8a0] sm:$0xff]
        %v488 = vld [vmem:[%s162 + $0x8a8] sm:$0xff]
        %v489 = vld [vmem:[%s162 + $0x8b0] sm:$0xff]
        %v490 = vld [vmem:[%s162 + $0x8b8] sm:$0xff]
        %v491 = vld [vmem:[%s162 + $0x8c0] sm:$0xff]
        %v492 = vld [vmem:[%s162 + $0x8c8] sm:$0xff]
        %v493 = vld [vmem:[%s162 + $0x8d0] sm:$0xff]
        %v494 = vld [vmem:[%s162 + $0x8d8] sm:$0xff]
        %v495 = vld [vmem:[%s162 + $0x8e0] sm:$0xff]
        %v496 = vld [vmem:[%s162 + $0x8e8] sm:$0xff]
        %v497 = vld [vmem:[%s162 + $0x8f0] sm:$0xff]
        %v498 = vld [vmem:[%s162 + $0x8f8] sm:$0xff]
        %v499 = vld [vmem:[%s162 + $0x900] sm:$0xff]
        %v500 = vld [vmem:[%s162 + $0x908] sm:$0xff]
        %v501 = vld [vmem:[%s162 + $0x910] sm:$0xff]
        %v502 = vld [vmem:[%s162 + $0x918] sm:$0xff]
        %v503 = vld [vmem:[%s162 + $0x920] sm:$0xff]
        %v504 = vld [vmem:[%s162 + $0x928] sm:$0xff]
        %v505 = vld [vmem:[%s162 + $0x930] sm:$0xff]
        %v506 = vld [vmem:[%s162 + $0x938] sm:$0xff]
        %v507 = vld [vmem:[%s162 + $0x940] sm:$0xff]
        %v508 = vld [vmem:[%s162 + $0x948] sm:$0xff]
        %v509 = vld [vmem:[%s162 + $0x950] sm:$0xff]
        %v510 = vld [vmem:[%s162 + $0x958] sm:$0xff]
        %v511 = vld [vmem:[%s162 + $0x960] sm:$0xff]
        %v512 = vld [vmem:[%s162 + $0x968] sm:$0xff]
        %v513 = vld [vmem:[%s162 + $0x970] sm:$0xff]
        %v514 = vld [vmem:[%s162 + $0x978] sm:$0xff]
        %v515 = vld [vmem:[%s162 + $0x980] sm:$0xff]
        %v516 = vld [vmem:[%s162 + $0x988] sm:$0xff]
        %v517 = vld [vmem:[%s162 + $0x990] sm:$0xff]
        %v518 = vld [vmem:[%s162 + $0x998] sm:$0xff]
        %v519 = vld [vmem:[%s162 + $0x9a0] sm:$0xff]
        %v520 = vld [vmem:[%s162 + $0x9a8] sm:$0xff]
        %v521 = vld [vmem:[%s162 + $0x9b0] sm:$0xff]
        %v522 = vld [vmem:[%s162 + $0x9b8] sm:$0xff]
        %v523 = vld [vmem:[%s162 + $0x9c0] sm:$0xff]
        %v524 = vld [vmem:[%s162 + $0x9c8] sm:$0xff]
        %v525 = vld [vmem:[%s162 + $0x9d0] sm:$0xff]
        %v526 = vld [vmem:[%s162 + $0x9d8] sm:$0xff]
        %v527 = vld [vmem:[%s162 + $0x9e0] sm:$0xff]
        %v528 = vld [vmem:[%s162 + $0x9e8] sm:$0xff]
        %v529 = vld [vmem:[%s162 + $0x9f0] sm:$0xff]
        %v530 = vld [vmem:[%s162 + $0x9f8] sm:$0xff]
        %v531 = vld [vmem:[%s162 + $0xa00] sm:$0xff]
        %v532 = vld [vmem:[%s162 + $0xa08] sm:$0xff]
        %v533 = vld [vmem:[%s162 + $0xa10] sm:$0xff]
        %v534 = vld [vmem:[%s162 + $0xa18] sm:$0xff]
        %v535 = vld [vmem:[%s162 + $0xa20] sm:$0xff]
        %v536 = vld [vmem:[%s162 + $0xa28] sm:$0xff]
        %v537 = vld [vmem:[%s162 + $0xa30] sm:$0xff]
        %v538 = vld [vmem:[%s162 + $0xa38] sm:$0xff]
        %v539 = vld [vmem:[%s162 + $0xa40] sm:$0xff]
        %v540 = vld [vmem:[%s162 + $0xa48] sm:$0xff]
        %v541 = vld [vmem:[%s162 + $0xa50] sm:$0xff]
        %v542 = vld [vmem:[%s162 + $0xa58] sm:$0xff]
        %v543 = vld [vmem:[%s162 + $0xa60] sm:$0xff]
        %v544 = vld [vmem:[%s162 + $0xa68] sm:$0xff]
        %v545 = vld [vmem:[%s162 + $0xa70] sm:$0xff]
        %v546 = vld [vmem:[%s162 + $0xa78] sm:$0xff]
        %v547 = vld [vmem:[%s162 + $0xa80] sm:$0xff]
        %v548 = vld [vmem:[%s162 + $0xa88] sm:$0xff]
        %v549 = vld [vmem:[%s162 + $0xa90] sm:$0xff]
        %v550 = vld [vmem:[%s162 + $0xa98] sm:$0xff]
        %v551 = vld [vmem:[%s162 + $0xaa0] sm:$0xff]
        %v552 = vld [vmem:[%s162 + $0xaa8] sm:$0xff]
        %v553 = vld [vmem:[%s162 + $0xab0] sm:$0xff]
        %v554 = vld [vmem:[%s162 + $0xab8] sm:$0xff]
        %v555 = vld [vmem:[%s162 + $0xac0] sm:$0xff]
        %v556 = vld [vmem:[%s162 + $0xac8] sm:$0xff]
        %v557 = vld [vmem:[%s162 + $0xad0] sm:$0xff]
        %v558 = vld [vmem:[%s162 + $0xad8] sm:$0xff]
        %v559 = vld [vmem:[%s162 + $0xae0] sm:$0xff]
        %v560 = vld [vmem:[%s162 + $0xae8] sm:$0xff]
        %v561 = vld [vmem:[%s162 + $0xaf0] sm:$0xff]
        %v562 = vld [vmem:[%s162 + $0xaf8] sm:$0xff]
        %v563 = vld [vmem:[%s162 + $0xb00] sm:$0xff]
        %v564 = vld [vmem:[%s162 + $0xb08] sm:$0xff]
        %v565 = vld [vmem:[%s162 + $0xb10] sm:$0xff]
        %v566 = vld [vmem:[%s162 + $0xb18] sm:$0xff]
        %v567 = vld [vmem:[%s162 + $0xb20] sm:$0xff]
        %v568 = vld [vmem:[%s162 + $0xb28] sm:$0xff]
        %v569 = vld [vmem:[%s162 + $0xb30] sm:$0xff]
        %v570 = vld [vmem:[%s162 + $0xb38] sm:$0xff]
        %v571 = vld [vmem:[%s162 + $0xb40] sm:$0xff]
        %v572 = vld [vmem:[%s162 + $0xb48] sm:$0xff]
        %v573 = vld [vmem:[%s162 + $0xb50] sm:$0xff]
        %v574 = vld [vmem:[%s162 + $0xb58] sm:$0xff]
        %v575 = vld [vmem:[%s162 + $0xb60] sm:$0xff]
        %v576 = vld [vmem:[%s162 + $0xb68] sm:$0xff]
        %v577 = vld [vmem:[%s162 + $0xb70] sm:$0xff]
        %v578 = vld [vmem:[%s162 + $0xb78] sm:$0xff]
        %v579 = vld [vmem:[%s162 + $0xb80] sm:$0xff]
        %v580 = vld [vmem:[%s162 + $0xb88] sm:$0xff]
        %v581 = vld [vmem:[%s162 + $0xb90] sm:$0xff]
        %v582 = vld [vmem:[%s162 + $0xb98] sm:$0xff]
        %v583 = vld [vmem:[%s162 + $0xba0] sm:$0xff]
        %v584 = vld [vmem:[%s162 + $0xba8] sm:$0xff]
        %v585 = vld [vmem:[%s162 + $0xbb0] sm:$0xff]
        %v586 = vld [vmem:[%s162 + $0xbb8] sm:$0xff]
        %v587 = vld [vmem:[%s162 + $0xbc0] sm:$0xff]
        %v588 = vld [vmem:[%s162 + $0xbc8] sm:$0xff]
        %v589 = vld [vmem:[%s162 + $0xbd0] sm:$0xff]
        %v590 = vld [vmem:[%s162 + $0xbd8] sm:$0xff]
        %v591 = vld [vmem:[%s162 + $0xbe0] sm:$0xff]
        %v592 = vld [vmem:[%s162 + $0xbe8] sm:$0xff]
        %v593 = vld [vmem:[%s162 + $0xbf0] sm:$0xff]
        %v594 = vld [vmem:[%s162 + $0xbf8] sm:$0xff]
        %v595 = vld [vmem:[%s162 + $0xc00] sm:$0xff]
        %v596 = vld [vmem:[%s162 + $0xc08] sm:$0xff]
        %v597 = vld [vmem:[%s162 + $0xc10] sm:$0xff]
        %v598 = vld [vmem:[%s162 + $0xc18] sm:$0xff]
        %v599 = vld [vmem:[%s162 + $0xc20] sm:$0xff]
        %v600 = vld [vmem:[%s162 + $0xc28] sm:$0xff]
        %v601 = vld [vmem:[%s162 + $0xc30] sm:$0xff]
        %v602 = vld [vmem:[%s162 + $0xc38] sm:$0xff]
        %v603 = vld [vmem:[%s162 + $0xc40] sm:$0xff]
        %v604 = vld [vmem:[%s162 + $0xc48] sm:$0xff]
        %v605 = vld [vmem:[%s162 + $0xc50] sm:$0xff]
        %v606 = vld [vmem:[%s162 + $0xc58] sm:$0xff]
        %v607 = vld [vmem:[%s162 + $0xc60] sm:$0xff]
        %v608 = vld [vmem:[%s162 + $0xc68] sm:$0xff]
        %v609 = vld [vmem:[%s162 + $0xc70] sm:$0xff]
        %v610 = vld [vmem:[%s162 + $0xc78] sm:$0xff]
        %v611 = vld [vmem:[%s162 + $0xc80] sm:$0xff]
        %v612 = vld [vmem:[%s162 + $0xc88] sm:$0xff]
        %v613 = vld [vmem:[%s162 + $0xc90] sm:$0xff]
        %v614 = vld [vmem:[%s162 + $0xc98] sm:$0xff]
        %v615 = vld [vmem:[%s162 + $0xca0] sm:$0xff]
        %v616 = vld [vmem:[%s162 + $0xca8] sm:$0xff]
        %v617 = vld [vmem:[%s162 + $0xcb0] sm:$0xff]
        %v618 = vld [vmem:[%s162 + $0xcb8] sm:$0xff]
        %v619 = vld [vmem:[%s162 + $0xcc0] sm:$0xff]
        %v620 = vld [vmem:[%s162 + $0xcc8] sm:$0xff]
        %v621 = vld [vmem:[%s162 + $0xcd0] sm:$0xff]
        %v622 = vld [vmem:[%s162 + $0xcd8] sm:$0xff]
        %v623 = vld [vmem:[%s162 + $0xce0] sm:$0xff]
        %v624 = vld [vmem:[%s162 + $0xce8] sm:$0xff]
        %v625 = vld [vmem:[%s162 + $0xcf0] sm:$0xff]
        %v626 = vld [vmem:[%s162 + $0xcf8] sm:$0xff]
        %v627 = vld [vmem:[%s162 + $0xd00] sm:$0xff]
        %v628 = vld [vmem:[%s162 + $0xd08] sm:$0xff]
        %v629 = vld [vmem:[%s162 + $0xd10] sm:$0xff]
        %v630 = vld [vmem:[%s162 + $0xd18] sm:$0xff]
        %v631 = vld [vmem:[%s162 + $0xd20] sm:$0xff]
        %v632 = vld [vmem:[%s162 + $0xd28] sm:$0xff]
        %v633 = vld [vmem:[%s162 + $0xd30] sm:$0xff]
        %v634 = vld [vmem:[%s162 + $0xd38] sm:$0xff]
        %v635 = vld [vmem:[%s162 + $0xd40] sm:$0xff]
        %v636 = vld [vmem:[%s162 + $0xd48] sm:$0xff]
        %v637 = vld [vmem:[%s162 + $0xd50] sm:$0xff]
        %v638 = vld [vmem:[%s162 + $0xd58] sm:$0xff]
        %v639 = vld [vmem:[%s162 + $0xd60] sm:$0xff]
        %v640 = vld [vmem:[%s162 + $0xd68] sm:$0xff]
        %v641 = vld [vmem:[%s162 + $0xd70] sm:$0xff]
        %v642 = vld [vmem:[%s162 + $0xd78] sm:$0xff]
        %v643 = vld [vmem:[%s162 + $0xd80] sm:$0xff]
        %v644 = vld [vmem:[%s162 + $0xd88] sm:$0xff]
        %v645 = vld [vmem:[%s162 + $0xd90] sm:$0xff]
        %v646 = vld [vmem:[%s162 + $0xd98] sm:$0xff]
        %v647 = vld [vmem:[%s162 + $0xda0] sm:$0xff]
        %v648 = vld [vmem:[%s162 + $0xda8] sm:$0xff]
        %v649 = vld [vmem:[%s162 + $0xdb0] sm:$0xff]
        %v650 = vld [vmem:[%s162 + $0xdb8] sm:$0xff]
        %v651 = vld [vmem:[%s162 + $0xdc0] sm:$0xff]
        %v652 = vld [vmem:[%s162 + $0xdc8] sm:$0xff]
        %v653 = vld [vmem:[%s162 + $0xdd0] sm:$0xff]
        %v654 = vld [vmem:[%s162 + $0xdd8] sm:$0xff]
        %v655 = vld [vmem:[%s162 + $0xde0] sm:$0xff]
        %v656 = vld [vmem:[%s162 + $0xde8] sm:$0xff]
        %v657 = vld [vmem:[%s162 + $0xdf0] sm:$0xff]
        %v658 = vld [vmem:[%s162 + $0xdf8] sm:$0xff]
        %v661 = vunpack.c.l.b16 %v209
        %v662 = vunpack.c.h.b16 %v209
        %v663 = vunpack.c.l.b16 %v210
        %v664 = vunpack.c.h.b16 %v210
        %v665 = vpack.c.b16 %v661, %v661
        %v666 = vpack.c.b16 %v662, %v662
        %v667 = vpack.c.b16 %v663, %v663
        %v668 = vpack.c.b16 %v664, %v664
        %v1120 = vunpack.c.l.b16 %v211
        %v1121 = vunpack.c.h.b16 %v211
        %v1122 = vunpack.c.l.b16 %v212
        %v1123 = vunpack.c.h.b16 %v212
        %v1124 = vunpack.c.l.b16 %v213
        %v1125 = vunpack.c.h.b16 %v213
        %v1126 = vunpack.c.l.b16 %v214
        %v1127 = vunpack.c.h.b16 %v214
        %v1128 = vunpack.c.l.b16 %v215
        %v1129 = vunpack.c.h.b16 %v215
        %v1130 = vunpack.c.l.b16 %v216
        %v1131 = vunpack.c.h.b16 %v216
        %v1132 = vunpack.c.l.b16 %v217
        %v1133 = vunpack.c.h.b16 %v217
        %v1134 = vunpack.c.l.b16 %v218
        %v1135 = vunpack.c.h.b16 %v218
        %v1136 = vunpack.c.l.b16 %v219
        %v1137 = vunpack.c.h.b16 %v219
        %v1138 = vunpack.c.l.b16 %v220
        %v1139 = vunpack.c.h.b16 %v220
        %v1140 = vunpack.c.l.b16 %v221
        %v1141 = vunpack.c.h.b16 %v221
        %v1142 = vunpack.c.l.b16 %v222
        %v1143 = vunpack.c.h.b16 %v222
        %v1144 = vunpack.c.l.b16 %v223
        %v1145 = vunpack.c.h.b16 %v223
        %v1146 = vunpack.c.l.b16 %v224
        %v1147 = vunpack.c.h.b16 %v224
        %v1148 = vunpack.c.l.b16 %v225
        %v1149 = vunpack.c.h.b16 %v225
        %v1150 = vunpack.c.l.b16 %v226
        %v1151 = vunpack.c.h.b16 %v226
        %v1152 = vunpack.c.l.b16 %v227
        %v1153 = vunpack.c.h.b16 %v227
        %v1154 = vunpack.c.l.b16 %v228
        %v1155 = vunpack.c.h.b16 %v228
        %v1156 = vunpack.c.l.b16 %v229
        %v1157 = vunpack.c.h.b16 %v229
        %v1158 = vunpack.c.l.b16 %v230
        %v1159 = vunpack.c.h.b16 %v230
        %v1160 = vunpack.c.l.b16 %v231
        %v1161 = vunpack.c.h.b16 %v231
        %v1162 = vunpack.c.l.b16 %v232
        %v1163 = vunpack.c.h.b16 %v232
        %v1164 = vunpack.c.l.b16 %v233
        %v1165 = vunpack.c.h.b16 %v233
        %v1166 = vunpack.c.l.b16 %v234
        %v1167 = vunpack.c.h.b16 %v234
        %v1168 = vunpack.c.l.b16 %v235
        %v1169 = vunpack.c.h.b16 %v235
        %v1170 = vunpack.c.l.b16 %v236
        %v1171 = vunpack.c.h.b16 %v236
        %v1172 = vunpack.c.l.b16 %v237
        %v1173 = vunpack.c.h.b16 %v237
        %v1174 = vunpack.c.l.b16 %v238
        %v1175 = vunpack.c.h.b16 %v238
        %v1176 = vunpack.c.l.b16 %v239
        %v1177 = vunpack.c.h.b16 %v239
        %v1178 = vunpack.c.l.b16 %v240
        %v1179 = vunpack.c.h.b16 %v240
        %v1180 = vunpack.c.l.b16 %v241
        %v1181 = vunpack.c.h.b16 %v241
        %v1182 = vunpack.c.l.b16 %v242
        %v1183 = vunpack.c.h.b16 %v242
        %v1184 = vunpack.c.l.b16 %v243
        %v1185 = vunpack.c.h.b16 %v243
        %v1186 = vunpack.c.l.b16 %v244
        %v1187 = vunpack.c.h.b16 %v244
        %v1188 = vunpack.c.l.b16 %v245
        %v1189 = vunpack.c.h.b16 %v245
        %v1190 = vunpack.c.l.b16 %v246
        %v1191 = vunpack.c.h.b16 %v246
        %v1192 = vunpack.c.l.b16 %v247
        %v1193 = vunpack.c.h.b16 %v247
        %v1194 = vunpack.c.l.b16 %v248
        %v1195 = vunpack.c.h.b16 %v248
        %v1196 = vunpack.c.l.b16 %v249
        %v1197 = vunpack.c.h.b16 %v249
        %v1198 = vunpack.c.l.b16 %v250
        %v1199 = vunpack.c.h.b16 %v250
        %v1200 = vunpack.c.l.b16 %v251
        %v1201 = vunpack.c.h.b16 %v251
        %v1202 = vunpack.c.l.b16 %v252
        %v1203 = vunpack.c.h.b16 %v252
        %v1204 = vunpack.c.l.b16 %v253
        %v1205 = vunpack.c.h.b16 %v253
        %v1206 = vunpack.c.l.b16 %v254
        %v1207 = vunpack.c.h.b16 %v254
        %v1208 = vunpack.c.l.b16 %v255
        %v1209 = vunpack.c.h.b16 %v255
        %v1210 = vunpack.c.l.b16 %v256
        %v1211 = vunpack.c.h.b16 %v256
        %v1212 = vunpack.c.l.b16 %v257
        %v1213 = vunpack.c.h.b16 %v257
        %v1214 = vunpack.c.l.b16 %v258
        %v1215 = vunpack.c.h.b16 %v258
        %v1216 = vunpack.c.l.b16 %v259
        %v1217 = vunpack.c.h.b16 %v259
        %v1218 = vunpack.c.l.b16 %v260
        %v1219 = vunpack.c.h.b16 %v260
        %v1220 = vunpack.c.l.b16 %v261
        %v1221 = vunpack.c.h.b16 %v261
        %v1222 = vunpack.c.l.b16 %v262
        %v1223 = vunpack.c.h.b16 %v262
        %v1224 = vunpack.c.l.b16 %v263
        %v1225 = vunpack.c.h.b16 %v263
        %v1226 = vunpack.c.l.b16 %v264
        %v1227 = vunpack.c.h.b16 %v264
        %v1228 = vunpack.c.l.b16 %v265
        %v1229 = vunpack.c.h.b16 %v265
        %v1230 = vunpack.c.l.b16 %v266
        %v1231 = vunpack.c.h.b16 %v266
        %v1232 = vunpack.c.l.b16 %v267
        %v1233 = vunpack.c.h.b16 %v267
        %v1234 = vunpack.c.l.b16 %v268
        %v1235 = vunpack.c.h.b16 %v268
        %v1236 = vunpack.c.l.b16 %v269
        %v1237 = vunpack.c.h.b16 %v269
        %v1238 = vunpack.c.l.b16 %v270
        %v1239 = vunpack.c.h.b16 %v270
        %v1240 = vunpack.c.l.b16 %v271
        %v1241 = vunpack.c.h.b16 %v271
        %v1242 = vunpack.c.l.b16 %v272
        %v1243 = vunpack.c.h.b16 %v272
        %v1244 = vunpack.c.l.b16 %v273
        %v1245 = vunpack.c.h.b16 %v273
        %v1246 = vunpack.c.l.b16 %v274
        %v1247 = vunpack.c.h.b16 %v274
        %v1248 = vunpack.c.l.b16 %v275
        %v1249 = vunpack.c.h.b16 %v275
        %v1250 = vunpack.c.l.b16 %v276
        %v1251 = vunpack.c.h.b16 %v276
        %v1252 = vunpack.c.l.b16 %v277
        %v1253 = vunpack.c.h.b16 %v277
        %v1254 = vunpack.c.l.b16 %v278
        %v1255 = vunpack.c.h.b16 %v278
        %v1256 = vunpack.c.l.b16 %v279
        %v1257 = vunpack.c.h.b16 %v279
        %v1258 = vunpack.c.l.b16 %v280
        %v1259 = vunpack.c.h.b16 %v280
        %v1260 = vunpack.c.l.b16 %v281
        %v1261 = vunpack.c.h.b16 %v281
        %v1262 = vunpack.c.l.b16 %v282
        %v1263 = vunpack.c.h.b16 %v282
        %v1264 = vunpack.c.l.b16 %v283
        %v1265 = vunpack.c.h.b16 %v283
        %v1266 = vunpack.c.l.b16 %v284
        %v1267 = vunpack.c.h.b16 %v284
        %v1268 = vunpack.c.l.b16 %v285
        %v1269 = vunpack.c.h.b16 %v285
        %v1270 = vunpack.c.l.b16 %v286
        %v1271 = vunpack.c.h.b16 %v286
        %v1272 = vunpack.c.l.b16 %v287
        %v1273 = vunpack.c.h.b16 %v287
        %v1274 = vunpack.c.l.b16 %v288
        %v1275 = vunpack.c.h.b16 %v288
        %v1276 = vunpack.c.l.b16 %v289
        %v1277 = vunpack.c.h.b16 %v289
        %v1278 = vunpack.c.l.b16 %v290
        %v1279 = vunpack.c.h.b16 %v290
        %v1280 = vunpack.c.l.b16 %v291
        %v1281 = vunpack.c.h.b16 %v291
        %v1282 = vunpack.c.l.b16 %v292
        %v1283 = vunpack.c.h.b16 %v292
        %v1284 = vunpack.c.l.b16 %v293
        %v1285 = vunpack.c.h.b16 %v293
        %v1286 = vunpack.c.l.b16 %v294
        %v1287 = vunpack.c.h.b16 %v294
        %v1288 = vunpack.c.l.b16 %v295
        %v1289 = vunpack.c.h.b16 %v295
        %v1290 = vunpack.c.l.b16 %v296
        %v1291 = vunpack.c.h.b16 %v296
        %v1292 = vunpack.c.l.b16 %v297
        %v1293 = vunpack.c.h.b16 %v297
        %v1294 = vunpack.c.l.b16 %v298
        %v1295 = vunpack.c.h.b16 %v298
        %v1296 = vunpack.c.l.b16 %v299
        %v1297 = vunpack.c.h.b16 %v299
        %v1298 = vunpack.c.l.b16 %v300
        %v1299 = vunpack.c.h.b16 %v300
        %v1300 = vunpack.c.l.b16 %v301
        %v1301 = vunpack.c.h.b16 %v301
        %v1302 = vunpack.c.l.b16 %v302
        %v1303 = vunpack.c.h.b16 %v302
        %v1304 = vunpack.c.l.b16 %v303
        %v1305 = vunpack.c.h.b16 %v303
        %v1306 = vunpack.c.l.b16 %v304
        %v1307 = vunpack.c.h.b16 %v304
        %v1308 = vunpack.c.l.b16 %v305
        %v1309 = vunpack.c.h.b16 %v305
        %v1310 = vunpack.c.l.b16 %v306
        %v1311 = vunpack.c.h.b16 %v306
        %v1312 = vunpack.c.l.b16 %v307
        %v1313 = vunpack.c.h.b16 %v307
        %v1314 = vunpack.c.l.b16 %v308
        %v1315 = vunpack.c.h.b16 %v308
        %v1316 = vunpack.c.l.b16 %v309
        %v1317 = vunpack.c.h.b16 %v309
        %v1318 = vunpack.c.l.b16 %v310
        %v1319 = vunpack.c.h.b16 %v310
        %v1320 = vunpack.c.l.b16 %v311
        %v1321 = vunpack.c.h.b16 %v311
        %v1322 = vunpack.c.l.b16 %v312
        %v1323 = vunpack.c.h.b16 %v312
        %v1324 = vunpack.c.l.b16 %v313
        %v1325 = vunpack.c.h.b16 %v313
        %v1326 = vunpack.c.l.b16 %v314
        %v1327 = vunpack.c.h.b16 %v314
        %v1328 = vunpack.c.l.b16 %v315
        %v1329 = vunpack.c.h.b16 %v315
        %v1330 = vunpack.c.l.b16 %v316
        %v1331 = vunpack.c.h.b16 %v316
        %v1332 = vunpack.c.l.b16 %v317
        %v1333 = vunpack.c.h.b16 %v317
        %v1334 = vunpack.c.l.b16 %v318
        %v1335 = vunpack.c.h.b16 %v318
        %v1336 = vunpack.c.l.b16 %v319
        %v1337 = vunpack.c.h.b16 %v319
        %v1338 = vunpack.c.l.b16 %v320
        %v1339 = vunpack.c.h.b16 %v320
        %v1340 = vunpack.c.l.b16 %v321
        %v1341 = vunpack.c.h.b16 %v321
        %v1342 = vunpack.c.l.b16 %v322
        %v1343 = vunpack.c.h.b16 %v322
        %v1344 = vunpack.c.l.b16 %v323
        %v1345 = vunpack.c.h.b16 %v323
        %v1346 = vunpack.c.l.b16 %v324
        %v1347 = vunpack.c.h.b16 %v324
        %v1348 = vunpack.c.l.b16 %v325
        %v1349 = vunpack.c.h.b16 %v325
        %v1350 = vunpack.c.l.b16 %v326
        %v1351 = vunpack.c.h.b16 %v326
        %v1352 = vunpack.c.l.b16 %v327
        %v1353 = vunpack.c.h.b16 %v327
        %v1354 = vunpack.c.l.b16 %v328
        %v1355 = vunpack.c.h.b16 %v328
        %v1356 = vunpack.c.l.b16 %v329
        %v1357 = vunpack.c.h.b16 %v329
        %v1358 = vunpack.c.l.b16 %v330
        %v1359 = vunpack.c.h.b16 %v330
        %v1360 = vunpack.c.l.b16 %v331
        %v1361 = vunpack.c.h.b16 %v331
        %v1362 = vunpack.c.l.b16 %v332
        %v1363 = vunpack.c.h.b16 %v332
        %v1364 = vunpack.c.l.b16 %v333
        %v1365 = vunpack.c.h.b16 %v333
        %v1366 = vunpack.c.l.b16 %v334
        %v1367 = vunpack.c.h.b16 %v334
        %v1368 = vunpack.c.l.b16 %v335
        %v1369 = vunpack.c.h.b16 %v335
        %v1370 = vunpack.c.l.b16 %v336
        %v1371 = vunpack.c.h.b16 %v336
        %v1372 = vunpack.c.l.b16 %v337
        %v1373 = vunpack.c.h.b16 %v337
        %v1374 = vunpack.c.l.b16 %v338
        %v1375 = vunpack.c.h.b16 %v338
        %v1376 = vunpack.c.l.b16 %v339
        %v1377 = vunpack.c.h.b16 %v339
        %v1378 = vunpack.c.l.b16 %v340
        %v1379 = vunpack.c.h.b16 %v340
        %v1380 = vunpack.c.l.b16 %v341
        %v1381 = vunpack.c.h.b16 %v341
        %v1382 = vunpack.c.l.b16 %v342
        %v1383 = vunpack.c.h.b16 %v342
        %v1384 = vunpack.c.l.b16 %v343
        %v1385 = vunpack.c.h.b16 %v343
        %v1386 = vunpack.c.l.b16 %v344
        %v1387 = vunpack.c.h.b16 %v344
        %v1388 = vunpack.c.l.b16 %v345
        %v1389 = vunpack.c.h.b16 %v345
        %v1390 = vunpack.c.l.b16 %v346
        %v1391 = vunpack.c.h.b16 %v346
        %v1392 = vunpack.c.l.b16 %v347
        %v1393 = vunpack.c.h.b16 %v347
        %v1394 = vunpack.c.l.b16 %v348
        %v1395 = vunpack.c.h.b16 %v348
        %v1396 = vunpack.c.l.b16 %v349
        %v1397 = vunpack.c.h.b16 %v349
        %v1398 = vunpack.c.l.b16 %v350
        %v1399 = vunpack.c.h.b16 %v350
        %v1400 = vunpack.c.l.b16 %v351
        %v1401 = vunpack.c.h.b16 %v351
        %v1402 = vunpack.c.l.b16 %v352
        %v1403 = vunpack.c.h.b16 %v352
        %v1404 = vunpack.c.l.b16 %v353
        %v1405 = vunpack.c.h.b16 %v353
        %v1406 = vunpack.c.l.b16 %v354
        %v1407 = vunpack.c.h.b16 %v354
        %v1408 = vunpack.c.l.b16 %v355
        %v1409 = vunpack.c.h.b16 %v355
        %v1410 = vunpack.c.l.b16 %v356
        %v1411 = vunpack.c.h.b16 %v356
        %v1412 = vunpack.c.l.b16 %v357
        %v1413 = vunpack.c.h.b16 %v357
        %v1414 = vunpack.c.l.b16 %v358
        %v1415 = vunpack.c.h.b16 %v358
        %v1416 = vunpack.c.l.b16 %v359
        %v1417 = vunpack.c.h.b16 %v359
        %v1418 = vunpack.c.l.b16 %v360
        %v1419 = vunpack.c.h.b16 %v360
        %v1420 = vunpack.c.l.b16 %v361
        %v1421 = vunpack.c.h.b16 %v361
        %v1422 = vunpack.c.l.b16 %v362
        %v1423 = vunpack.c.h.b16 %v362
        %v1424 = vunpack.c.l.b16 %v363
        %v1425 = vunpack.c.h.b16 %v363
        %v1426 = vunpack.c.l.b16 %v364
        %v1427 = vunpack.c.h.b16 %v364
        %v1428 = vunpack.c.l.b16 %v365
        %v1429 = vunpack.c.h.b16 %v365
        %v1430 = vunpack.c.l.b16 %v366
        %v1431 = vunpack.c.h.b16 %v366
        %v1432 = vunpack.c.l.b16 %v367
        %v1433 = vunpack.c.h.b16 %v367
        %v1434 = vunpack.c.l.b16 %v368
        %v1435 = vunpack.c.h.b16 %v368
        %v1436 = vunpack.c.l.b16 %v369
        %v1437 = vunpack.c.h.b16 %v369
        %v1438 = vunpack.c.l.b16 %v370
        %v1439 = vunpack.c.h.b16 %v370
        %v1440 = vunpack.c.l.b16 %v371
        %v1441 = vunpack.c.h.b16 %v371
        %v1442 = vunpack.c.l.b16 %v372
        %v1443 = vunpack.c.h.b16 %v372
        %v1444 = vunpack.c.l.b16 %v373
        %v1445 = vunpack.c.h.b16 %v373
        %v1446 = vunpack.c.l.b16 %v374
        %v1447 = vunpack.c.h.b16 %v374
        %v1448 = vunpack.c.l.b16 %v375
        %v1449 = vunpack.c.h.b16 %v375
        %v1450 = vunpack.c.l.b16 %v376
        %v1451 = vunpack.c.h.b16 %v376
        %v1452 = vunpack.c.l.b16 %v377
        %v1453 = vunpack.c.h.b16 %v377
        %v1454 = vunpack.c.l.b16 %v378
        %v1455 = vunpack.c.h.b16 %v378
        %v1456 = vunpack.c.l.b16 %v379
        %v1457 = vunpack.c.h.b16 %v379
        %v1458 = vunpack.c.l.b16 %v380
        %v1459 = vunpack.c.h.b16 %v380
        %v1460 = vunpack.c.l.b16 %v381
        %v1461 = vunpack.c.h.b16 %v381
        %v1462 = vunpack.c.l.b16 %v382
        %v1463 = vunpack.c.h.b16 %v382
        %v1464 = vunpack.c.l.b16 %v383
        %v1465 = vunpack.c.h.b16 %v383
        %v1466 = vunpack.c.l.b16 %v384
        %v1467 = vunpack.c.h.b16 %v384
        %v1468 = vunpack.c.l.b16 %v385
        %v1469 = vunpack.c.h.b16 %v385
        %v1470 = vunpack.c.l.b16 %v386
        %v1471 = vunpack.c.h.b16 %v386
        %v1472 = vunpack.c.l.b16 %v387
        %v1473 = vunpack.c.h.b16 %v387
        %v1474 = vunpack.c.l.b16 %v388
        %v1475 = vunpack.c.h.b16 %v388
        %v1476 = vunpack.c.l.b16 %v389
        %v1477 = vunpack.c.h.b16 %v389
        %v1478 = vunpack.c.l.b16 %v390
        %v1479 = vunpack.c.h.b16 %v390
        %v1480 = vunpack.c.l.b16 %v391
        %v1481 = vunpack.c.h.b16 %v391
        %v1482 = vunpack.c.l.b16 %v392
        %v1483 = vunpack.c.h.b16 %v392
        %v1484 = vunpack.c.l.b16 %v393
        %v1485 = vunpack.c.h.b16 %v393
        %v1486 = vunpack.c.l.b16 %v394
        %v1487 = vunpack.c.h.b16 %v394
        %v1488 = vunpack.c.l.b16 %v395
        %v1489 = vunpack.c.h.b16 %v395
        %v1490 = vunpack.c.l.b16 %v396
        %v1491 = vunpack.c.h.b16 %v396
        %v1492 = vunpack.c.l.b16 %v397
        %v1493 = vunpack.c.h.b16 %v397
        %v1494 = vunpack.c.l.b16 %v398
        %v1495 = vunpack.c.h.b16 %v398
        %v1496 = vunpack.c.l.b16 %v399
        %v1497 = vunpack.c.h.b16 %v399
        %v1498 = vunpack.c.l.b16 %v400
        %v1499 = vunpack.c.h.b16 %v400
        %v1500 = vunpack.c.l.b16 %v401
        %v1501 = vunpack.c.h.b16 %v401
        %v1502 = vunpack.c.l.b16 %v402
        %v1503 = vunpack.c.h.b16 %v402
        %v1504 = vunpack.c.l.b16 %v403
        %v1505 = vunpack.c.h.b16 %v403
        %v1506 = vunpack.c.l.b16 %v404
        %v1507 = vunpack.c.h.b16 %v404
        %v1508 = vunpack.c.l.b16 %v405
        %v1509 = vunpack.c.h.b16 %v405
        %v1510 = vunpack.c.l.b16 %v406
        %v1511 = vunpack.c.h.b16 %v406
        %v1512 = vunpack.c.l.b16 %v407
        %v1513 = vunpack.c.h.b16 %v407
        %v1514 = vunpack.c.l.b16 %v408
        %v1515 = vunpack.c.h.b16 %v408
        %v1516 = vunpack.c.l.b16 %v409
        %v1517 = vunpack.c.h.b16 %v409
        %v1518 = vunpack.c.l.b16 %v410
        %v1519 = vunpack.c.h.b16 %v410
        %v1520 = vunpack.c.l.b16 %v411
        %v1521 = vunpack.c.h.b16 %v411
        %v1522 = vunpack.c.l.b16 %v412
        %v1523 = vunpack.c.h.b16 %v412
        %v1524 = vunpack.c.l.b16 %v413
        %v1525 = vunpack.c.h.b16 %v413
        %v1526 = vunpack.c.l.b16 %v414
        %v1527 = vunpack.c.h.b16 %v414
        %v1528 = vunpack.c.l.b16 %v415
        %v1529 = vunpack.c.h.b16 %v415
        %v1530 = vunpack.c.l.b16 %v416
        %v1531 = vunpack.c.h.b16 %v416
        %v1532 = vunpack.c.l.b16 %v417
        %v1533 = vunpack.c.h.b16 %v417
        %v1534 = vunpack.c.l.b16 %v418
        %v1535 = vunpack.c.h.b16 %v418
        %v1536 = vunpack.c.l.b16 %v419
        %v1537 = vunpack.c.h.b16 %v419
        %v1538 = vunpack.c.l.b16 %v420
        %v1539 = vunpack.c.h.b16 %v420
        %v1540 = vunpack.c.l.b16 %v421
        %v1541 = vunpack.c.h.b16 %v421
        %v1542 = vunpack.c.l.b16 %v422
        %v1543 = vunpack.c.h.b16 %v422
        %v1544 = vunpack.c.l.b16 %v423
        %v1545 = vunpack.c.h.b16 %v423
        %v1546 = vunpack.c.l.b16 %v424
        %v1547 = vunpack.c.h.b16 %v424
        %v1548 = vunpack.c.l.b16 %v425
        %v1549 = vunpack.c.h.b16 %v425
        %v1550 = vunpack.c.l.b16 %v426
        %v1551 = vunpack.c.h.b16 %v426
        %v1552 = vunpack.c.l.b16 %v427
        %v1553 = vunpack.c.h.b16 %v427
        %v1554 = vunpack.c.l.b16 %v428
        %v1555 = vunpack.c.h.b16 %v428
        %v1556 = vunpack.c.l.b16 %v429
        %v1557 = vunpack.c.h.b16 %v429
        %v1558 = vunpack.c.l.b16 %v430
        %v1559 = vunpack.c.h.b16 %v430
        %v1560 = vunpack.c.l.b16 %v431
        %v1561 = vunpack.c.h.b16 %v431
        %v1562 = vunpack.c.l.b16 %v432
        %v1563 = vunpack.c.h.b16 %v432
        %v1564 = vunpack.c.l.b16 %v433
        %v1565 = vunpack.c.h.b16 %v433
        %v1566 = vunpack.c.l.b16 %v434
        %v1567 = vunpack.c.h.b16 %v434
        %v1568 = vunpack.c.l.b16 %v435
        %v1569 = vunpack.c.h.b16 %v435
        %v1570 = vunpack.c.l.b16 %v436
        %v1571 = vunpack.c.h.b16 %v436
        %v1572 = vunpack.c.l.b16 %v437
        %v1573 = vunpack.c.h.b16 %v437
        %v1574 = vunpack.c.l.b16 %v438
        %v1575 = vunpack.c.h.b16 %v438
        %v1576 = vunpack.c.l.b16 %v439
        %v1577 = vunpack.c.h.b16 %v439
        %v1578 = vunpack.c.l.b16 %v440
        %v1579 = vunpack.c.h.b16 %v440
        %v1580 = vunpack.c.l.b16 %v441
        %v1581 = vunpack.c.h.b16 %v441
        %v1582 = vunpack.c.l.b16 %v442
        %v1583 = vunpack.c.h.b16 %v442
        %v1584 = vunpack.c.l.b16 %v443
        %v1585 = vunpack.c.h.b16 %v443
        %v1586 = vunpack.c.l.b16 %v444
        %v1587 = vunpack.c.h.b16 %v444
        %v1588 = vunpack.c.l.b16 %v445
        %v1589 = vunpack.c.h.b16 %v445
        %v1590 = vunpack.c.l.b16 %v446
        %v1591 = vunpack.c.h.b16 %v446
        %v1592 = vunpack.c.l.b16 %v447
        %v1593 = vunpack.c.h.b16 %v447
        %v1594 = vunpack.c.l.b16 %v448
        %v1595 = vunpack.c.h.b16 %v448
        %v1596 = vunpack.c.l.b16 %v449
        %v1597 = vunpack.c.h.b16 %v449
        %v1598 = vunpack.c.l.b16 %v450
        %v1599 = vunpack.c.h.b16 %v450
        %v1600 = vunpack.c.l.b16 %v451
        %v1601 = vunpack.c.h.b16 %v451
        %v1602 = vunpack.c.l.b16 %v452
        %v1603 = vunpack.c.h.b16 %v452
        %v1604 = vunpack.c.l.b16 %v453
        %v1605 = vunpack.c.h.b16 %v453
        %v1606 = vunpack.c.l.b16 %v454
        %v1607 = vunpack.c.h.b16 %v454
        %v1608 = vunpack.c.l.b16 %v455
        %v1609 = vunpack.c.h.b16 %v455
        %v1610 = vunpack.c.l.b16 %v456
        %v1611 = vunpack.c.h.b16 %v456
        %v1612 = vunpack.c.l.b16 %v457
        %v1613 = vunpack.c.h.b16 %v457
        %v1614 = vunpack.c.l.b16 %v458
        %v1615 = vunpack.c.h.b16 %v458
        %v1616 = vunpack.c.l.b16 %v459
        %v1617 = vunpack.c.h.b16 %v459
        %v1618 = vunpack.c.l.b16 %v460
        %v1619 = vunpack.c.h.b16 %v460
        %v1620 = vunpack.c.l.b16 %v461
        %v1621 = vunpack.c.h.b16 %v461
        %v1622 = vunpack.c.l.b16 %v462
        %v1623 = vunpack.c.h.b16 %v462
        %v1624 = vunpack.c.l.b16 %v463
        %v1625 = vunpack.c.h.b16 %v463
        %v1626 = vunpack.c.l.b16 %v464
        %v1627 = vunpack.c.h.b16 %v464
        %v1628 = vunpack.c.l.b16 %v465
        %v1629 = vunpack.c.h.b16 %v465
        %v1630 = vunpack.c.l.b16 %v466
        %v1631 = vunpack.c.h.b16 %v466
        %v1632 = vunpack.c.l.b16 %v467
        %v1633 = vunpack.c.h.b16 %v467
        %v1634 = vunpack.c.l.b16 %v468
        %v1635 = vunpack.c.h.b16 %v468
        %v1636 = vunpack.c.l.b16 %v469
        %v1637 = vunpack.c.h.b16 %v469
        %v1638 = vunpack.c.l.b16 %v470
        %v1639 = vunpack.c.h.b16 %v470
        %v1640 = vunpack.c.l.b16 %v471
        %v1641 = vunpack.c.h.b16 %v471
        %v1642 = vunpack.c.l.b16 %v472
        %v1643 = vunpack.c.h.b16 %v472
        %v1644 = vunpack.c.l.b16 %v473
        %v1645 = vunpack.c.h.b16 %v473
        %v1646 = vunpack.c.l.b16 %v474
        %v1647 = vunpack.c.h.b16 %v474
        %v1648 = vunpack.c.l.b16 %v475
        %v1649 = vunpack.c.h.b16 %v475
        %v1650 = vunpack.c.l.b16 %v476
        %v1651 = vunpack.c.h.b16 %v476
        %v1652 = vunpack.c.l.b16 %v477
        %v1653 = vunpack.c.h.b16 %v477
        %v1654 = vunpack.c.l.b16 %v478
        %v1655 = vunpack.c.h.b16 %v478
        %v1656 = vunpack.c.l.b16 %v479
        %v1657 = vunpack.c.h.b16 %v479
        %v1658 = vunpack.c.l.b16 %v480
        %v1659 = vunpack.c.h.b16 %v480
        %v1660 = vunpack.c.l.b16 %v481
        %v1661 = vunpack.c.h.b16 %v481
        %v1662 = vunpack.c.l.b16 %v482
        %v1663 = vunpack.c.h.b16 %v482
        %v1664 = vunpack.c.l.b16 %v483
        %v1665 = vunpack.c.h.b16 %v483
        %v1666 = vunpack.c.l.b16 %v484
        %v1667 = vunpack.c.h.b16 %v484
        %v1668 = vunpack.c.l.b16 %v485
        %v1669 = vunpack.c.h.b16 %v485
        %v1670 = vunpack.c.l.b16 %v486
        %v1671 = vunpack.c.h.b16 %v486
        %v1672 = vunpack.c.l.b16 %v487
        %v1673 = vunpack.c.h.b16 %v487
        %v1674 = vunpack.c.l.b16 %v488
        %v1675 = vunpack.c.h.b16 %v488
        %v1676 = vunpack.c.l.b16 %v489
        %v1677 = vunpack.c.h.b16 %v489
        %v1678 = vunpack.c.l.b16 %v490
        %v1679 = vunpack.c.h.b16 %v490
        %v1680 = vunpack.c.l.b16 %v491
        %v1681 = vunpack.c.h.b16 %v491
        %v1682 = vunpack.c.l.b16 %v492
        %v1683 = vunpack.c.h.b16 %v492
        %v1684 = vunpack.c.l.b16 %v493
        %v1685 = vunpack.c.h.b16 %v493
        %v1686 = vunpack.c.l.b16 %v494
        %v1687 = vunpack.c.h.b16 %v494
        %v1688 = vunpack.c.l.b16 %v495
        %v1689 = vunpack.c.h.b16 %v495
        %v1690 = vunpack.c.l.b16 %v496
        %v1691 = vunpack.c.h.b16 %v496
        %v1692 = vunpack.c.l.b16 %v497
        %v1693 = vunpack.c.h.b16 %v497
        %v1694 = vunpack.c.l.b16 %v498
        %v1695 = vunpack.c.h.b16 %v498
        %v1696 = vunpack.c.l.b16 %v499
        %v1697 = vunpack.c.h.b16 %v499
        %v1698 = vunpack.c.l.b16 %v500
        %v1699 = vunpack.c.h.b16 %v500
        %v1700 = vunpack.c.l.b16 %v501
        %v1701 = vunpack.c.h.b16 %v501
        %v1702 = vunpack.c.l.b16 %v502
        %v1703 = vunpack.c.h.b16 %v502
        %v1704 = vunpack.c.l.b16 %v503
        %v1705 = vunpack.c.h.b16 %v503
        %v1706 = vunpack.c.l.b16 %v504
        %v1707 = vunpack.c.h.b16 %v504
        %v1708 = vunpack.c.l.b16 %v505
        %v1709 = vunpack.c.h.b16 %v505
        %v1710 = vunpack.c.l.b16 %v506
        %v1711 = vunpack.c.h.b16 %v506
        %v1712 = vunpack.c.l.b16 %v507
        %v1713 = vunpack.c.h.b16 %v507
        %v1714 = vunpack.c.l.b16 %v508
        %v1715 = vunpack.c.h.b16 %v508
        %v1716 = vunpack.c.l.b16 %v509
        %v1717 = vunpack.c.h.b16 %v509
        %v1718 = vunpack.c.l.b16 %v510
        %v1719 = vunpack.c.h.b16 %v510
        %v1720 = vunpack.c.l.b16 %v511
        %v1721 = vunpack.c.h.b16 %v511
        %v1722 = vunpack.c.l.b16 %v512
        %v1723 = vunpack.c.h.b16 %v512
        %v1724 = vunpack.c.l.b16 %v513
        %v1725 = vunpack.c.h.b16 %v513
        %v1726 = vunpack.c.l.b16 %v514
        %v1727 = vunpack.c.h.b16 %v514
        %v1728 = vunpack.c.l.b16 %v515
        %v1729 = vunpack.c.h.b16 %v515
        %v1730 = vunpack.c.l.b16 %v516
        %v1731 = vunpack.c.h.b16 %v516
        %v1732 = vunpack.c.l.b16 %v517
        %v1733 = vunpack.c.h.b16 %v517
        %v1734 = vunpack.c.l.b16 %v518
        %v1735 = vunpack.c.h.b16 %v518
        %v1736 = vunpack.c.l.b16 %v519
        %v1737 = vunpack.c.h.b16 %v519
        %v1738 = vunpack.c.l.b16 %v520
        %v1739 = vunpack.c.h.b16 %v520
        %v1740 = vunpack.c.l.b16 %v521
        %v1741 = vunpack.c.h.b16 %v521
        %v1742 = vunpack.c.l.b16 %v522
        %v1743 = vunpack.c.h.b16 %v522
        %v1744 = vunpack.c.l.b16 %v523
        %v1745 = vunpack.c.h.b16 %v523
        %v1746 = vunpack.c.l.b16 %v524
        %v1747 = vunpack.c.h.b16 %v524
        %v1748 = vunpack.c.l.b16 %v525
        %v1749 = vunpack.c.h.b16 %v525
        %v1750 = vunpack.c.l.b16 %v526
        %v1751 = vunpack.c.h.b16 %v526
        %v1752 = vunpack.c.l.b16 %v527
        %v1753 = vunpack.c.h.b16 %v527
        %v1754 = vunpack.c.l.b16 %v528
        %v1755 = vunpack.c.h.b16 %v528
        %v1756 = vunpack.c.l.b16 %v529
        %v1757 = vunpack.c.h.b16 %v529
        %v1758 = vunpack.c.l.b16 %v530
        %v1759 = vunpack.c.h.b16 %v530
        %v1760 = vunpack.c.l.b16 %v531
        %v1761 = vunpack.c.h.b16 %v531
        %v1762 = vunpack.c.l.b16 %v532
        %v1763 = vunpack.c.h.b16 %v532
        %v1764 = vunpack.c.l.b16 %v533
        %v1765 = vunpack.c.h.b16 %v533
        %v1766 = vunpack.c.l.b16 %v534
        %v1767 = vunpack.c.h.b16 %v534
        %v1768 = vunpack.c.l.b16 %v535
        %v1769 = vunpack.c.h.b16 %v535
        %v1770 = vunpack.c.l.b16 %v536
        %v1771 = vunpack.c.h.b16 %v536
        %v1772 = vunpack.c.l.b16 %v537
        %v1773 = vunpack.c.h.b16 %v537
        %v1774 = vunpack.c.l.b16 %v538
        %v1775 = vunpack.c.h.b16 %v538
        %v1776 = vunpack.c.l.b16 %v539
        %v1777 = vunpack.c.h.b16 %v539
        %v1778 = vunpack.c.l.b16 %v540
        %v1779 = vunpack.c.h.b16 %v540
        %v1780 = vunpack.c.l.b16 %v541
        %v1781 = vunpack.c.h.b16 %v541
        %v1782 = vunpack.c.l.b16 %v542
        %v1783 = vunpack.c.h.b16 %v542
        %v1784 = vunpack.c.l.b16 %v543
        %v1785 = vunpack.c.h.b16 %v543
        %v1786 = vunpack.c.l.b16 %v544
        %v1787 = vunpack.c.h.b16 %v544
        %v1788 = vunpack.c.l.b16 %v545
        %v1789 = vunpack.c.h.b16 %v545
        %v1790 = vunpack.c.l.b16 %v546
        %v1791 = vunpack.c.h.b16 %v546
        %v1792 = vunpack.c.l.b16 %v547
        %v1793 = vunpack.c.h.b16 %v547
        %v1794 = vunpack.c.l.b16 %v548
        %v1795 = vunpack.c.h.b16 %v548
        %v1796 = vunpack.c.l.b16 %v549
        %v1797 = vunpack.c.h.b16 %v549
        %v1798 = vunpack.c.l.b16 %v550
        %v1799 = vunpack.c.h.b16 %v550
        %v1800 = vunpack.c.l.b16 %v551
        %v1801 = vunpack.c.h.b16 %v551
        %v1802 = vunpack.c.l.b16 %v552
        %v1803 = vunpack.c.h.b16 %v552
        %v1804 = vunpack.c.l.b16 %v553
        %v1805 = vunpack.c.h.b16 %v553
        %v1806 = vunpack.c.l.b16 %v554
        %v1807 = vunpack.c.h.b16 %v554
        %v1808 = vunpack.c.l.b16 %v555
        %v1809 = vunpack.c.h.b16 %v555
        %v1810 = vunpack.c.l.b16 %v556
        %v1811 = vunpack.c.h.b16 %v556
        %v1812 = vunpack.c.l.b16 %v557
        %v1813 = vunpack.c.h.b16 %v557
        %v1814 = vunpack.c.l.b16 %v558
        %v1815 = vunpack.c.h.b16 %v558
        %v1816 = vunpack.c.l.b16 %v559
        %v1817 = vunpack.c.h.b16 %v559
        %v1818 = vunpack.c.l.b16 %v560
        %v1819 = vunpack.c.h.b16 %v560
        %v1820 = vunpack.c.l.b16 %v561
        %v1821 = vunpack.c.h.b16 %v561
        %v1822 = vunpack.c.l.b16 %v562
        %v1823 = vunpack.c.h.b16 %v562
        %v1824 = vunpack.c.l.b16 %v563
        %v1825 = vunpack.c.h.b16 %v563
        %v1826 = vunpack.c.l.b16 %v564
        %v1827 = vunpack.c.h.b16 %v564
        %v1828 = vunpack.c.l.b16 %v565
        %v1829 = vunpack.c.h.b16 %v565
        %v1830 = vunpack.c.l.b16 %v566
        %v1831 = vunpack.c.h.b16 %v566
        %v1832 = vunpack.c.l.b16 %v567
        %v1833 = vunpack.c.h.b16 %v567
        %v1834 = vunpack.c.l.b16 %v568
        %v1835 = vunpack.c.h.b16 %v568
        %v1836 = vunpack.c.l.b16 %v569
        %v1837 = vunpack.c.h.b16 %v569
        %v1838 = vunpack.c.l.b16 %v570
        %v1839 = vunpack.c.h.b16 %v570
        %v1840 = vunpack.c.l.b16 %v571
        %v1841 = vunpack.c.h.b16 %v571
        %v1842 = vunpack.c.l.b16 %v572
        %v1843 = vunpack.c.h.b16 %v572
        %v1844 = vunpack.c.l.b16 %v573
        %v1845 = vunpack.c.h.b16 %v573
        %v1846 = vunpack.c.l.b16 %v574
        %v1847 = vunpack.c.h.b16 %v574
        %v1848 = vunpack.c.l.b16 %v575
        %v1849 = vunpack.c.h.b16 %v575
        %v1850 = vunpack.c.l.b16 %v576
        %v1851 = vunpack.c.h.b16 %v576
        %v1852 = vunpack.c.l.b16 %v577
        %v1853 = vunpack.c.h.b16 %v577
        %v1854 = vunpack.c.l.b16 %v578
        %v1855 = vunpack.c.h.b16 %v578
        %v1856 = vunpack.c.l.b16 %v579
        %v1857 = vunpack.c.h.b16 %v579
        %v1858 = vunpack.c.l.b16 %v580
        %v1859 = vunpack.c.h.b16 %v580
        %v1860 = vunpack.c.l.b16 %v581
        %v1861 = vunpack.c.h.b16 %v581
        %v1862 = vunpack.c.l.b16 %v582
        %v1863 = vunpack.c.h.b16 %v582
        %v1864 = vunpack.c.l.b16 %v583
        %v1865 = vunpack.c.h.b16 %v583
        %v1866 = vunpack.c.l.b16 %v584
        %v1867 = vunpack.c.h.b16 %v584
        %v1868 = vunpack.c.l.b16 %v585
        %v1869 = vunpack.c.h.b16 %v585
        %v1870 = vunpack.c.l.b16 %v586
        %v1871 = vunpack.c.h.b16 %v586
        %v1872 = vunpack.c.l.b16 %v587
        %v1873 = vunpack.c.h.b16 %v587
        %v1874 = vunpack.c.l.b16 %v588
        %v1875 = vunpack.c.h.b16 %v588
        %v1876 = vunpack.c.l.b16 %v589
        %v1877 = vunpack.c.h.b16 %v589
        %v1878 = vunpack.c.l.b16 %v590
        %v1879 = vunpack.c.h.b16 %v590
        %v1880 = vunpack.c.l.b16 %v591
        %v1881 = vunpack.c.h.b16 %v591
        %v1882 = vunpack.c.l.b16 %v592
        %v1883 = vunpack.c.h.b16 %v592
        %v1884 = vunpack.c.l.b16 %v593
        %v1885 = vunpack.c.h.b16 %v593
        %v1886 = vunpack.c.l.b16 %v594
        %v1887 = vunpack.c.h.b16 %v594
        %v1888 = vunpack.c.l.b16 %v595
        %v1889 = vunpack.c.h.b16 %v595
        %v1890 = vunpack.c.l.b16 %v596
        %v1891 = vunpack.c.h.b16 %v596
        %v1892 = vunpack.c.l.b16 %v597
        %v1893 = vunpack.c.h.b16 %v597
        %v1894 = vunpack.c.l.b16 %v598
        %v1895 = vunpack.c.h.b16 %v598
        %v1896 = vunpack.c.l.b16 %v599
        %v1897 = vunpack.c.h.b16 %v599
        %v1898 = vunpack.c.l.b16 %v600
        %v1899 = vunpack.c.h.b16 %v600
        %v1900 = vunpack.c.l.b16 %v601
        %v1901 = vunpack.c.h.b16 %v601
        %v1902 = vunpack.c.l.b16 %v602
        %v1903 = vunpack.c.h.b16 %v602
        %v1904 = vunpack.c.l.b16 %v603
        %v1905 = vunpack.c.h.b16 %v603
        %v1906 = vunpack.c.l.b16 %v604
        %v1907 = vunpack.c.h.b16 %v604
        %v1908 = vunpack.c.l.b16 %v605
        %v1909 = vunpack.c.h.b16 %v605
        %v1910 = vunpack.c.l.b16 %v606
        %v1911 = vunpack.c.h.b16 %v606
        %v1912 = vunpack.c.l.b16 %v607
        %v1913 = vunpack.c.h.b16 %v607
        %v1914 = vunpack.c.l.b16 %v608
        %v1915 = vunpack.c.h.b16 %v608
        %v1916 = vunpack.c.l.b16 %v609
        %v1917 = vunpack.c.h.b16 %v609
        %v1918 = vunpack.c.l.b16 %v610
        %v1919 = vunpack.c.h.b16 %v610
        %v1920 = vunpack.c.l.b16 %v611
        %v1921 = vunpack.c.h.b16 %v611
        %v1922 = vunpack.c.l.b16 %v612
        %v1923 = vunpack.c.h.b16 %v612
        %v1924 = vunpack.c.l.b16 %v613
        %v1925 = vunpack.c.h.b16 %v613
        %v1926 = vunpack.c.l.b16 %v614
        %v1927 = vunpack.c.h.b16 %v614
        %v1928 = vunpack.c.l.b16 %v615
        %v1929 = vunpack.c.h.b16 %v615
        %v1930 = vunpack.c.l.b16 %v616
        %v1931 = vunpack.c.h.b16 %v616
        %v1932 = vunpack.c.l.b16 %v617
        %v1933 = vunpack.c.h.b16 %v617
        %v1934 = vunpack.c.l.b16 %v618
        %v1935 = vunpack.c.h.b16 %v618
        %v1936 = vunpack.c.l.b16 %v619
        %v1937 = vunpack.c.h.b16 %v619
        %v1938 = vunpack.c.l.b16 %v620
        %v1939 = vunpack.c.h.b16 %v620
        %v1940 = vunpack.c.l.b16 %v621
        %v1941 = vunpack.c.h.b16 %v621
        %v1942 = vunpack.c.l.b16 %v622
        %v1943 = vunpack.c.h.b16 %v622
        %v1944 = vunpack.c.l.b16 %v623
        %v1945 = vunpack.c.h.b16 %v623
        %v1946 = vunpack.c.l.b16 %v624
        %v1947 = vunpack.c.h.b16 %v624
        %v1948 = vunpack.c.l.b16 %v625
        %v1949 = vunpack.c.h.b16 %v625
        %v1950 = vunpack.c.l.b16 %v626
        %v1951 = vunpack.c.h.b16 %v626
        %v1952 = vunpack.c.l.b16 %v627
        %v1953 = vunpack.c.h.b16 %v627
        %v1954 = vunpack.c.l.b16 %v628
        %v1955 = vunpack.c.h.b16 %v628
        %v1956 = vunpack.c.l.b16 %v629
        %v1957 = vunpack.c.h.b16 %v629
        %v1958 = vunpack.c.l.b16 %v630
        %v1959 = vunpack.c.h.b16 %v630
        %v1960 = vunpack.c.l.b16 %v631
        %v1961 = vunpack.c.h.b16 %v631
        %v1962 = vunpack.c.l.b16 %v632
        %v1963 = vunpack.c.h.b16 %v632
        %v1964 = vunpack.c.l.b16 %v633
        %v1965 = vunpack.c.h.b16 %v633
        %v1966 = vunpack.c.l.b16 %v634
        %v1967 = vunpack.c.h.b16 %v634
        %v1968 = vunpack.c.l.b16 %v635
        %v1969 = vunpack.c.h.b16 %v635
        %v1970 = vunpack.c.l.b16 %v636
        %v1971 = vunpack.c.h.b16 %v636
        %v1972 = vunpack.c.l.b16 %v637
        %v1973 = vunpack.c.h.b16 %v637
        %v1974 = vunpack.c.l.b16 %v638
        %v1975 = vunpack.c.h.b16 %v638
        %v1976 = vunpack.c.l.b16 %v639
        %v1977 = vunpack.c.h.b16 %v639
        %v1978 = vunpack.c.l.b16 %v640
        %v1979 = vunpack.c.h.b16 %v640
        %v1980 = vunpack.c.l.b16 %v641
        %v1981 = vunpack.c.h.b16 %v641
        %v1982 = vunpack.c.l.b16 %v642
        %v1983 = vunpack.c.h.b16 %v642
        %v1984 = vunpack.c.l.b16 %v643
        %v1985 = vunpack.c.h.b16 %v643
        %v1986 = vunpack.c.l.b16 %v644
        %v1987 = vunpack.c.h.b16 %v644
        %v1988 = vunpack.c.l.b16 %v645
        %v1989 = vunpack.c.h.b16 %v645
        %v1990 = vunpack.c.l.b16 %v646
        %v1991 = vunpack.c.h.b16 %v646
        %v1992 = vunpack.c.l.b16 %v647
        %v1993 = vunpack.c.h.b16 %v647
        %v1994 = vunpack.c.l.b16 %v648
        %v1995 = vunpack.c.h.b16 %v648
        %v1996 = vunpack.c.l.b16 %v649
        %v1997 = vunpack.c.h.b16 %v649
        %v1998 = vunpack.c.l.b16 %v650
        %v1999 = vunpack.c.h.b16 %v650
        %v2000 = vunpack.c.l.b16 %v651
        %v2001 = vunpack.c.h.b16 %v651
        %v2002 = vunpack.c.l.b16 %v652
        %v2003 = vunpack.c.h.b16 %v652
        %v2004 = vunpack.c.l.b16 %v653
        %v2005 = vunpack.c.h.b16 %v653
        %v2006 = vunpack.c.l.b16 %v654
        %v2007 = vunpack.c.h.b16 %v654
        %v2008 = vunpack.c.l.b16 %v655
        %v2009 = vunpack.c.h.b16 %v655
        %v2010 = vunpack.c.l.b16 %v656
        %v2011 = vunpack.c.h.b16 %v656
        %v2012 = vunpack.c.l.b16 %v657
        %v2013 = vunpack.c.h.b16 %v657
        %v2014 = vunpack.c.l.b16 %v658
        %v2015 = vunpack.c.h.b16 %v658
        %v2016 = vpack.c.b16 %v1136, %v1120
        %v2017 = vpack.c.b16 %v1137, %v1121
        %v2018 = vpack.c.b16 %v1138, %v1122
        %v2019 = vpack.c.b16 %v1139, %v1123
        %v2020 = vpack.c.b16 %v1140, %v1124
        %v2021 = vpack.c.b16 %v1141, %v1125
        %v2022 = vpack.c.b16 %v1142, %v1126
        %v2023 = vpack.c.b16 %v1143, %v1127
        %v2024 = vpack.c.b16 %v1144, %v1128
        %v2025 = vpack.c.b16 %v1145, %v1129
        %v2026 = vpack.c.b16 %v1146, %v1130
        %v2027 = vpack.c.b16 %v1147, %v1131
        %v2028 = vpack.c.b16 %v1148, %v1132
        %v2029 = vpack.c.b16 %v1149, %v1133
        %v2030 = vpack.c.b16 %v1150, %v1134
        %v2031 = vpack.c.b16 %v1151, %v1135
        %v2032 = vpack.c.b16 %v1168, %v1152
        %v2033 = vpack.c.b16 %v1169, %v1153
        %v2034 = vpack.c.b16 %v1170, %v1154
        %v2035 = vpack.c.b16 %v1171, %v1155
        %v2036 = vpack.c.b16 %v1172, %v1156
        %v2037 = vpack.c.b16 %v1173, %v1157
        %v2038 = vpack.c.b16 %v1174, %v1158
        %v2039 = vpack.c.b16 %v1175, %v1159
        %v2040 = vpack.c.b16 %v1176, %v1160
        %v2041 = vpack.c.b16 %v1177, %v1161
        %v2042 = vpack.c.b16 %v1178, %v1162
        %v2043 = vpack.c.b16 %v1179, %v1163
        %v2044 = vpack.c.b16 %v1180, %v1164
        %v2045 = vpack.c.b16 %v1181, %v1165
        %v2046 = vpack.c.b16 %v1182, %v1166
        %v2047 = vpack.c.b16 %v1183, %v1167
        %v2048 = vpack.c.b16 %v1200, %v1184
        %v2049 = vpack.c.b16 %v1201, %v1185
        %v2050 = vpack.c.b16 %v1202, %v1186
        %v2051 = vpack.c.b16 %v1203, %v1187
        %v2052 = vpack.c.b16 %v1204, %v1188
        %v2053 = vpack.c.b16 %v1205, %v1189
        %v2054 = vpack.c.b16 %v1206, %v1190
        %v2055 = vpack.c.b16 %v1207, %v1191
        %v2056 = vpack.c.b16 %v1208, %v1192
        %v2057 = vpack.c.b16 %v1209, %v1193
        %v2058 = vpack.c.b16 %v1210, %v1194
        %v2059 = vpack.c.b16 %v1211, %v1195
        %v2060 = vpack.c.b16 %v1212, %v1196
        %v2061 = vpack.c.b16 %v1213, %v1197
        %v2062 = vpack.c.b16 %v1214, %v1198
        %v2063 = vpack.c.b16 %v1215, %v1199
        %v2064 = vpack.c.b16 %v1232, %v1216
        %v2065 = vpack.c.b16 %v1233, %v1217
        %v2066 = vpack.c.b16 %v1234, %v1218
        %v2067 = vpack.c.b16 %v1235, %v1219
        %v2068 = vpack.c.b16 %v1236, %v1220
        %v2069 = vpack.c.b16 %v1237, %v1221
        %v2070 = vpack.c.b16 %v1238, %v1222
        %v2071 = vpack.c.b16 %v1239, %v1223
        %v2072 = vpack.c.b16 %v1240, %v1224
        %v2073 = vpack.c.b16 %v1241, %v1225
        %v2074 = vpack.c.b16 %v1242, %v1226
        %v2075 = vpack.c.b16 %v1243, %v1227
        %v2076 = vpack.c.b16 %v1244, %v1228
        %v2077 = vpack.c.b16 %v1245, %v1229
        %v2078 = vpack.c.b16 %v1246, %v1230
        %v2079 = vpack.c.b16 %v1247, %v1231
        %v2080 = vpack.c.b16 %v1264, %v1248
        %v2081 = vpack.c.b16 %v1265, %v1249
        %v2082 = vpack.c.b16 %v1266, %v1250
        %v2083 = vpack.c.b16 %v1267, %v1251
        %v2084 = vpack.c.b16 %v1268, %v1252
        %v2085 = vpack.c.b16 %v1269, %v1253
        %v2086 = vpack.c.b16 %v1270, %v1254
        %v2087 = vpack.c.b16 %v1271, %v1255
        %v2088 = vpack.c.b16 %v1272, %v1256
        %v2089 = vpack.c.b16 %v1273, %v1257
        %v2090 = vpack.c.b16 %v1274, %v1258
        %v2091 = vpack.c.b16 %v1275, %v1259
        %v2092 = vpack.c.b16 %v1276, %v1260
        %v2093 = vpack.c.b16 %v1277, %v1261
        %v2094 = vpack.c.b16 %v1278, %v1262
        %v2095 = vpack.c.b16 %v1279, %v1263
        %v2096 = vpack.c.b16 %v1296, %v1280
        %v2097 = vpack.c.b16 %v1297, %v1281
        %v2098 = vpack.c.b16 %v1298, %v1282
        %v2099 = vpack.c.b16 %v1299, %v1283
        %v2100 = vpack.c.b16 %v1300, %v1284
        %v2101 = vpack.c.b16 %v1301, %v1285
        %v2102 = vpack.c.b16 %v1302, %v1286
        %v2103 = vpack.c.b16 %v1303, %v1287
        %v2104 = vpack.c.b16 %v1304, %v1288
        %v2105 = vpack.c.b16 %v1305, %v1289
        %v2106 = vpack.c.b16 %v1306, %v1290
        %v2107 = vpack.c.b16 %v1307, %v1291
        %v2108 = vpack.c.b16 %v1308, %v1292
        %v2109 = vpack.c.b16 %v1309, %v1293
        %v2110 = vpack.c.b16 %v1310, %v1294
        %v2111 = vpack.c.b16 %v1311, %v1295
        %v2112 = vpack.c.b16 %v1328, %v1312
        %v2113 = vpack.c.b16 %v1329, %v1313
        %v2114 = vpack.c.b16 %v1330, %v1314
        %v2115 = vpack.c.b16 %v1331, %v1315
        %v2116 = vpack.c.b16 %v1332, %v1316
        %v2117 = vpack.c.b16 %v1333, %v1317
        %v2118 = vpack.c.b16 %v1334, %v1318
        %v2119 = vpack.c.b16 %v1335, %v1319
        %v2120 = vpack.c.b16 %v1336, %v1320
        %v2121 = vpack.c.b16 %v1337, %v1321
        %v2122 = vpack.c.b16 %v1338, %v1322
        %v2123 = vpack.c.b16 %v1339, %v1323
        %v2124 = vpack.c.b16 %v1340, %v1324
        %v2125 = vpack.c.b16 %v1341, %v1325
        %v2126 = vpack.c.b16 %v1342, %v1326
        %v2127 = vpack.c.b16 %v1343, %v1327
        %v2128 = vpack.c.b16 %v1360, %v1344
        %v2129 = vpack.c.b16 %v1361, %v1345
        %v2130 = vpack.c.b16 %v1362, %v1346
        %v2131 = vpack.c.b16 %v1363, %v1347
        %v2132 = vpack.c.b16 %v1364, %v1348
        %v2133 = vpack.c.b16 %v1365, %v1349
        %v2134 = vpack.c.b16 %v1366, %v1350
        %v2135 = vpack.c.b16 %v1367, %v1351
        %v2136 = vpack.c.b16 %v1368, %v1352
        %v2137 = vpack.c.b16 %v1369, %v1353
        %v2138 = vpack.c.b16 %v1370, %v1354
        %v2139 = vpack.c.b16 %v1371, %v1355
        %v2140 = vpack.c.b16 %v1372, %v1356
        %v2141 = vpack.c.b16 %v1373, %v1357
        %v2142 = vpack.c.b16 %v1374, %v1358
        %v2143 = vpack.c.b16 %v1375, %v1359
        %v2144 = vpack.c.b16 %v1392, %v1376
        %v2145 = vpack.c.b16 %v1393, %v1377
        %v2146 = vpack.c.b16 %v1394, %v1378
        %v2147 = vpack.c.b16 %v1395, %v1379
        %v2148 = vpack.c.b16 %v1396, %v1380
        %v2149 = vpack.c.b16 %v1397, %v1381
        %v2150 = vpack.c.b16 %v1398, %v1382
        %v2151 = vpack.c.b16 %v1399, %v1383
        %v2152 = vpack.c.b16 %v1400, %v1384
        %v2153 = vpack.c.b16 %v1401, %v1385
        %v2154 = vpack.c.b16 %v1402, %v1386
        %v2155 = vpack.c.b16 %v1403, %v1387
        %v2156 = vpack.c.b16 %v1404, %v1388
        %v2157 = vpack.c.b16 %v1405, %v1389
        %v2158 = vpack.c.b16 %v1406, %v1390
        %v2159 = vpack.c.b16 %v1407, %v1391
        %v2160 = vpack.c.b16 %v1424, %v1408
        %v2161 = vpack.c.b16 %v1425, %v1409
        %v2162 = vpack.c.b16 %v1426, %v1410
        %v2163 = vpack.c.b16 %v1427, %v1411
        %v2164 = vpack.c.b16 %v1428, %v1412
        %v2165 = vpack.c.b16 %v1429, %v1413
        %v2166 = vpack.c.b16 %v1430, %v1414
        %v2167 = vpack.c.b16 %v1431, %v1415
        %v2168 = vpack.c.b16 %v1432, %v1416
        %v2169 = vpack.c.b16 %v1433, %v1417
        %v2170 = vpack.c.b16 %v1434, %v1418
        %v2171 = vpack.c.b16 %v1435, %v1419
        %v2172 = vpack.c.b16 %v1436, %v1420
        %v2173 = vpack.c.b16 %v1437, %v1421
        %v2174 = vpack.c.b16 %v1438, %v1422
        %v2175 = vpack.c.b16 %v1439, %v1423
        %v2176 = vpack.c.b16 %v1456, %v1440
        %v2177 = vpack.c.b16 %v1457, %v1441
        %v2178 = vpack.c.b16 %v1458, %v1442
        %v2179 = vpack.c.b16 %v1459, %v1443
        %v2180 = vpack.c.b16 %v1460, %v1444
        %v2181 = vpack.c.b16 %v1461, %v1445
        %v2182 = vpack.c.b16 %v1462, %v1446
        %v2183 = vpack.c.b16 %v1463, %v1447
        %v2184 = vpack.c.b16 %v1464, %v1448
        %v2185 = vpack.c.b16 %v1465, %v1449
        %v2186 = vpack.c.b16 %v1466, %v1450
        %v2187 = vpack.c.b16 %v1467, %v1451
        %v2188 = vpack.c.b16 %v1468, %v1452
        %v2189 = vpack.c.b16 %v1469, %v1453
        %v2190 = vpack.c.b16 %v1470, %v1454
        %v2191 = vpack.c.b16 %v1471, %v1455
        %v2192 = vpack.c.b16 %v1488, %v1472
        %v2193 = vpack.c.b16 %v1489, %v1473
        %v2194 = vpack.c.b16 %v1490, %v1474
        %v2195 = vpack.c.b16 %v1491, %v1475
        %v2196 = vpack.c.b16 %v1492, %v1476
        %v2197 = vpack.c.b16 %v1493, %v1477
        %v2198 = vpack.c.b16 %v1494, %v1478
        %v2199 = vpack.c.b16 %v1495, %v1479
        %v2200 = vpack.c.b16 %v1496, %v1480
        %v2201 = vpack.c.b16 %v1497, %v1481
        %v2202 = vpack.c.b16 %v1498, %v1482
        %v2203 = vpack.c.b16 %v1499, %v1483
        %v2204 = vpack.c.b16 %v1500, %v1484
        %v2205 = vpack.c.b16 %v1501, %v1485
        %v2206 = vpack.c.b16 %v1502, %v1486
        %v2207 = vpack.c.b16 %v1503, %v1487
        %v2208 = vpack.c.b16 %v1520, %v1504
        %v2209 = vpack.c.b16 %v1521, %v1505
        %v2210 = vpack.c.b16 %v1522, %v1506
        %v2211 = vpack.c.b16 %v1523, %v1507
        %v2212 = vpack.c.b16 %v1524, %v1508
        %v2213 = vpack.c.b16 %v1525, %v1509
        %v2214 = vpack.c.b16 %v1526, %v1510
        %v2215 = vpack.c.b16 %v1527, %v1511
        %v2216 = vpack.c.b16 %v1528, %v1512
        %v2217 = vpack.c.b16 %v1529, %v1513
        %v2218 = vpack.c.b16 %v1530, %v1514
        %v2219 = vpack.c.b16 %v1531, %v1515
        %v2220 = vpack.c.b16 %v1532, %v1516
        %v2221 = vpack.c.b16 %v1533, %v1517
        %v2222 = vpack.c.b16 %v1534, %v1518
        %v2223 = vpack.c.b16 %v1535, %v1519
        %v2224 = vpack.c.b16 %v1552, %v1536
        %v2225 = vpack.c.b16 %v1553, %v1537
        %v2226 = vpack.c.b16 %v1554, %v1538
        %v2227 = vpack.c.b16 %v1555, %v1539
        %v2228 = vpack.c.b16 %v1556, %v1540
        %v2229 = vpack.c.b16 %v1557, %v1541
        %v2230 = vpack.c.b16 %v1558, %v1542
        %v2231 = vpack.c.b16 %v1559, %v1543
        %v2232 = vpack.c.b16 %v1560, %v1544
        %v2233 = vpack.c.b16 %v1561, %v1545
        %v2234 = vpack.c.b16 %v1562, %v1546
        %v2235 = vpack.c.b16 %v1563, %v1547
        %v2236 = vpack.c.b16 %v1564, %v1548
        %v2237 = vpack.c.b16 %v1565, %v1549
        %v2238 = vpack.c.b16 %v1566, %v1550
        %v2239 = vpack.c.b16 %v1567, %v1551
        %v2240 = vpack.c.b16 %v1584, %v1568
        %v2241 = vpack.c.b16 %v1585, %v1569
        %v2242 = vpack.c.b16 %v1586, %v1570
        %v2243 = vpack.c.b16 %v1587, %v1571
        %v2244 = vpack.c.b16 %v1588, %v1572
        %v2245 = vpack.c.b16 %v1589, %v1573
        %v2246 = vpack.c.b16 %v1590, %v1574
        %v2247 = vpack.c.b16 %v1591, %v1575
        %v2248 = vpack.c.b16 %v1592, %v1576
        %v2249 = vpack.c.b16 %v1593, %v1577
        %v2250 = vpack.c.b16 %v1594, %v1578
        %v2251 = vpack.c.b16 %v1595, %v1579
        %v2252 = vpack.c.b16 %v1596, %v1580
        %v2253 = vpack.c.b16 %v1597, %v1581
        %v2254 = vpack.c.b16 %v1598, %v1582
        %v2255 = vpack.c.b16 %v1599, %v1583
        %v2256 = vpack.c.b16 %v1616, %v1600
        %v2257 = vpack.c.b16 %v1617, %v1601
        %v2258 = vpack.c.b16 %v1618, %v1602
        %v2259 = vpack.c.b16 %v1619, %v1603
        %v2260 = vpack.c.b16 %v1620, %v1604
        %v2261 = vpack.c.b16 %v1621, %v1605
        %v2262 = vpack.c.b16 %v1622, %v1606
        %v2263 = vpack.c.b16 %v1623, %v1607
        %v2264 = vpack.c.b16 %v1624, %v1608
        %v2265 = vpack.c.b16 %v1625, %v1609
        %v2266 = vpack.c.b16 %v1626, %v1610
        %v2267 = vpack.c.b16 %v1627, %v1611
        %v2268 = vpack.c.b16 %v1628, %v1612
        %v2269 = vpack.c.b16 %v1629, %v1613
        %v2270 = vpack.c.b16 %v1630, %v1614
        %v2271 = vpack.c.b16 %v1631, %v1615
        %v2272 = vpack.c.b16 %v1648, %v1632
        %v2273 = vpack.c.b16 %v1649, %v1633
        %v2274 = vpack.c.b16 %v1650, %v1634
        %v2275 = vpack.c.b16 %v1651, %v1635
        %v2276 = vpack.c.b16 %v1652, %v1636
        %v2277 = vpack.c.b16 %v1653, %v1637
        %v2278 = vpack.c.b16 %v1654, %v1638
        %v2279 = vpack.c.b16 %v1655, %v1639
        %v2280 = vpack.c.b16 %v1656, %v1640
        %v2281 = vpack.c.b16 %v1657, %v1641
        %v2282 = vpack.c.b16 %v1658, %v1642
        %v2283 = vpack.c.b16 %v1659, %v1643
        %v2284 = vpack.c.b16 %v1660, %v1644
        %v2285 = vpack.c.b16 %v1661, %v1645
        %v2286 = vpack.c.b16 %v1662, %v1646
        %v2287 = vpack.c.b16 %v1663, %v1647
        %v2288 = vpack.c.b16 %v1680, %v1664
        %v2289 = vpack.c.b16 %v1681, %v1665
        %v2290 = vpack.c.b16 %v1682, %v1666
        %v2291 = vpack.c.b16 %v1683, %v1667
        %v2292 = vpack.c.b16 %v1684, %v1668
        %v2293 = vpack.c.b16 %v1685, %v1669
        %v2294 = vpack.c.b16 %v1686, %v1670
        %v2295 = vpack.c.b16 %v1687, %v1671
        %v2296 = vpack.c.b16 %v1688, %v1672
        %v2297 = vpack.c.b16 %v1689, %v1673
        %v2298 = vpack.c.b16 %v1690, %v1674
        %v2299 = vpack.c.b16 %v1691, %v1675
        %v2300 = vpack.c.b16 %v1692, %v1676
        %v2301 = vpack.c.b16 %v1693, %v1677
        %v2302 = vpack.c.b16 %v1694, %v1678
        %v2303 = vpack.c.b16 %v1695, %v1679
        %v2304 = vpack.c.b16 %v1712, %v1696
        %v2305 = vpack.c.b16 %v1713, %v1697
        %v2306 = vpack.c.b16 %v1714, %v1698
        %v2307 = vpack.c.b16 %v1715, %v1699
        %v2308 = vpack.c.b16 %v1716, %v1700
        %v2309 = vpack.c.b16 %v1717, %v1701
        %v2310 = vpack.c.b16 %v1718, %v1702
        %v2311 = vpack.c.b16 %v1719, %v1703
        %v2312 = vpack.c.b16 %v1720, %v1704
        %v2313 = vpack.c.b16 %v1721, %v1705
        %v2314 = vpack.c.b16 %v1722, %v1706
        %v2315 = vpack.c.b16 %v1723, %v1707
        %v2316 = vpack.c.b16 %v1724, %v1708
        %v2317 = vpack.c.b16 %v1725, %v1709
        %v2318 = vpack.c.b16 %v1726, %v1710
        %v2319 = vpack.c.b16 %v1727, %v1711
        %v2320 = vpack.c.b16 %v1744, %v1728
        %v2321 = vpack.c.b16 %v1745, %v1729
        %v2322 = vpack.c.b16 %v1746, %v1730
        %v2323 = vpack.c.b16 %v1747, %v1731
        %v2324 = vpack.c.b16 %v1748, %v1732
        %v2325 = vpack.c.b16 %v1749, %v1733
        %v2326 = vpack.c.b16 %v1750, %v1734
        %v2327 = vpack.c.b16 %v1751, %v1735
        %v2328 = vpack.c.b16 %v1752, %v1736
        %v2329 = vpack.c.b16 %v1753, %v1737
        %v2330 = vpack.c.b16 %v1754, %v1738
        %v2331 = vpack.c.b16 %v1755, %v1739
        %v2332 = vpack.c.b16 %v1756, %v1740
        %v2333 = vpack.c.b16 %v1757, %v1741
        %v2334 = vpack.c.b16 %v1758, %v1742
        %v2335 = vpack.c.b16 %v1759, %v1743
        %v2336 = vpack.c.b16 %v1776, %v1760
        %v2337 = vpack.c.b16 %v1777, %v1761
        %v2338 = vpack.c.b16 %v1778, %v1762
        %v2339 = vpack.c.b16 %v1779, %v1763
        %v2340 = vpack.c.b16 %v1780, %v1764
        %v2341 = vpack.c.b16 %v1781, %v1765
        %v2342 = vpack.c.b16 %v1782, %v1766
        %v2343 = vpack.c.b16 %v1783, %v1767
        %v2344 = vpack.c.b16 %v1784, %v1768
        %v2345 = vpack.c.b16 %v1785, %v1769
        %v2346 = vpack.c.b16 %v1786, %v1770
        %v2347 = vpack.c.b16 %v1787, %v1771
        %v2348 = vpack.c.b16 %v1788, %v1772
        %v2349 = vpack.c.b16 %v1789, %v1773
        %v2350 = vpack.c.b16 %v1790, %v1774
        %v2351 = vpack.c.b16 %v1791, %v1775
        %v2352 = vpack.c.b16 %v1808, %v1792
        %v2353 = vpack.c.b16 %v1809, %v1793
        %v2354 = vpack.c.b16 %v1810, %v1794
        %v2355 = vpack.c.b16 %v1811, %v1795
        %v2356 = vpack.c.b16 %v1812, %v1796
        %v2357 = vpack.c.b16 %v1813, %v1797
        %v2358 = vpack.c.b16 %v1814, %v1798
        %v2359 = vpack.c.b16 %v1815, %v1799
        %v2360 = vpack.c.b16 %v1816, %v1800
        %v2361 = vpack.c.b16 %v1817, %v1801
        %v2362 = vpack.c.b16 %v1818, %v1802
        %v2363 = vpack.c.b16 %v1819, %v1803
        %v2364 = vpack.c.b16 %v1820, %v1804
        %v2365 = vpack.c.b16 %v1821, %v1805
        %v2366 = vpack.c.b16 %v1822, %v1806
        %v2367 = vpack.c.b16 %v1823, %v1807
        %v2368 = vpack.c.b16 %v1840, %v1824
        %v2369 = vpack.c.b16 %v1841, %v1825
        %v2370 = vpack.c.b16 %v1842, %v1826
        %v2371 = vpack.c.b16 %v1843, %v1827
        %v2372 = vpack.c.b16 %v1844, %v1828
        %v2373 = vpack.c.b16 %v1845, %v1829
        %v2374 = vpack.c.b16 %v1846, %v1830
        %v2375 = vpack.c.b16 %v1847, %v1831
        %v2376 = vpack.c.b16 %v1848, %v1832
        %v2377 = vpack.c.b16 %v1849, %v1833
        %v2378 = vpack.c.b16 %v1850, %v1834
        %v2379 = vpack.c.b16 %v1851, %v1835
        %v2380 = vpack.c.b16 %v1852, %v1836
        %v2381 = vpack.c.b16 %v1853, %v1837
        %v2382 = vpack.c.b16 %v1854, %v1838
        %v2383 = vpack.c.b16 %v1855, %v1839
        %v2384 = vpack.c.b16 %v1872, %v1856
        %v2385 = vpack.c.b16 %v1873, %v1857
        %v2386 = vpack.c.b16 %v1874, %v1858
        %v2387 = vpack.c.b16 %v1875, %v1859
        %v2388 = vpack.c.b16 %v1876, %v1860
        %v2389 = vpack.c.b16 %v1877, %v1861
        %v2390 = vpack.c.b16 %v1878, %v1862
        %v2391 = vpack.c.b16 %v1879, %v1863
        %v2392 = vpack.c.b16 %v1880, %v1864
        %v2393 = vpack.c.b16 %v1881, %v1865
        %v2394 = vpack.c.b16 %v1882, %v1866
        %v2395 = vpack.c.b16 %v1883, %v1867
        %v2396 = vpack.c.b16 %v1884, %v1868
        %v2397 = vpack.c.b16 %v1885, %v1869
        %v2398 = vpack.c.b16 %v1886, %v1870
        %v2399 = vpack.c.b16 %v1887, %v1871
        %v2400 = vpack.c.b16 %v1904, %v1888
        %v2401 = vpack.c.b16 %v1905, %v1889
        %v2402 = vpack.c.b16 %v1906, %v1890
        %v2403 = vpack.c.b16 %v1907, %v1891
        %v2404 = vpack.c.b16 %v1908, %v1892
        %v2405 = vpack.c.b16 %v1909, %v1893
        %v2406 = vpack.c.b16 %v1910, %v1894
        %v2407 = vpack.c.b16 %v1911, %v1895
        %v2408 = vpack.c.b16 %v1912, %v1896
        %v2409 = vpack.c.b16 %v1913, %v1897
        %v2410 = vpack.c.b16 %v1914, %v1898
        %v2411 = vpack.c.b16 %v1915, %v1899
        %v2412 = vpack.c.b16 %v1916, %v1900
        %v2413 = vpack.c.b16 %v1917, %v1901
        %v2414 = vpack.c.b16 %v1918, %v1902
        %v2415 = vpack.c.b16 %v1919, %v1903
        %v2416 = vpack.c.b16 %v1936, %v1920
        %v2417 = vpack.c.b16 %v1937, %v1921
        %v2418 = vpack.c.b16 %v1938, %v1922
        %v2419 = vpack.c.b16 %v1939, %v1923
        %v2420 = vpack.c.b16 %v1940, %v1924
        %v2421 = vpack.c.b16 %v1941, %v1925
        %v2422 = vpack.c.b16 %v1942, %v1926
        %v2423 = vpack.c.b16 %v1943, %v1927
        %v2424 = vpack.c.b16 %v1944, %v1928
        %v2425 = vpack.c.b16 %v1945, %v1929
        %v2426 = vpack.c.b16 %v1946, %v1930
        %v2427 = vpack.c.b16 %v1947, %v1931
        %v2428 = vpack.c.b16 %v1948, %v1932
        %v2429 = vpack.c.b16 %v1949, %v1933
        %v2430 = vpack.c.b16 %v1950, %v1934
        %v2431 = vpack.c.b16 %v1951, %v1935
        %v2432 = vpack.c.b16 %v1968, %v1952
        %v2433 = vpack.c.b16 %v1969, %v1953
        %v2434 = vpack.c.b16 %v1970, %v1954
        %v2435 = vpack.c.b16 %v1971, %v1955
        %v2436 = vpack.c.b16 %v1972, %v1956
        %v2437 = vpack.c.b16 %v1973, %v1957
        %v2438 = vpack.c.b16 %v1974, %v1958
        %v2439 = vpack.c.b16 %v1975, %v1959
        %v2440 = vpack.c.b16 %v1976, %v1960
        %v2441 = vpack.c.b16 %v1977, %v1961
        %v2442 = vpack.c.b16 %v1978, %v1962
        %v2443 = vpack.c.b16 %v1979, %v1963
        %v2444 = vpack.c.b16 %v1980, %v1964
        %v2445 = vpack.c.b16 %v1981, %v1965
        %v2446 = vpack.c.b16 %v1982, %v1966
        %v2447 = vpack.c.b16 %v1983, %v1967
        %v2448 = vpack.c.b16 %v2000, %v1984
        %v2449 = vpack.c.b16 %v2001, %v1985
        %v2450 = vpack.c.b16 %v2002, %v1986
        %v2451 = vpack.c.b16 %v2003, %v1987
        %v2452 = vpack.c.b16 %v2004, %v1988
        %v2453 = vpack.c.b16 %v2005, %v1989
        %v2454 = vpack.c.b16 %v2006, %v1990
        %v2455 = vpack.c.b16 %v2007, %v1991
        %v2456 = vpack.c.b16 %v2008, %v1992
        %v2457 = vpack.c.b16 %v2009, %v1993
        %v2458 = vpack.c.b16 %v2010, %v1994
        %v2459 = vpack.c.b16 %v2011, %v1995
        %v2460 = vpack.c.b16 %v2012, %v1996
        %v2461 = vpack.c.b16 %v2013, %v1997
        %v2462 = vpack.c.b16 %v2014, %v1998
        %v2463 = vpack.c.b16 %v2015, %v1999
        %vm2912 = vcmask 523264
        %v2914 = vsel %vm2912, %v668, 0
        %2916 = vmatprep.subr.bf16.mxu0 %v2017
        %2917 = vmatpush1.bf16.msra.mxu0 %v2016
        %2918 = vmatprep.subr.bf16.mxu0 %v2033
        %2919 = vmatpush1.bf16.msra.mxu0 %v2032
        %2920 = vmatprep.subr.bf16.mxu0 %v2049
        %2921 = vmatpush1.bf16.msra.mxu0 %v2048
        %2922 = vmatprep.subr.bf16.mxu0 %v2065
        %2923 = vmatpush1.bf16.msra.mxu0 %v2064
        %2924 = vmatprep.subr.bf16.mxu0 %v2081
        %2925 = vmatpush1.bf16.msra.mxu0 %v2080
        %2926 = vmatprep.subr.bf16.mxu0 %v2097
        %2927 = vmatpush1.bf16.msra.mxu0 %v2096
        %2928 = vmatprep.subr.bf16.mxu0 %v2113
        %2929 = vmatpush1.bf16.msra.mxu0 %v2112
        %2930 = vmatprep.subr.bf16.mxu0 %v2129
        %2931 = vmatpush1.bf16.msra.mxu0 %v2128
        %2932 = vmatprep.subr.bf16.mxu0 %v2145
        %2933 = vmatpush1.bf16.msra.mxu0 %v2144
        %2934 = vmatprep.subr.bf16.mxu0 %v2161
        %2935 = vmatpush1.bf16.msra.mxu0 %v2160
        %2936 = vmatprep.subr.bf16.mxu0 %v2177
        %2937 = vmatpush1.bf16.msra.mxu0 %v2176
        %2938 = vmatprep.subr.bf16.mxu0 %v2193
        %2939 = vmatpush1.bf16.msra.mxu0 %v2192
        %2940 = vmatprep.subr.bf16.mxu0 %v2209
        %2941 = vmatpush1.bf16.msra.mxu0 %v2208
        %2942 = vmatprep.subr.bf16.mxu0 %v2225
        %2943 = vmatpush1.bf16.msra.mxu0 %v2224
        %2944 = vmatprep.subr.bf16.mxu0 %v2241
        %2945 = vmatpush1.bf16.msra.mxu0 %v2240
        %2946 = vmatprep.subr.bf16.mxu0 %v2257
        %2947 = vmatpush1.bf16.msra.mxu0 %v2256
        %2948 = vmatprep.mubr.bf16.mxu0 %v666
        %2949 = vmatmul.mubr.bf16.gmra.mrb[0].mxu0 %v665
        %v2950 = vpop.f32.mrb[0].mxu0
        %v2951 = vadd.f32 0.0, %v2950
        %v2952 = vpop.f32.mrb[0].mxu0
        %v2953 = vadd.f32 0.0, %v2952
        %v2954 = vpop.f32.mrb[0].mxu0
        %v2955 = vpop.f32.mrb[0].mxu0
        %2956 = vdwg.mxu0
        %2957 = vmatprep.subr.bf16.mxu0 %v2273
        %2958 = vmatpush1.bf16.msra.mxu0 %v2272
        %2959 = vmatprep.subr.bf16.mxu0 %v2289
        %2960 = vmatpush1.bf16.msra.mxu0 %v2288
        %2961 = vmatprep.subr.bf16.mxu0 %v2305
        %2962 = vmatpush1.bf16.msra.mxu0 %v2304
        %2963 = vmatprep.subr.bf16.mxu0 %v2321
        %2964 = vmatpush1.bf16.msra.mxu0 %v2320
        %2965 = vmatprep.subr.bf16.mxu0 %v2337
        %2966 = vmatpush1.bf16.msra.mxu0 %v2336
        %2967 = vmatprep.subr.bf16.mxu0 %v2353
        %2968 = vmatpush1.bf16.msra.mxu0 %v2352
        %2969 = vmatprep.subr.bf16.mxu0 %v2369
        %2970 = vmatpush1.bf16.msra.mxu0 %v2368
        %2971 = vmatprep.subr.bf16.mxu0 %v2385
        %2972 = vmatpush1.bf16.msra.mxu0 %v2384
        %2973 = vmatprep.subr.bf16.mxu0 %v2401
        %2974 = vmatpush1.bf16.msra.mxu0 %v2400
        %2975 = vmatprep.subr.bf16.mxu0 %v2417
        %2976 = vmatpush1.bf16.msra.mxu0 %v2416
        %2977 = vmatprep.subr.bf16.mxu0 %v2433
        %2978 = vmatpush1.bf16.msra.mxu0 %v2432
        %2979 = vmatprep.subr.bf16.mxu0 %v2449
        %2980 = vmatpush1.bf16.msra.mxu0 %v2448
        %2981 = vmatprep.subr.bf16.mxu0 0
        %2982 = vmatpush1.bf16.msra.mxu0 0
        %2983 = vmatprep.subr.bf16.mxu0 0
        %2984 = vmatpush1.bf16.msra.mxu0 0
        %2985 = vmatprep.subr.bf16.mxu0 0
        %2986 = vmatpush1.bf16.msra.mxu0 0
        %2987 = vmatprep.subr.bf16.mxu0 0
        %2988 = vmatpush1.bf16.msra.mxu0 0
        %2989 = vmatprep.mubr.bf16.mxu0 %v2914
        %2990 = vmatmul.mubr.bf16.gmra.mrb[0].mxu0 %v667
        %v2991 = vpop.f32.mrb[0].mxu0
        %v2992 = vadd.f32 %v2951, %v2991
        %v2993 = vpop.f32.mrb[0].mxu0
        %v2994 = vadd.f32 %v2953, %v2993
        %v2995 = vpop.f32.mrb[0].mxu0
        %v2996 = vpop.f32.mrb[0].mxu0
        %2997 = vdwg.mxu0
        %2998 = vmatprep.subr.bf16.mxu0 %v2019
        %2999 = vmatpush1.bf16.msra.mxu0 %v2018
        %3000 = vmatprep.subr.bf16.mxu0 %v2035
        %3001 = vmatpush1.bf16.msra.mxu0 %v2034
        %3002 = vmatprep.subr.bf16.mxu0 %v2051
        %3003 = vmatpush1.bf16.msra.mxu0 %v2050
        %3004 = vmatprep.subr.bf16.mxu0 %v2067
        %3005 = vmatpush1.bf16.msra.mxu0 %v2066
        %3006 = vmatprep.subr.bf16.mxu0 %v2083
        %3007 = vmatpush1.bf16.msra.mxu0 %v2082
        %3008 = vmatprep.subr.bf16.mxu0 %v2099
        %3009 = vmatpush1.bf16.msra.mxu0 %v2098
        %3010 = vmatprep.subr.bf16.mxu0 %v2115
        %3011 = vmatpush1.bf16.msra.mxu0 %v2114
        %3012 = vmatprep.subr.bf16.mxu0 %v2131
        %3013 = vmatpush1.bf16.msra.mxu0 %v2130
        %3014 = vmatprep.subr.bf16.mxu0 %v2147
        %3015 = vmatpush1.bf16.msra.mxu0 %v2146
        %3016 = vmatprep.subr.bf16.mxu0 %v2163
        %3017 = vmatpush1.bf16.msra.mxu0 %v2162
        %3018 = vmatprep.subr.bf16.mxu0 %v2179
        %3019 = vmatpush1.bf16.msra.mxu0 %v2178
        %3020 = vmatprep.subr.bf16.mxu0 %v2195
        %3021 = vmatpush1.bf16.msra.mxu0 %v2194
        %3022 = vmatprep.subr.bf16.mxu0 %v2211
        %3023 = vmatpush1.bf16.msra.mxu0 %v2210
        %3024 = vmatprep.subr.bf16.mxu0 %v2227
        %3025 = vmatpush1.bf16.msra.mxu0 %v2226
        %3026 = vmatprep.subr.bf16.mxu0 %v2243
        %3027 = vmatpush1.bf16.msra.mxu0 %v2242
        %3028 = vmatprep.subr.bf16.mxu0 %v2259
        %3029 = vmatpush1.bf16.msra.mxu0 %v2258
        %3030 = vmatprep.mubr.bf16.mxu0 %v666
        %3031 = vmatmul.mubr.bf16.gmra.mrb[0].mxu0 %v665
        %v3032 = vpop.f32.mrb[0].mxu0
        %v3033 = vadd.f32 0.0, %v3032
        %v3034 = vpop.f32.mrb[0].mxu0
        %v3035 = vadd.f32 0.0, %v3034
        %v3036 = vpop.f32.mrb[0].mxu0
        %v3037 = vpop.f32.mrb[0].mxu0
        %3038 = vdwg.mxu0
        %3039 = vmatprep.subr.bf16.mxu0 %v2275
        %3040 = vmatpush1.bf16.msra.mxu0 %v2274
        %3041 = vmatprep.subr.bf16.mxu0 %v2291
        %3042 = vmatpush1.bf16.msra.mxu0 %v2290
        %3043 = vmatprep.subr.bf16.mxu0 %v2307
        %3044 = vmatpush1.bf16.msra.mxu0 %v2306
        %3045 = vmatprep.subr.bf16.mxu0 %v2323
        %3046 = vmatpush1.bf16.msra.mxu0 %v2322
        %3047 = vmatprep.subr.bf16.mxu0 %v2339
        %3048 = vmatpush1.bf16.msra.mxu0 %v2338
        %3049 = vmatprep.subr.bf16.mxu0 %v2355
        %3050 = vmatpush1.bf16.msra.mxu0 %v2354
        %3051 = vmatprep.subr.bf16.mxu0 %v2371
        %3052 = vmatpush1.bf16.msra.mxu0 %v2370
        %3053 = vmatprep.subr.bf16.mxu0 %v2387
        %3054 = vmatpush1.bf16.msra.mxu0 %v2386
        %3055 = vmatprep.subr.bf16.mxu0 %v2403
        %3056 = vmatpush1.bf16.msra.mxu0 %v2402
        %3057 = vmatprep.subr.bf16.mxu0 %v2419
        %3058 = vmatpush1.bf16.msra.mxu0 %v2418
        %3059 = vmatprep.subr.bf16.mxu0 %v2435
        %3060 = vmatpush1.bf16.msra.mxu0 %v2434
        %3061 = vmatprep.subr.bf16.mxu0 %v2451
        %3062 = vmatpush1.bf16.msra.mxu0 %v2450
        %3063 = vmatprep.subr.bf16.mxu0 0
        %3064 = vmatpush1.bf16.msra.mxu0 0
        %3065 = vmatprep.subr.bf16.mxu0 0
        %3066 = vmatpush1.bf16.msra.mxu0 0
        %3067 = vmatprep.subr.bf16.mxu0 0
        %3068 = vmatpush1.bf16.msra.mxu0 0
        %3069 = vmatprep.subr.bf16.mxu0 0
        %3070 = vmatpush1.bf16.msra.mxu0 0
        %3071 = vmatprep.mubr.bf16.mxu0 %v2914
        %3072 = vmatmul.mubr.bf16.gmra.mrb[0].mxu0 %v667
        %v3073 = vpop.f32.mrb[0].mxu0
        %v3074 = vadd.f32 %v3033, %v3073
        %v3075 = vpop.f32.mrb[0].mxu0
        %v3076 = vadd.f32 %v3035, %v3075
        %v3077 = vpop.f32.mrb[0].mxu0
        %v3078 = vpop.f32.mrb[0].mxu0
        %3079 = vdwg.mxu0
        %3080 = vmatprep.subr.bf16.mxu0 %v2021
        %3081 = vmatpush1.bf16.msra.mxu0 %v2020
        %3082 = vmatprep.subr.bf16.mxu0 %v2037
        %3083 = vmatpush1.bf16.msra.mxu0 %v2036
        %3084 = vmatprep.subr.bf16.mxu0 %v2053
        %3085 = vmatpush1.bf16.msra.mxu0 %v2052
        %3086 = vmatprep.subr.bf16.mxu0 %v2069
        %3087 = vmatpush1.bf16.msra.mxu0 %v2068
        %3088 = vmatprep.subr.bf16.mxu0 %v2085
        %3089 = vmatpush1.bf16.msra.mxu0 %v2084
        %3090 = vmatprep.subr.bf16.mxu0 %v2101
        %3091 = vmatpush1.bf16.msra.mxu0 %v2100
        %3092 = vmatprep.subr.bf16.mxu0 %v2117
        %3093 = vmatpush1.bf16.msra.mxu0 %v2116
        %3094 = vmatprep.subr.bf16.mxu0 %v2133
        %3095 = vmatpush1.bf16.msra.mxu0 %v2132
        %3096 = vmatprep.subr.bf16.mxu0 %v2149
        %3097 = vmatpush1.bf16.msra.mxu0 %v2148
        %3098 = vmatprep.subr.bf16.mxu0 %v2165
        %3099 = vmatpush1.bf16.msra.mxu0 %v2164
        %3100 = vmatprep.subr.bf16.mxu0 %v2181
        %3101 = vmatpush1.bf16.msra.mxu0 %v2180
        %3102 = vmatprep.subr.bf16.mxu0 %v2197
        %3103 = vmatpush1.bf16.msra.mxu0 %v2196
        %3104 = vmatprep.subr.bf16.mxu0 %v2213
        %3105 = vmatpush1.bf16.msra.mxu0 %v2212
        %3106 = vmatprep.subr.bf16.mxu0 %v2229
        %3107 = vmatpush1.bf16.msra.mxu0 %v2228
        %3108 = vmatprep.subr.bf16.mxu0 %v2245
        %3109 = vmatpush1.bf16.msra.mxu0 %v2244
        %3110 = vmatprep.subr.bf16.mxu0 %v2261
        %3111 = vmatpush1.bf16.msra.mxu0 %v2260
        %3112 = vmatprep.mubr.bf16.mxu0 %v666
        %3113 = vmatmul.mubr.bf16.gmra.mrb[0].mxu0 %v665
        %v3114 = vpop.f32.mrb[0].mxu0
        %v3115 = vadd.f32 0.0, %v3114
        %v3116 = vpop.f32.mrb[0].mxu0
        %v3117 = vadd.f32 0.0, %v3116
        %v3118 = vpop.f32.mrb[0].mxu0
        %v3119 = vpop.f32.mrb[0].mxu0
        %3120 = vdwg.mxu0
        %3121 = vmatprep.subr.bf16.mxu0 %v2277
        %3122 = vmatpush1.bf16.msra.mxu0 %v2276
        %3123 = vmatprep.subr.bf16.mxu0 %v2293
        %3124 = vmatpush1.bf16.msra.mxu0 %v2292
        %3125 = vmatprep.subr.bf16.mxu0 %v2309
        %3126 = vmatpush1.bf16.msra.mxu0 %v2308
        %3127 = vmatprep.subr.bf16.mxu0 %v2325
        %3128 = vmatpush1.bf16.msra.mxu0 %v2324
        %3129 = vmatprep.subr.bf16.mxu0 %v2341
        %3130 = vmatpush1.bf16.msra.mxu0 %v2340
        %3131 = vmatprep.subr.bf16.mxu0 %v2357
        %3132 = vmatpush1.bf16.msra.mxu0 %v2356
        %3133 = vmatprep.subr.bf16.mxu0 %v2373
        %3134 = vmatpush1.bf16.msra.mxu0 %v2372
        %3135 = vmatprep.subr.bf16.mxu0 %v2389
        %3136 = vmatpush1.bf16.msra.mxu0 %v2388
        %3137 = vmatprep.subr.bf16.mxu0 %v2405
        %3138 = vmatpush1.bf16.msra.mxu0 %v2404
        %3139 = vmatprep.subr.bf16.mxu0 %v2421
        %3140 = vmatpush1.bf16.msra.mxu0 %v2420
        %3141 = vmatprep.subr.bf16.mxu0 %v2437
        %3142 = vmatpush1.bf16.msra.mxu0 %v2436
        %3143 = vmatprep.subr.bf16.mxu0 %v2453
        %3144 = vmatpush1.bf16.msra.mxu0 %v2452
        %3145 = vmatprep.subr.bf16.mxu0 0
        %3146 = vmatpush1.bf16.msra.mxu0 0
        %3147 = vmatprep.subr.bf16.mxu0 0
        %3148 = vmatpush1.bf16.msra.mxu0 0
        %3149 = vmatprep.subr.bf16.mxu0 0
        %3150 = vmatpush1.bf16.msra.mxu0 0
        %3151 = vmatprep.subr.bf16.mxu0 0
        %3152 = vmatpush1.bf16.msra.mxu0 0
        %3153 = vmatprep.mubr.bf16.mxu0 %v2914
        %3154 = vmatmul.mubr.bf16.gmra.mrb[0].mxu0 %v667
        %v3155 = vpop.f32.mrb[0].mxu0
        %v3156 = vadd.f32 %v3115, %v3155
        %v3157 = vpop.f32.mrb[0].mxu0
        %v3158 = vadd.f32 %v3117, %v3157
        %v3159 = vpop.f32.mrb[0].mxu0
        %v3160 = vpop.f32.mrb[0].mxu0
        %3161 = vdwg.mxu0
        %3162 = vmatprep.subr.bf16.mxu0 %v2023
        %3163 = vmatpush1.bf16.msra.mxu0 %v2022
        %3164 = vmatprep.subr.bf16.mxu0 %v2039
        %3165 = vmatpush1.bf16.msra.mxu0 %v2038
        %3166 = vmatprep.subr.bf16.mxu0 %v2055
        %3167 = vmatpush1.bf16.msra.mxu0 %v2054
        %3168 = vmatprep.subr.bf16.mxu0 %v2071
        %3169 = vmatpush1.bf16.msra.mxu0 %v2070
        %3170 = vmatprep.subr.bf16.mxu0 %v2087
        %3171 = vmatpush1.bf16.msra.mxu0 %v2086
        %3172 = vmatprep.subr.bf16.mxu0 %v2103
        %3173 = vmatpush1.bf16.msra.mxu0 %v2102
        %3174 = vmatprep.subr.bf16.mxu0 %v2119
        %3175 = vmatpush1.bf16.msra.mxu0 %v2118
        %3176 = vmatprep.subr.bf16.mxu0 %v2135
        %3177 = vmatpush1.bf16.msra.mxu0 %v2134
        %3178 = vmatprep.subr.bf16.mxu0 %v2151
        %3179 = vmatpush1.bf16.msra.mxu0 %v2150
        %3180 = vmatprep.subr.bf16.mxu0 %v2167
        %3181 = vmatpush1.bf16.msra.mxu0 %v2166
        %3182 = vmatprep.subr.bf16.mxu0 %v2183
        %3183 = vmatpush1.bf16.msra.mxu0 %v2182
        %3184 = vmatprep.subr.bf16.mxu0 %v2199
        %3185 = vmatpush1.bf16.msra.mxu0 %v2198
        %3186 = vmatprep.subr.bf16.mxu0 %v2215
        %3187 = vmatpush1.bf16.msra.mxu0 %v2214
        %3188 = vmatprep.subr.bf16.mxu0 %v2231
        %3189 = vmatpush1.bf16.msra.mxu0 %v2230
        %3190 = vmatprep.subr.bf16.mxu0 %v2247
        %3191 = vmatpush1.bf16.msra.mxu0 %v2246
        %3192 = vmatprep.subr.bf16.mxu0 %v2263
        %3193 = vmatpush1.bf16.msra.mxu0 %v2262
        %3194 = vmatprep.mubr.bf16.mxu0 %v666
        %3195 = vmatmul.mubr.bf16.gmra.mrb[0].mxu0 %v665
        %v3196 = vpop.f32.mrb[0].mxu0
        %v3197 = vadd.f32 0.0, %v3196
        %v3198 = vpop.f32.mrb[0].mxu0
        %v3199 = vadd.f32 0.0, %v3198
        %v3200 = vpop.f32.mrb[0].mxu0
        %v3201 = vpop.f32.mrb[0].mxu0
        %3202 = vdwg.mxu0
        %3203 = vmatprep.subr.bf16.mxu0 %v2279
        %3204 = vmatpush1.bf16.msra.mxu0 %v2278
        %3205 = vmatprep.subr.bf16.mxu0 %v2295
        %3206 = vmatpush1.bf16.msra.mxu0 %v2294
        %3207 = vmatprep.subr.bf16.mxu0 %v2311
        %3208 = vmatpush1.bf16.msra.mxu0 %v2310
        %3209 = vmatprep.subr.bf16.mxu0 %v2327
        %3210 = vmatpush1.bf16.msra.mxu0 %v2326
        %3211 = vmatprep.subr.bf16.mxu0 %v2343
        %3212 = vmatpush1.bf16.msra.mxu0 %v2342
        %3213 = vmatprep.subr.bf16.mxu0 %v2359
        %3214 = vmatpush1.bf16.msra.mxu0 %v2358
        %3215 = vmatprep.subr.bf16.mxu0 %v2375
        %3216 = vmatpush1.bf16.msra.mxu0 %v2374
        %3217 = vmatprep.subr.bf16.mxu0 %v2391
        %3218 = vmatpush1.bf16.msra.mxu0 %v2390
        %3219 = vmatprep.subr.bf16.mxu0 %v2407
        %3220 = vmatpush1.bf16.msra.mxu0 %v2406
        %3221 = vmatprep.subr.bf16.mxu0 %v2423
        %3222 = vmatpush1.bf16.msra.mxu0 %v2422
        %3223 = vmatprep.subr.bf16.mxu0 %v2439
        %3224 = vmatpush1.bf16.msra.mxu0 %v2438
        %3225 = vmatprep.subr.bf16.mxu0 %v2455
        %3226 = vmatpush1.bf16.msra.mxu0 %v2454
        %3227 = vmatprep.subr.bf16.mxu0 0
        %3228 = vmatpush1.bf16.msra.mxu0 0
        %3229 = vmatprep.subr.bf16.mxu0 0
        %3230 = vmatpush1.bf16.msra.mxu0 0
        %3231 = vmatprep.subr.bf16.mxu0 0
        %3232 = vmatpush1.bf16.msra.mxu0 0
        %3233 = vmatprep.subr.bf16.mxu0 0
        %3234 = vmatpush1.bf16.msra.mxu0 0
        %3235 = vmatprep.mubr.bf16.mxu0 %v2914
        %3236 = vmatmul.mubr.bf16.gmra.mrb[0].mxu0 %v667
        %v3237 = vpop.f32.mrb[0].mxu0
        %v3238 = vadd.f32 %v3197, %v3237
        %v3239 = vpop.f32.mrb[0].mxu0
        %v3240 = vadd.f32 %v3199, %v3239
        %v3241 = vpop.f32.mrb[0].mxu0
        %v3242 = vpop.f32.mrb[0].mxu0
        %3243 = vdwg.mxu0
        %3244 = vmatprep.subr.bf16.mxu0 %v2025
        %3245 = vmatpush1.bf16.msra.mxu0 %v2024
        %3246 = vmatprep.subr.bf16.mxu0 %v2041
        %3247 = vmatpush1.bf16.msra.mxu0 %v2040
        %3248 = vmatprep.subr.bf16.mxu0 %v2057
        %3249 = vmatpush1.bf16.msra.mxu0 %v2056
        %3250 = vmatprep.subr.bf16.mxu0 %v2073
        %3251 = vmatpush1.bf16.msra.mxu0 %v2072
        %3252 = vmatprep.subr.bf16.mxu0 %v2089
        %3253 = vmatpush1.bf16.msra.mxu0 %v2088
        %3254 = vmatprep.subr.bf16.mxu0 %v2105
        %3255 = vmatpush1.bf16.msra.mxu0 %v2104
        %3256 = vmatprep.subr.bf16.mxu0 %v2121
        %3257 = vmatpush1.bf16.msra.mxu0 %v2120
        %3258 = vmatprep.subr.bf16.mxu0 %v2137
        %3259 = vmatpush1.bf16.msra.mxu0 %v2136
        %3260 = vmatprep.subr.bf16.mxu0 %v2153
        %3261 = vmatpush1.bf16.msra.mxu0 %v2152
        %3262 = vmatprep.subr.bf16.mxu0 %v2169
        %3263 = vmatpush1.bf16.msra.mxu0 %v2168
        %3264 = vmatprep.subr.bf16.mxu0 %v2185
        %3265 = vmatpush1.bf16.msra.mxu0 %v2184
        %3266 = vmatprep.subr.bf16.mxu0 %v2201
        %3267 = vmatpush1.bf16.msra.mxu0 %v2200
        %3268 = vmatprep.subr.bf16.mxu0 %v2217
        %3269 = vmatpush1.bf16.msra.mxu0 %v2216
        %3270 = vmatprep.subr.bf16.mxu0 %v2233
        %3271 = vmatpush1.bf16.msra.mxu0 %v2232
        %3272 = vmatprep.subr.bf16.mxu0 %v2249
        %3273 = vmatpush1.bf16.msra.mxu0 %v2248
        %3274 = vmatprep.subr.bf16.mxu0 %v2265
        %3275 = vmatpush1.bf16.msra.mxu0 %v2264
        %3276 = vmatprep.mubr.bf16.mxu0 %v666
        %3277 = vmatmul.mubr.bf16.gmra.mrb[0].mxu0 %v665
        %v3278 = vpop.f32.mrb[0].mxu0
        %v3279 = vadd.f32 0.0, %v3278
        %v3280 = vpop.f32.mrb[0].mxu0
        %v3281 = vadd.f32 0.0, %v3280
        %v3282 = vpop.f32.mrb[0].mxu0
        %v3283 = vpop.f32.mrb[0].mxu0
        %3284 = vdwg.mxu0
        %3285 = vmatprep.subr.bf16.mxu0 %v2281
        %3286 = vmatpush1.bf16.msra.mxu0 %v2280
        %3287 = vmatprep.subr.bf16.mxu0 %v2297
        %3288 = vmatpush1.bf16.msra.mxu0 %v2296
        %3289 = vmatprep.subr.bf16.mxu0 %v2313
        %3290 = vmatpush1.bf16.msra.mxu0 %v2312
        %3291 = vmatprep.subr.bf16.mxu0 %v2329
        %3292 = vmatpush1.bf16.msra.mxu0 %v2328
        %3293 = vmatprep.subr.bf16.mxu0 %v2345
        %3294 = vmatpush1.bf16.msra.mxu0 %v2344
        %3295 = vmatprep.subr.bf16.mxu0 %v2361
        %3296 = vmatpush1.bf16.msra.mxu0 %v2360
        %3297 = vmatprep.subr.bf16.mxu0 %v2377
        %3298 = vmatpush1.bf16.msra.mxu0 %v2376
        %3299 = vmatprep.subr.bf16.mxu0 %v2393
        %3300 = vmatpush1.bf16.msra.mxu0 %v2392
        %3301 = vmatprep.subr.bf16.mxu0 %v2409
        %3302 = vmatpush1.bf16.msra.mxu0 %v2408
        %3303 = vmatprep.subr.bf16.mxu0 %v2425
        %3304 = vmatpush1.bf16.msra.mxu0 %v2424
        %3305 = vmatprep.subr.bf16.mxu0 %v2441
        %3306 = vmatpush1.bf16.msra.mxu0 %v2440
        %3307 = vmatprep.subr.bf16.mxu0 %v2457
        %3308 = vmatpush1.bf16.msra.mxu0 %v2456
        %3309 = vmatprep.subr.bf16.mxu0 0
        %3310 = vmatpush1.bf16.msra.mxu0 0
        %3311 = vmatprep.subr.bf16.mxu0 0
        %3312 = vmatpush1.bf16.msra.mxu0 0
        %3313 = vmatprep.subr.bf16.mxu0 0
        %3314 = vmatpush1.bf16.msra.mxu0 0
        %3315 = vmatprep.subr.bf16.mxu0 0
        %3316 = vmatpush1.bf16.msra.mxu0 0
        %3317 = vmatprep.mubr.bf16.mxu0 %v2914
        %3318 = vmatmul.mubr.bf16.gmra.mrb[0].mxu0 %v667
        %v3319 = vpop.f32.mrb[0].mxu0
        %v3320 = vadd.f32 %v3279, %v3319
        %v3321 = vpop.f32.mrb[0].mxu0
        %v3322 = vadd.f32 %v3281, %v3321
        %v3323 = vpop.f32.mrb[0].mxu0
        %v3324 = vpop.f32.mrb[0].mxu0
        %3325 = vdwg.mxu0
        %3326 = vmatprep.subr.bf16.mxu0 %v2027
        %3327 = vmatpush1.bf16.msra.mxu0 %v2026
        %3328 = vmatprep.subr.bf16.mxu0 %v2043
        %3329 = vmatpush1.bf16.msra.mxu0 %v2042
        %3330 = vmatprep.subr.bf16.mxu0 %v2059
        %3331 = vmatpush1.bf16.msra.mxu0 %v2058
        %3332 = vmatprep.subr.bf16.mxu0 %v2075
        %3333 = vmatpush1.bf16.msra.mxu0 %v2074
        %3334 = vmatprep.subr.bf16.mxu0 %v2091
        %3335 = vmatpush1.bf16.msra.mxu0 %v2090
        %3336 = vmatprep.subr.bf16.mxu0 %v2107
        %3337 = vmatpush1.bf16.msra.mxu0 %v2106
        %3338 = vmatprep.subr.bf16.mxu0 %v2123
        %3339 = vmatpush1.bf16.msra.mxu0 %v2122
        %3340 = vmatprep.subr.bf16.mxu0 %v2139
        %3341 = vmatpush1.bf16.msra.mxu0 %v2138
        %3342 = vmatprep.subr.bf16.mxu0 %v2155
        %3343 = vmatpush1.bf16.msra.mxu0 %v2154
        %3344 = vmatprep.subr.bf16.mxu0 %v2171
        %3345 = vmatpush1.bf16.msra.mxu0 %v2170
        %3346 = vmatprep.subr.bf16.mxu0 %v2187
        %3347 = vmatpush1.bf16.msra.mxu0 %v2186
        %3348 = vmatprep.subr.bf16.mxu0 %v2203
        %3349 = vmatpush1.bf16.msra.mxu0 %v2202
        %3350 = vmatprep.subr.bf16.mxu0 %v2219
        %3351 = vmatpush1.bf16.msra.mxu0 %v2218
        %3352 = vmatprep.subr.bf16.mxu0 %v2235
        %3353 = vmatpush1.bf16.msra.mxu0 %v2234
        %3354 = vmatprep.subr.bf16.mxu0 %v2251
        %3355 = vmatpush1.bf16.msra.mxu0 %v2250
        %3356 = vmatprep.subr.bf16.mxu0 %v2267
        %3357 = vmatpush1.bf16.msra.mxu0 %v2266
        %3358 = vmatprep.mubr.bf16.mxu0 %v666
        %3359 = vmatmul.mubr.bf16.gmra.mrb[0].mxu0 %v665
        %v3360 = vpop.f32.mrb[0].mxu0
        %v3361 = vadd.f32 0.0, %v3360
        %v3362 = vpop.f32.mrb[0].mxu0
        %v3363 = vadd.f32 0.0, %v3362
        %v3364 = vpop.f32.mrb[0].mxu0
        %v3365 = vpop.f32.mrb[0].mxu0
        %3366 = vdwg.mxu0
        %3367 = vmatprep.subr.bf16.mxu0 %v2283
        %3368 = vmatpush1.bf16.msra.mxu0 %v2282
        %3369 = vmatprep.subr.bf16.mxu0 %v2299
        %3370 = vmatpush1.bf16.msra.mxu0 %v2298
        %3371 = vmatprep.subr.bf16.mxu0 %v2315
        %3372 = vmatpush1.bf16.msra.mxu0 %v2314
        %3373 = vmatprep.subr.bf16.mxu0 %v2331
        %3374 = vmatpush1.bf16.msra.mxu0 %v2330
        %3375 = vmatprep.subr.bf16.mxu0 %v2347
        %3376 = vmatpush1.bf16.msra.mxu0 %v2346
        %3377 = vmatprep.subr.bf16.mxu0 %v2363
        %3378 = vmatpush1.bf16.msra.mxu0 %v2362
        %3379 = vmatprep.subr.bf16.mxu0 %v2379
        %3380 = vmatpush1.bf16.msra.mxu0 %v2378
        %3381 = vmatprep.subr.bf16.mxu0 %v2395
        %3382 = vmatpush1.bf16.msra.mxu0 %v2394
        %3383 = vmatprep.subr.bf16.mxu0 %v2411
        %3384 = vmatpush1.bf16.msra.mxu0 %v2410
        %3385 = vmatprep.subr.bf16.mxu0 %v2427
        %3386 = vmatpush1.bf16.msra.mxu0 %v2426
        %3387 = vmatprep.subr.bf16.mxu0 %v2443
        %3388 = vmatpush1.bf16.msra.mxu0 %v2442
        %3389 = vmatprep.subr.bf16.mxu0 %v2459
        %3390 = vmatpush1.bf16.msra.mxu0 %v2458
        %3391 = vmatprep.subr.bf16.mxu0 0
        %3392 = vmatpush1.bf16.msra.mxu0 0
        %3393 = vmatprep.subr.bf16.mxu0 0
        %3394 = vmatpush1.bf16.msra.mxu0 0
        %3395 = vmatprep.subr.bf16.mxu0 0
        %3396 = vmatpush1.bf16.msra.mxu0 0
        %3397 = vmatprep.subr.bf16.mxu0 0
        %3398 = vmatpush1.bf16.msra.mxu0 0
        %3399 = vmatprep.mubr.bf16.mxu0 %v2914
        %3400 = vmatmul.mubr.bf16.gmra.mrb[0].mxu0 %v667
        %v3401 = vpop.f32.mrb[0].mxu0
        %v3402 = vadd.f32 %v3361, %v3401
        %v3403 = vpop.f32.mrb[0].mxu0
        %v3404 = vadd.f32 %v3363, %v3403
        %v3405 = vpop.f32.mrb[0].mxu0
        %v3406 = vpop.f32.mrb[0].mxu0
        %3407 = vdwg.mxu0
        %3408 = vmatprep.subr.bf16.mxu0 %v2029
        %3409 = vmatpush1.bf16.msra.mxu0 %v2028
        %3410 = vmatprep.subr.bf16.mxu0 %v2045
        %3411 = vmatpush1.bf16.msra.mxu0 %v2044
        %3412 = vmatprep.subr.bf16.mxu0 %v2061
        %3413 = vmatpush1.bf16.msra.mxu0 %v2060
        %3414 = vmatprep.subr.bf16.mxu0 %v2077
        %3415 = vmatpush1.bf16.msra.mxu0 %v2076
        %3416 = vmatprep.subr.bf16.mxu0 %v2093
        %3417 = vmatpush1.bf16.msra.mxu0 %v2092
        %3418 = vmatprep.subr.bf16.mxu0 %v2109
        %3419 = vmatpush1.bf16.msra.mxu0 %v2108
        %3420 = vmatprep.subr.bf16.mxu0 %v2125
        %3421 = vmatpush1.bf16.msra.mxu0 %v2124
        %3422 = vmatprep.subr.bf16.mxu0 %v2141
        %3423 = vmatpush1.bf16.msra.mxu0 %v2140
        %3424 = vmatprep.subr.bf16.mxu0 %v2157
        %3425 = vmatpush1.bf16.msra.mxu0 %v2156
        %3426 = vmatprep.subr.bf16.mxu0 %v2173
        %3427 = vmatpush1.bf16.msra.mxu0 %v2172
        %3428 = vmatprep.subr.bf16.mxu0 %v2189
        %3429 = vmatpush1.bf16.msra.mxu0 %v2188
        %3430 = vmatprep.subr.bf16.mxu0 %v2205
        %3431 = vmatpush1.bf16.msra.mxu0 %v2204
        %3432 = vmatprep.subr.bf16.mxu0 %v2221
        %3433 = vmatpush1.bf16.msra.mxu0 %v2220
        %3434 = vmatprep.subr.bf16.mxu0 %v2237
        %3435 = vmatpush1.bf16.msra.mxu0 %v2236
        %3436 = vmatprep.subr.bf16.mxu0 %v2253
        %3437 = vmatpush1.bf16.msra.mxu0 %v2252
        %3438 = vmatprep.subr.bf16.mxu0 %v2269
        %3439 = vmatpush1.bf16.msra.mxu0 %v2268
        %3440 = vmatprep.mubr.bf16.mxu0 %v666
        %3441 = vmatmul.mubr.bf16.gmra.mrb[0].mxu0 %v665
        %v3442 = vpop.f32.mrb[0].mxu0
        %v3443 = vadd.f32 0.0, %v3442
        %v3444 = vpop.f32.mrb[0].mxu0
        %v3445 = vadd.f32 0.0, %v3444
        %v3446 = vpop.f32.mrb[0].mxu0
        %v3447 = vpop.f32.mrb[0].mxu0
        %3448 = vdwg.mxu0
        %3449 = vmatprep.subr.bf16.mxu0 %v2285
        %3450 = vmatpush1.bf16.msra.mxu0 %v2284
        %3451 = vmatprep.subr.bf16.mxu0 %v2301
        %3452 = vmatpush1.bf16.msra.mxu0 %v2300
        %3453 = vmatprep.subr.bf16.mxu0 %v2317
        %3454 = vmatpush1.bf16.msra.mxu0 %v2316
        %3455 = vmatprep.subr.bf16.mxu0 %v2333
        %3456 = vmatpush1.bf16.msra.mxu0 %v2332
        %3457 = vmatprep.subr.bf16.mxu0 %v2349
        %3458 = vmatpush1.bf16.msra.mxu0 %v2348
        %3459 = vmatprep.subr.bf16.mxu0 %v2365
        %3460 = vmatpush1.bf16.msra.mxu0 %v2364
        %3461 = vmatprep.subr.bf16.mxu0 %v2381
        %3462 = vmatpush1.bf16.msra.mxu0 %v2380
        %3463 = vmatprep.subr.bf16.mxu0 %v2397
        %3464 = vmatpush1.bf16.msra.mxu0 %v2396
        %3465 = vmatprep.subr.bf16.mxu0 %v2413
        %3466 = vmatpush1.bf16.msra.mxu0 %v2412
        %3467 = vmatprep.subr.bf16.mxu0 %v2429
        %3468 = vmatpush1.bf16.msra.mxu0 %v2428
        %3469 = vmatprep.subr.bf16.mxu0 %v2445
        %3470 = vmatpush1.bf16.msra.mxu0 %v2444
        %3471 = vmatprep.subr.bf16.mxu0 %v2461
        %3472 = vmatpush1.bf16.msra.mxu0 %v2460
        %3473 = vmatprep.subr.bf16.mxu0 0
        %3474 = vmatpush1.bf16.msra.mxu0 0
        %3475 = vmatprep.subr.bf16.mxu0 0
        %3476 = vmatpush1.bf16.msra.mxu0 0
        %3477 = vmatprep.subr.bf16.mxu0 0
        %3478 = vmatpush1.bf16.msra.mxu0 0
        %3479 = vmatprep.subr.bf16.mxu0 0
        %3480 = vmatpush1.bf16.msra.mxu0 0
        %3481 = vmatprep.mubr.bf16.mxu0 %v2914
        %3482 = vmatmul.mubr.bf16.gmra.mrb[0].mxu0 %v667
        %v3483 = vpop.f32.mrb[0].mxu0
        %v3484 = vadd.f32 %v3443, %v3483
        %v3485 = vpop.f32.mrb[0].mxu0
        %v3486 = vadd.f32 %v3445, %v3485
        %v3487 = vpop.f32.mrb[0].mxu0
        %v3488 = vpop.f32.mrb[0].mxu0
        %3489 = vdwg.mxu0
        %3490 = vmatprep.subr.bf16.mxu0 %v2031
        %3491 = vmatpush1.bf16.msra.mxu0 %v2030
        %3492 = vmatprep.subr.bf16.mxu0 %v2047
        %3493 = vmatpush1.bf16.msra.mxu0 %v2046
        %3494 = vmatprep.subr.bf16.mxu0 %v2063
        %3495 = vmatpush1.bf16.msra.mxu0 %v2062
        %3496 = vmatprep.subr.bf16.mxu0 %v2079
        %3497 = vmatpush1.bf16.msra.mxu0 %v2078
        %3498 = vmatprep.subr.bf16.mxu0 %v2095
        %3499 = vmatpush1.bf16.msra.mxu0 %v2094
        %3500 = vmatprep.subr.bf16.mxu0 %v2111
        %3501 = vmatpush1.bf16.msra.mxu0 %v2110
        %3502 = vmatprep.subr.bf16.mxu0 %v2127
        %3503 = vmatpush1.bf16.msra.mxu0 %v2126
        %3504 = vmatprep.subr.bf16.mxu0 %v2143
        %3505 = vmatpush1.bf16.msra.mxu0 %v2142
        %3506 = vmatprep.subr.bf16.mxu0 %v2159
        %3507 = vmatpush1.bf16.msra.mxu0 %v2158
        %3508 = vmatprep.subr.bf16.mxu0 %v2175
        %3509 = vmatpush1.bf16.msra.mxu0 %v2174
        %3510 = vmatprep.subr.bf16.mxu0 %v2191
        %3511 = vmatpush1.bf16.msra.mxu0 %v2190
        %3512 = vmatprep.subr.bf16.mxu0 %v2207
        %3513 = vmatpush1.bf16.msra.mxu0 %v2206
        %3514 = vmatprep.subr.bf16.mxu0 %v2223
        %3515 = vmatpush1.bf16.msra.mxu0 %v2222
        %3516 = vmatprep.subr.bf16.mxu0 %v2239
        %3517 = vmatpush1.bf16.msra.mxu0 %v2238
        %3518 = vmatprep.subr.bf16.mxu0 %v2255
        %3519 = vmatpush1.bf16.msra.mxu0 %v2254
        %3520 = vmatprep.subr.bf16.mxu0 %v2271
        %3521 = vmatpush1.bf16.msra.mxu0 %v2270
        %3522 = vmatprep.mubr.bf16.mxu0 %v666
        %3523 = vmatmul.mubr.bf16.gmra.mrb[0].mxu0 %v665
        %v3524 = vpop.f32.mrb[0].mxu0
        %v3525 = vadd.f32 0.0, %v3524
        %v3526 = vpop.f32.mrb[0].mxu0
        %v3527 = vadd.f32 0.0, %v3526
        %v3528 = vpop.f32.mrb[0].mxu0
        %v3529 = vpop.f32.mrb[0].mxu0
        %3530 = vdwg.mxu0
        %3531 = vmatprep.subr.bf16.mxu0 %v2287
        %3532 = vmatpush1.bf16.msra.mxu0 %v2286
        %3533 = vmatprep.subr.bf16.mxu0 %v2303
        %3534 = vmatpush1.bf16.msra.mxu0 %v2302
        %3535 = vmatprep.subr.bf16.mxu0 %v2319
        %3536 = vmatpush1.bf16.msra.mxu0 %v2318
        %3537 = vmatprep.subr.bf16.mxu0 %v2335
        %3538 = vmatpush1.bf16.msra.mxu0 %v2334
        %3539 = vmatprep.subr.bf16.mxu0 %v2351
        %3540 = vmatpush1.bf16.msra.mxu0 %v2350
        %3541 = vmatprep.subr.bf16.mxu0 %v2367
        %3542 = vmatpush1.bf16.msra.mxu0 %v2366
        %3543 = vmatprep.subr.bf16.mxu0 %v2383
        %3544 = vmatpush1.bf16.msra.mxu0 %v2382
        %3545 = vmatprep.subr.bf16.mxu0 %v2399
        %3546 = vmatpush1.bf16.msra.mxu0 %v2398
        %3547 = vmatprep.subr.bf16.mxu0 %v2415
        %3548 = vmatpush1.bf16.msra.mxu0 %v2414
        %3549 = vmatprep.subr.bf16.mxu0 %v2431
        %3550 = vmatpush1.bf16.msra.mxu0 %v2430
        %3551 = vmatprep.subr.bf16.mxu0 %v2447
        %3552 = vmatpush1.bf16.msra.mxu0 %v2446
        %3553 = vmatprep.subr.bf16.mxu0 %v2463
        %3554 = vmatpush1.bf16.msra.mxu0 %v2462
        %3555 = vmatprep.subr.bf16.mxu0 0
        %3556 = vmatpush1.bf16.msra.mxu0 0
        %3557 = vmatprep.subr.bf16.mxu0 0
        %3558 = vmatpush1.bf16.msra.mxu0 0
        %3559 = vmatprep.subr.bf16.mxu0 0
        %3560 = vmatpush1.bf16.msra.mxu0 0
        %3561 = vmatprep.subr.bf16.mxu0 0
        %3562 = vmatpush1.bf16.msra.mxu0 0
        %3563 = vmatprep.mubr.bf16.mxu0 %v2914
        %3564 = vmatmul.mubr.bf16.gmra.mrb[0].mxu0 %v667
        %v3565 = vpop.f32.mrb[0].mxu0
        %v3566 = vadd.f32 %v3525, %v3565
        %v3567 = vpop.f32.mrb[0].mxu0
        %v3568 = vadd.f32 %v3527, %v3567
        %v3569 = vpop.f32.mrb[0].mxu0
        %v3570 = vpop.f32.mrb[0].mxu0
        %3571 = vdwg.mxu0
        %3572 = vst [vmem:[%s206] sm:$0xff] %v2992
        %3573 = vst [vmem:[%s206 + $0x8] sm:$0xff] %v2994
        %3574 = vst [vmem:[%s206 + $0x10] sm:$0xff] %v3074
        %3575 = vst [vmem:[%s206 + $0x18] sm:$0xff] %v3076
        %3576 = vst [vmem:[%s206 + $0x20] sm:$0xff] %v3156
        %3577 = vst [vmem:[%s206 + $0x28] sm:$0xff] %v3158
        %3578 = vst [vmem:[%s206 + $0x30] sm:$0xff] %v3238
        %3579 = vst [vmem:[%s206 + $0x38] sm:$0xff] %v3240
        %3580 = vst [vmem:[%s206 + $0x40] sm:$0xff] %v3320
        %3581 = vst [vmem:[%s206 + $0x48] sm:$0xff] %v3322
        %3582 = vst [vmem:[%s206 + $0x50] sm:$0xff] %v3402
        %3583 = vst [vmem:[%s206 + $0x58] sm:$0xff] %v3404
        %3584 = vst [vmem:[%s206 + $0x60] sm:$0xff] %v3484
        %3585 = vst [vmem:[%s206 + $0x68] sm:$0xff] %v3486
        %3586 = vst [vmem:[%s206 + $0x70] sm:$0xff] %v3566
        %3587 = vst [vmem:[%s206 + $0x78] sm:$0xff] %v3568
        %s3588 = smul.u32 16, %s21
        %p3589 = scmp.lt.s32.totalorder %s20, 0
        %s3590 = scalar_select %p3589, %s20, 0
        %p3591 = scmp.lt.s32.totalorder %s3588, 31
        %s3592 = scalar_select %p3591, %s3588, 31
        %s3593 = smul.addr %s3590, 32
        %s3594 = sadd.s32 %s3592, %s3593
        %s3595 = smul.addr %s3594, 8
        %s3596 = scalar_lea.vmem %s2, %s3595
        // Predicated region
        $region33: #{generator_b_forward.6} parent=27 // pred_check
          %p3597 = pneg %p100
        $region34: #{generator_b_forward.6} parent=27 // pred_check_branch
          %3599 = sbr.rel (%p3597) target = $region36
        $region35: #{generator_b_forward.6} parent=27 // pred_region
          %s3600 = smul.u32 16, %s21
        $region36: #{generator_b_forward.6} parent=27 // pred_fallthru
          _
      $region28: #{generator_b_forward.6} parent=5 // pred_fallthru
        _
      %p3601 = scmp.le.s32.totalorder 2, %s11
      // Predicated region
      $region37: #{generator_b_forward.6} parent=5 // pred_check
        %p3602 = pneg %p3601
      $region38: #{generator_b_forward.6} parent=5 // pred_check_branch
        %3604 = sbr.rel (%p3602) target = $region40
      $region39: #{generator_b_forward.6} parent=5 // pred_region
        %s3605 = ssub.s32 %s11, 2
        // Predicated region
        $region41: #{generator_b_forward.6} parent=39 // pred_check
          %p3606 = pneg %p106
        $region42: #{generator_b_forward.6} parent=39 // pred_check_branch
          %3608 = sbr.rel (%p3606) target = $region44
        $region43: #{generator_b_forward.6} parent=39 // pred_region
          %s3609 = smul.u32 16, %s23
          %p3610 = scmp.lt.s32.totalorder %s22, 0
          %s3611 = scalar_select %p3610, %s22, 0
          %p3612 = scmp.lt.s32.totalorder %s3609, 31
          %s3613 = scalar_select %p3612, %s3609, 31
          %s3614 = smul.addr %s3611, 32
          %s3615 = sadd.s32 %s3613, %s3614
          %s3616 = smul.addr %s3615, 8
          %s3617 = scalar_lea.vmem %s2, %s3616
        $region44: #{generator_b_forward.6} parent=39 // pred_fallthru
          _
      $region40: #{generator_b_forward.6} parent=5 // pred_fallthru
        _
    $region6: #{generator_b_forward.6} parent=1 // loop_footer
      %s15 = sadd.s32 1, %s11
    $region7: #{generator_b_forward.6} parent=1 // loop_footer_branch
      %10 = sbr.rel target = $region3
    $region8: #{generator_b_forward.6} parent=1 // loop_exit
      _
    %3618 = vsyncpa [#allocation3], 1
    %s3619 = scalar_lea.sflag [#allocation3], 1
    %3620 = vsyncpa %s3619, 1

// kernel: generator_b_forward.8
$region0: #{generator_b_forward.8}
  #allocation0 [shape = 'u32[]', space=smem, size = 0x4, offset = 0x4, fixed_abs, tag = 'smem constant byte address 0x4 - core index']
  #allocation1 [shape = 'u32[144,128]{1,0:T(1,128)}', space=vmem, size = 0x12000, scoped, tag = 'internal scratch']
  %s0 = inlined_call_operand.vmem [shape: bf16[128,128], index: 0, kind: input, shape index: {}]
  %s1 = inlined_call_operand.vmem [shape: bf16[128,1024], index: 1, kind: input, shape index: {}]
  %s2 = inlined_call_operand.vmem [shape: f32[128,1024], index: 2, kind: output, shape index: {}]
  %s3 = sld [smem:[#allocation0]]
  $region83: #{generator_b_forward.8} parent=0
    _
  %s5 = ssub.s32 1, %s3
  %s6 = scalar_select 0, %s5, %s3
  $region1: #{generator_b_forward.8} parent=0
    #allocation2 [shape = 'u8[262144]{0}', space=vmem, size = 0x40000, scoped, tag = 'input window, operand 1']
    #allocation3 [shape = 'u8[524288]{0}', space=vmem, size = 0x80000, scoped, tag = 'output window, operand 0']
    loop: start=0, step=1, limit=4
    $region2: #{generator_b_forward.8} parent=1 // loop_pre_header
      _
    $region3: #{generator_b_forward.8} parent=1 // loop_header
      %s8 = sphi 0, %s12
      %p9 = scmp.ge.s32.totalorder %s8, 4
      %s15 = sphi 0, %s27
      %s16 = sphi 0, %s23
      %s17 = sphi 0, %s15
      %s18 = sphi 0, %s16
      %s19 = sphi 0, %s17
      %s20 = sphi 0, %s18
      %s30 = sphi 0, %s32
      %s33 = sphi 0, %s30
      %s34 = sphi 0, %s33
      %s50 = sphi 0, %s34
      %s56 = sphi 0, %s58
      %s59 = sphi 0, %s56
      %s60 = sphi 0, %s59
      %s76 = sphi 0, %s60
      %s84 = sphi 0, %s86
      %s87 = sphi 0, %s84
      %s88 = sphi 0, %s87
      %s104 = sphi 0, %s88
    $region4: #{generator_b_forward.8} parent=1 // loop_header_branch
      %11 = sbr.rel (%p9) target = $region8
    $region5: #{generator_b_forward.8} parent=1 // loop_body
      %s13 = ssub.s32 %s8, 1
      %s14 = ssub.s32 %s8, 2
      %s21 = sadd.s32 1, %s16
      %p22 = scmp.ge.s32.totalorder %s21, 2
      %s23 = scalar_select %p22, 0, %s21
      %s24 = sadd.s32 1, %s15
      %s25 = scalar_select %p22, %s24, %s15
      %p26 = scmp.ge.s32.totalorder %s25, 1
      %s27 = scalar_select %p26, 0, %s25
      %s28 = ssub.s32 %s15, %s27
      %p29 = scmp.eq.s32.totalorder %s28, 0
      %s31 = sadd.s32 %s30, 1
      %s32 = scalar_select %p29, %s30, %s31
      %p35 = pneg %p29
      %p36 = scmp.eq.s32.totalorder %s8, 1
      %p37 = por %p35, %p36
      %p38 = scmp.ne.s32.totalorder %s30, %s33
      %p39 = scmp.eq.s32.totalorder %s8, 0
      %p40 = por %p38, %p39
      %p41 = scmp.ne.s32.totalorder %s30, %s33
      %p42 = scmp.eq.s32.totalorder %s13, 1
      %p43 = por %p41, %p42
      %p44 = scmp.ne.s32.totalorder %s33, %s34
      %p45 = scmp.eq.s32.totalorder %s13, 0
      %p46 = por %p44, %p45
      %p47 = scmp.ne.s32.totalorder %s33, %s34
      %p48 = scmp.eq.s32.totalorder %s14, 1
      %p49 = por %p47, %p48
      %p51 = scmp.ne.s32.totalorder %s34, %s50
      %p52 = scmp.eq.s32.totalorder %s14, 0
      %p53 = por %p51, %p52
      %s54 = ssub.s32 %s16, %s23
      %p55 = scmp.eq.s32.totalorder %s54, 0
      %s57 = sadd.s32 %s56, 1
      %s58 = scalar_select %p55, %s56, %s57
      %p61 = pneg %p55
      %p62 = scmp.eq.s32.totalorder %s8, 1
      %p63 = por %p61, %p62
      %p64 = scmp.ne.s32.totalorder %s56, %s59
      %p65 = scmp.eq.s32.totalorder %s8, 0
      %p66 = por %p64, %p65
      %p67 = scmp.ne.s32.totalorder %s56, %s59
      %p68 = scmp.eq.s32.totalorder %s13, 1
      %p69 = por %p67, %p68
      %p70 = scmp.ne.s32.totalorder %s59, %s60
      %p71 = scmp.eq.s32.totalorder %s13, 0
      %p72 = por %p70, %p71
      %p73 = scmp.ne.s32.totalorder %s59, %s60
      %p74 = scmp.eq.s32.totalorder %s14, 1
      %p75 = por %p73, %p74
      %p77 = scmp.ne.s32.totalorder %s60, %s76
      %p78 = scmp.eq.s32.totalorder %s14, 0
      %p79 = por %p77, %p78
      %s80 = ssub.s32 %s15, %s27
      %s81 = ssub.s32 %s16, %s23
      %s82 = sor.u32 %s80, %s81
      %p83 = scmp.eq.s32.totalorder %s82, 0
      %s85 = sadd.s32 %s84, 1
      %s86 = scalar_select %p83, %s84, %s85
      %p89 = pneg %p83
      %p90 = scmp.eq.s32.totalorder %s8, 1
      %p91 = por %p89, %p90
      %p92 = scmp.ne.s32.totalorder %s84, %s87
      %p93 = scmp.eq.s32.totalorder %s8, 0
      %p94 = por %p92, %p93
      %p95 = scmp.ne.s32.totalorder %s84, %s87
      %p96 = scmp.eq.s32.totalorder %s13, 1
      %p97 = por %p95, %p96
      %p98 = scmp.ne.s32.totalorder %s87, %s88
      %p99 = scmp.eq.s32.totalorder %s13, 0
      %p100 = por %p98, %p99
      %p101 = scmp.ne.s32.totalorder %s87, %s88
      %p102 = scmp.eq.s32.totalorder %s14, 1
      %p103 = por %p101, %p102
      %p105 = scmp.ne.s32.totalorder %s88, %s104
      %p106 = scmp.eq.s32.totalorder %s14, 0
      %p107 = por %p105, %p106
      %p108 = scmp.le.s32.totalorder 1, %s8
      %p109 = scmp.lt.s32.totalorder %s8, 3
      %p110 = pnand %p108, %p109
      %p111 = pneg %p110
      // Predicated region
      $region9: #{generator_b_forward.8} parent=5 // pred_check
        _
      $region10: #{generator_b_forward.8} parent=5 // pred_check_branch
        %113 = sbr.rel (%p110) target = $region12
      $region11: #{generator_b_forward.8} parent=5 // pred_region
        %s114 = ssub.s32 %s8, 1
        // Predicated region
        $region13: #{generator_b_forward.8} parent=11 // pred_check
          %p115 = pneg %p46
        $region14: #{generator_b_forward.8} parent=11 // pred_check_branch
          %117 = sbr.rel (%p115) target = $region16
        $region15: #{generator_b_forward.8} parent=11 // pred_region
          %s118 = smul.u32 16, %s17
          %p119 = scmp.lt.s32.totalorder %s118, 15
          %s120 = scalar_select %p119, %s118, 15
          %s121 = smul.addr %s120, 4
          %s122 = scalar_lea.vmem %s0, %s121
          %s123 = smul.u32 16, %s17
        $region16: #{generator_b_forward.8} parent=11 // pred_fallthru
          _
      $region12: #{generator_b_forward.8} parent=5 // pred_fallthru
        _
      %p124 = scmp.lt.s32.totalorder %s8, 2
      // Predicated region
      $region17: #{generator_b_forward.8} parent=5 // pred_check
        %p125 = pneg %p124
      $region18: #{generator_b_forward.8} parent=5 // pred_check_branch
        %127 = sbr.rel (%p125) target = $region20
      $region19: #{generator_b_forward.8} parent=5 // pred_region
        // Predicated region
        $region21: #{generator_b_forward.8} parent=19 // pred_check
          %p128 = pneg %p66
        $region22: #{generator_b_forward.8} parent=19 // pred_check_branch
          %130 = sbr.rel (%p128) target = $region24
        $region23: #{generator_b_forward.8} parent=19 // pred_region
          %s131 = sand.u32 %s56, 1
          %s132 = sand.u32 %s56, 1
          %s133 = smul.addr %s132, 256
          %s134 = scalar_lea.vmem [#allocation2], %s133
          %s135 = smul.u32 4, %s16
          %s136 = smul.addr %s135, 4
          %s137 = scalar_lea.vmem %s1, %s136
          // Predicated region
          $region25: #{generator_b_forward.8} parent=23 // pred_check
            _
          $region26: #{generator_b_forward.8} parent=23 // pred_check_branch
            %139 = sbr.rel (0) target = $region28
          $region27: #{generator_b_forward.8} parent=23 // pred_region
            // Predicated region
            $region29: #{generator_b_forward.8} parent=27 // pred_check
              _
            $region30: #{generator_b_forward.8} parent=27 // pred_check_branch
              %141 = sbr.rel (0) target = $region32
            $region31: #{generator_b_forward.8} parent=27 // pred_region
              loop: start=0, step=1, limit=1
              $region33: #{generator_b_forward.8} parent=31 // loop_pre_header
                _
              $region34: #{generator_b_forward.8} parent=31 // loop_header
                %s143 = sphi 0, %s147
                %p144 = scmp.ge.s32.totalorder %s143, 1
                %s148 = sphi %s137, %s137
                %s149 = sphi %s134, %s134
              $region35: #{generator_b_forward.8} parent=31 // loop_header_branch
                %146 = sbr.rel (%p144) target = $region39
              $region36: #{generator_b_forward.8} parent=31 // loop_body
                %v150 = vld [vmem:[%s148] sm:$0xff]
                %151 = vst [vmem:[%s149] sm:$0xff] %v150
                %v152 = vld [vmem:[%s148 + $0x8] sm:$0xff]
                %153 = vst [vmem:[%s149 + $0x8] sm:$0xff] %v152
                %v154 = vld [vmem:[%s148 + $0x20] sm:$0xff]
                %155 = vst [vmem:[%s149 + $0x10] sm:$0xff] %v154
                %v156 = vld [vmem:[%s148 + $0x28] sm:$0xff]
                %157 = vst [vmem:[%s149 + $0x18] sm:$0xff] %v156
                %v158 = vld [vmem:[%s148 + $0x40] sm:$0xff]
                %159 = vst [vmem:[%s149 + $0x20] sm:$0xff] %v158
                %v160 = vld [vmem:[%s148 + $0x48] sm:$0xff]
                %161 = vst [vmem:[%s149 + $0x28] sm:$0xff] %v160
                %v162 = vld [vmem:[%s148 + $0x60] sm:$0xff]
                %163 = vst [vmem:[%s149 + $0x30] sm:$0xff] %v162
                %v164 = vld [vmem:[%s148 + $0x68] sm:$0xff]
                %165 = vst [vmem:[%s149 + $0x38] sm:$0xff] %v164
                %v166 = vld [vmem:[%s148 + $0x80] sm:$0xff]
                %167 = vst [vmem:[%s149 + $0x40] sm:$0xff] %v166
                %v168 = vld [vmem:[%s148 + $0x88] sm:$0xff]
                %169 = vst [vmem:[%s149 + $0x48] sm:$0xff] %v168
                %v170 = vld [vmem:[%s148 + $0xa0] sm:$0xff]
                %171 = vst [vmem:[%s149 + $0x50] sm:$0xff] %v170
                %v172 = vld [vmem:[%s148 + $0xa8] sm:$0xff]
                %173 = vst [vmem:[%s149 + $0x58] sm:$0xff] %v172
                %v174 = vld [vmem:[%s148 + $0xc0] sm:$0xff]
                %175 = vst [vmem:[%s149 + $0x60] sm:$0xff] %v174
                %v176 = vld [vmem:[%s148 + $0xc8] sm:$0xff]
                %177 = vst [vmem:[%s149 + $0x68] sm:$0xff] %v176
                %v178 = vld [vmem:[%s148 + $0xe0] sm:$0xff]
                %179 = vst [vmem:[%s149 + $0x70] sm:$0xff] %v178
                %v180 = vld [vmem:[%s148 + $0xe8] sm:$0xff]
                %181 = vst [vmem:[%s149 + $0x78] sm:$0xff] %v180
                %v182 = vld [vmem:[%s148 + $0x100] sm:$0xff]
                %183 = vst [vmem:[%s149 + $0x80] sm:$0xff] %v182
                %v184 = vld [vmem:[%s148 + $0x108] sm:$0xff]
                %185 = vst [vmem:[%s149 + $0x88] sm:$0xff] %v184
                %v186 = vld [vmem:[%s148 + $0x120] sm:$0xff]
                %187 = vst [vmem:[%s149 + $0x90] sm:$0xff] %v186
                %v188 = vld [vmem:[%s148 + $0x128] sm:$0xff]
                %189 = vst [vmem:[%s149 + $0x98] sm:$0xff] %v188
                %v190 = vld [vmem:[%s148 + $0x140] sm:$0xff]
                %191 = vst [vmem:[%s149 + $0xa0] sm:$0xff] %v190
                %v192 = vld [vmem:[%s148 + $0x148] sm:$0xff]
                %193 = vst [vmem:[%s149 + $0xa8] sm:$0xff] %v192
                %v194 = vld [vmem:[%s148 + $0x160] sm:$0xff]
                %195 = vst [vmem:[%s149 + $0xb0] sm:$0xff] %v194
                %v196 = vld [vmem:[%s148 + $0x168] sm:$0xff]
                %197 = vst [vmem:[%s149 + $0xb8] sm:$0xff] %v196
                %v198 = vld [vmem:[%s148 + $0x180] sm:$0xff]
                %199 = vst [vmem:[%s149 + $0xc0] sm:$0xff] %v198
                %v200 = vld [vmem:[%s148 + $0x188] sm:$0xff]
                %201 = vst [vmem:[%s149 + $0xc8] sm:$0xff] %v200
                %v202 = vld [vmem:[%s148 + $0x1a0] sm:$0xff]
                %203 = vst [vmem:[%s149 + $0xd0] sm:$0xff] %v202
                %v204 = vld [vmem:[%s148 + $0x1a8] sm:$0xff]
                %205 = vst [vmem:[%s149 + $0xd8] sm:$0xff] %v204
                %v206 = vld [vmem:[%s148 + $0x1c0] sm:$0xff]
                %207 = vst [vmem:[%s149 + $0xe0] sm:$0xff] %v206
                %v208 = vld [vmem:[%s148 + $0x1c8] sm:$0xff]
                %209 = vst [vmem:[%s149 + $0xe8] sm:$0xff] %v208
                %v210 = vld [vmem:[%s148 + $0x1e0] sm:$0xff]
                %211 = vst [vmem:[%s149 + $0xf0] sm:$0xff] %v210
                %v212 = vld [vmem:[%s148 + $0x1e8] sm:$0xff]
                %213 = vst [vmem:[%s149 + $0xf8] sm:$0xff] %v212
              $region37: #{generator_b_forward.8} parent=31 // loop_footer
                %s147 = sadd.s32 1, %s143
              $region38: #{generator_b_forward.8} parent=31 // loop_footer_branch
                %142 = sbr.rel target = $region34
              $region39: #{generator_b_forward.8} parent=31 // loop_exit
                _
            $region32: #{generator_b_forward.8} parent=27 // pred_fallthru
              _
            // Predicated region
            $region40: #{generator_b_forward.8} parent=27 // pred_check
              _
            $region41: #{generator_b_forward.8} parent=27 // pred_check_branch
              %215 = sbr.rel target = $region43
            $region42: #{generator_b_forward.8} parent=27 // pred_region
              _
            $region43: #{generator_b_forward.8} parent=27 // pred_fallthru
              _
          $region28: #{generator_b_forward.8} parent=23 // pred_fallthru
            _
          %216 = vnop
        $region24: #{generator_b_forward.8} parent=19 // pred_fallthru
          _
      $region20: #{generator_b_forward.8} parent=5 // pred_fallthru
        _
      %p217 = scmp.le.s32.totalorder 1, %s8
      %p218 = scmp.lt.s32.totalorder %s8, 3
      %p219 = pnand %p217, %p218
      %p220 = pneg %p219
      // Predicated region
      $region44: #{generator_b_forward.8} parent=5 // pred_check
        _
      $region45: #{generator_b_forward.8} parent=5 // pred_check_branch
        %222 = sbr.rel (%p219) target = $region47
      $region46: #{generator_b_forward.8} parent=5 // pred_region
        %s223 = ssub.s32 %s8, 1
        %s224 = sand.u32 %s59, 1
        %s225 = sand.u32 %s59, 1
        %s226 = smul.addr %s225, 256
        %s227 = scalar_lea.vmem [#allocation2], %s226
        // Predicated region
        $region48: #{generator_b_forward.8} parent=46 // pred_check
          %p228 = pneg %p72
        $region49: #{generator_b_forward.8} parent=46 // pred_check_branch
          %230 = sbr.rel (%p228) target = $region51
        $region50: #{generator_b_forward.8} parent=46 // pred_region
          _
        $region51: #{generator_b_forward.8} parent=46 // pred_fallthru
          _
        %s231 = smul.u32 16, %s17
        %p232 = scmp.lt.s32.totalorder %s231, 15
        %s233 = scalar_select %p232, %s231, 15
        %s234 = smul.addr %s233, 4
        %s235 = scalar_lea.vmem %s0, %s234
        %p236 = pneg %p46
        %p237 = pneg %p43
        %s238 = sand.u32 %s59, 1
        %s239 = sand.u32 %s59, 1
        %s240 = smul.addr %s239, 256
        %s241 = scalar_lea.vmem [#allocation2], %s240
        %p242 = pneg %p72
        %p243 = pneg %p69
        %p244 = pneg %p100
        %p245 = pneg %p97
        %s246 = sand.u32 %s87, 1
        %s247 = sand.u32 %s87, 1
        %s248 = smul.addr %s247, 512
        %s249 = scalar_lea.vmem [#allocation3], %s248
        %s250 = smul.u32 16, %s17
        %p251 = scmp.lt.s32.totalorder %s250, 15
        %s252 = scalar_select %p251, %s250, 15
        %s253 = smul.addr %s252, 4
        %s254 = scalar_lea.vmem %s0, %s253
        %s255 = smul.u32 16, %s17
        %s256 = smul.u32 4, %s18
        %s257 = smul.u32 16, %s17
        %s258 = smul.u32 4, %s18
        %v260 = vld [vmem:[%s254] sm:$0xf]
        %v261 = vld [vmem:[%s254 + $0x4] sm:$0xf]
        %v262 = vld [vmem:[%s254 + $0x8] sm:$0xf]
        %v263 = vld [vmem:[%s254 + $0xc] sm:$0xf]
        %v264 = vld [vmem:[%s254 + $0x10] sm:$0xf]
        %v265 = vld [vmem:[%s254 + $0x14] sm:$0xf]
        %v266 = vld [vmem:[%s254 + $0x18] sm:$0xf]
        %v267 = vld [vmem:[%s254 + $0x1c] sm:$0xf]
        %v268 = vld [vmem:[%s254 + $0x20] sm:$0xf]
        %v269 = vld [vmem:[%s254 + $0x24] sm:$0xf]
        %v270 = vld [vmem:[%s254 + $0x28] sm:$0xf]
        %v271 = vld [vmem:[%s254 + $0x2c] sm:$0xf]
        %v272 = vld [vmem:[%s254 + $0x30] sm:$0xf]
        %v273 = vld [vmem:[%s254 + $0x34] sm:$0xf]
        %v274 = vld [vmem:[%s254 + $0x38] sm:$0xf]
        %v275 = vld [vmem:[%s254 + $0x3c] sm:$0xf]
        %v276 = vld [vmem:[%s227] sm:$0xff]
        %v277 = vld [vmem:[%s227 + $0x8] sm:$0xff]
        %v278 = vld [vmem:[%s227 + $0x10] sm:$0xff]
        %v279 = vld [vmem:[%s227 + $0x18] sm:$0xff]
        %v280 = vld [vmem:[%s227 + $0x20] sm:$0xff]
        %v281 = vld [vmem:[%s227 + $0x28] sm:$0xff]
        %v282 = vld [vmem:[%s227 + $0x30] sm:$0xff]
        %v283 = vld [vmem:[%s227 + $0x38] sm:$0xff]
        %v284 = vld [vmem:[%s227 + $0x40] sm:$0xff]
        %v285 = vld [vmem:[%s227 + $0x48] sm:$0xff]
        %v286 = vld [vmem:[%s227 + $0x50] sm:$0xff]
        %v287 = vld [vmem:[%s227 + $0x58] sm:$0xff]
        %v288 = vld [vmem:[%s227 + $0x60] sm:$0xff]
        %v289 = vld [vmem:[%s227 + $0x68] sm:$0xff]
        %v290 = vld [vmem:[%s227 + $0x70] sm:$0xff]
        %v291 = vld [vmem:[%s227 + $0x78] sm:$0xff]
        %v292 = vld [vmem:[%s227 + $0x80] sm:$0xff]
        %v293 = vld [vmem:[%s227 + $0x88] sm:$0xff]
        %v294 = vld [vmem:[%s227 + $0x90] sm:$0xff]
        %v295 = vld [vmem:[%s227 + $0x98] sm:$0xff]
        %v296 = vld [vmem:[%s227 + $0xa0] sm:$0xff]
        %v297 = vld [vmem:[%s227 + $0xa8] sm:$0xff]
        %v298 = vld [vmem:[%s227 + $0xb0] sm:$0xff]
        %v299 = vld [vmem:[%s227 + $0xb8] sm:$0xff]
        %v300 = vld [vmem:[%s227 + $0xc0] sm:$0xff]
        %v301 = vld [vmem:[%s227 + $0xc8] sm:$0xff]
        %v302 = vld [vmem:[%s227 + $0xd0] sm:$0xff]
        %v303 = vld [vmem:[%s227 + $0xd8] sm:$0xff]
        %v304 = vld [vmem:[%s227 + $0xe0] sm:$0xff]
        %v305 = vld [vmem:[%s227 + $0xe8] sm:$0xff]
        %v306 = vld [vmem:[%s227 + $0xf0] sm:$0xff]
        %v307 = vld [vmem:[%s227 + $0xf8] sm:$0xff]
        %v324 = vunpack.c.l.b16 %v260
        %v325 = vunpack.c.l.b16 %v261
        %v326 = vunpack.c.l.b16 %v262
        %v327 = vunpack.c.l.b16 %v263
        %v328 = vunpack.c.l.b16 %v264
        %v329 = vunpack.c.l.b16 %v265
        %v330 = vunpack.c.l.b16 %v266
        %v331 = vunpack.c.l.b16 %v267
        %v332 = vunpack.c.l.b16 %v268
        %v333 = vunpack.c.l.b16 %v269
        %v334 = vunpack.c.l.b16 %v270
        %v335 = vunpack.c.l.b16 %v271
        %v336 = vunpack.c.l.b16 %v272
        %v337 = vunpack.c.l.b16 %v273
        %v338 = vunpack.c.l.b16 %v274
        %v339 = vunpack.c.l.b16 %v275
        %v340 = vpack.c.b16 %v325, %v324
        %v341 = vpack.c.b16 %v327, %v326
        %v342 = vpack.c.b16 %v329, %v328
        %v343 = vpack.c.b16 %v331, %v330
        %v344 = vpack.c.b16 %v333, %v332
        %v345 = vpack.c.b16 %v335, %v334
        %v346 = vpack.c.b16 %v337, %v336
        %v347 = vpack.c.b16 %v339, %v338
        %v388 = vunpack.c.l.b16 %v276
        %v389 = vunpack.c.h.b16 %v276
        %v390 = vunpack.c.l.b16 %v277
        %v391 = vunpack.c.h.b16 %v277
        %v392 = vunpack.c.l.b16 %v278
        %v393 = vunpack.c.h.b16 %v278
        %v394 = vunpack.c.l.b16 %v279
        %v395 = vunpack.c.h.b16 %v279
        %v396 = vunpack.c.l.b16 %v280
        %v397 = vunpack.c.h.b16 %v280
        %v398 = vunpack.c.l.b16 %v281
        %v399 = vunpack.c.h.b16 %v281
        %v400 = vunpack.c.l.b16 %v282
        %v401 = vunpack.c.h.b16 %v282
        %v402 = vunpack.c.l.b16 %v283
        %v403 = vunpack.c.h.b16 %v283
        %v404 = vunpack.c.l.b16 %v284
        %v405 = vunpack.c.h.b16 %v284
        %v406 = vunpack.c.l.b16 %v285
        %v407 = vunpack.c.h.b16 %v285
        %v408 = vunpack.c.l.b16 %v286
        %v409 = vunpack.c.h.b16 %v286
        %v410 = vunpack.c.l.b16 %v287
        %v411 = vunpack.c.h.b16 %v287
        %v412 = vunpack.c.l.b16 %v288
        %v413 = vunpack.c.h.b16 %v288
        %v414 = vunpack.c.l.b16 %v289
        %v415 = vunpack.c.h.b16 %v289
        %v416 = vunpack.c.l.b16 %v290
        %v417 = vunpack.c.h.b16 %v290
        %v418 = vunpack.c.l.b16 %v291
        %v419 = vunpack.c.h.b16 %v291
        %v420 = vunpack.c.l.b16 %v292
        %v421 = vunpack.c.h.b16 %v292
        %v422 = vunpack.c.l.b16 %v293
        %v423 = vunpack.c.h.b16 %v293
        %v424 = vunpack.c.l.b16 %v294
        %v425 = vunpack.c.h.b16 %v294
        %v426 = vunpack.c.l.b16 %v295
        %v427 = vunpack.c.h.b16 %v295
        %v428 = vunpack.c.l.b16 %v296
        %v429 = vunpack.c.h.b16 %v296
        %v430 = vunpack.c.l.b16 %v297
        %v431 = vunpack.c.h.b16 %v297
        %v432 = vunpack.c.l.b16 %v298
        %v433 = vunpack.c.h.b16 %v298
        %v434 = vunpack.c.l.b16 %v299
        %v435 = vunpack.c.h.b16 %v299
        %v436 = vunpack.c.l.b16 %v300
        %v437 = vunpack.c.h.b16 %v300
        %v438 = vunpack.c.l.b16 %v301
        %v439 = vunpack.c.h.b16 %v301
        %v440 = vunpack.c.l.b16 %v302
        %v441 = vunpack.c.h.b16 %v302
        %v442 = vunpack.c.l.b16 %v303
        %v443 = vunpack.c.h.b16 %v303
        %v444 = vunpack.c.l.b16 %v304
        %v445 = vunpack.c.h.b16 %v304
        %v446 = vunpack.c.l.b16 %v305
        %v447 = vunpack.c.h.b16 %v305
        %v448 = vunpack.c.l.b16 %v306
        %v449 = vunpack.c.h.b16 %v306
        %v450 = vunpack.c.l.b16 %v307
        %v451 = vunpack.c.h.b16 %v307
        %v452 = vpack.c.b16 %v392, %v388
        %v453 = vpack.c.b16 %v393, %v389
        %v454 = vpack.c.b16 %v394, %v390
        %v455 = vpack.c.b16 %v395, %v391
        %v456 = vpack.c.b16 %v400, %v396
        %v457 = vpack.c.b16 %v401, %v397
        %v458 = vpack.c.b16 %v402, %v398
        %v459 = vpack.c.b16 %v403, %v399
        %v460 = vpack.c.b16 %v408, %v404
        %v461 = vpack.c.b16 %v409, %v405
        %v462 = vpack.c.b16 %v410, %v406
        %v463 = vpack.c.b16 %v411, %v407
        %v464 = vpack.c.b16 %v416, %v412
        %v465 = vpack.c.b16 %v417, %v413
        %v466 = vpack.c.b16 %v418, %v414
        %v467 = vpack.c.b16 %v419, %v415
        %v468 = vpack.c.b16 %v424, %v420
        %v469 = vpack.c.b16 %v425, %v421
        %v470 = vpack.c.b16 %v426, %v422
        %v471 = vpack.c.b16 %v427, %v423
        %v472 = vpack.c.b16 %v432, %v428
        %v473 = vpack.c.b16 %v433, %v429
        %v474 = vpack.c.b16 %v434, %v430
        %v475 = vpack.c.b16 %v435, %v431
        %v476 = vpack.c.b16 %v440, %v436
        %v477 = vpack.c.b16 %v441, %v437
        %v478 = vpack.c.b16 %v442, %v438
        %v479 = vpack.c.b16 %v443, %v439
        %v480 = vpack.c.b16 %v448, %v444
        %v481 = vpack.c.b16 %v449, %v445
        %v482 = vpack.c.b16 %v450, %v446
        %v483 = vpack.c.b16 %v451, %v447
        %516 = vmatprep.subr.bf16.mxu0 %v453
        %517 = vmatpush1.bf16.msra.mxu0 %v452
        %518 = vmatprep.subr.bf16.mxu0 %v457
        %519 = vmatpush1.bf16.msra.mxu0 %v456
        %520 = vmatprep.subr.bf16.mxu0 %v461
        %521 = vmatpush1.bf16.msra.mxu0 %v460
        %522 = vmatprep.subr.bf16.mxu0 %v465
        %523 = vmatpush1.bf16.msra.mxu0 %v464
        %524 = vmatprep.subr.bf16.mxu0 %v469
        %525 = vmatpush1.bf16.msra.mxu0 %v468
        %526 = vmatprep.subr.bf16.mxu0 %v473
        %527 = vmatpush1.bf16.msra.mxu0 %v472
        %528 = vmatprep.subr.bf16.mxu0 %v477
        %529 = vmatpush1.bf16.msra.mxu0 %v476
        %530 = vmatprep.subr.bf16.mxu0 %v481
        %531 = vmatpush1.bf16.msra.mxu0 %v480
        %532 = vmatprep.subr.bf16.mxu0 0
        %533 = vmatpush1.bf16.msra.mxu0 0
        %534 = vmatprep.subr.bf16.mxu0 0
        %535 = vmatpush1.bf16.msra.mxu0 0
        %536 = vmatprep.subr.bf16.mxu0 0
        %537 = vmatpush1.bf16.msra.mxu0 0
        %538 = vmatprep.subr.bf16.mxu0 0
        %539 = vmatpush1.bf16.msra.mxu0 0
        %540 = vmatprep.subr.bf16.mxu0 0
        %541 = vmatpush1.bf16.msra.mxu0 0
        %542 = vmatprep.subr.bf16.mxu0 0
        %543 = vmatpush1.bf16.msra.mxu0 0
        %544 = vmatprep.subr.bf16.mxu0 0
        %545 = vmatpush1.bf16.msra.mxu0 0
        %546 = vmatprep.subr.bf16.mxu0 0
        %547 = vmatpush1.bf16.msra.mxu0 0
        %548 = vmatprep.mubr.bf16.mxu0 0
        %549 = vmatmul.mubr.bf16.gmra.mrb[0].mxu0 %v340
        %v550 = vpop.f32.mrb[0].mxu0
        %v551 = vadd.f32 0.0, %v550
        %v552 = vpop.f32.mrb[0].mxu0
        %v553 = vadd.f32 0.0, %v552
        %v554 = vpop.f32.mrb[0].mxu0
        %v555 = vadd.f32 0.0, %v554
        %v556 = vpop.f32.mrb[0].mxu0
        %v557 = vadd.f32 0.0, %v556
        %558 = vmatprep.mubr.bf16.mxu0 0
        %559 = vmatmul.mubr.bf16.gmra.mrb[0].mxu0 %v341
        %v560 = vpop.f32.mrb[0].mxu0
        %v561 = vadd.f32 0.0, %v560
        %v562 = vpop.f32.mrb[0].mxu0
        %v563 = vadd.f32 0.0, %v562
        %v564 = vpop.f32.mrb[0].mxu0
        %v565 = vadd.f32 0.0, %v564
        %v566 = vpop.f32.mrb[0].mxu0
        %v567 = vadd.f32 0.0, %v566
        %568 = vmatprep.mubr.bf16.mxu0 0
        %569 = vmatmul.mubr.bf16.gmra.mrb[0].mxu0 %v342
        %v570 = vpop.f32.mrb[0].mxu0
        %v571 = vadd.f32 0.0, %v570
        %v572 = vpop.f32.mrb[0].mxu0
        %v573 = vadd.f32 0.0, %v572
        %v574 = vpop.f32.mrb[0].mxu0
        %v575 = vadd.f32 0.0, %v574
        %v576 = vpop.f32.mrb[0].mxu0
        %v577 = vadd.f32 0.0, %v576
        %578 = vmatprep.mubr.bf16.mxu0 0
        %579 = vmatmul.mubr.bf16.gmra.mrb[0].mxu0 %v343
        %v580 = vpop.f32.mrb[0].mxu0
        %v581 = vadd.f32 0.0, %v580
        %v582 = vpop.f32.mrb[0].mxu0
        %v583 = vadd.f32 0.0, %v582
        %v584 = vpop.f32.mrb[0].mxu0
        %v585 = vadd.f32 0.0, %v584
        %v586 = vpop.f32.mrb[0].mxu0
        %v587 = vadd.f32 0.0, %v586
        %588 = vmatprep.mubr.bf16.mxu0 0
        %589 = vmatmul.mubr.bf16.gmra.mrb[0].mxu0 %v344
        %v590 = vpop.f32.mrb[0].mxu0
        %v591 = vadd.f32 0.0, %v590
        %v592 = vpop.f32.mrb[0].mxu0
        %v593 = vadd.f32 0.0, %v592
        %v594 = vpop.f32.mrb[0].mxu0
        %v595 = vadd.f32 0.0, %v594
        %v596 = vpop.f32.mrb[0].mxu0
        %v597 = vadd.f32 0.0, %v596
        %598 = vmatprep.mubr.bf16.mxu0 0
        %599 = vmatmul.mubr.bf16.gmra.mrb[0].mxu0 %v345
        %v600 = vpop.f32.mrb[0].mxu0
        %v601 = vadd.f32 0.0, %v600
        %v602 = vpop.f32.mrb[0].mxu0
        %v603 = vadd.f32 0.0, %v602
        %v604 = vpop.f32.mrb[0].mxu0
        %v605 = vadd.f32 0.0, %v604
        %v606 = vpop.f32.mrb[0].mxu0
        %v607 = vadd.f32 0.0, %v606
        %608 = vmatprep.mubr.bf16.mxu0 0
        %609 = vmatmul.mubr.bf16.gmra.mrb[0].mxu0 %v346
        %v610 = vpop.f32.mrb[0].mxu0
        %v611 = vadd.f32 0.0, %v610
        %v612 = vpop.f32.mrb[0].mxu0
        %v613 = vadd.f32 0.0, %v612
        %v614 = vpop.f32.mrb[0].mxu0
        %v615 = vadd.f32 0.0, %v614
        %v616 = vpop.f32.mrb[0].mxu0
        %v617 = vadd.f32 0.0, %v616
        %618 = vmatprep.mubr.bf16.mxu0 0
        %619 = vmatmul.mubr.bf16.gmra.mrb[0].mxu0 %v347
        %v620 = vpop.f32.mrb[0].mxu0
        %v621 = vadd.f32 0.0, %v620
        %v622 = vpop.f32.mrb[0].mxu0
        %v623 = vadd.f32 0.0, %v622
        %v624 = vpop.f32.mrb[0].mxu0
        %v625 = vadd.f32 0.0, %v624
        %v626 = vpop.f32.mrb[0].mxu0
        %v627 = vadd.f32 0.0, %v626
        %628 = vdwg.mxu0
        %629 = vmatprep.subr.bf16.mxu0 %v455
        %630 = vmatpush1.bf16.msra.mxu0 %v454
        %631 = vmatprep.subr.bf16.mxu0 %v459
        %632 = vmatpush1.bf16.msra.mxu0 %v458
        %633 = vmatprep.subr.bf16.mxu0 %v463
        %634 = vmatpush1.bf16.msra.mxu0 %v462
        %635 = vmatprep.subr.bf16.mxu0 %v467
        %636 = vmatpush1.bf16.msra.mxu0 %v466
        %637 = vmatprep.subr.bf16.mxu0 %v471
        %638 = vmatpush1.bf16.msra.mxu0 %v470
        %639 = vmatprep.subr.bf16.mxu0 %v475
        %640 = vmatpush1.bf16.msra.mxu0 %v474
        %641 = vmatprep.subr.bf16.mxu0 %v479
        %642 = vmatpush1.bf16.msra.mxu0 %v478
        %643 = vmatprep.subr.bf16.mxu0 %v483
        %644 = vmatpush1.bf16.msra.mxu0 %v482
        %645 = vmatprep.subr.bf16.mxu0 0
        %646 = vmatpush1.bf16.msra.mxu0 0
        %647 = vmatprep.subr.bf16.mxu0 0
        %648 = vmatpush1.bf16.msra.mxu0 0
        %649 = vmatprep.subr.bf16.mxu0 0
        %650 = vmatpush1.bf16.msra.mxu0 0
        %651 = vmatprep.subr.bf16.mxu0 0
        %652 = vmatpush1.bf16.msra.mxu0 0
        %653 = vmatprep.subr.bf16.mxu0 0
        %654 = vmatpush1.bf16.msra.mxu0 0
        %655 = vmatprep.subr.bf16.mxu0 0
        %656 = vmatpush1.bf16.msra.mxu0 0
        %657 = vmatprep.subr.bf16.mxu0 0
        %658 = vmatpush1.bf16.msra.mxu0 0
        %659 = vmatprep.subr.bf16.mxu0 0
        %660 = vmatpush1.bf16.msra.mxu0 0
        %661 = vmatprep.mubr.bf16.mxu0 0
        %662 = vmatmul.mubr.bf16.gmra.mrb[0].mxu0 %v340
        %v663 = vpop.f32.mrb[0].mxu0
        %v664 = vadd.f32 0.0, %v663
        %v665 = vpop.f32.mrb[0].mxu0
        %v666 = vadd.f32 0.0, %v665
        %v667 = vpop.f32.mrb[0].mxu0
        %v668 = vadd.f32 0.0, %v667
        %v669 = vpop.f32.mrb[0].mxu0
        %v670 = vadd.f32 0.0, %v669
        %671 = vmatprep.mubr.bf16.mxu0 0
        %672 = vmatmul.mubr.bf16.gmra.mrb[0].mxu0 %v341
        %v673 = vpop.f32.mrb[0].mxu0
        %v674 = vadd.f32 0.0, %v673
        %v675 = vpop.f32.mrb[0].mxu0
        %v676 = vadd.f32 0.0, %v675
        %v677 = vpop.f32.mrb[0].mxu0
        %v678 = vadd.f32 0.0, %v677
        %v679 = vpop.f32.mrb[0].mxu0
        %v680 = vadd.f32 0.0, %v679
        %681 = vmatprep.mubr.bf16.mxu0 0
        %682 = vmatmul.mubr.bf16.gmra.mrb[0].mxu0 %v342
        %v683 = vpop.f32.mrb[0].mxu0
        %v684 = vadd.f32 0.0, %v683
        %v685 = vpop.f32.mrb[0].mxu0
        %v686 = vadd.f32 0.0, %v685
        %v687 = vpop.f32.mrb[0].mxu0
        %v688 = vadd.f32 0.0, %v687
        %v689 = vpop.f32.mrb[0].mxu0
        %v690 = vadd.f32 0.0, %v689
        %691 = vmatprep.mubr.bf16.mxu0 0
        %692 = vmatmul.mubr.bf16.gmra.mrb[0].mxu0 %v343
        %v693 = vpop.f32.mrb[0].mxu0
        %v694 = vadd.f32 0.0, %v693
        %v695 = vpop.f32.mrb[0].mxu0
        %v696 = vadd.f32 0.0, %v695
        %v697 = vpop.f32.mrb[0].mxu0
        %v698 = vadd.f32 0.0, %v697
        %v699 = vpop.f32.mrb[0].mxu0
        %v700 = vadd.f32 0.0, %v699
        %701 = vmatprep.mubr.bf16.mxu0 0
        %702 = vmatmul.mubr.bf16.gmra.mrb[0].mxu0 %v344
        %v703 = vpop.f32.mrb[0].mxu0
        %v704 = vadd.f32 0.0, %v703
        %v705 = vpop.f32.mrb[0].mxu0
        %v706 = vadd.f32 0.0, %v705
        %v707 = vpop.f32.mrb[0].mxu0
        %v708 = vadd.f32 0.0, %v707
        %v709 = vpop.f32.mrb[0].mxu0
        %v710 = vadd.f32 0.0, %v709
        %711 = vmatprep.mubr.bf16.mxu0 0
        %712 = vmatmul.mubr.bf16.gmra.mrb[0].mxu0 %v345
        %v713 = vpop.f32.mrb[0].mxu0
        %v714 = vadd.f32 0.0, %v713
        %v715 = vpop.f32.mrb[0].mxu0
        %v716 = vadd.f32 0.0, %v715
        %v717 = vpop.f32.mrb[0].mxu0
        %v718 = vadd.f32 0.0, %v717
        %v719 = vpop.f32.mrb[0].mxu0
        %v720 = vadd.f32 0.0, %v719
        %721 = vmatprep.mubr.bf16.mxu0 0
        %722 = vmatmul.mubr.bf16.gmra.mrb[0].mxu0 %v346
        %v723 = vpop.f32.mrb[0].mxu0
        %v724 = vadd.f32 0.0, %v723
        %v725 = vpop.f32.mrb[0].mxu0
        %v726 = vadd.f32 0.0, %v725
        %v727 = vpop.f32.mrb[0].mxu0
        %v728 = vadd.f32 0.0, %v727
        %v729 = vpop.f32.mrb[0].mxu0
        %v730 = vadd.f32 0.0, %v729
        %731 = vmatprep.mubr.bf16.mxu0 0
        %732 = vmatmul.mubr.bf16.gmra.mrb[0].mxu0 %v347
        %v733 = vpop.f32.mrb[0].mxu0
        %v734 = vadd.f32 0.0, %v733
        %v735 = vpop.f32.mrb[0].mxu0
        %v736 = vadd.f32 0.0, %v735
        %v737 = vpop.f32.mrb[0].mxu0
        %v738 = vadd.f32 0.0, %v737
        %v739 = vpop.f32.mrb[0].mxu0
        %v740 = vadd.f32 0.0, %v739
        %741 = vdwg.mxu0
        %742 = vst [vmem:[%s249] sm:$0xff] %v551
        %743 = vst [vmem:[%s249 + $0x8] sm:$0xff] %v553
        %744 = vst [vmem:[%s249 + $0x10] sm:$0xff] %v664
        %745 = vst [vmem:[%s249 + $0x18] sm:$0xff] %v666
        %746 = vst [vmem:[%s249 + $0x20] sm:$0xff] %v555
        %747 = vst [vmem:[%s249 + $0x28] sm:$0xff] %v557
        %748 = vst [vmem:[%s249 + $0x30] sm:$0xff] %v668
        %749 = vst [vmem:[%s249 + $0x38] sm:$0xff] %v670
        %750 = vst [vmem:[%s249 + $0x40] sm:$0xff] %v561
        %751 = vst [vmem:[%s249 + $0x48] sm:$0xff] %v563
        %752 = vst [vmem:[%s249 + $0x50] sm:$0xff] %v674
        %753 = vst [vmem:[%s249 + $0x58] sm:$0xff] %v676
        %754 = vst [vmem:[%s249 + $0x60] sm:$0xff] %v565
        %755 = vst [vmem:[%s249 + $0x68] sm:$0xff] %v567
        %756 = vst [vmem:[%s249 + $0x70] sm:$0xff] %v678
        %757 = vst [vmem:[%s249 + $0x78] sm:$0xff] %v680
        %758 = vst [vmem:[%s249 + $0x80] sm:$0xff] %v571
        %759 = vst [vmem:[%s249 + $0x88] sm:$0xff] %v573
        %760 = vst [vmem:[%s249 + $0x90] sm:$0xff] %v684
        %761 = vst [vmem:[%s249 + $0x98] sm:$0xff] %v686
        %762 = vst [vmem:[%s249 + $0xa0] sm:$0xff] %v575
        %763 = vst [vmem:[%s249 + $0xa8] sm:$0xff] %v577
        %764 = vst [vmem:[%s249 + $0xb0] sm:$0xff] %v688
        %765 = vst [vmem:[%s249 + $0xb8] sm:$0xff] %v690
        %766 = vst [vmem:[%s249 + $0xc0] sm:$0xff] %v581
        %767 = vst [vmem:[%s249 + $0xc8] sm:$0xff] %v583
        %768 = vst [vmem:[%s249 + $0xd0] sm:$0xff] %v694
        %769 = vst [vmem:[%s249 + $0xd8] sm:$0xff] %v696
        %770 = vst [vmem:[%s249 + $0xe0] sm:$0xff] %v585
        %771 = vst [vmem:[%s249 + $0xe8] sm:$0xff] %v587
        %772 = vst [vmem:[%s249 + $0xf0] sm:$0xff] %v698
        %773 = vst [vmem:[%s249 + $0xf8] sm:$0xff] %v700
        %774 = vst [vmem:[%s249 + $0x100] sm:$0xff] %v591
        %775 = vst [vmem:[%s249 + $0x108] sm:$0xff] %v593
        %776 = vst [vmem:[%s249 + $0x110] sm:$0xff] %v704
        %777 = vst [vmem:[%s249 + $0x118] sm:$0xff] %v706
        %778 = vst [vmem:[%s249 + $0x120] sm:$0xff] %v595
        %779 = vst [vmem:[%s249 + $0x128] sm:$0xff] %v597
        %780 = vst [vmem:[%s249 + $0x130] sm:$0xff] %v708
        %781 = vst [vmem:[%s249 + $0x138] sm:$0xff] %v710
        %782 = vst [vmem:[%s249 + $0x140] sm:$0xff] %v601
        %783 = vst [vmem:[%s249 + $0x148] sm:$0xff] %v603
        %784 = vst [vmem:[%s249 + $0x150] sm:$0xff] %v714
        %785 = vst [vmem:[%s249 + $0x158] sm:$0xff] %v716
        %786 = vst [vmem:[%s249 + $0x160] sm:$0xff] %v605
        %787 = vst [vmem:[%s249 + $0x168] sm:$0xff] %v607
        %788 = vst [vmem:[%s249 + $0x170] sm:$0xff] %v718
        %789 = vst [vmem:[%s249 + $0x178] sm:$0xff] %v720
        %790 = vst [vmem:[%s249 + $0x180] sm:$0xff] %v611
        %791 = vst [vmem:[%s249 + $0x188] sm:$0xff] %v613
        %792 = vst [vmem:[%s249 + $0x190] sm:$0xff] %v724
        %793 = vst [vmem:[%s249 + $0x198] sm:$0xff] %v726
        %794 = vst [vmem:[%s249 + $0x1a0] sm:$0xff] %v615
        %795 = vst [vmem:[%s249 + $0x1a8] sm:$0xff] %v617
        %796 = vst [vmem:[%s249 + $0x1b0] sm:$0xff] %v728
        %797 = vst [vmem:[%s249 + $0x1b8] sm:$0xff] %v730
        %798 = vst [vmem:[%s249 + $0x1c0] sm:$0xff] %v621
        %799 = vst [vmem:[%s249 + $0x1c8] sm:$0xff] %v623
        %800 = vst [vmem:[%s249 + $0x1d0] sm:$0xff] %v734
        %801 = vst [vmem:[%s249 + $0x1d8] sm:$0xff] %v736
        %802 = vst [vmem:[%s249 + $0x1e0] sm:$0xff] %v625
        %803 = vst [vmem:[%s249 + $0x1e8] sm:$0xff] %v627
        %804 = vst [vmem:[%s249 + $0x1f0] sm:$0xff] %v738
        %805 = vst [vmem:[%s249 + $0x1f8] sm:$0xff] %v740
        %s806 = sand.u32 %s87, 1
        %s807 = sand.u32 %s87, 1
        %s808 = smul.addr %s807, 512
        %s809 = scalar_lea.vmem [#allocation3], %s808
        // Predicated region
        $region52: #{generator_b_forward.8} parent=46 // pred_check
          %p810 = pneg %p97
        $region53: #{generator_b_forward.8} parent=46 // pred_check_branch
          %812 = sbr.rel (%p810) target = $region55
        $region54: #{generator_b_forward.8} parent=46 // pred_region
          %s813 = smul.u32 16, %s17
          %s814 = smul.u32 4, %s18
          %s815 = smul.addr %s813, 8
          %s816 = sadd.s32 %s814, %s815
          %s817 = smul.addr %s816, 8
          %s818 = scalar_lea.vmem %s2, %s817
          // Predicated region
          $region56: #{generator_b_forward.8} parent=54 // pred_check
            _
          $region57: #{generator_b_forward.8} parent=54 // pred_check_branch
            %820 = sbr.rel (0) target = $region59
          $region58: #{generator_b_forward.8} parent=54 // pred_region
            // Predicated region
            $region60: #{generator_b_forward.8} parent=58 // pred_check
              _
            $region61: #{generator_b_forward.8} parent=58 // pred_check_branch
              %822 = sbr.rel (0) target = $region63
            $region62: #{generator_b_forward.8} parent=58 // pred_region
              loop: start=0, step=1, limit=1
              $region64: #{generator_b_forward.8} parent=62 // loop_pre_header
                _
              $region65: #{generator_b_forward.8} parent=62 // loop_header
                %s824 = sphi 0, %s828
                %p825 = scmp.ge.s32.totalorder %s824, 1
                %s829 = sphi %s809, %s809
                %s830 = sphi %s818, %s818
              $region66: #{generator_b_forward.8} parent=62 // loop_header_branch
                %827 = sbr.rel (%p825) target = $region70
              $region67: #{generator_b_forward.8} parent=62 // loop_body
                %v831 = vld [vmem:[%s829] sm:$0xff]
                %832 = vst [vmem:[%s830] sm:$0xff] %v831
                %v833 = vld [vmem:[%s829 + $0x8] sm:$0xff]
                %834 = vst [vmem:[%s830 + $0x8] sm:$0xff] %v833
                %v835 = vld [vmem:[%s829 + $0x10] sm:$0xff]
                %836 = vst [vmem:[%s830 + $0x10] sm:$0xff] %v835
                %v837 = vld [vmem:[%s829 + $0x18] sm:$0xff]
                %838 = vst [vmem:[%s830 + $0x18] sm:$0xff] %v837
                %v839 = vld [vmem:[%s829 + $0x20] sm:$0xff]
                %840 = vst [vmem:[%s830 + $0x40] sm:$0xff] %v839
                %v841 = vld [vmem:[%s829 + $0x28] sm:$0xff]
                %842 = vst [vmem:[%s830 + $0x48] sm:$0xff] %v841
                %v843 = vld [vmem:[%s829 + $0x30] sm:$0xff]
                %844 = vst [vmem:[%s830 + $0x50] sm:$0xff] %v843
                %v845 = vld [vmem:[%s829 + $0x38] sm:$0xff]
                %846 = vst [vmem:[%s830 + $0x58] sm:$0xff] %v845
                %v847 = vld [vmem:[%s829 + $0x40] sm:$0xff]
                %848 = vst [vmem:[%s830 + $0x80] sm:$0xff] %v847
                %v849 = vld [vmem:[%s829 + $0x48] sm:$0xff]
                %850 = vst [vmem:[%s830 + $0x88] sm:$0xff] %v849
                %v851 = vld [vmem:[%s829 + $0x50] sm:$0xff]
                %852 = vst [vmem:[%s830 + $0x90] sm:$0xff] %v851
                %v853 = vld [vmem:[%s829 + $0x58] sm:$0xff]
                %854 = vst [vmem:[%s830 + $0x98] sm:$0xff] %v853
                %v855 = vld [vmem:[%s829 + $0x60] sm:$0xff]
                %856 = vst [vmem:[%s830 + $0xc0] sm:$0xff] %v855
                %v857 = vld [vmem:[%s829 + $0x68] sm:$0xff]
                %858 = vst [vmem:[%s830 + $0xc8] sm:$0xff] %v857
                %v859 = vld [vmem:[%s829 + $0x70] sm:$0xff]
                %860 = vst [vmem:[%s830 + $0xd0] sm:$0xff] %v859
                %v861 = vld [vmem:[%s829 + $0x78] sm:$0xff]
                %862 = vst [vmem:[%s830 + $0xd8] sm:$0xff] %v861
                %v863 = vld [vmem:[%s829 + $0x80] sm:$0xff]
                %864 = vst [vmem:[%s830 + $0x100] sm:$0xff] %v863
                %v865 = vld [vmem:[%s829 + $0x88] sm:$0xff]
                %866 = vst [vmem:[%s830 + $0x108] sm:$0xff] %v865
                %v867 = vld [vmem:[%s829 + $0x90] sm:$0xff]
                %868 = vst [vmem:[%s830 + $0x110] sm:$0xff] %v867
                %v869 = vld [vmem:[%s829 + $0x98] sm:$0xff]
                %870 = vst [vmem:[%s830 + $0x118] sm:$0xff] %v869
                %v871 = vld [vmem:[%s829 + $0xa0] sm:$0xff]
                %872 = vst [vmem:[%s830 + $0x140] sm:$0xff] %v871
                %v873 = vld [vmem:[%s829 + $0xa8] sm:$0xff]
                %874 = vst [vmem:[%s830 + $0x148] sm:$0xff] %v873
                %v875 = vld [vmem:[%s829 + $0xb0] sm:$0xff]
                %876 = vst [vmem:[%s830 + $0x150] sm:$0xff] %v875
                %v877 = vld [vmem:[%s829 + $0xb8] sm:$0xff]
                %878 = vst [vmem:[%s830 + $0x158] sm:$0xff] %v877
                %v879 = vld [vmem:[%s829 + $0xc0] sm:$0xff]
                %880 = vst [vmem:[%s830 + $0x180] sm:$0xff] %v879
                %v881 = vld [vmem:[%s829 + $0xc8] sm:$0xff]
                %882 = vst [vmem:[%s830 + $0x188] sm:$0xff] %v881
                %v883 = vld [vmem:[%s829 + $0xd0] sm:$0xff]
                %884 = vst [vmem:[%s830 + $0x190] sm:$0xff] %v883
                %v885 = vld [vmem:[%s829 + $0xd8] sm:$0xff]
                %886 = vst [vmem:[%s830 + $0x198] sm:$0xff] %v885
                %v887 = vld [vmem:[%s829 + $0xe0] sm:$0xff]
                %888 = vst [vmem:[%s830 + $0x1c0] sm:$0xff] %v887
                %v889 = vld [vmem:[%s829 + $0xe8] sm:$0xff]
                %890 = vst [vmem:[%s830 + $0x1c8] sm:$0xff] %v889
                %v891 = vld [vmem:[%s829 + $0xf0] sm:$0xff]
                %892 = vst [vmem:[%s830 + $0x1d0] sm:$0xff] %v891
                %v893 = vld [vmem:[%s829 + $0xf8] sm:$0xff]
                %894 = vst [vmem:[%s830 + $0x1d8] sm:$0xff] %v893
                %v895 = vld [vmem:[%s829 + $0x100] sm:$0xff]
                %896 = vst [vmem:[%s830 + $0x200] sm:$0xff] %v895
                %v897 = vld [vmem:[%s829 + $0x108] sm:$0xff]
                %898 = vst [vmem:[%s830 + $0x208] sm:$0xff] %v897
                %v899 = vld [vmem:[%s829 + $0x110] sm:$0xff]
                %900 = vst [vmem:[%s830 + $0x210] sm:$0xff] %v899
                %v901 = vld [vmem:[%s829 + $0x118] sm:$0xff]
                %902 = vst [vmem:[%s830 + $0x218] sm:$0xff] %v901
                %v903 = vld [vmem:[%s829 + $0x120] sm:$0xff]
                %904 = vst [vmem:[%s830 + $0x240] sm:$0xff] %v903
                %v905 = vld [vmem:[%s829 + $0x128] sm:$0xff]
                %906 = vst [vmem:[%s830 + $0x248] sm:$0xff] %v905
                %v907 = vld [vmem:[%s829 + $0x130] sm:$0xff]
                %908 = vst [vmem:[%s830 + $0x250] sm:$0xff] %v907
                %v909 = vld [vmem:[%s829 + $0x138] sm:$0xff]
                %910 = vst [vmem:[%s830 + $0x258] sm:$0xff] %v909
                %v911 = vld [vmem:[%s829 + $0x140] sm:$0xff]
                %912 = vst [vmem:[%s830 + $0x280] sm:$0xff] %v911
                %v913 = vld [vmem:[%s829 + $0x148] sm:$0xff]
                %914 = vst [vmem:[%s830 + $0x288] sm:$0xff] %v913
                %v915 = vld [vmem:[%s829 + $0x150] sm:$0xff]
                %916 = vst [vmem:[%s830 + $0x290] sm:$0xff] %v915
                %v917 = vld [vmem:[%s829 + $0x158] sm:$0xff]
                %918 = vst [vmem:[%s830 + $0x298] sm:$0xff] %v917
                %v919 = vld [vmem:[%s829 + $0x160] sm:$0xff]
                %920 = vst [vmem:[%s830 + $0x2c0] sm:$0xff] %v919
                %v921 = vld [vmem:[%s829 + $0x168] sm:$0xff]
                %922 = vst [vmem:[%s830 + $0x2c8] sm:$0xff] %v921
                %v923 = vld [vmem:[%s829 + $0x170] sm:$0xff]
                %924 = vst [vmem:[%s830 + $0x2d0] sm:$0xff] %v923
                %v925 = vld [vmem:[%s829 + $0x178] sm:$0xff]
                %926 = vst [vmem:[%s830 + $0x2d8] sm:$0xff] %v925
                %v927 = vld [vmem:[%s829 + $0x180] sm:$0xff]
                %928 = vst [vmem:[%s830 + $0x300] sm:$0xff] %v927
                %v929 = vld [vmem:[%s829 + $0x188] sm:$0xff]
                %930 = vst [vmem:[%s830 + $0x308] sm:$0xff] %v929
                %v931 = vld [vmem:[%s829 + $0x190] sm:$0xff]
                %932 = vst [vmem:[%s830 + $0x310] sm:$0xff] %v931
                %v933 = vld [vmem:[%s829 + $0x198] sm:$0xff]
                %934 = vst [vmem:[%s830 + $0x318] sm:$0xff] %v933
                %v935 = vld [vmem:[%s829 + $0x1a0] sm:$0xff]
                %936 = vst [vmem:[%s830 + $0x340] sm:$0xff] %v935
                %v937 = vld [vmem:[%s829 + $0x1a8] sm:$0xff]
                %938 = vst [vmem:[%s830 + $0x348] sm:$0xff] %v937
                %v939 = vld [vmem:[%s829 + $0x1b0] sm:$0xff]
                %940 = vst [vmem:[%s830 + $0x350] sm:$0xff] %v939
                %v941 = vld [vmem:[%s829 + $0x1b8] sm:$0xff]
                %942 = vst [vmem:[%s830 + $0x358] sm:$0xff] %v941
                %v943 = vld [vmem:[%s829 + $0x1c0] sm:$0xff]
                %944 = vst [vmem:[%s830 + $0x380] sm:$0xff] %v943
                %v945 = vld [vmem:[%s829 + $0x1c8] sm:$0xff]
                %946 = vst [vmem:[%s830 + $0x388] sm:$0xff] %v945
                %v947 = vld [vmem:[%s829 + $0x1d0] sm:$0xff]
                %948 = vst [vmem:[%s830 + $0x390] sm:$0xff] %v947
                %v949 = vld [vmem:[%s829 + $0x1d8] sm:$0xff]
                %950 = vst [vmem:[%s830 + $0x398] sm:$0xff] %v949
                %v951 = vld [vmem:[%s829 + $0x1e0] sm:$0xff]
                %952 = vst [vmem:[%s830 + $0x3c0] sm:$0xff] %v951
                %v953 = vld [vmem:[%s829 + $0x1e8] sm:$0xff]
                %954 = vst [vmem:[%s830 + $0x3c8] sm:$0xff] %v953
                %v955 = vld [vmem:[%s829 + $0x1f0] sm:$0xff]
                %956 = vst [vmem:[%s830 + $0x3d0] sm:$0xff] %v955
                %v957 = vld [vmem:[%s829 + $0x1f8] sm:$0xff]
                %958 = vst [vmem:[%s830 + $0x3d8] sm:$0xff] %v957
              $region68: #{generator_b_forward.8} parent=62 // loop_footer
                %s828 = sadd.s32 1, %s824
              $region69: #{generator_b_forward.8} parent=62 // loop_footer_branch
                %823 = sbr.rel target = $region65
              $region70: #{generator_b_forward.8} parent=62 // loop_exit
                _
            $region63: #{generator_b_forward.8} parent=58 // pred_fallthru
              _
            // Predicated region
            $region71: #{generator_b_forward.8} parent=58 // pred_check
              _
            $region72: #{generator_b_forward.8} parent=58 // pred_check_branch
              %960 = sbr.rel target = $region74
            $region73: #{generator_b_forward.8} parent=58 // pred_region
              _
            $region74: #{generator_b_forward.8} parent=58 // pred_fallthru
              _
          $region59: #{generator_b_forward.8} parent=54 // pred_fallthru
            _
          %961 = vnop
        $region55: #{generator_b_forward.8} parent=46 // pred_fallthru
          _
      $region47: #{generator_b_forward.8} parent=5 // pred_fallthru
        _
      %p962 = scmp.le.s32.totalorder 2, %s8
      // Predicated region
      $region75: #{generator_b_forward.8} parent=5 // pred_check
        %p963 = pneg %p962
      $region76: #{generator_b_forward.8} parent=5 // pred_check_branch
        %965 = sbr.rel (%p963) target = $region78
      $region77: #{generator_b_forward.8} parent=5 // pred_region
        %s966 = ssub.s32 %s8, 2
        // Predicated region
        $region79: #{generator_b_forward.8} parent=77 // pred_check
          %p967 = pneg %p103
        $region80: #{generator_b_forward.8} parent=77 // pred_check_branch
          %969 = sbr.rel (%p967) target = $region82
        $region81: #{generator_b_forward.8} parent=77 // pred_region
          %s970 = sand.u32 %s88, 1
          %s971 = sand.u32 %s88, 1
          %s972 = smul.addr %s971, 512
          %s973 = scalar_lea.vmem [#allocation3], %s972
        $region82: #{generator_b_forward.8} parent=77 // pred_fallthru
          _
      $region78: #{generator_b_forward.8} parent=5 // pred_fallthru
        _
    $region6: #{generator_b_forward.8} parent=1 // loop_footer
      %s12 = sadd.s32 1, %s8
    $region7: #{generator_b_forward.8} parent=1 // loop_footer_branch
      %7 = sbr.rel target = $region3
    $region8: #{generator_b_forward.8} parent=1 // loop_exit
      _

// kernel: generator_b_forward.9
$region0: #{generator_b_forward.9}
  #allocation0 [shape = 'u32[]', space=smem, size = 0x4, offset = 0x4, fixed_abs, tag = 'smem constant byte address 0x4 - core index']
  #allocation1 [shape = 'u32[144,128]{1,0:T(1,128)}', space=vmem, size = 0x12000, scoped, tag = 'internal scratch']
  %s0 = inlined_call_operand.vmem [shape: bf16[512,64], index: 0, kind: input, shape index: {}]
  %s1 = inlined_call_operand.vmem [shape: bf16[64,128], index: 1, kind: input, shape index: {}]
  %s2 = inlined_call_operand.vmem [shape: f32[512,128], index: 2, kind: output, shape index: {}]
  %s3 = sld [smem:[#allocation0]]
  $region41: #{generator_b_forward.9} parent=0
    _
  %s5 = ssub.s32 1, %s3
  %s6 = scalar_select 0, %s5, %s3
  loop: start=0, step=1, limit=4
  $region2: #{generator_b_forward.9} parent=0 // loop_pre_header
    _
  $region3: #{generator_b_forward.9} parent=0 // loop_header
    %s8 = sphi 0, %s12
    %p9 = scmp.ge.s32.totalorder %s8, 4
    %s15 = sphi 0, %s27
    %s16 = sphi 0, %s23
    %s17 = sphi 0, %s15
    %s18 = sphi 0, %s16
    %s19 = sphi 0, %s17
    %s20 = sphi 0, %s18
    %s30 = sphi 0, %s32
    %s33 = sphi 0, %s30
    %s34 = sphi 0, %s33
    %s50 = sphi 0, %s34
    %s56 = sphi 0, %s58
    %s59 = sphi 0, %s56
    %s60 = sphi 0, %s59
    %s76 = sphi 0, %s60
    %s84 = sphi 0, %s86
    %s87 = sphi 0, %s84
    %s88 = sphi 0, %s87
    %s104 = sphi 0, %s88
  $region4: #{generator_b_forward.9} parent=0 // loop_header_branch
    %11 = sbr.rel (%p9) target = $region8
  $region5: #{generator_b_forward.9} parent=0 // loop_body
    %s13 = ssub.s32 %s8, 1
    %s14 = ssub.s32 %s8, 2
    %s21 = sadd.s32 1, %s16
    %p22 = scmp.ge.s32.totalorder %s21, 1
    %s23 = scalar_select %p22, 0, %s21
    %s24 = sadd.s32 1, %s15
    %s25 = scalar_select %p22, %s24, %s15
    %p26 = scmp.ge.s32.totalorder %s25, 2
    %s27 = scalar_select %p26, 0, %s25
    %s28 = ssub.s32 %s15, %s27
    %p29 = scmp.eq.s32.totalorder %s28, 0
    %s31 = sadd.s32 %s30, 1
    %s32 = scalar_select %p29, %s30, %s31
    %p35 = pneg %p29
    %p36 = scmp.eq.s32.totalorder %s8, 1
    %p37 = por %p35, %p36
    %p38 = scmp.ne.s32.totalorder %s30, %s33
    %p39 = scmp.eq.s32.totalorder %s8, 0
    %p40 = por %p38, %p39
    %p41 = scmp.ne.s32.totalorder %s30, %s33
    %p42 = scmp.eq.s32.totalorder %s13, 1
    %p43 = por %p41, %p42
    %p44 = scmp.ne.s32.totalorder %s33, %s34
    %p45 = scmp.eq.s32.totalorder %s13, 0
    %p46 = por %p44, %p45
    %p47 = scmp.ne.s32.totalorder %s33, %s34
    %p48 = scmp.eq.s32.totalorder %s14, 1
    %p49 = por %p47, %p48
    %p51 = scmp.ne.s32.totalorder %s34, %s50
    %p52 = scmp.eq.s32.totalorder %s14, 0
    %p53 = por %p51, %p52
    %s54 = ssub.s32 %s16, %s23
    %p55 = scmp.eq.s32.totalorder %s54, 0
    %s57 = sadd.s32 %s56, 1
    %s58 = scalar_select %p55, %s56, %s57
    %p61 = pneg %p55
    %p62 = scmp.eq.s32.totalorder %s8, 1
    %p63 = por %p61, %p62
    %p64 = scmp.ne.s32.totalorder %s56, %s59
    %p65 = scmp.eq.s32.totalorder %s8, 0
    %p66 = por %p64, %p65
    %p67 = scmp.ne.s32.totalorder %s56, %s59
    %p68 = scmp.eq.s32.totalorder %s13, 1
    %p69 = por %p67, %p68
    %p70 = scmp.ne.s32.totalorder %s59, %s60
    %p71 = scmp.eq.s32.totalorder %s13, 0
    %p72 = por %p70, %p71
    %p73 = scmp.ne.s32.totalorder %s59, %s60
    %p74 = scmp.eq.s32.totalorder %s14, 1
    %p75 = por %p73, %p74
    %p77 = scmp.ne.s32.totalorder %s60, %s76
    %p78 = scmp.eq.s32.totalorder %s14, 0
    %p79 = por %p77, %p78
    %s80 = ssub.s32 %s15, %s27
    %s81 = ssub.s32 %s16, %s23
    %s82 = sor.u32 %s80, %s81
    %p83 = scmp.eq.s32.totalorder %s82, 0
    %s85 = sadd.s32 %s84, 1
    %s86 = scalar_select %p83, %s84, %s85
    %p89 = pneg %p83
    %p90 = scmp.eq.s32.totalorder %s8, 1
    %p91 = por %p89, %p90
    %p92 = scmp.ne.s32.totalorder %s84, %s87
    %p93 = scmp.eq.s32.totalorder %s8, 0
    %p94 = por %p92, %p93
    %p95 = scmp.ne.s32.totalorder %s84, %s87
    %p96 = scmp.eq.s32.totalorder %s13, 1
    %p97 = por %p95, %p96
    %p98 = scmp.ne.s32.totalorder %s87, %s88
    %p99 = scmp.eq.s32.totalorder %s13, 0
    %p100 = por %p98, %p99
    %p101 = scmp.ne.s32.totalorder %s87, %s88
    %p102 = scmp.eq.s32.totalorder %s14, 1
    %p103 = por %p101, %p102
    %p105 = scmp.ne.s32.totalorder %s88, %s104
    %p106 = scmp.eq.s32.totalorder %s14, 0
    %p107 = por %p105, %p106
    %p108 = scmp.le.s32.totalorder 1, %s8
    %p109 = scmp.lt.s32.totalorder %s8, 3
    %p110 = pnand %p108, %p109
    %p111 = pneg %p110
    // Predicated region
    $region9: #{generator_b_forward.9} parent=5 // pred_check
      _
    $region10: #{generator_b_forward.9} parent=5 // pred_check_branch
      %113 = sbr.rel (%p110) target = $region12
    $region11: #{generator_b_forward.9} parent=5 // pred_region
      %s114 = ssub.s32 %s8, 1
      // Predicated region
      $region13: #{generator_b_forward.9} parent=11 // pred_check
        %p115 = pneg %p72
      $region14: #{generator_b_forward.9} parent=11 // pred_check_branch
        %117 = sbr.rel (%p115) target = $region16
      $region15: #{generator_b_forward.9} parent=11 // pred_region
        %p118 = scmp.lt.s32.totalorder %s18, 0
        %s119 = scalar_select %p118, %s18, 0
        %s120 = smul.addr %s119, 4
        %s121 = scalar_lea.vmem %s1, %s120
      $region16: #{generator_b_forward.9} parent=11 // pred_fallthru
        _
    $region12: #{generator_b_forward.9} parent=5 // pred_fallthru
      _
    %p122 = scmp.lt.s32.totalorder %s8, 2
    // Predicated region
    $region17: #{generator_b_forward.9} parent=5 // pred_check
      %p123 = pneg %p122
    $region18: #{generator_b_forward.9} parent=5 // pred_check_branch
      %125 = sbr.rel (%p123) target = $region20
    $region19: #{generator_b_forward.9} parent=5 // pred_region
      // Predicated region
      $region21: #{generator_b_forward.9} parent=19 // pred_check
        %p126 = pneg %p40
      $region22: #{generator_b_forward.9} parent=19 // pred_check_branch
        %128 = sbr.rel (%p126) target = $region24
      $region23: #{generator_b_forward.9} parent=19 // pred_region
        %s129 = smul.u32 32, %s15
        %p130 = scmp.lt.s32.totalorder %s129, 63
        %s131 = scalar_select %p130, %s129, 63
        %s132 = smul.addr %s131, 4
        %s133 = scalar_lea.vmem %s0, %s132
        %s134 = smul.u32 32, %s15
      $region24: #{generator_b_forward.9} parent=19 // pred_fallthru
        _
    $region20: #{generator_b_forward.9} parent=5 // pred_fallthru
      _
    %p135 = scmp.le.s32.totalorder 1, %s8
    %p136 = scmp.lt.s32.totalorder %s8, 3
    %p137 = pnand %p135, %p136
    %p138 = pneg %p137
    // Predicated region
    $region25: #{generator_b_forward.9} parent=5 // pred_check
      _
    $region26: #{generator_b_forward.9} parent=5 // pred_check_branch
      %140 = sbr.rel (%p137) target = $region28
    $region27: #{generator_b_forward.9} parent=5 // pred_region
      %s141 = ssub.s32 %s8, 1
      %s142 = smul.u32 32, %s17
      %p143 = scmp.lt.s32.totalorder %s142, 63
      %s144 = scalar_select %p143, %s142, 63
      %s145 = smul.addr %s144, 4
      %s146 = scalar_lea.vmem %s0, %s145
      %p147 = pneg %p46
      %p148 = pneg %p43
      %p149 = scmp.lt.s32.totalorder %s18, 0
      %s150 = scalar_select %p149, %s18, 0
      %s151 = smul.addr %s150, 4
      %s152 = scalar_lea.vmem %s1, %s151
      %p153 = pneg %p72
      %p154 = pneg %p69
      %p155 = pneg %p100
      %p156 = pneg %p97
      %s157 = smul.u32 32, %s17
      %p158 = scmp.lt.s32.totalorder %s157, 63
      %s159 = scalar_select %p158, %s157, 63
      %p160 = scmp.lt.s32.totalorder %s18, 0
      %s161 = scalar_select %p160, %s18, 0
      %s162 = sadd.s32 %s161, %s159
      %s163 = smul.addr %s162, 8
      %s164 = scalar_lea.vmem %s2, %s163
      %s165 = smul.u32 32, %s17
      %p166 = scmp.lt.s32.totalorder %s165, 63
      %s167 = scalar_select %p166, %s165, 63
      %s168 = smul.addr %s167, 4
      %s169 = scalar_lea.vmem %s0, %s168
      %s170 = smul.u32 32, %s17
      %p171 = scmp.lt.s32.totalorder %s18, 0
      %s172 = scalar_select %p171, %s18, 0
      %s173 = smul.addr %s172, 4
      %s174 = scalar_lea.vmem %s1, %s173
      %s175 = smul.u32 32, %s17
      %p176 = scmp.lt.s32.totalorder %s175, 63
      %s177 = scalar_select %p176, %s175, 63
      %p178 = scmp.lt.s32.totalorder %s18, 0
      %s179 = scalar_select %p178, %s18, 0
      %s180 = sadd.s32 %s179, %s177
      %s181 = smul.addr %s180, 8
      %s182 = scalar_lea.vmem %s2, %s181
      %s183 = smul.u32 32, %s17
      %v185 = vld [vmem:[%s169] sm:$0xf]
      %v186 = vld [vmem:[%s169 + $0x4] sm:$0xf]
      %v187 = vld [vmem:[%s169 + $0x8] sm:$0xf]
      %v188 = vld [vmem:[%s169 + $0xc] sm:$0xf]
      %v189 = vld [vmem:[%s169 + $0x10] sm:$0xf]
      %v190 = vld [vmem:[%s169 + $0x14] sm:$0xf]
      %v191 = vld [vmem:[%s169 + $0x18] sm:$0xf]
      %v192 = vld [vmem:[%s169 + $0x1c] sm:$0xf]
      %v193 = vld [vmem:[%s169 + $0x20] sm:$0xf]
      %v194 = vld [vmem:[%s169 + $0x24] sm:$0xf]
      %v195 = vld [vmem:[%s169 + $0x28] sm:$0xf]
      %v196 = vld [vmem:[%s169 + $0x2c] sm:$0xf]
      %v197 = vld [vmem:[%s169 + $0x30] sm:$0xf]
      %v198 = vld [vmem:[%s169 + $0x34] sm:$0xf]
      %v199 = vld [vmem:[%s169 + $0x38] sm:$0xf]
      %v200 = vld [vmem:[%s169 + $0x3c] sm:$0xf]
      %v201 = vld [vmem:[%s169 + $0x40] sm:$0xf]
      %v202 = vld [vmem:[%s169 + $0x44] sm:$0xf]
      %v203 = vld [vmem:[%s169 + $0x48] sm:$0xf]
      %v204 = vld [vmem:[%s169 + $0x4c] sm:$0xf]
      %v205 = vld [vmem:[%s169 + $0x50] sm:$0xf]
      %v206 = vld [vmem:[%s169 + $0x54] sm:$0xf]
      %v207 = vld [vmem:[%s169 + $0x58] sm:$0xf]
      %v208 = vld [vmem:[%s169 + $0x5c] sm:$0xf]
      %v209 = vld [vmem:[%s169 + $0x60] sm:$0xf]
      %v210 = vld [vmem:[%s169 + $0x64] sm:$0xf]
      %v211 = vld [vmem:[%s169 + $0x68] sm:$0xf]
      %v212 = vld [vmem:[%s169 + $0x6c] sm:$0xf]
      %v213 = vld [vmem:[%s169 + $0x70] sm:$0xf]
      %v214 = vld [vmem:[%s169 + $0x74] sm:$0xf]
      %v215 = vld [vmem:[%s169 + $0x78] sm:$0xf]
      %v216 = vld [vmem:[%s169 + $0x7c] sm:$0xf]
      %v217 = vld [vmem:[%s174] sm:$0xf]
      %v218 = vld [vmem:[%s174 + $0x4] sm:$0xf]
      %v219 = vld [vmem:[%s174 + $0x8] sm:$0xf]
      %v220 = vld [vmem:[%s174 + $0xc] sm:$0xf]
      %v221 = vld [vmem:[%s174 + $0x10] sm:$0xf]
      %v222 = vld [vmem:[%s174 + $0x14] sm:$0xf]
      %v223 = vld [vmem:[%s174 + $0x18] sm:$0xf]
      %v224 = vld [vmem:[%s174 + $0x1c] sm:$0xf]
      %v257 = vunpack.c.l.b16 %v185
      %v258 = vunpack.c.l.b16 %v186
      %v259 = vunpack.c.l.b16 %v187
      %v260 = vunpack.c.l.b16 %v188
      %v261 = vunpack.c.l.b16 %v189
      %v262 = vunpack.c.l.b16 %v190
      %v263 = vunpack.c.l.b16 %v191
      %v264 = vunpack.c.l.b16 %v192
      %v265 = vunpack.c.l.b16 %v193
      %v266 = vunpack.c.l.b16 %v194
      %v267 = vunpack.c.l.b16 %v195
      %v268 = vunpack.c.l.b16 %v196
      %v269 = vunpack.c.l.b16 %v197
      %v270 = vunpack.c.l.b16 %v198
      %v271 = vunpack.c.l.b16 %v199
      %v272 = vunpack.c.l.b16 %v200
      %v273 = vunpack.c.l.b16 %v201
      %v274 = vunpack.c.l.b16 %v202
      %v275 = vunpack.c.l.b16 %v203
      %v276 = vunpack.c.l.b16 %v204
      %v277 = vunpack.c.l.b16 %v205
      %v278 = vunpack.c.l.b16 %v206
      %v279 = vunpack.c.l.b16 %v207
      %v280 = vunpack.c.l.b16 %v208
      %v281 = vunpack.c.l.b16 %v209
      %v282 = vunpack.c.l.b16 %v210
      %v283 = vunpack.c.l.b16 %v211
      %v284 = vunpack.c.l.b16 %v212
      %v285 = vunpack.c.l.b16 %v213
      %v286 = vunpack.c.l.b16 %v214
      %v287 = vunpack.c.l.b16 %v215
      %v288 = vunpack.c.l.b16 %v216
      %v289 = vpack.c.b16 %v258, %v257
      %v290 = vpack.c.b16 %v260, %v259
      %v291 = vpack.c.b16 %v262, %v261
      %v292 = vpack.c.b16 %v264, %v263
      %v293 = vpack.c.b16 %v266, %v265
      %v294 = vpack.c.b16 %v268, %v267
      %v295 = vpack.c.b16 %v270, %v269
      %v296 = vpack.c.b16 %v272, %v271
      %v297 = vpack.c.b16 %v274, %v273
      %v298 = vpack.c.b16 %v276, %v275
      %v299 = vpack.c.b16 %v278, %v277
      %v300 = vpack.c.b16 %v280, %v279
      %v301 = vpack.c.b16 %v282, %v281
      %v302 = vpack.c.b16 %v284, %v283
      %v303 = vpack.c.b16 %v286, %v285
      %v304 = vpack.c.b16 %v288, %v287
      %v313 = vunpack.c.l.b16 %v217
      %v314 = vunpack.c.l.b16 %v218
      %v315 = vunpack.c.l.b16 %v219
      %v316 = vunpack.c.l.b16 %v220
      %v317 = vunpack.c.l.b16 %v221
      %v318 = vunpack.c.l.b16 %v222
      %v319 = vunpack.c.l.b16 %v223
      %v320 = vunpack.c.l.b16 %v224
      %v321 = vpack.c.b16 %v314, %v313
      %v322 = vpack.c.b16 %v316, %v315
      %v323 = vpack.c.b16 %v318, %v317
      %v324 = vpack.c.b16 %v320, %v319
      %vm329 = vcmask 523264
      %v331 = vsel %vm329, %v289, 0
      %v334 = vsel %vm329, %v290, 0
      %v337 = vsel %vm329, %v291, 0
      %v340 = vsel %vm329, %v292, 0
      %v343 = vsel %vm329, %v293, 0
      %v346 = vsel %vm329, %v294, 0
      %v349 = vsel %vm329, %v295, 0
      %v352 = vsel %vm329, %v296, 0
      %v355 = vsel %vm329, %v297, 0
      %v358 = vsel %vm329, %v298, 0
      %v361 = vsel %vm329, %v299, 0
      %v364 = vsel %vm329, %v300, 0
      %v367 = vsel %vm329, %v301, 0
      %v370 = vsel %vm329, %v302, 0
      %v373 = vsel %vm329, %v303, 0
      %v376 = vsel %vm329, %v304, 0
      %378 = vmatprep.subr.bf16.mxu0 0
      %379 = vmatpush1.bf16.msra.mxu0 %v321
      %380 = vmatprep.subr.bf16.mxu0 0
      %381 = vmatpush1.bf16.msra.mxu0 %v322
      %382 = vmatprep.subr.bf16.mxu0 0
      %383 = vmatpush1.bf16.msra.mxu0 %v323
      %384 = vmatprep.subr.bf16.mxu0 0
      %385 = vmatpush1.bf16.msra.mxu0 %v324
      %386 = vmatprep.subr.bf16.mxu0 0
      %387 = vmatpush1.bf16.msra.mxu0 0
      %388 = vmatprep.subr.bf16.mxu0 0
      %389 = vmatpush1.bf16.msra.mxu0 0
      %390 = vmatprep.subr.bf16.mxu0 0
      %391 = vmatpush1.bf16.msra.mxu0 0
      %392 = vmatprep.subr.bf16.mxu0 0
      %393 = vmatpush1.bf16.msra.mxu0 0
      %394 = vmatprep.subr.bf16.mxu0 0
      %395 = vmatpush1.bf16.msra.mxu0 0
      %396 = vmatprep.subr.bf16.mxu0 0
      %397 = vmatpush1.bf16.msra.mxu0 0
      %398 = vmatprep.subr.bf16.mxu0 0
      %399 = vmatpush1.bf16.msra.mxu0 0
      %400 = vmatprep.subr.bf16.mxu0 0
      %401 = vmatpush1.bf16.msra.mxu0 0
      %402 = vmatprep.subr.bf16.mxu0 0
      %403 = vmatpush1.bf16.msra.mxu0 0
      %404 = vmatprep.subr.bf16.mxu0 0
      %405 = vmatpush1.bf16.msra.mxu0 0
      %406 = vmatprep.subr.bf16.mxu0 0
      %407 = vmatpush1.bf16.msra.mxu0 0
      %408 = vmatprep.subr.bf16.mxu0 0
      %409 = vmatpush1.bf16.msra.mxu0 0
      %410 = vmatprep.mubr.bf16.mxu0 0
      %411 = vmatmul.mubr.bf16.gmra.mrb[0].mxu0 %v331
      %v412 = vpop.f32.mrb[0].mxu0
      %v413 = vadd.f32 0.0, %v412
      %v414 = vpop.f32.mrb[0].mxu0
      %v415 = vpop.f32.mrb[0].mxu0
      %v416 = vadd.f32 0.0, %v415
      %v417 = vpop.f32.mrb[0].mxu0
      %418 = vmatprep.mubr.bf16.mxu0 0
      %419 = vmatmul.mubr.bf16.gmra.mrb[0].mxu0 %v334
      %v420 = vpop.f32.mrb[0].mxu0
      %v421 = vadd.f32 0.0, %v420
      %v422 = vpop.f32.mrb[0].mxu0
      %v423 = vpop.f32.mrb[0].mxu0
      %v424 = vadd.f32 0.0, %v423
      %v425 = vpop.f32.mrb[0].mxu0
      %426 = vmatprep.mubr.bf16.mxu0 0
      %427 = vmatmul.mubr.bf16.gmra.mrb[0].mxu0 %v337
      %v428 = vpop.f32.mrb[0].mxu0
      %v429 = vadd.f32 0.0, %v428
      %v430 = vpop.f32.mrb[0].mxu0
      %v431 = vpop.f32.mrb[0].mxu0
      %v432 = vadd.f32 0.0, %v431
      %v433 = vpop.f32.mrb[0].mxu0
      %434 = vmatprep.mubr.bf16.mxu0 0
      %435 = vmatmul.mubr.bf16.gmra.mrb[0].mxu0 %v340
      %v436 = vpop.f32.mrb[0].mxu0
      %v437 = vadd.f32 0.0, %v436
      %v438 = vpop.f32.mrb[0].mxu0
      %v439 = vpop.f32.mrb[0].mxu0
      %v440 = vadd.f32 0.0, %v439
      %v441 = vpop.f32.mrb[0].mxu0
      %442 = vmatprep.mubr.bf16.mxu0 0
      %443 = vmatmul.mubr.bf16.gmra.mrb[0].mxu0 %v343
      %v444 = vpop.f32.mrb[0].mxu0
      %v445 = vadd.f32 0.0, %v444
      %v446 = vpop.f32.mrb[0].mxu0
      %v447 = vpop.f32.mrb[0].mxu0
      %v448 = vadd.f32 0.0, %v447
      %v449 = vpop.f32.mrb[0].mxu0
      %450 = vmatprep.mubr.bf16.mxu0 0
      %451 = vmatmul.mubr.bf16.gmra.mrb[0].mxu0 %v346
      %v452 = vpop.f32.mrb[0].mxu0
      %v453 = vadd.f32 0.0, %v452
      %v454 = vpop.f32.mrb[0].mxu0
      %v455 = vpop.f32.mrb[0].mxu0
      %v456 = vadd.f32 0.0, %v455
      %v457 = vpop.f32.mrb[0].mxu0
      %458 = vmatprep.mubr.bf16.mxu0 0
      %459 = vmatmul.mubr.bf16.gmra.mrb[0].mxu0 %v349
      %v460 = vpop.f32.mrb[0].mxu0
      %v461 = vadd.f32 0.0, %v460
      %v462 = vpop.f32.mrb[0].mxu0
      %v463 = vpop.f32.mrb[0].mxu0
      %v464 = vadd.f32 0.0, %v463
      %v465 = vpop.f32.mrb[0].mxu0
      %466 = vmatprep.mubr.bf16.mxu0 0
      %467 = vmatmul.mubr.bf16.gmra.mrb[0].mxu0 %v352
      %v468 = vpop.f32.mrb[0].mxu0
      %v469 = vadd.f32 0.0, %v468
      %v470 = vpop.f32.mrb[0].mxu0
      %v471 = vpop.f32.mrb[0].mxu0
      %v472 = vadd.f32 0.0, %v471
      %v473 = vpop.f32.mrb[0].mxu0
      %474 = vmatprep.mubr.bf16.mxu0 0
      %475 = vmatmul.mubr.bf16.gmra.mrb[0].mxu0 %v355
      %v476 = vpop.f32.mrb[0].mxu0
      %v477 = vadd.f32 0.0, %v476
      %v478 = vpop.f32.mrb[0].mxu0
      %v479 = vpop.f32.mrb[0].mxu0
      %v480 = vadd.f32 0.0, %v479
      %v481 = vpop.f32.mrb[0].mxu0
      %482 = vmatprep.mubr.bf16.mxu0 0
      %483 = vmatmul.mubr.bf16.gmra.mrb[0].mxu0 %v358
      %v484 = vpop.f32.mrb[0].mxu0
      %v485 = vadd.f32 0.0, %v484
      %v486 = vpop.f32.mrb[0].mxu0
      %v487 = vpop.f32.mrb[0].mxu0
      %v488 = vadd.f32 0.0, %v487
      %v489 = vpop.f32.mrb[0].mxu0
      %490 = vmatprep.mubr.bf16.mxu0 0
      %491 = vmatmul.mubr.bf16.gmra.mrb[0].mxu0 %v361
      %v492 = vpop.f32.mrb[0].mxu0
      %v493 = vadd.f32 0.0, %v492
      %v494 = vpop.f32.mrb[0].mxu0
      %v495 = vpop.f32.mrb[0].mxu0
      %v496 = vadd.f32 0.0, %v495
      %v497 = vpop.f32.mrb[0].mxu0
      %498 = vmatprep.mubr.bf16.mxu0 0
      %499 = vmatmul.mubr.bf16.gmra.mrb[0].mxu0 %v364
      %v500 = vpop.f32.mrb[0].mxu0
      %v501 = vadd.f32 0.0, %v500
      %v502 = vpop.f32.mrb[0].mxu0
      %v503 = vpop.f32.mrb[0].mxu0
      %v504 = vadd.f32 0.0, %v503
      %v505 = vpop.f32.mrb[0].mxu0
      %506 = vmatprep.mubr.bf16.mxu0 0
      %507 = vmatmul.mubr.bf16.gmra.mrb[0].mxu0 %v367
      %v508 = vpop.f32.mrb[0].mxu0
      %v509 = vadd.f32 0.0, %v508
      %v510 = vpop.f32.mrb[0].mxu0
      %v511 = vpop.f32.mrb[0].mxu0
      %v512 = vadd.f32 0.0, %v511
      %v513 = vpop.f32.mrb[0].mxu0
      %514 = vmatprep.mubr.bf16.mxu0 0
      %515 = vmatmul.mubr.bf16.gmra.mrb[0].mxu0 %v370
      %v516 = vpop.f32.mrb[0].mxu0
      %v517 = vadd.f32 0.0, %v516
      %v518 = vpop.f32.mrb[0].mxu0
      %v519 = vpop.f32.mrb[0].mxu0
      %v520 = vadd.f32 0.0, %v519
      %v521 = vpop.f32.mrb[0].mxu0
      %522 = vmatprep.mubr.bf16.mxu0 0
      %523 = vmatmul.mubr.bf16.gmra.mrb[0].mxu0 %v373
      %v524 = vpop.f32.mrb[0].mxu0
      %v525 = vadd.f32 0.0, %v524
      %v526 = vpop.f32.mrb[0].mxu0
      %v527 = vpop.f32.mrb[0].mxu0
      %v528 = vadd.f32 0.0, %v527
      %v529 = vpop.f32.mrb[0].mxu0
      %530 = vmatprep.mubr.bf16.mxu0 0
      %531 = vmatmul.mubr.bf16.gmra.mrb[0].mxu0 %v376
      %v532 = vpop.f32.mrb[0].mxu0
      %v533 = vadd.f32 0.0, %v532
      %v534 = vpop.f32.mrb[0].mxu0
      %v535 = vpop.f32.mrb[0].mxu0
      %v536 = vadd.f32 0.0, %v535
      %v537 = vpop.f32.mrb[0].mxu0
      %538 = vdwg.mxu0
      %539 = vst [vmem:[%s182] sm:$0xff] %v413
      %540 = vst [vmem:[%s182 + $0x8] sm:$0xff] %v416
      %541 = vst [vmem:[%s182 + $0x10] sm:$0xff] %v421
      %542 = vst [vmem:[%s182 + $0x18] sm:$0xff] %v424
      %543 = vst [vmem:[%s182 + $0x20] sm:$0xff] %v429
      %544 = vst [vmem:[%s182 + $0x28] sm:$0xff] %v432
      %545 = vst [vmem:[%s182 + $0x30] sm:$0xff] %v437
      %546 = vst [vmem:[%s182 + $0x38] sm:$0xff] %v440
      %547 = vst [vmem:[%s182 + $0x40] sm:$0xff] %v445
      %548 = vst [vmem:[%s182 + $0x48] sm:$0xff] %v448
      %549 = vst [vmem:[%s182 + $0x50] sm:$0xff] %v453
      %550 = vst [vmem:[%s182 + $0x58] sm:$0xff] %v456
      %551 = vst [vmem:[%s182 + $0x60] sm:$0xff] %v461
      %552 = vst [vmem:[%s182 + $0x68] sm:$0xff] %v464
      %553 = vst [vmem:[%s182 + $0x70] sm:$0xff] %v469
      %554 = vst [vmem:[%s182 + $0x78] sm:$0xff] %v472
      %555 = vst [vmem:[%s182 + $0x80] sm:$0xff] %v477
      %556 = vst [vmem:[%s182 + $0x88] sm:$0xff] %v480
      %557 = vst [vmem:[%s182 + $0x90] sm:$0xff] %v485
      %558 = vst [vmem:[%s182 + $0x98] sm:$0xff] %v488
      %559 = vst [vmem:[%s182 + $0xa0] sm:$0xff] %v493
      %560 = vst [vmem:[%s182 + $0xa8] sm:$0xff] %v496
      %561 = vst [vmem:[%s182 + $0xb0] sm:$0xff] %v501
      %562 = vst [vmem:[%s182 + $0xb8] sm:$0xff] %v504
      %563 = vst [vmem:[%s182 + $0xc0] sm:$0xff] %v509
      %564 = vst [vmem:[%s182 + $0xc8] sm:$0xff] %v512
      %565 = vst [vmem:[%s182 + $0xd0] sm:$0xff] %v517
      %566 = vst [vmem:[%s182 + $0xd8] sm:$0xff] %v520
      %567 = vst [vmem:[%s182 + $0xe0] sm:$0xff] %v525
      %568 = vst [vmem:[%s182 + $0xe8] sm:$0xff] %v528
      %569 = vst [vmem:[%s182 + $0xf0] sm:$0xff] %v533
      %570 = vst [vmem:[%s182 + $0xf8] sm:$0xff] %v536
      %s571 = smul.u32 32, %s17
      %p572 = scmp.lt.s32.totalorder %s571, 63
      %s573 = scalar_select %p572, %s571, 63
      %p574 = scmp.lt.s32.totalorder %s18, 0
      %s575 = scalar_select %p574, %s18, 0
      %s576 = sadd.s32 %s575, %s573
      %s577 = smul.addr %s576, 8
      %s578 = scalar_lea.vmem %s2, %s577
      // Predicated region
      $region29: #{generator_b_forward.9} parent=27 // pred_check
        %p579 = pneg %p97
      $region30: #{generator_b_forward.9} parent=27 // pred_check_branch
        %581 = sbr.rel (%p579) target = $region32
      $region31: #{generator_b_forward.9} parent=27 // pred_region
        %s582 = smul.u32 32, %s17
      $region32: #{generator_b_forward.9} parent=27 // pred_fallthru
        _
    $region28: #{generator_b_forward.9} parent=5 // pred_fallthru
      _
    %p583 = scmp.le.s32.totalorder 2, %s8
    // Predicated region
    $region33: #{generator_b_forward.9} parent=5 // pred_check
      %p584 = pneg %p583
    $region34: #{generator_b_forward.9} parent=5 // pred_check_branch
      %586 = sbr.rel (%p584) target = $region36
    $region35: #{generator_b_forward.9} parent=5 // pred_region
      %s587 = ssub.s32 %s8, 2
      // Predicated region
      $region37: #{generator_b_forward.9} parent=35 // pred_check
        %p588 = pneg %p103
      $region38: #{generator_b_forward.9} parent=35 // pred_check_branch
        %590 = sbr.rel (%p588) target = $region40
      $region39: #{generator_b_forward.9} parent=35 // pred_region
        %s591 = smul.u32 32, %s19
        %p592 = scmp.lt.s32.totalorder %s591, 63
        %s593 = scalar_select %p592, %s591, 63
        %p594 = scmp.lt.s32.totalorder %s20, 0
        %s595 = scalar_select %p594, %s20, 0
        %s596 = sadd.s32 %s595, %s593
        %s597 = smul.addr %s596, 8
        %s598 = scalar_lea.vmem %s2, %s597
      $region40: #{generator_b_forward.9} parent=35 // pred_fallthru
        _
    $region36: #{generator_b_forward.9} parent=5 // pred_fallthru
      _
  $region6: #{generator_b_forward.9} parent=0 // loop_footer
    %s12 = sadd.s32 1, %s8
  $region7: #{generator_b_forward.9} parent=0 // loop_footer_branch
    %7 = sbr.rel target = $region3
  $region8: #{generator_b_forward.9} parent=0 // loop_exit
    _

</llo_original>
